<compile_context>
chip_gen: v6e
topology: v6e:2x2x1
jax: 0.10.0
libtpu: 0.0.40
codegen_flags: <defaults>
</compile_context>

<pallas_src>
import functools

import jax
import jax.numpy as jnp
from jax.experimental import pallas as pl
from jax.experimental.pallas import tpu as pltpu


LANE = 128      # lane-tile width
C_PAD = 128     # every feature map is carried with 128 (zero-padded) channels


def _round_up(v, m):
    return ((v + m - 1) // m) * m


def _layout_consts(H, W):
    """Flattened padded-spatial layout: valid pixel (r, c) lives at row M0 + r*Wp + c;
    every other row (and the c >= W pad columns) is zero."""
    Wp = W + 2                               # one pad column each side
    M0 = _round_up(Wp + 1, 8)                # sublane-aligned start of the valid region
    L = H * Wp                               # slab rows produced / consumed per conv
    S = _round_up(M0 + Wp + 1 + L, 8)        # total rows (covers the largest halo read)
    # tap (dy, dx) reads rows [off, off+L) where off = M0 - (Wp+1) + dy*Wp + dx
    offs = tuple(M0 - Wp - 1 + dy * Wp + dx for dy in range(3) for dx in range(3))
    return Wp, M0, L, S, offs


def _col_mask(L, W, Wp):
    """(L, 1) f32 mask: 1.0 at valid columns (w < W), 0.0 at the horizontal pad junk."""
    return (jnp.arange(L) % Wp < W).astype(jnp.float32).reshape(L, 1)


# ----------------------------- Pallas kernels --------------------------------
def conv3x3_pad_kernel(x_ref, w_ref, b_ref, mask_ref, o_ref, acc_ref,
                       *, tap_offsets, L, M0):
    # x_ref: (S, Cin_p) f32 (whole padded image for this batch element)
    # w_ref: (9, Cin_p, Cout_p) bf16   b_ref: (1, Cout_p) f32   mask_ref: (L, 1) f32
    # o_ref: (S, Cout_p) f32           acc_ref: (L, Cout_p) f32 VMEM scratch
    acc_ref[...] = jnp.broadcast_to(b_ref[...], acc_ref.shape)      # bias folded into init
    for t, off in enumerate(tap_offsets):                           # 9 static halo taps
        slab = x_ref[pl.ds(off, L), :].astype(jnp.bfloat16)
        acc_ref[...] += jnp.dot(slab, w_ref[t],
                                preferred_element_type=jnp.float32)
    act = jnp.maximum(acc_ref[...], 0.0) * mask_ref[...]            # ReLU + zero pad cols
    o_ref[...] = jnp.zeros_like(o_ref)                              # zero borders / tail
    o_ref[pl.ds(M0, L), :] = act.astype(o_ref.dtype)                # aligned placement


def conv3x3_rpn_head_kernel(x_ref, w_ref, b_ref, hw_ref, hb_ref, o_ref, acc_ref,
                            *, tap_offsets, L):
    # Conv + ReLU, then the fused 1x1 (objectness | bbox) heads in the epilogue.
    acc_ref[...] = jnp.broadcast_to(b_ref[...], acc_ref.shape)
    for t, off in enumerate(tap_offsets):
        slab = x_ref[pl.ds(off, L), :].astype(jnp.bfloat16)
        acc_ref[...] += jnp.dot(slab, w_ref[t],
                                preferred_element_type=jnp.float32)
    act = jnp.maximum(acc_ref[...], 0.0).astype(jnp.bfloat16)       # rpn_feat stays in VMEM
    o_ref[...] = (jnp.dot(act, hw_ref[...], preferred_element_type=jnp.float32)
                  + hb_ref[...])


def box_head_kernel(x_ref, w6_ref, b6_ref, w7_ref, b7_ref, wp_ref, bp_ref, o_ref):
    # fc6 -> ReLU -> fc7 -> ReLU -> (cls_score | bbox_pred), all weights VMEM-resident.
    h = jnp.dot(x_ref[...], w6_ref[...], preferred_element_type=jnp.float32) + b6_ref[...]
    h = jnp.maximum(h, 0.0).astype(jnp.bfloat16)
    h = jnp.dot(h, w7_ref[...], preferred_element_type=jnp.float32) + b7_ref[...]
    h = jnp.maximum(h, 0.0).astype(jnp.bfloat16)
    o_ref[...] = (jnp.dot(h, wp_ref[...], preferred_element_type=jnp.float32)
                  + bp_ref[...])


# ----------------------------- kernel wrappers --------------------------------
def conv3x3_pallas(x_flat, conv, *, H, W):
    """3x3 / stride-1 / pad-1 conv + bias + ReLU; in/out in the padded-flat layout."""
    N, S, CIN = x_flat.shape
    Wp, M0, L, S2, offs = _layout_consts(H, W)
    assert S == S2 and conv["w"].shape[1] == CIN
    COUT = conv["w"].shape[2]
    mask = _col_mask(L, W, Wp)
    kernel = functools.partial(conv3x3_pad_kernel, tap_offsets=offs, L=L, M0=M0)
    return pl.pallas_call(
        kernel,
        out_shape=jax.ShapeDtypeStruct((N, S, COUT), jnp.float32),
        grid=(N,),
        in_specs=[
            pl.BlockSpec((None, S, CIN), lambda n: (n, 0, 0)),
            pl.BlockSpec((9, CIN, COUT), lambda n: (0, 0, 0)),
            pl.BlockSpec((1, COUT), lambda n: (0, 0)),
            pl.BlockSpec((L, 1), lambda n: (0, 0)),
        ],
        out_specs=pl.BlockSpec((None, S, COUT), lambda n: (n, 0, 0)),
        scratch_shapes=[pltpu.VMEM((L, COUT), jnp.float32)],
        compiler_params=pltpu.CompilerParams(
            dimension_semantics=("parallel",),
            vmem_limit_bytes=8 * 1024 * 1024,
        ),
    )(x_flat, conv["w"], conv["b"], mask)


def conv3x3_rpn_pallas(x_flat, conv, head, *, H, W):
    """RPN 3x3 conv + ReLU with the objectness/bbox heads fused into the epilogue."""
    N, S, CIN = x_flat.shape
    Wp, M0, L, S2, offs = _layout_consts(H, W)
    assert S == S2 and conv["w"].shape[1] == CIN
    COUT = conv["w"].shape[2]
    HN = head["w"].shape[1]
    kernel = functools.partial(conv3x3_rpn_head_kernel, tap_offsets=offs, L=L)
    return pl.pallas_call(
        kernel,
        out_shape=jax.ShapeDtypeStruct((N, L, HN), jnp.float32),
        grid=(N,),
        in_specs=[
            pl.BlockSpec((None, S, CIN), lambda n: (n, 0, 0)),
            pl.BlockSpec((9, CIN, COUT), lambda n: (0, 0, 0)),
            pl.BlockSpec((1, COUT), lambda n: (0, 0)),
            pl.BlockSpec((COUT, HN), lambda n: (0, 0)),
            pl.BlockSpec((1, HN), lambda n: (0, 0)),
        ],
        out_specs=pl.BlockSpec((None, L, HN), lambda n: (n, 0, 0)),
        scratch_shapes=[pltpu.VMEM((L, COUT), jnp.float32)],
        compiler_params=pltpu.CompilerParams(
            dimension_semantics=("parallel",),
            vmem_limit_bytes=8 * 1024 * 1024,
        ),
    )(x_flat, conv["w"], conv["b"], head["w"], head["b"])


def box_head_pallas(pooled, fc6, fc7, pred):
    """fc6 -> fc7 -> (cls_score|bbox_pred) fused in one kernel on unique pooled rows."""
    N, CP = pooled.shape
    Mp = _round_up(N, 16)                                  # bf16-friendly row count
    xp = jnp.zeros((Mp, CP), jnp.bfloat16).at[:N, :].set(pooled.astype(jnp.bfloat16))
    NO = pred["w"].shape[1]
    out = pl.pallas_call(
        box_head_kernel,
        out_shape=jax.ShapeDtypeStruct((Mp, NO), jnp.float32),
        grid=(1,),
        in_specs=[
            pl.BlockSpec((Mp, CP), lambda i: (0, 0)),
            pl.BlockSpec(fc6["w"].shape, lambda i: (0, 0)),
            pl.BlockSpec(fc6["b"].shape, lambda i: (0, 0)),
            pl.BlockSpec(fc7["w"].shape, lambda i: (0, 0)),
            pl.BlockSpec(fc7["b"].shape, lambda i: (0, 0)),
            pl.BlockSpec(pred["w"].shape, lambda i: (0, 0)),
            pl.BlockSpec(pred["b"].shape, lambda i: (0, 0)),
        ],
        out_specs=pl.BlockSpec((Mp, NO), lambda i: (0, 0)),
        compiler_params=pltpu.CompilerParams(
            dimension_semantics=("arbitrary",),
            vmem_limit_bytes=4 * 1024 * 1024,
        ),
    )(xp, fc6["w"], fc6["b"], fc7["w"], fc7["b"], pred["w"], pred["b"])
    return out[:N]


# ----------------------------- parameters -------------------------------------
def init_params(key, c_in, c_feat, num_anchors, num_classes, mlp_dim):
    ks = jax.random.split(key, 12)
    s = 0.05
    return {
        # backbone stem (stand-in for resnet50+FPN feature extractor)
        "bb_w": s * jax.random.normal(ks[0], (3, 3, c_in, c_feat), jnp.float32),
        "bb_b": jnp.zeros((c_feat,), jnp.float32),
        # RPN head
        "rpn_conv_w": s * jax.random.normal(ks[1], (3, 3, c_feat, c_feat), jnp.float32),
        "rpn_conv_b": jnp.zeros((c_feat,), jnp.float32),
        "rpn_cls_w": s * jax.random.normal(ks[2], (c_feat, num_anchors), jnp.float32),
        "rpn_cls_b": jnp.zeros((num_anchors,), jnp.float32),
        "rpn_bbox_w": s * jax.random.normal(ks[3], (c_feat, num_anchors * 4), jnp.float32),
        "rpn_bbox_b": jnp.zeros((num_anchors * 4,), jnp.float32),
        # box head MLP (TwoMLPHead style)
        "fc6_w": s * jax.random.normal(ks[4], (c_feat, mlp_dim), jnp.float32),
        "fc6_b": jnp.zeros((mlp_dim,), jnp.float32),
        "fc7_w": s * jax.random.normal(ks[5], (mlp_dim, mlp_dim), jnp.float32),
        "fc7_b": jnp.zeros((mlp_dim,), jnp.float32),
        # FastRCNNPredictor replacement (cls_score, bbox_pred)
        "cls_w": s * jax.random.normal(ks[6], (mlp_dim, num_classes), jnp.float32),
        "cls_b": jnp.zeros((num_classes,), jnp.float32),
        "box_w": s * jax.random.normal(ks[7], (mlp_dim, num_classes * 4), jnp.float32),
        "box_b": jnp.zeros((num_classes * 4,), jnp.float32),
    }


def prep_conv3x3(w_hwio, b, cin_p, cout_p):
    kh, kw, cin, cout = w_hwio.shape
    assert (kh, kw) == (3, 3) and cin <= cin_p and cout <= cout_p
    w = jnp.zeros((9, cin_p, cout_p), jnp.bfloat16)
    w = w.at[:, :cin, :cout].set(w_hwio.reshape(9, cin, cout).astype(jnp.bfloat16))
    bb = jnp.zeros((1, cout_p), jnp.float32).at[0, :cout].set(b.astype(jnp.float32))
    return {"w": w, "b": bb}


def prep_dense(w, b, k_p, n_p):
    K, Nout = w.shape
    assert K <= k_p and Nout <= n_p
    wp = jnp.zeros((k_p, n_p), jnp.bfloat16).at[:K, :Nout].set(w.astype(jnp.bfloat16))
    bp = jnp.zeros((1, n_p), jnp.float32).at[0, :Nout].set(b.astype(jnp.float32))
    return {"w": wp, "b": bp}


def prepare_params(raw):
    """Pad + cast every weight ONCE (zero padding keeps results exact) and fuse the
    tiny-N heads (rpn cls|bbox, cls_score|bbox_pred) into single matrices."""
    na = raw["rpn_cls_w"].shape[1]
    nc = raw["cls_w"].shape[1]
    mlp_p = _round_up(raw["fc6_w"].shape[1], LANE)
    return {
        "bb": prep_conv3x3(raw["bb_w"], raw["bb_b"], C_PAD, C_PAD),
        "rpn_conv": prep_conv3x3(raw["rpn_conv_w"], raw["rpn_conv_b"], C_PAD, C_PAD),
        "rpn_head": prep_dense(
            jnp.concatenate([raw["rpn_cls_w"], raw["rpn_bbox_w"]], axis=1),
            jnp.concatenate([raw["rpn_cls_b"], raw["rpn_bbox_b"]], axis=0),
            C_PAD, _round_up(5 * na, LANE)),
        "fc6": prep_dense(raw["fc6_w"], raw["fc6_b"], C_PAD, mlp_p),
        "fc7": prep_dense(raw["fc7_w"], raw["fc7_b"], mlp_p, mlp_p),
        "predictor": prep_dense(
            jnp.concatenate([raw["cls_w"], raw["box_w"]], axis=1),
            jnp.concatenate([raw["cls_b"], raw["box_b"]], axis=0),
            mlp_p, _round_up(5 * nc, LANE)),
    }


# ----------------------------- forward ----------------------------------------
def faster_rcnn_forward(x_nchw, pp, *, num_anchors, num_classes, num_proposals=8):
    N, Cin, H, W = x_nchw.shape
    A, C = num_anchors, num_classes
    Wp, M0, L, S, _ = _layout_consts(H, W)

    # Build the flattened padded-spatial input layout (one small copy; this replaces
    # the previous 9x im2col HBM blowup entirely).
    x = jnp.transpose(x_nchw, (0, 2, 3, 1)).astype(jnp.float32)          # (N,H,W,Cin)
    x = jnp.pad(x, ((0, 0), (0, 0), (0, Wp - W), (0, C_PAD - Cin)))      # zero pad cols+chans
    x_flat = jnp.zeros((N, S, C_PAD), jnp.float32)
    x_flat = x_flat.at[:, M0:M0 + L, :].set(x.reshape(N, L, C_PAD))

    # Backbone 3x3 conv + ReLU (kernel 1); output stays in the padded-flat layout.
    feat = conv3x3_pallas(x_flat, pp["bb"], H=H, W=W)                    # (N, S, 128) f32

    # RPN 3x3 conv + ReLU with fused objectness/bbox heads (kernel 2).
    rpn = conv3x3_rpn_pallas(feat, pp["rpn_conv"], pp["rpn_head"], H=H, W=W)  # (N, L, 128)
    rpn = rpn.reshape(N, H, Wp, -1)[:, :, :W, :]
    rpn_objectness = rpn[..., :A]                                        # (N, H, W, A)
    rpn_bbox_deltas = rpn[..., A:5 * A]                                  # (N, H, W, 4A)

    # TODO(synk): anchor generation, proposal decoding, NMS/top-k and ROIAlign are
    # data-dependent gather/sort ops omitted here; pooled ROI features are stood in
    # by a per-image global average pool (pad rows/channels are zero, so sum/(H*W)).
    pooled = jnp.sum(feat, axis=1) * (1.0 / (H * W))                     # (N, 128)

    # Box head on the UNIQUE pooled rows (kernel 3), then repeat per proposal.
    pred = box_head_pallas(pooled, pp["fc6"], pp["fc7"], pp["predictor"])  # (N, 128)
    pred = jnp.repeat(pred, num_proposals, axis=0)                       # (N*P, 128)
    cls_logits = pred[:, :C]
    box_regression = pred[:, C:5 * C]

    return {
        "rpn_objectness": rpn_objectness,
        "rpn_bbox_deltas": rpn_bbox_deltas,
        "cls_logits": cls_logits,
        "box_regression": box_regression,
    }


if __name__ == "__main__":
    key = jax.random.PRNGKey(0)
    k_x, k_p = jax.random.split(key)

    # Small synthetic shapes
    batch, c_in, H, W = 2, 4, 16, 16
    c_feat, num_anchors, num_classes, mlp_dim = 32, 3, 5, 64
    num_proposals = 8

    x = jax.random.normal(k_x, (batch, c_in, H, W), jnp.float32)         # NCHW input
    raw_params = init_params(k_p, c_in, c_feat, num_anchors, num_classes, mlp_dim)
    pp = prepare_params(raw_params)                                      # pad/cast once

    fwd = jax.jit(functools.partial(
        faster_rcnn_forward,
        num_anchors=num_anchors,
        num_classes=num_classes,
        num_proposals=num_proposals))

    out = fwd(x, pp)
    out = jax.tree_util.tree_map(jax.block_until_ready, out)

    # Light sanity checks
    assert out["rpn_objectness"].shape == (batch, H, W, num_anchors)
    assert out["rpn_bbox_deltas"].shape == (batch, H, W, num_anchors * 4)
    assert out["cls_logits"].shape == (batch * num_proposals, num_classes)
    assert out["box_regression"].shape == (batch * num_proposals, num_classes * 4)
    for v in out.values():
        assert bool(jnp.all(jnp.isfinite(v)))

    print("KERNEL_OK")
</pallas_src>

<mosaic_0001>
module attributes {stable_mosaic.version = 11 : i64} {
  func.func @conv3x3_pad_kernel(%arg0: i32, %arg1: memref<1x336x128xf32, #tpu.memory_space<vmem>>, %arg2: memref<9x128x128xbf16, #tpu.memory_space<vmem>>, %arg3: memref<1x128xf32, #tpu.memory_space<vmem>>, %arg4: memref<288x1xf32, #tpu.memory_space<vmem>>, %arg5: memref<1x336x128xf32, #tpu.memory_space<vmem>>, %arg6: memref<288x128xf32, #tpu.memory_space<vmem>>) attributes {dimension_semantics = [#tpu.dimension_semantics<parallel>], iteration_bounds = array<i64: 2>, scalar_prefetch = 0 : i64, scratch_operands = 1 : i64, tpu.core_type = #tpu.core_type<tc>, window_params = [{transform_indices = @transform_0, window_bounds = array<i64: 1, 336, 128>}, {pipeline_mode = #tpu.pipeline_mode<synchronous>, transform_indices = @transform_1, window_bounds = array<i64: 9, 128, 128>}, {pipeline_mode = #tpu.pipeline_mode<synchronous>, transform_indices = @transform_2, window_bounds = array<i64: 1, 128>}, {pipeline_mode = #tpu.pipeline_mode<synchronous>, transform_indices = @transform_3, window_bounds = array<i64: 288, 1>}, {transform_indices = @transform_4, window_bounds = array<i64: 1, 336, 128>}]} {
    %c0 = arith.constant 0 : index
    %c0_0 = arith.constant 0 : index
    %0 = vector.load %arg3[%c0, %c0_0] : memref<1x128xf32, #tpu.memory_space<vmem>>, vector<1x128xf32>
    %1 = vector.shape_cast %0 : vector<1x128xf32> to vector<1x128xf32>
    %2 = vector.broadcast %1 : vector<1x128xf32> to vector<288x128xf32>
    %c0_1 = arith.constant 0 : index
    %c0_2 = arith.constant 0 : index
    %3 = vector.load %arg6[%c0_1, %c0_2] : memref<288x128xf32, #tpu.memory_space<vmem>>, vector<288x128xf32>
    tpu.vector_store %arg6[%c0_1, %c0_2], %2 {strides = array<i32>} : memref<288x128xf32, #tpu.memory_space<vmem>>, vector<288x128xf32>,
    %c0_3 = arith.constant 0 : index
    %c5 = arith.constant 5 : index
    %c0_4 = arith.constant 0 : index
    %4 = vector.load %arg1[%c0_3, %c5, %c0_4] : memref<1x336x128xf32, #tpu.memory_space<vmem>>, vector<1x288x128xf32>
    %5 = vector.shape_cast %4 : vector<1x288x128xf32> to vector<288x128xf32>
    %6 = arith.truncf %5 : vector<288x128xf32> to vector<288x128xbf16>
    %c0_5 = arith.constant 0 : index
    %c0_6 = arith.constant 0 : index
    %7 = vector.load %arg6[%c0_5, %c0_6] : memref<288x128xf32, #tpu.memory_space<vmem>>, vector<288x128xf32>
    %c0_7 = arith.constant 0 : index
    %c0_8 = arith.constant 0 : index
    %c0_9 = arith.constant 0 : index
    %8 = vector.load %arg2[%c0_7, %c0_8, %c0_9] : memref<9x128x128xbf16, #tpu.memory_space<vmem>>, vector<1x128x128xbf16>
    %9 = vector.shape_cast %8 : vector<1x128x128xbf16> to vector<128x128xbf16>
    %cst = arith.constant dense<0.000000e+00> : vector<288x128xf32>
    %10 = tpu.matmul %6, %9, %cst {dimension_numbers = #tpu.dot_dimension_numbers<[1], [0], [0], [1], [0, 0, 1, 1], [], []>} : vector<288x128xbf16>, vector<128x128xbf16>, vector<288x128xf32> -> vector<288x128xf32>
    %11 = arith.addf %7, %10 : vector<288x128xf32>
    %c0_10 = arith.constant 0 : index
    %c0_11 = arith.constant 0 : index
    %12 = vector.load %arg6[%c0_10, %c0_11] : memref<288x128xf32, #tpu.memory_space<vmem>>, vector<288x128xf32>
    tpu.vector_store %arg6[%c0_10, %c0_11], %11 {strides = array<i32>} : memref<288x128xf32, #tpu.memory_space<vmem>>, vector<288x128xf32>,
    %c0_12 = arith.constant 0 : index
    %c6 = arith.constant 6 : index
    %c0_13 = arith.constant 0 : index
    %13 = vector.load %arg1[%c0_12, %c6, %c0_13] : memref<1x336x128xf32, #tpu.memory_space<vmem>>, vector<1x288x128xf32>
    %14 = vector.shape_cast %13 : vector<1x288x128xf32> to vector<288x128xf32>
    %15 = arith.truncf %14 : vector<288x128xf32> to vector<288x128xbf16>
    %c0_14 = arith.constant 0 : index
    %c0_15 = arith.constant 0 : index
    %16 = vector.load %arg6[%c0_14, %c0_15] : memref<288x128xf32, #tpu.memory_space<vmem>>, vector<288x128xf32>
    %c1 = arith.constant 1 : index
    %c0_16 = arith.constant 0 : index
    %c0_17 = arith.constant 0 : index
    %17 = vector.load %arg2[%c1, %c0_16, %c0_17] : memref<9x128x128xbf16, #tpu.memory_space<vmem>>, vector<1x128x128xbf16>
    %18 = vector.shape_cast %17 : vector<1x128x128xbf16> to vector<128x128xbf16>
    %cst_18 = arith.constant dense<0.000000e+00> : vector<288x128xf32>
    %19 = tpu.matmul %15, %18, %cst_18 {dimension_numbers = #tpu.dot_dimension_numbers<[1], [0], [0], [1], [0, 0, 1, 1], [], []>} : vector<288x128xbf16>, vector<128x128xbf16>, vector<288x128xf32> -> vector<288x128xf32>
    %20 = arith.addf %16, %19 : vector<288x128xf32>
    %c0_19 = arith.constant 0 : index
    %c0_20 = arith.constant 0 : index
    %21 = vector.load %arg6[%c0_19, %c0_20] : memref<288x128xf32, #tpu.memory_space<vmem>>, vector<288x128xf32>
    tpu.vector_store %arg6[%c0_19, %c0_20], %20 {strides = array<i32>} : memref<288x128xf32, #tpu.memory_space<vmem>>, vector<288x128xf32>,
    %c0_21 = arith.constant 0 : index
    %c7 = arith.constant 7 : index
    %c0_22 = arith.constant 0 : index
    %22 = vector.load %arg1[%c0_21, %c7, %c0_22] : memref<1x336x128xf32, #tpu.memory_space<vmem>>, vector<1x288x128xf32>
    %23 = vector.shape_cast %22 : vector<1x288x128xf32> to vector<288x128xf32>
    %24 = arith.truncf %23 : vector<288x128xf32> to vector<288x128xbf16>
    %c0_23 = arith.constant 0 : index
    %c0_24 = arith.constant 0 : index
    %25 = vector.load %arg6[%c0_23, %c0_24] : memref<288x128xf32, #tpu.memory_space<vmem>>, vector<288x128xf32>
    %c2 = arith.constant 2 : index
    %c0_25 = arith.constant 0 : index
    %c0_26 = arith.constant 0 : index
    %26 = vector.load %arg2[%c2, %c0_25, %c0_26] : memref<9x128x128xbf16, #tpu.memory_space<vmem>>, vector<1x128x128xbf16>
    %27 = vector.shape_cast %26 : vector<1x128x128xbf16> to vector<128x128xbf16>
    %cst_27 = arith.constant dense<0.000000e+00> : vector<288x128xf32>
    %28 = tpu.matmul %24, %27, %cst_27 {dimension_numbers = #tpu.dot_dimension_numbers<[1], [0], [0], [1], [0, 0, 1, 1], [], []>} : vector<288x128xbf16>, vector<128x128xbf16>, vector<288x128xf32> -> vector<288x128xf32>
    %29 = arith.addf %25, %28 : vector<288x128xf32>
    %c0_28 = arith.constant 0 : index
    %c0_29 = arith.constant 0 : index
    %30 = vector.load %arg6[%c0_28, %c0_29] : memref<288x128xf32, #tpu.memory_space<vmem>>, vector<288x128xf32>
    tpu.vector_store %arg6[%c0_28, %c0_29], %29 {strides = array<i32>} : memref<288x128xf32, #tpu.memory_space<vmem>>, vector<288x128xf32>,
    %c0_30 = arith.constant 0 : index
    %c23 = arith.constant 23 : index
    %c0_31 = arith.constant 0 : index
    %31 = vector.load %arg1[%c0_30, %c23, %c0_31] : memref<1x336x128xf32, #tpu.memory_space<vmem>>, vector<1x288x128xf32>
    %32 = vector.shape_cast %31 : vector<1x288x128xf32> to vector<288x128xf32>
    %33 = arith.truncf %32 : vector<288x128xf32> to vector<288x128xbf16>
    %c0_32 = arith.constant 0 : index
    %c0_33 = arith.constant 0 : index
    %34 = vector.load %arg6[%c0_32, %c0_33] : memref<288x128xf32, #tpu.memory_space<vmem>>, vector<288x128xf32>
    %c3 = arith.constant 3 : index
    %c0_34 = arith.constant 0 : index
    %c0_35 = arith.constant 0 : index
    %35 = vector.load %arg2[%c3, %c0_34, %c0_35] : memref<9x128x128xbf16, #tpu.memory_space<vmem>>, vector<1x128x128xbf16>
    %36 = vector.shape_cast %35 : vector<1x128x128xbf16> to vector<128x128xbf16>
    %cst_36 = arith.constant dense<0.000000e+00> : vector<288x128xf32>
    %37 = tpu.matmul %33, %36, %cst_36 {dimension_numbers = #tpu.dot_dimension_numbers<[1], [0], [0], [1], [0, 0, 1, 1], [], []>} : vector<288x128xbf16>, vector<128x128xbf16>, vector<288x128xf32> -> vector<288x128xf32>
    %38 = arith.addf %34, %37 : vector<288x128xf32>
    %c0_37 = arith.constant 0 : index
    %c0_38 = arith.constant 0 : index
    %39 = vector.load %arg6[%c0_37, %c0_38] : memref<288x128xf32, #tpu.memory_space<vmem>>, vector<288x128xf32>
    tpu.vector_store %arg6[%c0_37, %c0_38], %38 {strides = array<i32>} : memref<288x128xf32, #tpu.memory_space<vmem>>, vector<288x128xf32>,
    %c0_39 = arith.constant 0 : index
    %c24 = arith.constant 24 : index
    %c0_40 = arith.constant 0 : index
    %40 = vector.load %arg1[%c0_39, %c24, %c0_40] : memref<1x336x128xf32, #tpu.memory_space<vmem>>, vector<1x288x128xf32>
    %41 = vector.shape_cast %40 : vector<1x288x128xf32> to vector<288x128xf32>
    %42 = arith.truncf %41 : vector<288x128xf32> to vector<288x128xbf16>
    %c0_41 = arith.constant 0 : index
    %c0_42 = arith.constant 0 : index
    %43 = vector.load %arg6[%c0_41, %c0_42] : memref<288x128xf32, #tpu.memory_space<vmem>>, vector<288x128xf32>
    %c4 = arith.constant 4 : index
    %c0_43 = arith.constant 0 : index
    %c0_44 = arith.constant 0 : index
    %44 = vector.load %arg2[%c4, %c0_43, %c0_44] : memref<9x128x128xbf16, #tpu.memory_space<vmem>>, vector<1x128x128xbf16>
    %45 = vector.shape_cast %44 : vector<1x128x128xbf16> to vector<128x128xbf16>
    %cst_45 = arith.constant dense<0.000000e+00> : vector<288x128xf32>
    %46 = tpu.matmul %42, %45, %cst_45 {dimension_numbers = #tpu.dot_dimension_numbers<[1], [0], [0], [1], [0, 0, 1, 1], [], []>} : vector<288x128xbf16>, vector<128x128xbf16>, vector<288x128xf32> -> vector<288x128xf32>
    %47 = arith.addf %43, %46 : vector<288x128xf32>
    %c0_46 = arith.constant 0 : index
    %c0_47 = arith.constant 0 : index
    %48 = vector.load %arg6[%c0_46, %c0_47] : memref<288x128xf32, #tpu.memory_space<vmem>>, vector<288x128xf32>
    tpu.vector_store %arg6[%c0_46, %c0_47], %47 {strides = array<i32>} : memref<288x128xf32, #tpu.memory_space<vmem>>, vector<288x128xf32>,
    %c0_48 = arith.constant 0 : index
    %c25 = arith.constant 25 : index
    %c0_49 = arith.constant 0 : index
    %49 = vector.load %arg1[%c0_48, %c25, %c0_49] : memref<1x336x128xf32, #tpu.memory_space<vmem>>, vector<1x288x128xf32>
    %50 = vector.shape_cast %49 : vector<1x288x128xf32> to vector<288x128xf32>
    %51 = arith.truncf %50 : vector<288x128xf32> to vector<288x128xbf16>
    %c0_50 = arith.constant 0 : index
    %c0_51 = arith.constant 0 : index
    %52 = vector.load %arg6[%c0_50, %c0_51] : memref<288x128xf32, #tpu.memory_space<vmem>>, vector<288x128xf32>
    %c5_52 = arith.constant 5 : index
    %c0_53 = arith.constant 0 : index
    %c0_54 = arith.constant 0 : index
    %53 = vector.load %arg2[%c5_52, %c0_53, %c0_54] : memref<9x128x128xbf16, #tpu.memory_space<vmem>>, vector<1x128x128xbf16>
    %54 = vector.shape_cast %53 : vector<1x128x128xbf16> to vector<128x128xbf16>
    %cst_55 = arith.constant dense<0.000000e+00> : vector<288x128xf32>
    %55 = tpu.matmul %51, %54, %cst_55 {dimension_numbers = #tpu.dot_dimension_numbers<[1], [0], [0], [1], [0, 0, 1, 1], [], []>} : vector<288x128xbf16>, vector<128x128xbf16>, vector<288x128xf32> -> vector<288x128xf32>
    %56 = arith.addf %52, %55 : vector<288x128xf32>
    %c0_56 = arith.constant 0 : index
    %c0_57 = arith.constant 0 : index
    %57 = vector.load %arg6[%c0_56, %c0_57] : memref<288x128xf32, #tpu.memory_space<vmem>>, vector<288x128xf32>
    tpu.vector_store %arg6[%c0_56, %c0_57], %56 {strides = array<i32>} : memref<288x128xf32, #tpu.memory_space<vmem>>, vector<288x128xf32>,
    %c0_58 = arith.constant 0 : index
    %c41 = arith.constant 41 : index
    %c0_59 = arith.constant 0 : index
    %58 = vector.load %arg1[%c0_58, %c41, %c0_59] : memref<1x336x128xf32, #tpu.memory_space<vmem>>, vector<1x288x128xf32>
    %59 = vector.shape_cast %58 : vector<1x288x128xf32> to vector<288x128xf32>
    %60 = arith.truncf %59 : vector<288x128xf32> to vector<288x128xbf16>
    %c0_60 = arith.constant 0 : index
    %c0_61 = arith.constant 0 : index
    %61 = vector.load %arg6[%c0_60, %c0_61] : memref<288x128xf32, #tpu.memory_space<vmem>>, vector<288x128xf32>
    %c6_62 = arith.constant 6 : index
    %c0_63 = arith.constant 0 : index
    %c0_64 = arith.constant 0 : index
    %62 = vector.load %arg2[%c6_62, %c0_63, %c0_64] : memref<9x128x128xbf16, #tpu.memory_space<vmem>>, vector<1x128x128xbf16>
    %63 = vector.shape_cast %62 : vector<1x128x128xbf16> to vector<128x128xbf16>
    %cst_65 = arith.constant dense<0.000000e+00> : vector<288x128xf32>
    %64 = tpu.matmul %60, %63, %cst_65 {dimension_numbers = #tpu.dot_dimension_numbers<[1], [0], [0], [1], [0, 0, 1, 1], [], []>} : vector<288x128xbf16>, vector<128x128xbf16>, vector<288x128xf32> -> vector<288x128xf32>
    %65 = arith.addf %61, %64 : vector<288x128xf32>
    %c0_66 = arith.constant 0 : index
    %c0_67 = arith.constant 0 : index
    %66 = vector.load %arg6[%c0_66, %c0_67] : memref<288x128xf32, #tpu.memory_space<vmem>>, vector<288x128xf32>
    tpu.vector_store %arg6[%c0_66, %c0_67], %65 {strides = array<i32>} : memref<288x128xf32, #tpu.memory_space<vmem>>, vector<288x128xf32>,
    %c0_68 = arith.constant 0 : index
    %c42 = arith.constant 42 : index
    %c0_69 = arith.constant 0 : index
    %67 = vector.load %arg1[%c0_68, %c42, %c0_69] : memref<1x336x128xf32, #tpu.memory_space<vmem>>, vector<1x288x128xf32>
    %68 = vector.shape_cast %67 : vector<1x288x128xf32> to vector<288x128xf32>
    %69 = arith.truncf %68 : vector<288x128xf32> to vector<288x128xbf16>
    %c0_70 = arith.constant 0 : index
    %c0_71 = arith.constant 0 : index
    %70 = vector.load %arg6[%c0_70, %c0_71] : memref<288x128xf32, #tpu.memory_space<vmem>>, vector<288x128xf32>
    %c7_72 = arith.constant 7 : index
    %c0_73 = arith.constant 0 : index
    %c0_74 = arith.constant 0 : index
    %71 = vector.load %arg2[%c7_72, %c0_73, %c0_74] : memref<9x128x128xbf16, #tpu.memory_space<vmem>>, vector<1x128x128xbf16>
    %72 = vector.shape_cast %71 : vector<1x128x128xbf16> to vector<128x128xbf16>
    %cst_75 = arith.constant dense<0.000000e+00> : vector<288x128xf32>
    %73 = tpu.matmul %69, %72, %cst_75 {dimension_numbers = #tpu.dot_dimension_numbers<[1], [0], [0], [1], [0, 0, 1, 1], [], []>} : vector<288x128xbf16>, vector<128x128xbf16>, vector<288x128xf32> -> vector<288x128xf32>
    %74 = arith.addf %70, %73 : vector<288x128xf32>
    %c0_76 = arith.constant 0 : index
    %c0_77 = arith.constant 0 : index
    %75 = vector.load %arg6[%c0_76, %c0_77] : memref<288x128xf32, #tpu.memory_space<vmem>>, vector<288x128xf32>
    tpu.vector_store %arg6[%c0_76, %c0_77], %74 {strides = array<i32>} : memref<288x128xf32, #tpu.memory_space<vmem>>, vector<288x128xf32>,
    %c0_78 = arith.constant 0 : index
    %c43 = arith.constant 43 : index
    %c0_79 = arith.constant 0 : index
    %76 = vector.load %arg1[%c0_78, %c43, %c0_79] : memref<1x336x128xf32, #tpu.memory_space<vmem>>, vector<1x288x128xf32>
    %77 = vector.shape_cast %76 : vector<1x288x128xf32> to vector<288x128xf32>
    %78 = arith.truncf %77 : vector<288x128xf32> to vector<288x128xbf16>
    %c0_80 = arith.constant 0 : index
    %c0_81 = arith.constant 0 : index
    %79 = vector.load %arg6[%c0_80, %c0_81] : memref<288x128xf32, #tpu.memory_space<vmem>>, vector<288x128xf32>
    %c8 = arith.constant 8 : index
    %c0_82 = arith.constant 0 : index
    %c0_83 = arith.constant 0 : index
    %80 = vector.load %arg2[%c8, %c0_82, %c0_83] : memref<9x128x128xbf16, #tpu.memory_space<vmem>>, vector<1x128x128xbf16>
    %81 = vector.shape_cast %80 : vector<1x128x128xbf16> to vector<128x128xbf16>
    %cst_84 = arith.constant dense<0.000000e+00> : vector<288x128xf32>
    %82 = tpu.matmul %78, %81, %cst_84 {dimension_numbers = #tpu.dot_dimension_numbers<[1], [0], [0], [1], [0, 0, 1, 1], [], []>} : vector<288x128xbf16>, vector<128x128xbf16>, vector<288x128xf32> -> vector<288x128xf32>
    %83 = arith.addf %79, %82 : vector<288x128xf32>
    %c0_85 = arith.constant 0 : index
    %c0_86 = arith.constant 0 : index
    %84 = vector.load %arg6[%c0_85, %c0_86] : memref<288x128xf32, #tpu.memory_space<vmem>>, vector<288x128xf32>
    tpu.vector_store %arg6[%c0_85, %c0_86], %83 {strides = array<i32>} : memref<288x128xf32, #tpu.memory_space<vmem>>, vector<288x128xf32>,
    %c0_87 = arith.constant 0 : index
    %c0_88 = arith.constant 0 : index
    %85 = vector.load %arg6[%c0_87, %c0_88] : memref<288x128xf32, #tpu.memory_space<vmem>>, vector<288x128xf32>
    %cst_89 = arith.constant 0.000000e+00 : f32
    %86 = vector.broadcast %cst_89 : f32 to vector<288x128xf32>
    %87 = arith.maximumf %85, %86 : vector<288x128xf32>
    %c0_90 = arith.constant 0 : index
    %c0_91 = arith.constant 0 : index
    %88 = vector.load %arg4[%c0_90, %c0_91] : memref<288x1xf32, #tpu.memory_space<vmem>>, vector<288x1xf32>
    %89 = vector.broadcast %88 : vector<288x1xf32> to vector<288x128xf32>
    %90 = arith.mulf %87, %89 : vector<288x128xf32>
    %cst_92 = arith.constant 0.000000e+00 : f32
    %91 = vector.broadcast %cst_92 : f32 to vector<336x128xf32>
    %c0_93 = arith.constant 0 : index
    %c0_94 = arith.constant 0 : index
    %c0_95 = arith.constant 0 : index
    %92 = vector.load %arg5[%c0_93, %c0_94, %c0_95] : memref<1x336x128xf32, #tpu.memory_space<vmem>>, vector<1x336x128xf32>
    %93 = vector.shape_cast %92 : vector<1x336x128xf32> to vector<336x128xf32>
    %94 = vector.shape_cast %91 : vector<336x128xf32> to vector<1x336x128xf32>
    tpu.vector_store %arg5[%c0_93, %c0_94, %c0_95], %94 {strides = array<i32>} : memref<1x336x128xf32, #tpu.memory_space<vmem>>, vector<1x336x128xf32>,
    %c0_96 = arith.constant 0 : index
    %c24_97 = arith.constant 24 : index
    %c0_98 = arith.constant 0 : index
    %95 = vector.load %arg5[%c0_96, %c24_97, %c0_98] : memref<1x336x128xf32, #tpu.memory_space<vmem>>, vector<1x288x128xf32>
    %96 = vector.shape_cast %95 : vector<1x288x128xf32> to vector<288x128xf32>
    %97 = vector.shape_cast %90 : vector<288x128xf32> to vector<1x288x128xf32>
    tpu.vector_store %arg5[%c0_96, %c24_97, %c0_98], %97 {strides = array<i32>} : memref<1x336x128xf32, #tpu.memory_space<vmem>>, vector<1x288x128xf32>,
    return
  }
  func.func @transform_0(%arg0: i32) -> (i32, i32, i32) {
    %c0_i32 = arith.constant 0 : i32
    %c0_i32_0 = arith.constant 0 : i32
    %c0_i32_1 = arith.constant 0 : i32
    return %arg0, %c0_i32, %c0_i32_0 : i32, i32, i32
  }
  func.func @transform_1(%arg0: i32) -> (i32, i32, i32) {
    %c0_i32 = arith.constant 0 : i32
    %c0_i32_0 = arith.constant 0 : i32
    %c0_i32_1 = arith.constant 0 : i32
    %c0_i32_2 = arith.constant 0 : i32
    return %c0_i32, %c0_i32_0, %c0_i32_1 : i32, i32, i32
  }
  func.func @transform_2(%arg0: i32) -> (i32, i32) {
    %c0_i32 = arith.constant 0 : i32
    %c0_i32_0 = arith.constant 0 : i32
    %c0_i32_1 = arith.constant 0 : i32
    return %c0_i32, %c0_i32_0 : i32, i32
  }
  func.func @transform_3(%arg0: i32) -> (i32, i32) {
    %c0_i32 = arith.constant 0 : i32
    %c0_i32_0 = arith.constant 0 : i32
    %c0_i32_1 = arith.constant 0 : i32
    return %c0_i32, %c0_i32_0 : i32, i32
  }
  func.func @transform_4(%arg0: i32) -> (i32, i32, i32) {
    %c0_i32 = arith.constant 0 : i32
    %c0_i32_0 = arith.constant 0 : i32
    %c0_i32_1 = arith.constant 0 : i32
    return %arg0, %c0_i32, %c0_i32_0 : i32, i32, i32
  }
}

module attributes {stable_mosaic.version = 11 : i64} {
  func.func @conv3x3_rpn_head_kernel(%arg0: i32, %arg1: memref<1x336x128xf32, #tpu.memory_space<vmem>>, %arg2: memref<9x128x128xbf16, #tpu.memory_space<vmem>>, %arg3: memref<1x128xf32, #tpu.memory_space<vmem>>, %arg4: memref<128x128xbf16, #tpu.memory_space<vmem>>, %arg5: memref<1x128xf32, #tpu.memory_space<vmem>>, %arg6: memref<1x288x128xf32, #tpu.memory_space<vmem>>, %arg7: memref<288x128xf32, #tpu.memory_space<vmem>>) attributes {dimension_semantics = [#tpu.dimension_semantics<parallel>], iteration_bounds = array<i64: 2>, scalar_prefetch = 0 : i64, scratch_operands = 1 : i64, tpu.core_type = #tpu.core_type<tc>, window_params = [{transform_indices = @transform_0, window_bounds = array<i64: 1, 336, 128>}, {pipeline_mode = #tpu.pipeline_mode<synchronous>, transform_indices = @transform_1, window_bounds = array<i64: 9, 128, 128>}, {pipeline_mode = #tpu.pipeline_mode<synchronous>, transform_indices = @transform_2, window_bounds = array<i64: 1, 128>}, {pipeline_mode = #tpu.pipeline_mode<synchronous>, transform_indices = @transform_3, window_bounds = array<i64: 128, 128>}, {pipeline_mode = #tpu.pipeline_mode<synchronous>, transform_indices = @transform_4, window_bounds = array<i64: 1, 128>}, {transform_indices = @transform_5, window_bounds = array<i64: 1, 288, 128>}]} {
    %c0 = arith.constant 0 : index
    %c0_0 = arith.constant 0 : index
    %0 = vector.load %arg3[%c0, %c0_0] : memref<1x128xf32, #tpu.memory_space<vmem>>, vector<1x128xf32>
    %1 = vector.shape_cast %0 : vector<1x128xf32> to vector<1x128xf32>
    %2 = vector.broadcast %1 : vector<1x128xf32> to vector<288x128xf32>
    %c0_1 = arith.constant 0 : index
    %c0_2 = arith.constant 0 : index
    %3 = vector.load %arg7[%c0_1, %c0_2] : memref<288x128xf32, #tpu.memory_space<vmem>>, vector<288x128xf32>
    tpu.vector_store %arg7[%c0_1, %c0_2], %2 {strides = array<i32>} : memref<288x128xf32, #tpu.memory_space<vmem>>, vector<288x128xf32>,
    %c0_3 = arith.constant 0 : index
    %c5 = arith.constant 5 : index
    %c0_4 = arith.constant 0 : index
    %4 = vector.load %arg1[%c0_3, %c5, %c0_4] : memref<1x336x128xf32, #tpu.memory_space<vmem>>, vector<1x288x128xf32>
    %5 = vector.shape_cast %4 : vector<1x288x128xf32> to vector<288x128xf32>
    %6 = arith.truncf %5 : vector<288x128xf32> to vector<288x128xbf16>
    %c0_5 = arith.constant 0 : index
    %c0_6 = arith.constant 0 : index
    %7 = vector.load %arg7[%c0_5, %c0_6] : memref<288x128xf32, #tpu.memory_space<vmem>>, vector<288x128xf32>
    %c0_7 = arith.constant 0 : index
    %c0_8 = arith.constant 0 : index
    %c0_9 = arith.constant 0 : index
    %8 = vector.load %arg2[%c0_7, %c0_8, %c0_9] : memref<9x128x128xbf16, #tpu.memory_space<vmem>>, vector<1x128x128xbf16>
    %9 = vector.shape_cast %8 : vector<1x128x128xbf16> to vector<128x128xbf16>
    %cst = arith.constant dense<0.000000e+00> : vector<288x128xf32>
    %10 = tpu.matmul %6, %9, %cst {dimension_numbers = #tpu.dot_dimension_numbers<[1], [0], [0], [1], [0, 0, 1, 1], [], []>} : vector<288x128xbf16>, vector<128x128xbf16>, vector<288x128xf32> -> vector<288x128xf32>
    %11 = arith.addf %7, %10 : vector<288x128xf32>
    %c0_10 = arith.constant 0 : index
    %c0_11 = arith.constant 0 : index
    %12 = vector.load %arg7[%c0_10, %c0_11] : memref<288x128xf32, #tpu.memory_space<vmem>>, vector<288x128xf32>
    tpu.vector_store %arg7[%c0_10, %c0_11], %11 {strides = array<i32>} : memref<288x128xf32, #tpu.memory_space<vmem>>, vector<288x128xf32>,
    %c0_12 = arith.constant 0 : index
    %c6 = arith.constant 6 : index
    %c0_13 = arith.constant 0 : index
    %13 = vector.load %arg1[%c0_12, %c6, %c0_13] : memref<1x336x128xf32, #tpu.memory_space<vmem>>, vector<1x288x128xf32>
    %14 = vector.shape_cast %13 : vector<1x288x128xf32> to vector<288x128xf32>
    %15 = arith.truncf %14 : vector<288x128xf32> to vector<288x128xbf16>
    %c0_14 = arith.constant 0 : index
    %c0_15 = arith.constant 0 : index
    %16 = vector.load %arg7[%c0_14, %c0_15] : memref<288x128xf32, #tpu.memory_space<vmem>>, vector<288x128xf32>
    %c1 = arith.constant 1 : index
    %c0_16 = arith.constant 0 : index
    %c0_17 = arith.constant 0 : index
    %17 = vector.load %arg2[%c1, %c0_16, %c0_17] : memref<9x128x128xbf16, #tpu.memory_space<vmem>>, vector<1x128x128xbf16>
    %18 = vector.shape_cast %17 : vector<1x128x128xbf16> to vector<128x128xbf16>
    %cst_18 = arith.constant dense<0.000000e+00> : vector<288x128xf32>
    %19 = tpu.matmul %15, %18, %cst_18 {dimension_numbers = #tpu.dot_dimension_numbers<[1], [0], [0], [1], [0, 0, 1, 1], [], []>} : vector<288x128xbf16>, vector<128x128xbf16>, vector<288x128xf32> -> vector<288x128xf32>
    %20 = arith.addf %16, %19 : vector<288x128xf32>
    %c0_19 = arith.constant 0 : index
    %c0_20 = arith.constant 0 : index
    %21 = vector.load %arg7[%c0_19, %c0_20] : memref<288x128xf32, #tpu.memory_space<vmem>>, vector<288x128xf32>
    tpu.vector_store %arg7[%c0_19, %c0_20], %20 {strides = array<i32>} : memref<288x128xf32, #tpu.memory_space<vmem>>, vector<288x128xf32>,
    %c0_21 = arith.constant 0 : index
    %c7 = arith.constant 7 : index
    %c0_22 = arith.constant 0 : index
    %22 = vector.load %arg1[%c0_21, %c7, %c0_22] : memref<1x336x128xf32, #tpu.memory_space<vmem>>, vector<1x288x128xf32>
    %23 = vector.shape_cast %22 : vector<1x288x128xf32> to vector<288x128xf32>
    %24 = arith.truncf %23 : vector<288x128xf32> to vector<288x128xbf16>
    %c0_23 = arith.constant 0 : index
    %c0_24 = arith.constant 0 : index
    %25 = vector.load %arg7[%c0_23, %c0_24] : memref<288x128xf32, #tpu.memory_space<vmem>>, vector<288x128xf32>
    %c2 = arith.constant 2 : index
    %c0_25 = arith.constant 0 : index
    %c0_26 = arith.constant 0 : index
    %26 = vector.load %arg2[%c2, %c0_25, %c0_26] : memref<9x128x128xbf16, #tpu.memory_space<vmem>>, vector<1x128x128xbf16>
    %27 = vector.shape_cast %26 : vector<1x128x128xbf16> to vector<128x128xbf16>
    %cst_27 = arith.constant dense<0.000000e+00> : vector<288x128xf32>
    %28 = tpu.matmul %24, %27, %cst_27 {dimension_numbers = #tpu.dot_dimension_numbers<[1], [0], [0], [1], [0, 0, 1, 1], [], []>} : vector<288x128xbf16>, vector<128x128xbf16>, vector<288x128xf32> -> vector<288x128xf32>
    %29 = arith.addf %25, %28 : vector<288x128xf32>
    %c0_28 = arith.constant 0 : index
    %c0_29 = arith.constant 0 : index
    %30 = vector.load %arg7[%c0_28, %c0_29] : memref<288x128xf32, #tpu.memory_space<vmem>>, vector<288x128xf32>
    tpu.vector_store %arg7[%c0_28, %c0_29], %29 {strides = array<i32>} : memref<288x128xf32, #tpu.memory_space<vmem>>, vector<288x128xf32>,
    %c0_30 = arith.constant 0 : index
    %c23 = arith.constant 23 : index
    %c0_31 = arith.constant 0 : index
    %31 = vector.load %arg1[%c0_30, %c23, %c0_31] : memref<1x336x128xf32, #tpu.memory_space<vmem>>, vector<1x288x128xf32>
    %32 = vector.shape_cast %31 : vector<1x288x128xf32> to vector<288x128xf32>
    %33 = arith.truncf %32 : vector<288x128xf32> to vector<288x128xbf16>
    %c0_32 = arith.constant 0 : index
    %c0_33 = arith.constant 0 : index
    %34 = vector.load %arg7[%c0_32, %c0_33] : memref<288x128xf32, #tpu.memory_space<vmem>>, vector<288x128xf32>
    %c3 = arith.constant 3 : index
    %c0_34 = arith.constant 0 : index
    %c0_35 = arith.constant 0 : index
    %35 = vector.load %arg2[%c3, %c0_34, %c0_35] : memref<9x128x128xbf16, #tpu.memory_space<vmem>>, vector<1x128x128xbf16>
    %36 = vector.shape_cast %35 : vector<1x128x128xbf16> to vector<128x128xbf16>
    %cst_36 = arith.constant dense<0.000000e+00> : vector<288x128xf32>
    %37 = tpu.matmul %33, %36, %cst_36 {dimension_numbers = #tpu.dot_dimension_numbers<[1], [0], [0], [1], [0, 0, 1, 1], [], []>} : vector<288x128xbf16>, vector<128x128xbf16>, vector<288x128xf32> -> vector<288x128xf32>
    %38 = arith.addf %34, %37 : vector<288x128xf32>
    %c0_37 = arith.constant 0 : index
    %c0_38 = arith.constant 0 : index
    %39 = vector.load %arg7[%c0_37, %c0_38] : memref<288x128xf32, #tpu.memory_space<vmem>>, vector<288x128xf32>
    tpu.vector_store %arg7[%c0_37, %c0_38], %38 {strides = array<i32>} : memref<288x128xf32, #tpu.memory_space<vmem>>, vector<288x128xf32>,
    %c0_39 = arith.constant 0 : index
    %c24 = arith.constant 24 : index
    %c0_40 = arith.constant 0 : index
    %40 = vector.load %arg1[%c0_39, %c24, %c0_40] : memref<1x336x128xf32, #tpu.memory_space<vmem>>, vector<1x288x128xf32>
    %41 = vector.shape_cast %40 : vector<1x288x128xf32> to vector<288x128xf32>
    %42 = arith.truncf %41 : vector<288x128xf32> to vector<288x128xbf16>
    %c0_41 = arith.constant 0 : index
    %c0_42 = arith.constant 0 : index
    %43 = vector.load %arg7[%c0_41, %c0_42] : memref<288x128xf32, #tpu.memory_space<vmem>>, vector<288x128xf32>
    %c4 = arith.constant 4 : index
    %c0_43 = arith.constant 0 : index
    %c0_44 = arith.constant 0 : index
    %44 = vector.load %arg2[%c4, %c0_43, %c0_44] : memref<9x128x128xbf16, #tpu.memory_space<vmem>>, vector<1x128x128xbf16>
    %45 = vector.shape_cast %44 : vector<1x128x128xbf16> to vector<128x128xbf16>
    %cst_45 = arith.constant dense<0.000000e+00> : vector<288x128xf32>
    %46 = tpu.matmul %42, %45, %cst_45 {dimension_numbers = #tpu.dot_dimension_numbers<[1], [0], [0], [1], [0, 0, 1, 1], [], []>} : vector<288x128xbf16>, vector<128x128xbf16>, vector<288x128xf32> -> vector<288x128xf32>
    %47 = arith.addf %43, %46 : vector<288x128xf32>
    %c0_46 = arith.constant 0 : index
    %c0_47 = arith.constant 0 : index
    %48 = vector.load %arg7[%c0_46, %c0_47] : memref<288x128xf32, #tpu.memory_space<vmem>>, vector<288x128xf32>
    tpu.vector_store %arg7[%c0_46, %c0_47], %47 {strides = array<i32>} : memref<288x128xf32, #tpu.memory_space<vmem>>, vector<288x128xf32>,
    %c0_48 = arith.constant 0 : index
    %c25 = arith.constant 25 : index
    %c0_49 = arith.constant 0 : index
    %49 = vector.load %arg1[%c0_48, %c25, %c0_49] : memref<1x336x128xf32, #tpu.memory_space<vmem>>, vector<1x288x128xf32>
    %50 = vector.shape_cast %49 : vector<1x288x128xf32> to vector<288x128xf32>
    %51 = arith.truncf %50 : vector<288x128xf32> to vector<288x128xbf16>
    %c0_50 = arith.constant 0 : index
    %c0_51 = arith.constant 0 : index
    %52 = vector.load %arg7[%c0_50, %c0_51] : memref<288x128xf32, #tpu.memory_space<vmem>>, vector<288x128xf32>
    %c5_52 = arith.constant 5 : index
    %c0_53 = arith.constant 0 : index
    %c0_54 = arith.constant 0 : index
    %53 = vector.load %arg2[%c5_52, %c0_53, %c0_54] : memref<9x128x128xbf16, #tpu.memory_space<vmem>>, vector<1x128x128xbf16>
    %54 = vector.shape_cast %53 : vector<1x128x128xbf16> to vector<128x128xbf16>
    %cst_55 = arith.constant dense<0.000000e+00> : vector<288x128xf32>
    %55 = tpu.matmul %51, %54, %cst_55 {dimension_numbers = #tpu.dot_dimension_numbers<[1], [0], [0], [1], [0, 0, 1, 1], [], []>} : vector<288x128xbf16>, vector<128x128xbf16>, vector<288x128xf32> -> vector<288x128xf32>
    %56 = arith.addf %52, %55 : vector<288x128xf32>
    %c0_56 = arith.constant 0 : index
    %c0_57 = arith.constant 0 : index
    %57 = vector.load %arg7[%c0_56, %c0_57] : memref<288x128xf32, #tpu.memory_space<vmem>>, vector<288x128xf32>
    tpu.vector_store %arg7[%c0_56, %c0_57], %56 {strides = array<i32>} : memref<288x128xf32, #tpu.memory_space<vmem>>, vector<288x128xf32>,
    %c0_58 = arith.constant 0 : index
    %c41 = arith.constant 41 : index
    %c0_59 = arith.constant 0 : index
    %58 = vector.load %arg1[%c0_58, %c41, %c0_59] : memref<1x336x128xf32, #tpu.memory_space<vmem>>, vector<1x288x128xf32>
    %59 = vector.shape_cast %58 : vector<1x288x128xf32> to vector<288x128xf32>
    %60 = arith.truncf %59 : vector<288x128xf32> to vector<288x128xbf16>
    %c0_60 = arith.constant 0 : index
    %c0_61 = arith.constant 0 : index
    %61 = vector.load %arg7[%c0_60, %c0_61] : memref<288x128xf32, #tpu.memory_space<vmem>>, vector<288x128xf32>
    %c6_62 = arith.constant 6 : index
    %c0_63 = arith.constant 0 : index
    %c0_64 = arith.constant 0 : index
    %62 = vector.load %arg2[%c6_62, %c0_63, %c0_64] : memref<9x128x128xbf16, #tpu.memory_space<vmem>>, vector<1x128x128xbf16>
    %63 = vector.shape_cast %62 : vector<1x128x128xbf16> to vector<128x128xbf16>
    %cst_65 = arith.constant dense<0.000000e+00> : vector<288x128xf32>
    %64 = tpu.matmul %60, %63, %cst_65 {dimension_numbers = #tpu.dot_dimension_numbers<[1], [0], [0], [1], [0, 0, 1, 1], [], []>} : vector<288x128xbf16>, vector<128x128xbf16>, vector<288x128xf32> -> vector<288x128xf32>
    %65 = arith.addf %61, %64 : vector<288x128xf32>
    %c0_66 = arith.constant 0 : index
    %c0_67 = arith.constant 0 : index
    %66 = vector.load %arg7[%c0_66, %c0_67] : memref<288x128xf32, #tpu.memory_space<vmem>>, vector<288x128xf32>
    tpu.vector_store %arg7[%c0_66, %c0_67], %65 {strides = array<i32>} : memref<288x128xf32, #tpu.memory_space<vmem>>, vector<288x128xf32>,
    %c0_68 = arith.constant 0 : index
    %c42 = arith.constant 42 : index
    %c0_69 = arith.constant 0 : index
    %67 = vector.load %arg1[%c0_68, %c42, %c0_69] : memref<1x336x128xf32, #tpu.memory_space<vmem>>, vector<1x288x128xf32>
    %68 = vector.shape_cast %67 : vector<1x288x128xf32> to vector<288x128xf32>
    %69 = arith.truncf %68 : vector<288x128xf32> to vector<288x128xbf16>
    %c0_70 = arith.constant 0 : index
    %c0_71 = arith.constant 0 : index
    %70 = vector.load %arg7[%c0_70, %c0_71] : memref<288x128xf32, #tpu.memory_space<vmem>>, vector<288x128xf32>
    %c7_72 = arith.constant 7 : index
    %c0_73 = arith.constant 0 : index
    %c0_74 = arith.constant 0 : index
    %71 = vector.load %arg2[%c7_72, %c0_73, %c0_74] : memref<9x128x128xbf16, #tpu.memory_space<vmem>>, vector<1x128x128xbf16>
    %72 = vector.shape_cast %71 : vector<1x128x128xbf16> to vector<128x128xbf16>
    %cst_75 = arith.constant dense<0.000000e+00> : vector<288x128xf32>
    %73 = tpu.matmul %69, %72, %cst_75 {dimension_numbers = #tpu.dot_dimension_numbers<[1], [0], [0], [1], [0, 0, 1, 1], [], []>} : vector<288x128xbf16>, vector<128x128xbf16>, vector<288x128xf32> -> vector<288x128xf32>
    %74 = arith.addf %70, %73 : vector<288x128xf32>
    %c0_76 = arith.constant 0 : index
    %c0_77 = arith.constant 0 : index
    %75 = vector.load %arg7[%c0_76, %c0_77] : memref<288x128xf32, #tpu.memory_space<vmem>>, vector<288x128xf32>
    tpu.vector_store %arg7[%c0_76, %c0_77], %74 {strides = array<i32>} : memref<288x128xf32, #tpu.memory_space<vmem>>, vector<288x128xf32>,
    %c0_78 = arith.constant 0 : index
    %c43 = arith.constant 43 : index
    %c0_79 = arith.constant 0 : index
    %76 = vector.load %arg1[%c0_78, %c43, %c0_79] : memref<1x336x128xf32, #tpu.memory_space<vmem>>, vector<1x288x128xf32>
    %77 = vector.shape_cast %76 : vector<1x288x128xf32> to vector<288x128xf32>
    %78 = arith.truncf %77 : vector<288x128xf32> to vector<288x128xbf16>
    %c0_80 = arith.constant 0 : index
    %c0_81 = arith.constant 0 : index
    %79 = vector.load %arg7[%c0_80, %c0_81] : memref<288x128xf32, #tpu.memory_space<vmem>>, vector<288x128xf32>
    %c8 = arith.constant 8 : index
    %c0_82 = arith.constant 0 : index
    %c0_83 = arith.constant 0 : index
    %80 = vector.load %arg2[%c8, %c0_82, %c0_83] : memref<9x128x128xbf16, #tpu.memory_space<vmem>>, vector<1x128x128xbf16>
    %81 = vector.shape_cast %80 : vector<1x128x128xbf16> to vector<128x128xbf16>
    %cst_84 = arith.constant dense<0.000000e+00> : vector<288x128xf32>
    %82 = tpu.matmul %78, %81, %cst_84 {dimension_numbers = #tpu.dot_dimension_numbers<[1], [0], [0], [1], [0, 0, 1, 1], [], []>} : vector<288x128xbf16>, vector<128x128xbf16>, vector<288x128xf32> -> vector<288x128xf32>
    %83 = arith.addf %79, %82 : vector<288x128xf32>
    %c0_85 = arith.constant 0 : index
    %c0_86 = arith.constant 0 : index
    %84 = vector.load %arg7[%c0_85, %c0_86] : memref<288x128xf32, #tpu.memory_space<vmem>>, vector<288x128xf32>
    tpu.vector_store %arg7[%c0_85, %c0_86], %83 {strides = array<i32>} : memref<288x128xf32, #tpu.memory_space<vmem>>, vector<288x128xf32>,
    %c0_87 = arith.constant 0 : index
    %c0_88 = arith.constant 0 : index
    %85 = vector.load %arg7[%c0_87, %c0_88] : memref<288x128xf32, #tpu.memory_space<vmem>>, vector<288x128xf32>
    %cst_89 = arith.constant 0.000000e+00 : f32
    %86 = vector.broadcast %cst_89 : f32 to vector<288x128xf32>
    %87 = arith.maximumf %85, %86 : vector<288x128xf32>
    %88 = arith.truncf %87 : vector<288x128xf32> to vector<288x128xbf16>
    %c0_90 = arith.constant 0 : index
    %c0_91 = arith.constant 0 : index
    %89 = vector.load %arg4[%c0_90, %c0_91] : memref<128x128xbf16, #tpu.memory_space<vmem>>, vector<128x128xbf16>
    %cst_92 = arith.constant dense<0.000000e+00> : vector<288x128xf32>
    %90 = tpu.matmul %88, %89, %cst_92 {dimension_numbers = #tpu.dot_dimension_numbers<[1], [0], [0], [1], [0, 0, 1, 1], [], []>} : vector<288x128xbf16>, vector<128x128xbf16>, vector<288x128xf32> -> vector<288x128xf32>
    %c0_93 = arith.constant 0 : index
    %c0_94 = arith.constant 0 : index
    %91 = vector.load %arg5[%c0_93, %c0_94] : memref<1x128xf32, #tpu.memory_space<vmem>>, vector<1x128xf32>
    %92 = vector.broadcast %91 : vector<1x128xf32> to vector<288x128xf32>
    %93 = arith.addf %90, %92 : vector<288x128xf32>
    %c0_95 = arith.constant 0 : index
    %c0_96 = arith.constant 0 : index
    %c0_97 = arith.constant 0 : index
    %94 = vector.load %arg6[%c0_95, %c0_96, %c0_97] : memref<1x288x128xf32, #tpu.memory_space<vmem>>, vector<1x288x128xf32>
    %95 = vector.shape_cast %94 : vector<1x288x128xf32> to vector<288x128xf32>
    %96 = vector.shape_cast %93 : vector<288x128xf32> to vector<1x288x128xf32>
    tpu.vector_store %arg6[%c0_95, %c0_96, %c0_97], %96 {strides = array<i32>} : memref<1x288x128xf32, #tpu.memory_space<vmem>>, vector<1x288x128xf32>,
    return
  }
  func.func @transform_0(%arg0: i32) -> (i32, i32, i32) {
    %c0_i32 = arith.constant 0 : i32
    %c0_i32_0 = arith.constant 0 : i32
    %c0_i32_1 = arith.constant 0 : i32
    return %arg0, %c0_i32, %c0_i32_0 : i32, i32, i32
  }
  func.func @transform_1(%arg0: i32) -> (i32, i32, i32) {
    %c0_i32 = arith.constant 0 : i32
    %c0_i32_0 = arith.constant 0 : i32
    %c0_i32_1 = arith.constant 0 : i32
    %c0_i32_2 = arith.constant 0 : i32
    return %c0_i32, %c0_i32_0, %c0_i32_1 : i32, i32, i32
  }
  func.func @transform_2(%arg0: i32) -> (i32, i32) {
    %c0_i32 = arith.constant 0 : i32
    %c0_i32_0 = arith.constant 0 : i32
    %c0_i32_1 = arith.constant 0 : i32
    return %c0_i32, %c0_i32_0 : i32, i32
  }
  func.func @transform_3(%arg0: i32) -> (i32, i32) {
    %c0_i32 = arith.constant 0 : i32
    %c0_i32_0 = arith.constant 0 : i32
    %c0_i32_1 = arith.constant 0 : i32
    return %c0_i32, %c0_i32_0 : i32, i32
  }
  func.func @transform_4(%arg0: i32) -> (i32, i32) {
    %c0_i32 = arith.constant 0 : i32
    %c0_i32_0 = arith.constant 0 : i32
    %c0_i32_1 = arith.constant 0 : i32
    return %c0_i32, %c0_i32_0 : i32, i32
  }
  func.func @transform_5(%arg0: i32) -> (i32, i32, i32) {
    %c0_i32 = arith.constant 0 : i32
    %c0_i32_0 = arith.constant 0 : i32
    %c0_i32_1 = arith.constant 0 : i32
    return %arg0, %c0_i32, %c0_i32_0 : i32, i32, i32
  }
}

module attributes {stable_mosaic.version = 11 : i64} {
  func.func @box_head_kernel(%arg0: i32, %arg1: memref<16x128xbf16, #tpu.memory_space<vmem>>, %arg2: memref<128x128xbf16, #tpu.memory_space<vmem>>, %arg3: memref<1x128xf32, #tpu.memory_space<vmem>>, %arg4: memref<128x128xbf16, #tpu.memory_space<vmem>>, %arg5: memref<1x128xf32, #tpu.memory_space<vmem>>, %arg6: memref<128x128xbf16, #tpu.memory_space<vmem>>, %arg7: memref<1x128xf32, #tpu.memory_space<vmem>>, %arg8: memref<16x128xf32, #tpu.memory_space<vmem>>) attributes {dimension_semantics = [#tpu.dimension_semantics<arbitrary>], iteration_bounds = array<i64: 1>, scalar_prefetch = 0 : i64, scratch_operands = 0 : i64, tpu.core_type = #tpu.core_type<tc>, window_params = [{pipeline_mode = #tpu.pipeline_mode<synchronous>, transform_indices = @transform_0, window_bounds = array<i64: 16, 128>}, {pipeline_mode = #tpu.pipeline_mode<synchronous>, transform_indices = @transform_1, window_bounds = array<i64: 128, 128>}, {pipeline_mode = #tpu.pipeline_mode<synchronous>, transform_indices = @transform_2, window_bounds = array<i64: 1, 128>}, {pipeline_mode = #tpu.pipeline_mode<synchronous>, transform_indices = @transform_3, window_bounds = array<i64: 128, 128>}, {pipeline_mode = #tpu.pipeline_mode<synchronous>, transform_indices = @transform_4, window_bounds = array<i64: 1, 128>}, {pipeline_mode = #tpu.pipeline_mode<synchronous>, transform_indices = @transform_5, window_bounds = array<i64: 128, 128>}, {pipeline_mode = #tpu.pipeline_mode<synchronous>, transform_indices = @transform_6, window_bounds = array<i64: 1, 128>}, {pipeline_mode = #tpu.pipeline_mode<synchronous>, transform_indices = @transform_7, window_bounds = array<i64: 16, 128>}]} {
    %c0 = arith.constant 0 : index
    %c0_0 = arith.constant 0 : index
    %0 = vector.load %arg1[%c0, %c0_0] : memref<16x128xbf16, #tpu.memory_space<vmem>>, vector<16x128xbf16>
    %c0_1 = arith.constant 0 : index
    %c0_2 = arith.constant 0 : index
    %1 = vector.load %arg2[%c0_1, %c0_2] : memref<128x128xbf16, #tpu.memory_space<vmem>>, vector<128x128xbf16>
    %cst = arith.constant dense<0.000000e+00> : vector<16x128xf32>
    %2 = tpu.matmul %0, %1, %cst {dimension_numbers = #tpu.dot_dimension_numbers<[1], [0], [0], [1], [0, 0, 1, 1], [], []>} : vector<16x128xbf16>, vector<128x128xbf16>, vector<16x128xf32> -> vector<16x128xf32>
    %c0_3 = arith.constant 0 : index
    %c0_4 = arith.constant 0 : index
    %3 = vector.load %arg3[%c0_3, %c0_4] : memref<1x128xf32, #tpu.memory_space<vmem>>, vector<1x128xf32>
    %4 = vector.broadcast %3 : vector<1x128xf32> to vector<16x128xf32>
    %5 = arith.addf %2, %4 : vector<16x128xf32>
    %cst_5 = arith.constant 0.000000e+00 : f32
    %6 = vector.broadcast %cst_5 : f32 to vector<16x128xf32>
    %7 = arith.maximumf %5, %6 : vector<16x128xf32>
    %8 = arith.truncf %7 : vector<16x128xf32> to vector<16x128xbf16>
    %c0_6 = arith.constant 0 : index
    %c0_7 = arith.constant 0 : index
    %9 = vector.load %arg4[%c0_6, %c0_7] : memref<128x128xbf16, #tpu.memory_space<vmem>>, vector<128x128xbf16>
    %cst_8 = arith.constant dense<0.000000e+00> : vector<16x128xf32>
    %10 = tpu.matmul %8, %9, %cst_8 {dimension_numbers = #tpu.dot_dimension_numbers<[1], [0], [0], [1], [0, 0, 1, 1], [], []>} : vector<16x128xbf16>, vector<128x128xbf16>, vector<16x128xf32> -> vector<16x128xf32>
    %c0_9 = arith.constant 0 : index
    %c0_10 = arith.constant 0 : index
    %11 = vector.load %arg5[%c0_9, %c0_10] : memref<1x128xf32, #tpu.memory_space<vmem>>, vector<1x128xf32>
    %12 = vector.broadcast %11 : vector<1x128xf32> to vector<16x128xf32>
    %13 = arith.addf %10, %12 : vector<16x128xf32>
    %cst_11 = arith.constant 0.000000e+00 : f32
    %14 = vector.broadcast %cst_11 : f32 to vector<16x128xf32>
    %15 = arith.maximumf %13, %14 : vector<16x128xf32>
    %16 = arith.truncf %15 : vector<16x128xf32> to vector<16x128xbf16>
    %c0_12 = arith.constant 0 : index
    %c0_13 = arith.constant 0 : index
    %17 = vector.load %arg6[%c0_12, %c0_13] : memref<128x128xbf16, #tpu.memory_space<vmem>>, vector<128x128xbf16>
    %cst_14 = arith.constant dense<0.000000e+00> : vector<16x128xf32>
    %18 = tpu.matmul %16, %17, %cst_14 {dimension_numbers = #tpu.dot_dimension_numbers<[1], [0], [0], [1], [0, 0, 1, 1], [], []>} : vector<16x128xbf16>, vector<128x128xbf16>, vector<16x128xf32> -> vector<16x128xf32>
    %c0_15 = arith.constant 0 : index
    %c0_16 = arith.constant 0 : index
    %19 = vector.load %arg7[%c0_15, %c0_16] : memref<1x128xf32, #tpu.memory_space<vmem>>, vector<1x128xf32>
    %20 = vector.broadcast %19 : vector<1x128xf32> to vector<16x128xf32>
    %21 = arith.addf %18, %20 : vector<16x128xf32>
    %c0_17 = arith.constant 0 : index
    %c0_18 = arith.constant 0 : index
    %22 = vector.load %arg8[%c0_17, %c0_18] : memref<16x128xf32, #tpu.memory_space<vmem>>, vector<16x128xf32>
    tpu.vector_store %arg8[%c0_17, %c0_18], %21 {strides = array<i32>} : memref<16x128xf32, #tpu.memory_space<vmem>>, vector<16x128xf32>,
    return
  }
  func.func @transform_0(%arg0: i32) -> (i32, i32) {
    %c0_i32 = arith.constant 0 : i32
    %c0_i32_0 = arith.constant 0 : i32
    %c0_i32_1 = arith.constant 0 : i32
    return %c0_i32, %c0_i32_0 : i32, i32
  }
  func.func @transform_1(%arg0: i32) -> (i32, i32) {
    %c0_i32 = arith.constant 0 : i32
    %c0_i32_0 = arith.constant 0 : i32
    %c0_i32_1 = arith.constant 0 : i32
    return %c0_i32, %c0_i32_0 : i32, i32
  }
  func.func @transform_2(%arg0: i32) -> (i32, i32) {
    %c0_i32 = arith.constant 0 : i32
    %c0_i32_0 = arith.constant 0 : i32
    %c0_i32_1 = arith.constant 0 : i32
    return %c0_i32, %c0_i32_0 : i32, i32
  }
  func.func @transform_3(%arg0: i32) -> (i32, i32) {
    %c0_i32 = arith.constant 0 : i32
    %c0_i32_0 = arith.constant 0 : i32
    %c0_i32_1 = arith.constant 0 : i32
    return %c0_i32, %c0_i32_0 : i32, i32
  }
  func.func @transform_4(%arg0: i32) -> (i32, i32) {
    %c0_i32 = arith.constant 0 : i32
    %c0_i32_0 = arith.constant 0 : i32
    %c0_i32_1 = arith.constant 0 : i32
    return %c0_i32, %c0_i32_0 : i32, i32
  }
  func.func @transform_5(%arg0: i32) -> (i32, i32) {
    %c0_i32 = arith.constant 0 : i32
    %c0_i32_0 = arith.constant 0 : i32
    %c0_i32_1 = arith.constant 0 : i32
    return %c0_i32, %c0_i32_0 : i32, i32
  }
  func.func @transform_6(%arg0: i32) -> (i32, i32) {
    %c0_i32 = arith.constant 0 : i32
    %c0_i32_0 = arith.constant 0 : i32
    %c0_i32_1 = arith.constant 0 : i32
    return %c0_i32, %c0_i32_0 : i32, i32
  }
  func.func @transform_7(%arg0: i32) -> (i32, i32) {
    %c0_i32 = arith.constant 0 : i32
    %c0_i32_0 = arith.constant 0 : i32
    %c0_i32_1 = arith.constant 0 : i32
    return %c0_i32, %c0_i32_0 : i32, i32
  }
}

</mosaic_0001>

<llo_original>
// kernel: faster_rcnn_forward.5
$region0: #{faster_rcnn_forward.5}
  #allocation0 [shape = 'u32[]', space=smem, size = 0x4, offset = 0x4, fixed_abs, tag = 'smem constant byte address 0x4 - core index']
  #allocation1 [shape = 'u32[144,128]{1,0:T(1,128)}', space=vmem, size = 0x12000, scoped, tag = 'internal scratch']
  %s0 = inlined_call_operand.vmem [shape: bf16[16,128], index: 0, kind: input, shape index: {}]
  %s1 = inlined_call_operand.vmem [shape: bf16[128,128], index: 1, kind: input, shape index: {}]
  %s2 = inlined_call_operand.vmem [shape: f32[1,128], index: 2, kind: input, shape index: {}]
  %s3 = inlined_call_operand.vmem [shape: bf16[128,128], index: 3, kind: input, shape index: {}]
  %s4 = inlined_call_operand.vmem [shape: f32[1,128], index: 4, kind: input, shape index: {}]
  %s5 = inlined_call_operand.vmem [shape: bf16[128,128], index: 5, kind: input, shape index: {}]
  %s6 = inlined_call_operand.vmem [shape: f32[1,128], index: 6, kind: input, shape index: {}]
  %s7 = inlined_call_operand.vmem [shape: f32[16,128], index: 7, kind: output, shape index: {}]
  %s8 = sld [smem:[#allocation0]]
  $region38: #{faster_rcnn_forward.5} parent=0
    _
  %s10 = ssub.s32 1, %s8
  %s11 = scalar_select 0, %s10, %s8
  // Predicated region
  $region2: #{faster_rcnn_forward.5} parent=0 // pred_check
    _
  $region3: #{faster_rcnn_forward.5} parent=0 // pred_check_branch
    %13 = sbr.rel (0) target = $region5
  $region4: #{faster_rcnn_forward.5} parent=0 // pred_region
    _
  $region5: #{faster_rcnn_forward.5} parent=0 // pred_fallthru
    _
  // Predicated region
  $region6: #{faster_rcnn_forward.5} parent=0 // pred_check
    _
  $region7: #{faster_rcnn_forward.5} parent=0 // pred_check_branch
    %15 = sbr.rel (0) target = $region9
  $region8: #{faster_rcnn_forward.5} parent=0 // pred_region
    _
  $region9: #{faster_rcnn_forward.5} parent=0 // pred_fallthru
    _
  // Predicated region
  $region10: #{faster_rcnn_forward.5} parent=0 // pred_check
    _
  $region11: #{faster_rcnn_forward.5} parent=0 // pred_check_branch
    %17 = sbr.rel (0) target = $region13
  $region12: #{faster_rcnn_forward.5} parent=0 // pred_region
    _
  $region13: #{faster_rcnn_forward.5} parent=0 // pred_fallthru
    _
  // Predicated region
  $region14: #{faster_rcnn_forward.5} parent=0 // pred_check
    _
  $region15: #{faster_rcnn_forward.5} parent=0 // pred_check_branch
    %19 = sbr.rel (0) target = $region17
  $region16: #{faster_rcnn_forward.5} parent=0 // pred_region
    _
  $region17: #{faster_rcnn_forward.5} parent=0 // pred_fallthru
    _
  // Predicated region
  $region18: #{faster_rcnn_forward.5} parent=0 // pred_check
    _
  $region19: #{faster_rcnn_forward.5} parent=0 // pred_check_branch
    %21 = sbr.rel (0) target = $region21
  $region20: #{faster_rcnn_forward.5} parent=0 // pred_region
    _
  $region21: #{faster_rcnn_forward.5} parent=0 // pred_fallthru
    _
  // Predicated region
  $region22: #{faster_rcnn_forward.5} parent=0 // pred_check
    _
  $region23: #{faster_rcnn_forward.5} parent=0 // pred_check_branch
    %23 = sbr.rel (0) target = $region25
  $region24: #{faster_rcnn_forward.5} parent=0 // pred_region
    _
  $region25: #{faster_rcnn_forward.5} parent=0 // pred_fallthru
    _
  // Predicated region
  $region26: #{faster_rcnn_forward.5} parent=0 // pred_check
    _
  $region27: #{faster_rcnn_forward.5} parent=0 // pred_check_branch
    %25 = sbr.rel (0) target = $region29
  $region28: #{faster_rcnn_forward.5} parent=0 // pred_region
    _
  $region29: #{faster_rcnn_forward.5} parent=0 // pred_fallthru
    _
  %v27 = vld [vmem:[%s0] sm:$0xf]
  %v28 = vld [vmem:[%s0 + $0x4] sm:$0xf]
  %v29 = vld [vmem:[%s1] sm:$0xf]
  %v30 = vld [vmem:[%s1 + $0x4] sm:$0xf]
  %v31 = vld [vmem:[%s1 + $0x8] sm:$0xf]
  %v32 = vld [vmem:[%s1 + $0xc] sm:$0xf]
  %v33 = vld [vmem:[%s1 + $0x10] sm:$0xf]
  %v34 = vld [vmem:[%s1 + $0x14] sm:$0xf]
  %v35 = vld [vmem:[%s1 + $0x18] sm:$0xf]
  %v36 = vld [vmem:[%s1 + $0x1c] sm:$0xf]
  %v37 = vld [vmem:[%s1 + $0x20] sm:$0xf]
  %v38 = vld [vmem:[%s1 + $0x24] sm:$0xf]
  %v39 = vld [vmem:[%s1 + $0x28] sm:$0xf]
  %v40 = vld [vmem:[%s1 + $0x2c] sm:$0xf]
  %v41 = vld [vmem:[%s1 + $0x30] sm:$0xf]
  %v42 = vld [vmem:[%s1 + $0x34] sm:$0xf]
  %v43 = vld [vmem:[%s1 + $0x38] sm:$0xf]
  %v44 = vld [vmem:[%s1 + $0x3c] sm:$0xf]
  %v45 = vld [vmem:[%s2] sm:$0x1]
  %v47 = vlaneseq
  %v48 = vshrl.u32 %v47, 7
  %v49 = vsub.s32 0, %v48
  %v50 = vrot.slane %v45, %v49
  %v54 = vunpack.c.l.b16 %v27
  %v55 = vunpack.c.l.b16 %v28
  %v56 = vpack.c.b16 %v55, %v54
  %v74 = vunpack.c.l.b16 %v29
  %v75 = vunpack.c.l.b16 %v30
  %v76 = vunpack.c.l.b16 %v31
  %v77 = vunpack.c.l.b16 %v32
  %v78 = vunpack.c.l.b16 %v33
  %v79 = vunpack.c.l.b16 %v34
  %v80 = vunpack.c.l.b16 %v35
  %v81 = vunpack.c.l.b16 %v36
  %v82 = vunpack.c.l.b16 %v37
  %v83 = vunpack.c.l.b16 %v38
  %v84 = vunpack.c.l.b16 %v39
  %v85 = vunpack.c.l.b16 %v40
  %v86 = vunpack.c.l.b16 %v41
  %v87 = vunpack.c.l.b16 %v42
  %v88 = vunpack.c.l.b16 %v43
  %v89 = vunpack.c.l.b16 %v44
  %v90 = vpack.c.b16 %v75, %v74
  %v91 = vpack.c.b16 %v77, %v76
  %v92 = vpack.c.b16 %v79, %v78
  %v93 = vpack.c.b16 %v81, %v80
  %v94 = vpack.c.b16 %v83, %v82
  %v95 = vpack.c.b16 %v85, %v84
  %v96 = vpack.c.b16 %v87, %v86
  %v97 = vpack.c.b16 %v89, %v88
  %106 = vmatprep.subr.bf16.mxu0 0
  %107 = vmatpush1.bf16.msra.mxu0 %v97
  %108 = vmatprep.subr.bf16.mxu0 0
  %109 = vmatpush1.bf16.msra.mxu0 %v96
  %110 = vmatprep.subr.bf16.mxu0 0
  %111 = vmatpush1.bf16.msra.mxu0 %v95
  %112 = vmatprep.subr.bf16.mxu0 0
  %113 = vmatpush1.bf16.msra.mxu0 %v94
  %114 = vmatprep.subr.bf16.mxu0 0
  %115 = vmatpush1.bf16.msra.mxu0 %v93
  %116 = vmatprep.subr.bf16.mxu0 0
  %117 = vmatpush1.bf16.msra.mxu0 %v92
  %118 = vmatprep.subr.bf16.mxu0 0
  %119 = vmatpush1.bf16.msra.mxu0 %v91
  %120 = vmatprep.subr.bf16.mxu0 0
  %121 = vmatpush1.bf16.msra.mxu0 %v90
  %122 = vmatprep.subr.bf16.mxu0 0
  %123 = vmatpush2.bf16.msra.mxu0 0
  %124 = vmatprep.subr.bf16.mxu0 0
  %125 = vmatpush2.bf16.msra.mxu0 0
  %126 = vmatprep.subr.bf16.mxu0 0
  %127 = vmatpush2.bf16.msra.mxu0 0
  %128 = vmatprep.subr.bf16.mxu0 0
  %129 = vmatpush2.bf16.msra.mxu0 0
  %130 = vmatprep.subr.bf16.mxu0 0
  %131 = vmatpush2.bf16.msra.mxu0 0
  %132 = vmatprep.subr.bf16.mxu0 0
  %133 = vmatpush2.bf16.msra.mxu0 0
  %134 = vmatprep.subr.bf16.mxu0 0
  %135 = vmatpush2.bf16.msra.mxu0 0
  %136 = vmatprep.subr.bf16.mxu0 0
  %137 = vmatpush2.bf16.msra.mxu0 0
  %138 = vmatprep.mubr.bf16.mxu0 0
  %139 = vmatmul.mubr.bf16.gmra.mxu0 %v56
  %v140 = vpop.f32.mrf.mxu0
  %v141 = vadd.f32 %v50, %v140
  %v142 = vpop.f32.mrf.mxu0
  %v143 = vpop.f32.mrf.mxu0
  %v144 = vadd.f32 %v50, %v143
  %v145 = vpop.f32.mrf.mxu0
  %146 = vdwg.mxu0
  %v147 = vmax.f32 %v141, 0.0
  %v148 = vmax.f32 %v144, 0.0
  %v149 = vpack.c.bf16 %v148, %v147
  %v150 = vld [vmem:[%s3] sm:$0xf]
  %v151 = vld [vmem:[%s3 + $0x4] sm:$0xf]
  %v152 = vld [vmem:[%s3 + $0x8] sm:$0xf]
  %v153 = vld [vmem:[%s3 + $0xc] sm:$0xf]
  %v154 = vld [vmem:[%s3 + $0x10] sm:$0xf]
  %v155 = vld [vmem:[%s3 + $0x14] sm:$0xf]
  %v156 = vld [vmem:[%s3 + $0x18] sm:$0xf]
  %v157 = vld [vmem:[%s3 + $0x1c] sm:$0xf]
  %v158 = vld [vmem:[%s3 + $0x20] sm:$0xf]
  %v159 = vld [vmem:[%s3 + $0x24] sm:$0xf]
  %v160 = vld [vmem:[%s3 + $0x28] sm:$0xf]
  %v161 = vld [vmem:[%s3 + $0x2c] sm:$0xf]
  %v162 = vld [vmem:[%s3 + $0x30] sm:$0xf]
  %v163 = vld [vmem:[%s3 + $0x34] sm:$0xf]
  %v164 = vld [vmem:[%s3 + $0x38] sm:$0xf]
  %v165 = vld [vmem:[%s3 + $0x3c] sm:$0xf]
  %v166 = vld [vmem:[%s4] sm:$0x1]
  %v168 = vlaneseq
  %v169 = vshrl.u32 %v168, 7
  %v170 = vsub.s32 0, %v169
  %v171 = vrot.slane %v166, %v170
  %v189 = vunpack.c.l.b16 %v150
  %v190 = vunpack.c.l.b16 %v151
  %v191 = vunpack.c.l.b16 %v152
  %v192 = vunpack.c.l.b16 %v153
  %v193 = vunpack.c.l.b16 %v154
  %v194 = vunpack.c.l.b16 %v155
  %v195 = vunpack.c.l.b16 %v156
  %v196 = vunpack.c.l.b16 %v157
  %v197 = vunpack.c.l.b16 %v158
  %v198 = vunpack.c.l.b16 %v159
  %v199 = vunpack.c.l.b16 %v160
  %v200 = vunpack.c.l.b16 %v161
  %v201 = vunpack.c.l.b16 %v162
  %v202 = vunpack.c.l.b16 %v163
  %v203 = vunpack.c.l.b16 %v164
  %v204 = vunpack.c.l.b16 %v165
  %v205 = vpack.c.b16 %v190, %v189
  %v206 = vpack.c.b16 %v192, %v191
  %v207 = vpack.c.b16 %v194, %v193
  %v208 = vpack.c.b16 %v196, %v195
  %v209 = vpack.c.b16 %v198, %v197
  %v210 = vpack.c.b16 %v200, %v199
  %v211 = vpack.c.b16 %v202, %v201
  %v212 = vpack.c.b16 %v204, %v203
  %221 = vmatprep.subr.bf16.mxu0 0
  %222 = vmatpush1.bf16.msra.mxu0 %v212
  %223 = vmatprep.subr.bf16.mxu0 0
  %224 = vmatpush1.bf16.msra.mxu0 %v211
  %225 = vmatprep.subr.bf16.mxu0 0
  %226 = vmatpush1.bf16.msra.mxu0 %v210
  %227 = vmatprep.subr.bf16.mxu0 0
  %228 = vmatpush1.bf16.msra.mxu0 %v209
  %229 = vmatprep.subr.bf16.mxu0 0
  %230 = vmatpush1.bf16.msra.mxu0 %v208
  %231 = vmatprep.subr.bf16.mxu0 0
  %232 = vmatpush1.bf16.msra.mxu0 %v207
  %233 = vmatprep.subr.bf16.mxu0 0
  %234 = vmatpush1.bf16.msra.mxu0 %v206
  %235 = vmatprep.subr.bf16.mxu0 0
  %236 = vmatpush1.bf16.msra.mxu0 %v205
  %237 = vmatprep.subr.bf16.mxu0 0
  %238 = vmatpush2.bf16.msra.mxu0 0
  %239 = vmatprep.subr.bf16.mxu0 0
  %240 = vmatpush2.bf16.msra.mxu0 0
  %241 = vmatprep.subr.bf16.mxu0 0
  %242 = vmatpush2.bf16.msra.mxu0 0
  %243 = vmatprep.subr.bf16.mxu0 0
  %244 = vmatpush2.bf16.msra.mxu0 0
  %245 = vmatprep.subr.bf16.mxu0 0
  %246 = vmatpush2.bf16.msra.mxu0 0
  %247 = vmatprep.subr.bf16.mxu0 0
  %248 = vmatpush2.bf16.msra.mxu0 0
  %249 = vmatprep.subr.bf16.mxu0 0
  %250 = vmatpush2.bf16.msra.mxu0 0
  %251 = vmatprep.subr.bf16.mxu0 0
  %252 = vmatpush2.bf16.msra.mxu0 0
  %253 = vmatprep.mubr.bf16.mxu0 0
  %254 = vmatmul.mubr.bf16.gmra.mxu0 %v149
  %v255 = vpop.f32.mrf.mxu0
  %v256 = vadd.f32 %v171, %v255
  %v257 = vpop.f32.mrf.mxu0
  %v258 = vpop.f32.mrf.mxu0
  %v259 = vadd.f32 %v171, %v258
  %v260 = vpop.f32.mrf.mxu0
  %261 = vdwg.mxu0
  %v262 = vmax.f32 %v256, 0.0
  %v263 = vmax.f32 %v259, 0.0
  %v264 = vpack.c.bf16 %v263, %v262
  %v265 = vld [vmem:[%s5] sm:$0xf]
  %v266 = vld [vmem:[%s5 + $0x4] sm:$0xf]
  %v267 = vld [vmem:[%s5 + $0x8] sm:$0xf]
  %v268 = vld [vmem:[%s5 + $0xc] sm:$0xf]
  %v269 = vld [vmem:[%s5 + $0x10] sm:$0xf]
  %v270 = vld [vmem:[%s5 + $0x14] sm:$0xf]
  %v271 = vld [vmem:[%s5 + $0x18] sm:$0xf]
  %v272 = vld [vmem:[%s5 + $0x1c] sm:$0xf]
  %v273 = vld [vmem:[%s5 + $0x20] sm:$0xf]
  %v274 = vld [vmem:[%s5 + $0x24] sm:$0xf]
  %v275 = vld [vmem:[%s5 + $0x28] sm:$0xf]
  %v276 = vld [vmem:[%s5 + $0x2c] sm:$0xf]
  %v277 = vld [vmem:[%s5 + $0x30] sm:$0xf]
  %v278 = vld [vmem:[%s5 + $0x34] sm:$0xf]
  %v279 = vld [vmem:[%s5 + $0x38] sm:$0xf]
  %v280 = vld [vmem:[%s5 + $0x3c] sm:$0xf]
  %v281 = vld [vmem:[%s6] sm:$0x1]
  %v283 = vlaneseq
  %v284 = vshrl.u32 %v283, 7
  %v285 = vsub.s32 0, %v284
  %v286 = vrot.slane %v281, %v285
  %v304 = vunpack.c.l.b16 %v265
  %v305 = vunpack.c.l.b16 %v266
  %v306 = vunpack.c.l.b16 %v267
  %v307 = vunpack.c.l.b16 %v268
  %v308 = vunpack.c.l.b16 %v269
  %v309 = vunpack.c.l.b16 %v270
  %v310 = vunpack.c.l.b16 %v271
  %v311 = vunpack.c.l.b16 %v272
  %v312 = vunpack.c.l.b16 %v273
  %v313 = vunpack.c.l.b16 %v274
  %v314 = vunpack.c.l.b16 %v275
  %v315 = vunpack.c.l.b16 %v276
  %v316 = vunpack.c.l.b16 %v277
  %v317 = vunpack.c.l.b16 %v278
  %v318 = vunpack.c.l.b16 %v279
  %v319 = vunpack.c.l.b16 %v280
  %v320 = vpack.c.b16 %v305, %v304
  %v321 = vpack.c.b16 %v307, %v306
  %v322 = vpack.c.b16 %v309, %v308
  %v323 = vpack.c.b16 %v311, %v310
  %v324 = vpack.c.b16 %v313, %v312
  %v325 = vpack.c.b16 %v315, %v314
  %v326 = vpack.c.b16 %v317, %v316
  %v327 = vpack.c.b16 %v319, %v318
  %336 = vmatprep.subr.bf16.mxu0 0
  %337 = vmatpush1.bf16.msra.mxu0 %v327
  %338 = vmatprep.subr.bf16.mxu0 0
  %339 = vmatpush1.bf16.msra.mxu0 %v326
  %340 = vmatprep.subr.bf16.mxu0 0
  %341 = vmatpush1.bf16.msra.mxu0 %v325
  %342 = vmatprep.subr.bf16.mxu0 0
  %343 = vmatpush1.bf16.msra.mxu0 %v324
  %344 = vmatprep.subr.bf16.mxu0 0
  %345 = vmatpush1.bf16.msra.mxu0 %v323
  %346 = vmatprep.subr.bf16.mxu0 0
  %347 = vmatpush1.bf16.msra.mxu0 %v322
  %348 = vmatprep.subr.bf16.mxu0 0
  %349 = vmatpush1.bf16.msra.mxu0 %v321
  %350 = vmatprep.subr.bf16.mxu0 0
  %351 = vmatpush1.bf16.msra.mxu0 %v320
  %352 = vmatprep.subr.bf16.mxu0 0
  %353 = vmatpush2.bf16.msra.mxu0 0
  %354 = vmatprep.subr.bf16.mxu0 0
  %355 = vmatpush2.bf16.msra.mxu0 0
  %356 = vmatprep.subr.bf16.mxu0 0
  %357 = vmatpush2.bf16.msra.mxu0 0
  %358 = vmatprep.subr.bf16.mxu0 0
  %359 = vmatpush2.bf16.msra.mxu0 0
  %360 = vmatprep.subr.bf16.mxu0 0
  %361 = vmatpush2.bf16.msra.mxu0 0
  %362 = vmatprep.subr.bf16.mxu0 0
  %363 = vmatpush2.bf16.msra.mxu0 0
  %364 = vmatprep.subr.bf16.mxu0 0
  %365 = vmatpush2.bf16.msra.mxu0 0
  %366 = vmatprep.subr.bf16.mxu0 0
  %367 = vmatpush2.bf16.msra.mxu0 0
  %368 = vmatprep.mubr.bf16.mxu0 0
  %369 = vmatmul.mubr.bf16.gmra.mxu0 %v264
  %v370 = vpop.f32.mrf.mxu0
  %v371 = vadd.f32 %v286, %v370
  %v372 = vpop.f32.mrf.mxu0
  %v373 = vpop.f32.mrf.mxu0
  %v374 = vadd.f32 %v286, %v373
  %v375 = vpop.f32.mrf.mxu0
  %376 = vdwg.mxu0
  %377 = vst [vmem:[%s7] sm:$0xff] %v371
  %378 = vst [vmem:[%s7 + $0x8] sm:$0xff] %v374
  // Predicated region
  $region30: #{faster_rcnn_forward.5} parent=0 // pred_check
    _
  $region31: #{faster_rcnn_forward.5} parent=0 // pred_check_branch
    %380 = sbr.rel (0) target = $region33
  $region32: #{faster_rcnn_forward.5} parent=0 // pred_region
    _
  $region33: #{faster_rcnn_forward.5} parent=0 // pred_fallthru
    _
  // Predicated region
  $region34: #{faster_rcnn_forward.5} parent=0 // pred_check
    _
  $region35: #{faster_rcnn_forward.5} parent=0 // pred_check_branch
    %382 = sbr.rel (0) target = $region37
  $region36: #{faster_rcnn_forward.5} parent=0 // pred_region
    _
  $region37: #{faster_rcnn_forward.5} parent=0 // pred_fallthru
    _

// kernel: faster_rcnn_forward.3
$region0: #{faster_rcnn_forward.3}
  #allocation0 [shape = 'u32[]', space=smem, size = 0x4, offset = 0x4, fixed_abs, tag = 'smem constant byte address 0x4 - core index']
  #allocation1 [shape = 'u32[144,128]{1,0:T(1,128)}', space=vmem, size = 0x12000, scoped, tag = 'internal scratch']
  #allocation2 [shape = 'f32[288,128]{1,0:T(8,128)}', space=vmem, size = 0x24000, scoped, tag = 'scratch operand']
  %s0 = inlined_call_operand.vmem [shape: f32[2,336,128], index: 0, kind: input, shape index: {}]
  %s1 = inlined_call_operand.vmem [shape: bf16[9,128,128], index: 1, kind: input, shape index: {}]
  %s2 = inlined_call_operand.vmem [shape: f32[1,128], index: 2, kind: input, shape index: {}]
  %s3 = inlined_call_operand.vmem [shape: f32[288,1], index: 3, kind: input, shape index: {}]
  %s4 = inlined_call_operand.vmem [shape: f32[2,336,128], index: 4, kind: output, shape index: {}]
  %s5 = sld [smem:[#allocation0]]
  $region49: #{faster_rcnn_forward.3} parent=0
    _
  %s7 = ssub.s32 1, %s5
  %s8 = scalar_select 0, %s7, %s5
  loop: start=0, step=1, limit=4
  $region2: #{faster_rcnn_forward.3} parent=0 // loop_pre_header
    _
  $region3: #{faster_rcnn_forward.3} parent=0 // loop_header
    %s10 = sphi 0, %s14
    %p11 = scmp.ge.s32.totalorder %s10, 4
    %s20 = sphi 0, %s22
    %s23 = sphi 0, %s20
    %s24 = sphi 0, %s23
    %s40 = sphi 0, %s24
    %s44 = sphi 0, %s44
    %s46 = sphi 0, %s44
    %s47 = sphi 0, %s46
    %s61 = sphi 0, %s47
    %s65 = sphi 0, %s65
    %s67 = sphi 0, %s65
    %s68 = sphi 0, %s67
    %s82 = sphi 0, %s68
    %s86 = sphi 0, %s86
    %s88 = sphi 0, %s86
    %s89 = sphi 0, %s88
    %s103 = sphi 0, %s89
    %s109 = sphi 0, %s111
    %s112 = sphi 0, %s109
    %s113 = sphi 0, %s112
    %s129 = sphi 0, %s113
  $region4: #{faster_rcnn_forward.3} parent=0 // loop_header_branch
    %13 = sbr.rel (%p11) target = $region8
  $region5: #{faster_rcnn_forward.3} parent=0 // loop_body
    %s15 = ssub.s32 %s10, 1
    %s16 = ssub.s32 %s10, 2
    %s17 = sadd.s32 %s10, 1
    %s18 = ssub.s32 %s10, %s17
    %p19 = scmp.eq.s32.totalorder %s18, 0
    %s21 = sadd.s32 %s20, 1
    %s22 = scalar_select %p19, %s20, %s21
    %p25 = pneg %p19
    %p26 = scmp.eq.s32.totalorder %s10, 1
    %p27 = por %p25, %p26
    %p28 = scmp.ne.s32.totalorder %s20, %s23
    %p29 = scmp.eq.s32.totalorder %s10, 0
    %p30 = por %p28, %p29
    %p31 = scmp.ne.s32.totalorder %s20, %s23
    %p32 = scmp.eq.s32.totalorder %s15, 1
    %p33 = por %p31, %p32
    %p34 = scmp.ne.s32.totalorder %s23, %s24
    %p35 = scmp.eq.s32.totalorder %s15, 0
    %p36 = por %p34, %p35
    %p37 = scmp.ne.s32.totalorder %s23, %s24
    %p38 = scmp.eq.s32.totalorder %s16, 1
    %p39 = por %p37, %p38
    %p41 = scmp.ne.s32.totalorder %s24, %s40
    %p42 = scmp.eq.s32.totalorder %s16, 0
    %p43 = por %p41, %p42
    %s45 = sadd.s32 %s44, 1
    %p48 = scmp.eq.s32.totalorder %s10, 1
    %p49 = scmp.ne.s32.totalorder %s44, %s46
    %p50 = scmp.eq.s32.totalorder %s10, 0
    %p51 = por %p49, %p50
    %p52 = scmp.ne.s32.totalorder %s44, %s46
    %p53 = scmp.eq.s32.totalorder %s15, 1
    %p54 = por %p52, %p53
    %p55 = scmp.ne.s32.totalorder %s46, %s47
    %p56 = scmp.eq.s32.totalorder %s15, 0
    %p57 = por %p55, %p56
    %p58 = scmp.ne.s32.totalorder %s46, %s47
    %p59 = scmp.eq.s32.totalorder %s16, 1
    %p60 = por %p58, %p59
    %p62 = scmp.ne.s32.totalorder %s47, %s61
    %p63 = scmp.eq.s32.totalorder %s16, 0
    %p64 = por %p62, %p63
    %s66 = sadd.s32 %s65, 1
    %p69 = scmp.eq.s32.totalorder %s10, 1
    %p70 = scmp.ne.s32.totalorder %s65, %s67
    %p71 = scmp.eq.s32.totalorder %s10, 0
    %p72 = por %p70, %p71
    %p73 = scmp.ne.s32.totalorder %s65, %s67
    %p74 = scmp.eq.s32.totalorder %s15, 1
    %p75 = por %p73, %p74
    %p76 = scmp.ne.s32.totalorder %s67, %s68
    %p77 = scmp.eq.s32.totalorder %s15, 0
    %p78 = por %p76, %p77
    %p79 = scmp.ne.s32.totalorder %s67, %s68
    %p80 = scmp.eq.s32.totalorder %s16, 1
    %p81 = por %p79, %p80
    %p83 = scmp.ne.s32.totalorder %s68, %s82
    %p84 = scmp.eq.s32.totalorder %s16, 0
    %p85 = por %p83, %p84
    %s87 = sadd.s32 %s86, 1
    %p90 = scmp.eq.s32.totalorder %s10, 1
    %p91 = scmp.ne.s32.totalorder %s86, %s88
    %p92 = scmp.eq.s32.totalorder %s10, 0
    %p93 = por %p91, %p92
    %p94 = scmp.ne.s32.totalorder %s86, %s88
    %p95 = scmp.eq.s32.totalorder %s15, 1
    %p96 = por %p94, %p95
    %p97 = scmp.ne.s32.totalorder %s88, %s89
    %p98 = scmp.eq.s32.totalorder %s15, 0
    %p99 = por %p97, %p98
    %p100 = scmp.ne.s32.totalorder %s88, %s89
    %p101 = scmp.eq.s32.totalorder %s16, 1
    %p102 = por %p100, %p101
    %p104 = scmp.ne.s32.totalorder %s89, %s103
    %p105 = scmp.eq.s32.totalorder %s16, 0
    %p106 = por %p104, %p105
    %s107 = ssub.s32 %s10, %s17
    %p108 = scmp.eq.s32.totalorder %s107, 0
    %s110 = sadd.s32 %s109, 1
    %s111 = scalar_select %p108, %s109, %s110
    %p114 = pneg %p108
    %p115 = scmp.eq.s32.totalorder %s10, 1
    %p116 = por %p114, %p115
    %p117 = scmp.ne.s32.totalorder %s109, %s112
    %p118 = scmp.eq.s32.totalorder %s10, 0
    %p119 = por %p117, %p118
    %p120 = scmp.ne.s32.totalorder %s109, %s112
    %p121 = scmp.eq.s32.totalorder %s15, 1
    %p122 = por %p120, %p121
    %p123 = scmp.ne.s32.totalorder %s112, %s113
    %p124 = scmp.eq.s32.totalorder %s15, 0
    %p125 = por %p123, %p124
    %p126 = scmp.ne.s32.totalorder %s112, %s113
    %p127 = scmp.eq.s32.totalorder %s16, 1
    %p128 = por %p126, %p127
    %p130 = scmp.ne.s32.totalorder %s113, %s129
    %p131 = scmp.eq.s32.totalorder %s16, 0
    %p132 = por %p130, %p131
    %p133 = scmp.le.s32.totalorder 1, %s10
    %p134 = scmp.lt.s32.totalorder %s10, 3
    %p135 = pnand %p133, %p134
    %p136 = pneg %p135
    // Predicated region
    $region9: #{faster_rcnn_forward.3} parent=5 // pred_check
      _
    $region10: #{faster_rcnn_forward.3} parent=5 // pred_check_branch
      %138 = sbr.rel (%p135) target = $region12
    $region11: #{faster_rcnn_forward.3} parent=5 // pred_region
      %s139 = ssub.s32 %s10, 1
      // Predicated region
      $region13: #{faster_rcnn_forward.3} parent=11 // pred_check
        %p140 = pneg %p57
      $region14: #{faster_rcnn_forward.3} parent=11 // pred_check_branch
        %142 = sbr.rel (%p140) target = $region16
      $region15: #{faster_rcnn_forward.3} parent=11 // pred_region
        _
      $region16: #{faster_rcnn_forward.3} parent=11 // pred_fallthru
        _
      // Predicated region
      $region17: #{faster_rcnn_forward.3} parent=11 // pred_check
        %p143 = pneg %p78
      $region18: #{faster_rcnn_forward.3} parent=11 // pred_check_branch
        %145 = sbr.rel (%p143) target = $region20
      $region19: #{faster_rcnn_forward.3} parent=11 // pred_region
        _
      $region20: #{faster_rcnn_forward.3} parent=11 // pred_fallthru
        _
      // Predicated region
      $region21: #{faster_rcnn_forward.3} parent=11 // pred_check
        %p146 = pneg %p99
      $region22: #{faster_rcnn_forward.3} parent=11 // pred_check_branch
        %148 = sbr.rel (%p146) target = $region24
      $region23: #{faster_rcnn_forward.3} parent=11 // pred_region
        _
      $region24: #{faster_rcnn_forward.3} parent=11 // pred_fallthru
        _
    $region12: #{faster_rcnn_forward.3} parent=5 // pred_fallthru
      _
    %p149 = scmp.lt.s32.totalorder %s10, 2
    // Predicated region
    $region25: #{faster_rcnn_forward.3} parent=5 // pred_check
      %p150 = pneg %p149
    $region26: #{faster_rcnn_forward.3} parent=5 // pred_check_branch
      %152 = sbr.rel (%p150) target = $region28
    $region27: #{faster_rcnn_forward.3} parent=5 // pred_region
      // Predicated region
      $region29: #{faster_rcnn_forward.3} parent=27 // pred_check
        %p153 = pneg %p30
      $region30: #{faster_rcnn_forward.3} parent=27 // pred_check_branch
        %155 = sbr.rel (%p153) target = $region32
      $region31: #{faster_rcnn_forward.3} parent=27 // pred_region
        %p156 = scmp.lt.s32.totalorder %s10, 1
        %s157 = scalar_select %p156, %s10, 1
        %s158 = smul.addr %s157, 42
        %s159 = smul.addr %s158, 8
        %s160 = scalar_lea.vmem %s0, %s159
      $region32: #{faster_rcnn_forward.3} parent=27 // pred_fallthru
        _
    $region28: #{faster_rcnn_forward.3} parent=5 // pred_fallthru
      _
    %p161 = scmp.le.s32.totalorder 1, %s10
    %p162 = scmp.lt.s32.totalorder %s10, 3
    %p163 = pnand %p161, %p162
    %p164 = pneg %p163
    // Predicated region
    $region33: #{faster_rcnn_forward.3} parent=5 // pred_check
      _
    $region34: #{faster_rcnn_forward.3} parent=5 // pred_check_branch
      %166 = sbr.rel (%p163) target = $region36
    $region35: #{faster_rcnn_forward.3} parent=5 // pred_region
      %s167 = ssub.s32 %s10, 1
      %p168 = scmp.lt.s32.totalorder %s15, 1
      %s169 = scalar_select %p168, %s15, 1
      %s170 = smul.addr %s169, 42
      %s171 = smul.addr %s170, 8
      %s172 = scalar_lea.vmem %s0, %s171
      %p173 = pneg %p36
      %p174 = pneg %p33
      %p175 = pneg %p57
      %p176 = pneg %p54
      %p177 = pneg %p78
      %p178 = pneg %p75
      %p179 = pneg %p99
      %p180 = pneg %p96
      %p181 = pneg %p125
      %p182 = pneg %p122
      %p183 = scmp.lt.s32.totalorder %s15, 1
      %s184 = scalar_select %p183, %s15, 1
      %s185 = smul.addr %s184, 42
      %s186 = smul.addr %s185, 8
      %s187 = scalar_lea.vmem %s4, %s186
      %p188 = scmp.lt.s32.totalorder %s15, 1
      %s189 = scalar_select %p188, %s15, 1
      %s190 = smul.addr %s189, 42
      %s191 = smul.addr %s190, 8
      %s192 = scalar_lea.vmem %s0, %s191
      %p193 = scmp.lt.s32.totalorder %s15, 1
      %s194 = scalar_select %p193, %s15, 1
      %s195 = smul.addr %s194, 42
      %s196 = smul.addr %s195, 8
      %s197 = scalar_lea.vmem %s4, %s196
      %v199 = vld [vmem:[%s2] sm:$0x1]
      %v201 = vlaneseq
      %v202 = vshrl.u32 %v201, 7
      %v203 = vsub.s32 0, %v202
      %v204 = vrot.slane %v199, %v203
      %206 = vst [vmem:[#allocation2] sm:$0xff] %v204
      %207 = vst [vmem:[#allocation2 + $0x8] sm:$0xff] %v204
      %208 = vst [vmem:[#allocation2 + $0x10] sm:$0xff] %v204
      %209 = vst [vmem:[#allocation2 + $0x18] sm:$0xff] %v204
      %210 = vst [vmem:[#allocation2 + $0x20] sm:$0xff] %v204
      %211 = vst [vmem:[#allocation2 + $0x28] sm:$0xff] %v204
      %212 = vst [vmem:[#allocation2 + $0x30] sm:$0xff] %v204
      %213 = vst [vmem:[#allocation2 + $0x38] sm:$0xff] %v204
      %214 = vst [vmem:[#allocation2 + $0x40] sm:$0xff] %v204
      %215 = vst [vmem:[#allocation2 + $0x48] sm:$0xff] %v204
      %216 = vst [vmem:[#allocation2 + $0x50] sm:$0xff] %v204
      %217 = vst [vmem:[#allocation2 + $0x58] sm:$0xff] %v204
      %218 = vst [vmem:[#allocation2 + $0x60] sm:$0xff] %v204
      %219 = vst [vmem:[#allocation2 + $0x68] sm:$0xff] %v204
      %220 = vst [vmem:[#allocation2 + $0x70] sm:$0xff] %v204
      %221 = vst [vmem:[#allocation2 + $0x78] sm:$0xff] %v204
      %222 = vst [vmem:[#allocation2 + $0x80] sm:$0xff] %v204
      %223 = vst [vmem:[#allocation2 + $0x88] sm:$0xff] %v204
      %224 = vst [vmem:[#allocation2 + $0x90] sm:$0xff] %v204
      %225 = vst [vmem:[#allocation2 + $0x98] sm:$0xff] %v204
      %226 = vst [vmem:[#allocation2 + $0xa0] sm:$0xff] %v204
      %227 = vst [vmem:[#allocation2 + $0xa8] sm:$0xff] %v204
      %228 = vst [vmem:[#allocation2 + $0xb0] sm:$0xff] %v204
      %229 = vst [vmem:[#allocation2 + $0xb8] sm:$0xff] %v204
      %230 = vst [vmem:[#allocation2 + $0xc0] sm:$0xff] %v204
      %231 = vst [vmem:[#allocation2 + $0xc8] sm:$0xff] %v204
      %232 = vst [vmem:[#allocation2 + $0xd0] sm:$0xff] %v204
      %233 = vst [vmem:[#allocation2 + $0xd8] sm:$0xff] %v204
      %234 = vst [vmem:[#allocation2 + $0xe0] sm:$0xff] %v204
      %235 = vst [vmem:[#allocation2 + $0xe8] sm:$0xff] %v204
      %236 = vst [vmem:[#allocation2 + $0xf0] sm:$0xff] %v204
      %237 = vst [vmem:[#allocation2 + $0xf8] sm:$0xff] %v204
      %238 = vst [vmem:[#allocation2 + $0x100] sm:$0xff] %v204
      %239 = vst [vmem:[#allocation2 + $0x108] sm:$0xff] %v204
      %240 = vst [vmem:[#allocation2 + $0x110] sm:$0xff] %v204
      %241 = vst [vmem:[#allocation2 + $0x118] sm:$0xff] %v204
      %v242 = vld [vmem:[%s192 + $0x5] sm:$0xff]
      %v243 = vld [vmem:[%s192 + $0xd] sm:$0xff]
      %v244 = vld [vmem:[%s192 + $0x15] sm:$0xff]
      %v245 = vld [vmem:[%s192 + $0x1d] sm:$0xff]
      %v246 = vld [vmem:[%s192 + $0x25] sm:$0xff]
      %v247 = vld [vmem:[%s192 + $0x2d] sm:$0xff]
      %v248 = vld [vmem:[%s192 + $0x35] sm:$0xff]
      %v249 = vld [vmem:[%s192 + $0x3d] sm:$0xff]
      %v250 = vld [vmem:[%s192 + $0x45] sm:$0xff]
      %v251 = vld [vmem:[%s192 + $0x4d] sm:$0xff]
      %v252 = vld [vmem:[%s192 + $0x55] sm:$0xff]
      %v253 = vld [vmem:[%s192 + $0x5d] sm:$0xff]
      %v254 = vld [vmem:[%s192 + $0x65] sm:$0xff]
      %v255 = vld [vmem:[%s192 + $0x6d] sm:$0xff]
      %v256 = vld [vmem:[%s192 + $0x75] sm:$0xff]
      %v257 = vld [vmem:[%s192 + $0x7d] sm:$0xff]
      %v258 = vld [vmem:[%s192 + $0x85] sm:$0xff]
      %v259 = vld [vmem:[%s192 + $0x8d] sm:$0xff]
      %v260 = vld [vmem:[%s192 + $0x95] sm:$0xff]
      %v261 = vld [vmem:[%s192 + $0x9d] sm:$0xff]
      %v262 = vld [vmem:[%s192 + $0xa5] sm:$0xff]
      %v263 = vld [vmem:[%s192 + $0xad] sm:$0xff]
      %v264 = vld [vmem:[%s192 + $0xb5] sm:$0xff]
      %v265 = vld [vmem:[%s192 + $0xbd] sm:$0xff]
      %v266 = vld [vmem:[%s192 + $0xc5] sm:$0xff]
      %v267 = vld [vmem:[%s192 + $0xcd] sm:$0xff]
      %v268 = vld [vmem:[%s192 + $0xd5] sm:$0xff]
      %v269 = vld [vmem:[%s192 + $0xdd] sm:$0xff]
      %v270 = vld [vmem:[%s192 + $0xe5] sm:$0xff]
      %v271 = vld [vmem:[%s192 + $0xed] sm:$0xff]
      %v272 = vld [vmem:[%s192 + $0xf5] sm:$0xff]
      %v273 = vld [vmem:[%s192 + $0xfd] sm:$0xff]
      %v274 = vld [vmem:[%s192 + $0x105] sm:$0xff]
      %v275 = vld [vmem:[%s192 + $0x10d] sm:$0xff]
      %v276 = vld [vmem:[%s192 + $0x115] sm:$0xff]
      %v277 = vld [vmem:[%s192 + $0x11d] sm:$0xff]
      %v278 = vpack.c.bf16 %v243, %v242
      %v279 = vpack.c.bf16 %v245, %v244
      %v280 = vpack.c.bf16 %v247, %v246
      %v281 = vpack.c.bf16 %v249, %v248
      %v282 = vpack.c.bf16 %v251, %v250
      %v283 = vpack.c.bf16 %v253, %v252
      %v284 = vpack.c.bf16 %v255, %v254
      %v285 = vpack.c.bf16 %v257, %v256
      %v286 = vpack.c.bf16 %v259, %v258
      %v287 = vpack.c.bf16 %v261, %v260
      %v288 = vpack.c.bf16 %v263, %v262
      %v289 = vpack.c.bf16 %v265, %v264
      %v290 = vpack.c.bf16 %v267, %v266
      %v291 = vpack.c.bf16 %v269, %v268
      %v292 = vpack.c.bf16 %v271, %v270
      %v293 = vpack.c.bf16 %v273, %v272
      %v294 = vpack.c.bf16 %v275, %v274
      %v295 = vpack.c.bf16 %v277, %v276
      %v296 = vld [vmem:[#allocation2] sm:$0xff]
      %v297 = vld [vmem:[#allocation2 + $0x8] sm:$0xff]
      %v298 = vld [vmem:[#allocation2 + $0x10] sm:$0xff]
      %v299 = vld [vmem:[#allocation2 + $0x18] sm:$0xff]
      %v300 = vld [vmem:[#allocation2 + $0x20] sm:$0xff]
      %v301 = vld [vmem:[#allocation2 + $0x28] sm:$0xff]
      %v302 = vld [vmem:[#allocation2 + $0x30] sm:$0xff]
      %v303 = vld [vmem:[#allocation2 + $0x38] sm:$0xff]
      %v304 = vld [vmem:[#allocation2 + $0x40] sm:$0xff]
      %v305 = vld [vmem:[#allocation2 + $0x48] sm:$0xff]
      %v306 = vld [vmem:[#allocation2 + $0x50] sm:$0xff]
      %v307 = vld [vmem:[#allocation2 + $0x58] sm:$0xff]
      %v308 = vld [vmem:[#allocation2 + $0x60] sm:$0xff]
      %v309 = vld [vmem:[#allocation2 + $0x68] sm:$0xff]
      %v310 = vld [vmem:[#allocation2 + $0x70] sm:$0xff]
      %v311 = vld [vmem:[#allocation2 + $0x78] sm:$0xff]
      %v312 = vld [vmem:[#allocation2 + $0x80] sm:$0xff]
      %v313 = vld [vmem:[#allocation2 + $0x88] sm:$0xff]
      %v314 = vld [vmem:[#allocation2 + $0x90] sm:$0xff]
      %v315 = vld [vmem:[#allocation2 + $0x98] sm:$0xff]
      %v316 = vld [vmem:[#allocation2 + $0xa0] sm:$0xff]
      %v317 = vld [vmem:[#allocation2 + $0xa8] sm:$0xff]
      %v318 = vld [vmem:[#allocation2 + $0xb0] sm:$0xff]
      %v319 = vld [vmem:[#allocation2 + $0xb8] sm:$0xff]
      %v320 = vld [vmem:[#allocation2 + $0xc0] sm:$0xff]
      %v321 = vld [vmem:[#allocation2 + $0xc8] sm:$0xff]
      %v322 = vld [vmem:[#allocation2 + $0xd0] sm:$0xff]
      %v323 = vld [vmem:[#allocation2 + $0xd8] sm:$0xff]
      %v324 = vld [vmem:[#allocation2 + $0xe0] sm:$0xff]
      %v325 = vld [vmem:[#allocation2 + $0xe8] sm:$0xff]
      %v326 = vld [vmem:[#allocation2 + $0xf0] sm:$0xff]
      %v327 = vld [vmem:[#allocation2 + $0xf8] sm:$0xff]
      %v328 = vld [vmem:[#allocation2 + $0x100] sm:$0xff]
      %v329 = vld [vmem:[#allocation2 + $0x108] sm:$0xff]
      %v330 = vld [vmem:[#allocation2 + $0x110] sm:$0xff]
      %v331 = vld [vmem:[#allocation2 + $0x118] sm:$0xff]
      %v332 = vld [vmem:[%s1] sm:$0xf]
      %v333 = vld [vmem:[%s1 + $0x4] sm:$0xf]
      %v334 = vld [vmem:[%s1 + $0x8] sm:$0xf]
      %v335 = vld [vmem:[%s1 + $0xc] sm:$0xf]
      %v336 = vld [vmem:[%s1 + $0x10] sm:$0xf]
      %v337 = vld [vmem:[%s1 + $0x14] sm:$0xf]
      %v338 = vld [vmem:[%s1 + $0x18] sm:$0xf]
      %v339 = vld [vmem:[%s1 + $0x1c] sm:$0xf]
      %v340 = vld [vmem:[%s1 + $0x20] sm:$0xf]
      %v341 = vld [vmem:[%s1 + $0x24] sm:$0xf]
      %v342 = vld [vmem:[%s1 + $0x28] sm:$0xf]
      %v343 = vld [vmem:[%s1 + $0x2c] sm:$0xf]
      %v344 = vld [vmem:[%s1 + $0x30] sm:$0xf]
      %v345 = vld [vmem:[%s1 + $0x34] sm:$0xf]
      %v346 = vld [vmem:[%s1 + $0x38] sm:$0xf]
      %v347 = vld [vmem:[%s1 + $0x3c] sm:$0xf]
      %v364 = vunpack.c.l.b16 %v332
      %v365 = vunpack.c.l.b16 %v333
      %v366 = vunpack.c.l.b16 %v334
      %v367 = vunpack.c.l.b16 %v335
      %v368 = vunpack.c.l.b16 %v336
      %v369 = vunpack.c.l.b16 %v337
      %v370 = vunpack.c.l.b16 %v338
      %v371 = vunpack.c.l.b16 %v339
      %v372 = vunpack.c.l.b16 %v340
      %v373 = vunpack.c.l.b16 %v341
      %v374 = vunpack.c.l.b16 %v342
      %v375 = vunpack.c.l.b16 %v343
      %v376 = vunpack.c.l.b16 %v344
      %v377 = vunpack.c.l.b16 %v345
      %v378 = vunpack.c.l.b16 %v346
      %v379 = vunpack.c.l.b16 %v347
      %v380 = vpack.c.b16 %v365, %v364
      %v381 = vpack.c.b16 %v367, %v366
      %v382 = vpack.c.b16 %v369, %v368
      %v383 = vpack.c.b16 %v371, %v370
      %v384 = vpack.c.b16 %v373, %v372
      %v385 = vpack.c.b16 %v375, %v374
      %v386 = vpack.c.b16 %v377, %v376
      %v387 = vpack.c.b16 %v379, %v378
      %396 = vmatprep.subr.bf16.mxu0 0
      %397 = vmatpush1.bf16.msra.mxu0 %v387
      %398 = vmatprep.subr.bf16.mxu0 0
      %399 = vmatpush1.bf16.msra.mxu0 %v386
      %400 = vmatprep.subr.bf16.mxu0 0
      %401 = vmatpush1.bf16.msra.mxu0 %v385
      %402 = vmatprep.subr.bf16.mxu0 0
      %403 = vmatpush1.bf16.msra.mxu0 %v384
      %404 = vmatprep.subr.bf16.mxu0 0
      %405 = vmatpush1.bf16.msra.mxu0 %v383
      %406 = vmatprep.subr.bf16.mxu0 0
      %407 = vmatpush1.bf16.msra.mxu0 %v382
      %408 = vmatprep.subr.bf16.mxu0 0
      %409 = vmatpush1.bf16.msra.mxu0 %v381
      %410 = vmatprep.subr.bf16.mxu0 0
      %411 = vmatpush1.bf16.msra.mxu0 %v380
      %412 = vmatprep.subr.bf16.mxu0 0
      %413 = vmatpush2.bf16.msra.mxu0 0
      %414 = vmatprep.subr.bf16.mxu0 0
      %415 = vmatpush2.bf16.msra.mxu0 0
      %416 = vmatprep.subr.bf16.mxu0 0
      %417 = vmatpush2.bf16.msra.mxu0 0
      %418 = vmatprep.subr.bf16.mxu0 0
      %419 = vmatpush2.bf16.msra.mxu0 0
      %420 = vmatprep.subr.bf16.mxu0 0
      %421 = vmatpush2.bf16.msra.mxu0 0
      %422 = vmatprep.subr.bf16.mxu0 0
      %423 = vmatpush2.bf16.msra.mxu0 0
      %424 = vmatprep.subr.bf16.mxu0 0
      %425 = vmatpush2.bf16.msra.mxu0 0
      %426 = vmatprep.subr.bf16.mxu0 0
      %427 = vmatpush2.bf16.msra.mxu0 0
      %428 = vmatprep.mubr.bf16.mxu0 0
      %429 = vmatmul.mubr.bf16.gmra.mxu0 %v278
      %v430 = vpop.f32.mrf.mxu0
      %v431 = vadd.f32 0.0, %v430
      %v432 = vpop.f32.mrf.mxu0
      %v433 = vpop.f32.mrf.mxu0
      %v434 = vadd.f32 0.0, %v433
      %v435 = vpop.f32.mrf.mxu0
      %436 = vmatprep.mubr.bf16.mxu0 0
      %437 = vmatmul.mubr.bf16.gmra.mxu0 %v279
      %v438 = vpop.f32.mrf.mxu0
      %v439 = vadd.f32 0.0, %v438
      %v440 = vpop.f32.mrf.mxu0
      %v441 = vpop.f32.mrf.mxu0
      %v442 = vadd.f32 0.0, %v441
      %v443 = vpop.f32.mrf.mxu0
      %444 = vmatprep.mubr.bf16.mxu0 0
      %445 = vmatmul.mubr.bf16.gmra.mxu0 %v280
      %v446 = vpop.f32.mrf.mxu0
      %v447 = vadd.f32 0.0, %v446
      %v448 = vpop.f32.mrf.mxu0
      %v449 = vpop.f32.mrf.mxu0
      %v450 = vadd.f32 0.0, %v449
      %v451 = vpop.f32.mrf.mxu0
      %452 = vmatprep.mubr.bf16.mxu0 0
      %453 = vmatmul.mubr.bf16.gmra.mxu0 %v281
      %v454 = vpop.f32.mrf.mxu0
      %v455 = vadd.f32 0.0, %v454
      %v456 = vpop.f32.mrf.mxu0
      %v457 = vpop.f32.mrf.mxu0
      %v458 = vadd.f32 0.0, %v457
      %v459 = vpop.f32.mrf.mxu0
      %460 = vmatprep.mubr.bf16.mxu0 0
      %461 = vmatmul.mubr.bf16.gmra.mxu0 %v282
      %v462 = vpop.f32.mrf.mxu0
      %v463 = vadd.f32 0.0, %v462
      %v464 = vpop.f32.mrf.mxu0
      %v465 = vpop.f32.mrf.mxu0
      %v466 = vadd.f32 0.0, %v465
      %v467 = vpop.f32.mrf.mxu0
      %468 = vmatprep.mubr.bf16.mxu0 0
      %469 = vmatmul.mubr.bf16.gmra.mxu0 %v283
      %v470 = vpop.f32.mrf.mxu0
      %v471 = vadd.f32 0.0, %v470
      %v472 = vpop.f32.mrf.mxu0
      %v473 = vpop.f32.mrf.mxu0
      %v474 = vadd.f32 0.0, %v473
      %v475 = vpop.f32.mrf.mxu0
      %476 = vmatprep.mubr.bf16.mxu0 0
      %477 = vmatmul.mubr.bf16.gmra.mxu0 %v284
      %v478 = vpop.f32.mrf.mxu0
      %v479 = vadd.f32 0.0, %v478
      %v480 = vpop.f32.mrf.mxu0
      %v481 = vpop.f32.mrf.mxu0
      %v482 = vadd.f32 0.0, %v481
      %v483 = vpop.f32.mrf.mxu0
      %484 = vmatprep.mubr.bf16.mxu0 0
      %485 = vmatmul.mubr.bf16.gmra.mxu0 %v285
      %v486 = vpop.f32.mrf.mxu0
      %v487 = vadd.f32 0.0, %v486
      %v488 = vpop.f32.mrf.mxu0
      %v489 = vpop.f32.mrf.mxu0
      %v490 = vadd.f32 0.0, %v489
      %v491 = vpop.f32.mrf.mxu0
      %492 = vmatprep.mubr.bf16.mxu0 0
      %493 = vmatmul.mubr.bf16.gmra.mxu0 %v286
      %v494 = vpop.f32.mrf.mxu0
      %v495 = vadd.f32 0.0, %v494
      %v496 = vpop.f32.mrf.mxu0
      %v497 = vpop.f32.mrf.mxu0
      %v498 = vadd.f32 0.0, %v497
      %v499 = vpop.f32.mrf.mxu0
      %500 = vmatprep.mubr.bf16.mxu0 0
      %501 = vmatmul.mubr.bf16.gmra.mxu0 %v287
      %v502 = vpop.f32.mrf.mxu0
      %v503 = vadd.f32 0.0, %v502
      %v504 = vpop.f32.mrf.mxu0
      %v505 = vpop.f32.mrf.mxu0
      %v506 = vadd.f32 0.0, %v505
      %v507 = vpop.f32.mrf.mxu0
      %508 = vmatprep.mubr.bf16.mxu0 0
      %509 = vmatmul.mubr.bf16.gmra.mxu0 %v288
      %v510 = vpop.f32.mrf.mxu0
      %v511 = vadd.f32 0.0, %v510
      %v512 = vpop.f32.mrf.mxu0
      %v513 = vpop.f32.mrf.mxu0
      %v514 = vadd.f32 0.0, %v513
      %v515 = vpop.f32.mrf.mxu0
      %516 = vmatprep.mubr.bf16.mxu0 0
      %517 = vmatmul.mubr.bf16.gmra.mxu0 %v289
      %v518 = vpop.f32.mrf.mxu0
      %v519 = vadd.f32 0.0, %v518
      %v520 = vpop.f32.mrf.mxu0
      %v521 = vpop.f32.mrf.mxu0
      %v522 = vadd.f32 0.0, %v521
      %v523 = vpop.f32.mrf.mxu0
      %524 = vmatprep.mubr.bf16.mxu0 0
      %525 = vmatmul.mubr.bf16.gmra.mxu0 %v290
      %v526 = vpop.f32.mrf.mxu0
      %v527 = vadd.f32 0.0, %v526
      %v528 = vpop.f32.mrf.mxu0
      %v529 = vpop.f32.mrf.mxu0
      %v530 = vadd.f32 0.0, %v529
      %v531 = vpop.f32.mrf.mxu0
      %532 = vmatprep.mubr.bf16.mxu0 0
      %533 = vmatmul.mubr.bf16.gmra.mxu0 %v291
      %v534 = vpop.f32.mrf.mxu0
      %v535 = vadd.f32 0.0, %v534
      %v536 = vpop.f32.mrf.mxu0
      %v537 = vpop.f32.mrf.mxu0
      %v538 = vadd.f32 0.0, %v537
      %v539 = vpop.f32.mrf.mxu0
      %540 = vmatprep.mubr.bf16.mxu0 0
      %541 = vmatmul.mubr.bf16.gmra.mxu0 %v292
      %v542 = vpop.f32.mrf.mxu0
      %v543 = vadd.f32 0.0, %v542
      %v544 = vpop.f32.mrf.mxu0
      %v545 = vpop.f32.mrf.mxu0
      %v546 = vadd.f32 0.0, %v545
      %v547 = vpop.f32.mrf.mxu0
      %548 = vmatprep.mubr.bf16.mxu0 0
      %549 = vmatmul.mubr.bf16.gmra.mxu0 %v293
      %v550 = vpop.f32.mrf.mxu0
      %v551 = vadd.f32 0.0, %v550
      %v552 = vpop.f32.mrf.mxu0
      %v553 = vpop.f32.mrf.mxu0
      %v554 = vadd.f32 0.0, %v553
      %v555 = vpop.f32.mrf.mxu0
      %556 = vmatprep.mubr.bf16.mxu0 0
      %557 = vmatmul.mubr.bf16.gmra.mxu0 %v294
      %v558 = vpop.f32.mrf.mxu0
      %v559 = vadd.f32 0.0, %v558
      %v560 = vpop.f32.mrf.mxu0
      %v561 = vpop.f32.mrf.mxu0
      %v562 = vadd.f32 0.0, %v561
      %v563 = vpop.f32.mrf.mxu0
      %564 = vmatprep.mubr.bf16.mxu0 0
      %565 = vmatmul.mubr.bf16.gmra.mxu0 %v295
      %v566 = vpop.f32.mrf.mxu0
      %v567 = vadd.f32 0.0, %v566
      %v568 = vpop.f32.mrf.mxu0
      %v569 = vpop.f32.mrf.mxu0
      %v570 = vadd.f32 0.0, %v569
      %v571 = vpop.f32.mrf.mxu0
      %572 = vdwg.mxu0
      %v573 = vadd.f32 %v296, %v431
      %v574 = vadd.f32 %v297, %v434
      %v575 = vadd.f32 %v298, %v439
      %v576 = vadd.f32 %v299, %v442
      %v577 = vadd.f32 %v300, %v447
      %v578 = vadd.f32 %v301, %v450
      %v579 = vadd.f32 %v302, %v455
      %v580 = vadd.f32 %v303, %v458
      %v581 = vadd.f32 %v304, %v463
      %v582 = vadd.f32 %v305, %v466
      %v583 = vadd.f32 %v306, %v471
      %v584 = vadd.f32 %v307, %v474
      %v585 = vadd.f32 %v308, %v479
      %v586 = vadd.f32 %v309, %v482
      %v587 = vadd.f32 %v310, %v487
      %v588 = vadd.f32 %v311, %v490
      %v589 = vadd.f32 %v312, %v495
      %v590 = vadd.f32 %v313, %v498
      %v591 = vadd.f32 %v314, %v503
      %v592 = vadd.f32 %v315, %v506
      %v593 = vadd.f32 %v316, %v511
      %v594 = vadd.f32 %v317, %v514
      %v595 = vadd.f32 %v318, %v519
      %v596 = vadd.f32 %v319, %v522
      %v597 = vadd.f32 %v320, %v527
      %v598 = vadd.f32 %v321, %v530
      %v599 = vadd.f32 %v322, %v535
      %v600 = vadd.f32 %v323, %v538
      %v601 = vadd.f32 %v324, %v543
      %v602 = vadd.f32 %v325, %v546
      %v603 = vadd.f32 %v326, %v551
      %v604 = vadd.f32 %v327, %v554
      %v605 = vadd.f32 %v328, %v559
      %v606 = vadd.f32 %v329, %v562
      %v607 = vadd.f32 %v330, %v567
      %v608 = vadd.f32 %v331, %v570
      %609 = vst [vmem:[#allocation2] sm:$0xff] %v573
      %610 = vst [vmem:[#allocation2 + $0x8] sm:$0xff] %v574
      %611 = vst [vmem:[#allocation2 + $0x10] sm:$0xff] %v575
      %612 = vst [vmem:[#allocation2 + $0x18] sm:$0xff] %v576
      %613 = vst [vmem:[#allocation2 + $0x20] sm:$0xff] %v577
      %614 = vst [vmem:[#allocation2 + $0x28] sm:$0xff] %v578
      %615 = vst [vmem:[#allocation2 + $0x30] sm:$0xff] %v579
      %616 = vst [vmem:[#allocation2 + $0x38] sm:$0xff] %v580
      %617 = vst [vmem:[#allocation2 + $0x40] sm:$0xff] %v581
      %618 = vst [vmem:[#allocation2 + $0x48] sm:$0xff] %v582
      %619 = vst [vmem:[#allocation2 + $0x50] sm:$0xff] %v583
      %620 = vst [vmem:[#allocation2 + $0x58] sm:$0xff] %v584
      %621 = vst [vmem:[#allocation2 + $0x60] sm:$0xff] %v585
      %622 = vst [vmem:[#allocation2 + $0x68] sm:$0xff] %v586
      %623 = vst [vmem:[#allocation2 + $0x70] sm:$0xff] %v587
      %624 = vst [vmem:[#allocation2 + $0x78] sm:$0xff] %v588
      %625 = vst [vmem:[#allocation2 + $0x80] sm:$0xff] %v589
      %626 = vst [vmem:[#allocation2 + $0x88] sm:$0xff] %v590
      %627 = vst [vmem:[#allocation2 + $0x90] sm:$0xff] %v591
      %628 = vst [vmem:[#allocation2 + $0x98] sm:$0xff] %v592
      %629 = vst [vmem:[#allocation2 + $0xa0] sm:$0xff] %v593
      %630 = vst [vmem:[#allocation2 + $0xa8] sm:$0xff] %v594
      %631 = vst [vmem:[#allocation2 + $0xb0] sm:$0xff] %v595
      %632 = vst [vmem:[#allocation2 + $0xb8] sm:$0xff] %v596
      %633 = vst [vmem:[#allocation2 + $0xc0] sm:$0xff] %v597
      %634 = vst [vmem:[#allocation2 + $0xc8] sm:$0xff] %v598
      %635 = vst [vmem:[#allocation2 + $0xd0] sm:$0xff] %v599
      %636 = vst [vmem:[#allocation2 + $0xd8] sm:$0xff] %v600
      %637 = vst [vmem:[#allocation2 + $0xe0] sm:$0xff] %v601
      %638 = vst [vmem:[#allocation2 + $0xe8] sm:$0xff] %v602
      %639 = vst [vmem:[#allocation2 + $0xf0] sm:$0xff] %v603
      %640 = vst [vmem:[#allocation2 + $0xf8] sm:$0xff] %v604
      %641 = vst [vmem:[#allocation2 + $0x100] sm:$0xff] %v605
      %642 = vst [vmem:[#allocation2 + $0x108] sm:$0xff] %v606
      %643 = vst [vmem:[#allocation2 + $0x110] sm:$0xff] %v607
      %644 = vst [vmem:[#allocation2 + $0x118] sm:$0xff] %v608
      %v645 = vld [vmem:[%s192 + $0x6] sm:$0xff]
      %v646 = vld [vmem:[%s192 + $0xe] sm:$0xff]
      %v647 = vld [vmem:[%s192 + $0x16] sm:$0xff]
      %v648 = vld [vmem:[%s192 + $0x1e] sm:$0xff]
      %v649 = vld [vmem:[%s192 + $0x26] sm:$0xff]
      %v650 = vld [vmem:[%s192 + $0x2e] sm:$0xff]
      %v651 = vld [vmem:[%s192 + $0x36] sm:$0xff]
      %v652 = vld [vmem:[%s192 + $0x3e] sm:$0xff]
      %v653 = vld [vmem:[%s192 + $0x46] sm:$0xff]
      %v654 = vld [vmem:[%s192 + $0x4e] sm:$0xff]
      %v655 = vld [vmem:[%s192 + $0x56] sm:$0xff]
      %v656 = vld [vmem:[%s192 + $0x5e] sm:$0xff]
      %v657 = vld [vmem:[%s192 + $0x66] sm:$0xff]
      %v658 = vld [vmem:[%s192 + $0x6e] sm:$0xff]
      %v659 = vld [vmem:[%s192 + $0x76] sm:$0xff]
      %v660 = vld [vmem:[%s192 + $0x7e] sm:$0xff]
      %v661 = vld [vmem:[%s192 + $0x86] sm:$0xff]
      %v662 = vld [vmem:[%s192 + $0x8e] sm:$0xff]
      %v663 = vld [vmem:[%s192 + $0x96] sm:$0xff]
      %v664 = vld [vmem:[%s192 + $0x9e] sm:$0xff]
      %v665 = vld [vmem:[%s192 + $0xa6] sm:$0xff]
      %v666 = vld [vmem:[%s192 + $0xae] sm:$0xff]
      %v667 = vld [vmem:[%s192 + $0xb6] sm:$0xff]
      %v668 = vld [vmem:[%s192 + $0xbe] sm:$0xff]
      %v669 = vld [vmem:[%s192 + $0xc6] sm:$0xff]
      %v670 = vld [vmem:[%s192 + $0xce] sm:$0xff]
      %v671 = vld [vmem:[%s192 + $0xd6] sm:$0xff]
      %v672 = vld [vmem:[%s192 + $0xde] sm:$0xff]
      %v673 = vld [vmem:[%s192 + $0xe6] sm:$0xff]
      %v674 = vld [vmem:[%s192 + $0xee] sm:$0xff]
      %v675 = vld [vmem:[%s192 + $0xf6] sm:$0xff]
      %v676 = vld [vmem:[%s192 + $0xfe] sm:$0xff]
      %v677 = vld [vmem:[%s192 + $0x106] sm:$0xff]
      %v678 = vld [vmem:[%s192 + $0x10e] sm:$0xff]
      %v679 = vld [vmem:[%s192 + $0x116] sm:$0xff]
      %v680 = vld [vmem:[%s192 + $0x11e] sm:$0xff]
      %v681 = vpack.c.bf16 %v646, %v645
      %v682 = vpack.c.bf16 %v648, %v647
      %v683 = vpack.c.bf16 %v650, %v649
      %v684 = vpack.c.bf16 %v652, %v651
      %v685 = vpack.c.bf16 %v654, %v653
      %v686 = vpack.c.bf16 %v656, %v655
      %v687 = vpack.c.bf16 %v658, %v657
      %v688 = vpack.c.bf16 %v660, %v659
      %v689 = vpack.c.bf16 %v662, %v661
      %v690 = vpack.c.bf16 %v664, %v663
      %v691 = vpack.c.bf16 %v666, %v665
      %v692 = vpack.c.bf16 %v668, %v667
      %v693 = vpack.c.bf16 %v670, %v669
      %v694 = vpack.c.bf16 %v672, %v671
      %v695 = vpack.c.bf16 %v674, %v673
      %v696 = vpack.c.bf16 %v676, %v675
      %v697 = vpack.c.bf16 %v678, %v677
      %v698 = vpack.c.bf16 %v680, %v679
      %v699 = vld [vmem:[#allocation2] sm:$0xff]
      %v700 = vld [vmem:[#allocation2 + $0x8] sm:$0xff]
      %v701 = vld [vmem:[#allocation2 + $0x10] sm:$0xff]
      %v702 = vld [vmem:[#allocation2 + $0x18] sm:$0xff]
      %v703 = vld [vmem:[#allocation2 + $0x20] sm:$0xff]
      %v704 = vld [vmem:[#allocation2 + $0x28] sm:$0xff]
      %v705 = vld [vmem:[#allocation2 + $0x30] sm:$0xff]
      %v706 = vld [vmem:[#allocation2 + $0x38] sm:$0xff]
      %v707 = vld [vmem:[#allocation2 + $0x40] sm:$0xff]
      %v708 = vld [vmem:[#allocation2 + $0x48] sm:$0xff]
      %v709 = vld [vmem:[#allocation2 + $0x50] sm:$0xff]
      %v710 = vld [vmem:[#allocation2 + $0x58] sm:$0xff]
      %v711 = vld [vmem:[#allocation2 + $0x60] sm:$0xff]
      %v712 = vld [vmem:[#allocation2 + $0x68] sm:$0xff]
      %v713 = vld [vmem:[#allocation2 + $0x70] sm:$0xff]
      %v714 = vld [vmem:[#allocation2 + $0x78] sm:$0xff]
      %v715 = vld [vmem:[#allocation2 + $0x80] sm:$0xff]
      %v716 = vld [vmem:[#allocation2 + $0x88] sm:$0xff]
      %v717 = vld [vmem:[#allocation2 + $0x90] sm:$0xff]
      %v718 = vld [vmem:[#allocation2 + $0x98] sm:$0xff]
      %v719 = vld [vmem:[#allocation2 + $0xa0] sm:$0xff]
      %v720 = vld [vmem:[#allocation2 + $0xa8] sm:$0xff]
      %v721 = vld [vmem:[#allocation2 + $0xb0] sm:$0xff]
      %v722 = vld [vmem:[#allocation2 + $0xb8] sm:$0xff]
      %v723 = vld [vmem:[#allocation2 + $0xc0] sm:$0xff]
      %v724 = vld [vmem:[#allocation2 + $0xc8] sm:$0xff]
      %v725 = vld [vmem:[#allocation2 + $0xd0] sm:$0xff]
      %v726 = vld [vmem:[#allocation2 + $0xd8] sm:$0xff]
      %v727 = vld [vmem:[#allocation2 + $0xe0] sm:$0xff]
      %v728 = vld [vmem:[#allocation2 + $0xe8] sm:$0xff]
      %v729 = vld [vmem:[#allocation2 + $0xf0] sm:$0xff]
      %v730 = vld [vmem:[#allocation2 + $0xf8] sm:$0xff]
      %v731 = vld [vmem:[#allocation2 + $0x100] sm:$0xff]
      %v732 = vld [vmem:[#allocation2 + $0x108] sm:$0xff]
      %v733 = vld [vmem:[#allocation2 + $0x110] sm:$0xff]
      %v734 = vld [vmem:[#allocation2 + $0x118] sm:$0xff]
      %s735 = scalar_lea.vmem %s1, 64
      %v736 = vld [vmem:[%s735] sm:$0xf]
      %v737 = vld [vmem:[%s735 + $0x4] sm:$0xf]
      %v738 = vld [vmem:[%s735 + $0x8] sm:$0xf]
      %v739 = vld [vmem:[%s735 + $0xc] sm:$0xf]
      %v740 = vld [vmem:[%s735 + $0x10] sm:$0xf]
      %v741 = vld [vmem:[%s735 + $0x14] sm:$0xf]
      %v742 = vld [vmem:[%s735 + $0x18] sm:$0xf]
      %v743 = vld [vmem:[%s735 + $0x1c] sm:$0xf]
      %v744 = vld [vmem:[%s735 + $0x20] sm:$0xf]
      %v745 = vld [vmem:[%s735 + $0x24] sm:$0xf]
      %v746 = vld [vmem:[%s735 + $0x28] sm:$0xf]
      %v747 = vld [vmem:[%s735 + $0x2c] sm:$0xf]
      %v748 = vld [vmem:[%s735 + $0x30] sm:$0xf]
      %v749 = vld [vmem:[%s735 + $0x34] sm:$0xf]
      %v750 = vld [vmem:[%s735 + $0x38] sm:$0xf]
      %v751 = vld [vmem:[%s735 + $0x3c] sm:$0xf]
      %v768 = vunpack.c.l.b16 %v736
      %v769 = vunpack.c.l.b16 %v737
      %v770 = vunpack.c.l.b16 %v738
      %v771 = vunpack.c.l.b16 %v739
      %v772 = vunpack.c.l.b16 %v740
      %v773 = vunpack.c.l.b16 %v741
      %v774 = vunpack.c.l.b16 %v742
      %v775 = vunpack.c.l.b16 %v743
      %v776 = vunpack.c.l.b16 %v744
      %v777 = vunpack.c.l.b16 %v745
      %v778 = vunpack.c.l.b16 %v746
      %v779 = vunpack.c.l.b16 %v747
      %v780 = vunpack.c.l.b16 %v748
      %v781 = vunpack.c.l.b16 %v749
      %v782 = vunpack.c.l.b16 %v750
      %v783 = vunpack.c.l.b16 %v751
      %v784 = vpack.c.b16 %v769, %v768
      %v785 = vpack.c.b16 %v771, %v770
      %v786 = vpack.c.b16 %v773, %v772
      %v787 = vpack.c.b16 %v775, %v774
      %v788 = vpack.c.b16 %v777, %v776
      %v789 = vpack.c.b16 %v779, %v778
      %v790 = vpack.c.b16 %v781, %v780
      %v791 = vpack.c.b16 %v783, %v782
      %800 = vmatprep.subr.bf16.mxu0 0
      %801 = vmatpush1.bf16.msra.mxu0 %v791
      %802 = vmatprep.subr.bf16.mxu0 0
      %803 = vmatpush1.bf16.msra.mxu0 %v790
      %804 = vmatprep.subr.bf16.mxu0 0
      %805 = vmatpush1.bf16.msra.mxu0 %v789
      %806 = vmatprep.subr.bf16.mxu0 0
      %807 = vmatpush1.bf16.msra.mxu0 %v788
      %808 = vmatprep.subr.bf16.mxu0 0
      %809 = vmatpush1.bf16.msra.mxu0 %v787
      %810 = vmatprep.subr.bf16.mxu0 0
      %811 = vmatpush1.bf16.msra.mxu0 %v786
      %812 = vmatprep.subr.bf16.mxu0 0
      %813 = vmatpush1.bf16.msra.mxu0 %v785
      %814 = vmatprep.subr.bf16.mxu0 0
      %815 = vmatpush1.bf16.msra.mxu0 %v784
      %816 = vmatprep.subr.bf16.mxu0 0
      %817 = vmatpush2.bf16.msra.mxu0 0
      %818 = vmatprep.subr.bf16.mxu0 0
      %819 = vmatpush2.bf16.msra.mxu0 0
      %820 = vmatprep.subr.bf16.mxu0 0
      %821 = vmatpush2.bf16.msra.mxu0 0
      %822 = vmatprep.subr.bf16.mxu0 0
      %823 = vmatpush2.bf16.msra.mxu0 0
      %824 = vmatprep.subr.bf16.mxu0 0
      %825 = vmatpush2.bf16.msra.mxu0 0
      %826 = vmatprep.subr.bf16.mxu0 0
      %827 = vmatpush2.bf16.msra.mxu0 0
      %828 = vmatprep.subr.bf16.mxu0 0
      %829 = vmatpush2.bf16.msra.mxu0 0
      %830 = vmatprep.subr.bf16.mxu0 0
      %831 = vmatpush2.bf16.msra.mxu0 0
      %832 = vmatprep.mubr.bf16.mxu0 0
      %833 = vmatmul.mubr.bf16.gmra.mxu0 %v681
      %v834 = vpop.f32.mrf.mxu0
      %v835 = vadd.f32 0.0, %v834
      %v836 = vpop.f32.mrf.mxu0
      %v837 = vpop.f32.mrf.mxu0
      %v838 = vadd.f32 0.0, %v837
      %v839 = vpop.f32.mrf.mxu0
      %840 = vmatprep.mubr.bf16.mxu0 0
      %841 = vmatmul.mubr.bf16.gmra.mxu0 %v682
      %v842 = vpop.f32.mrf.mxu0
      %v843 = vadd.f32 0.0, %v842
      %v844 = vpop.f32.mrf.mxu0
      %v845 = vpop.f32.mrf.mxu0
      %v846 = vadd.f32 0.0, %v845
      %v847 = vpop.f32.mrf.mxu0
      %848 = vmatprep.mubr.bf16.mxu0 0
      %849 = vmatmul.mubr.bf16.gmra.mxu0 %v683
      %v850 = vpop.f32.mrf.mxu0
      %v851 = vadd.f32 0.0, %v850
      %v852 = vpop.f32.mrf.mxu0
      %v853 = vpop.f32.mrf.mxu0
      %v854 = vadd.f32 0.0, %v853
      %v855 = vpop.f32.mrf.mxu0
      %856 = vmatprep.mubr.bf16.mxu0 0
      %857 = vmatmul.mubr.bf16.gmra.mxu0 %v684
      %v858 = vpop.f32.mrf.mxu0
      %v859 = vadd.f32 0.0, %v858
      %v860 = vpop.f32.mrf.mxu0
      %v861 = vpop.f32.mrf.mxu0
      %v862 = vadd.f32 0.0, %v861
      %v863 = vpop.f32.mrf.mxu0
      %864 = vmatprep.mubr.bf16.mxu0 0
      %865 = vmatmul.mubr.bf16.gmra.mxu0 %v685
      %v866 = vpop.f32.mrf.mxu0
      %v867 = vadd.f32 0.0, %v866
      %v868 = vpop.f32.mrf.mxu0
      %v869 = vpop.f32.mrf.mxu0
      %v870 = vadd.f32 0.0, %v869
      %v871 = vpop.f32.mrf.mxu0
      %872 = vmatprep.mubr.bf16.mxu0 0
      %873 = vmatmul.mubr.bf16.gmra.mxu0 %v686
      %v874 = vpop.f32.mrf.mxu0
      %v875 = vadd.f32 0.0, %v874
      %v876 = vpop.f32.mrf.mxu0
      %v877 = vpop.f32.mrf.mxu0
      %v878 = vadd.f32 0.0, %v877
      %v879 = vpop.f32.mrf.mxu0
      %880 = vmatprep.mubr.bf16.mxu0 0
      %881 = vmatmul.mubr.bf16.gmra.mxu0 %v687
      %v882 = vpop.f32.mrf.mxu0
      %v883 = vadd.f32 0.0, %v882
      %v884 = vpop.f32.mrf.mxu0
      %v885 = vpop.f32.mrf.mxu0
      %v886 = vadd.f32 0.0, %v885
      %v887 = vpop.f32.mrf.mxu0
      %888 = vmatprep.mubr.bf16.mxu0 0
      %889 = vmatmul.mubr.bf16.gmra.mxu0 %v688
      %v890 = vpop.f32.mrf.mxu0
      %v891 = vadd.f32 0.0, %v890
      %v892 = vpop.f32.mrf.mxu0
      %v893 = vpop.f32.mrf.mxu0
      %v894 = vadd.f32 0.0, %v893
      %v895 = vpop.f32.mrf.mxu0
      %896 = vmatprep.mubr.bf16.mxu0 0
      %897 = vmatmul.mubr.bf16.gmra.mxu0 %v689
      %v898 = vpop.f32.mrf.mxu0
      %v899 = vadd.f32 0.0, %v898
      %v900 = vpop.f32.mrf.mxu0
      %v901 = vpop.f32.mrf.mxu0
      %v902 = vadd.f32 0.0, %v901
      %v903 = vpop.f32.mrf.mxu0
      %904 = vmatprep.mubr.bf16.mxu0 0
      %905 = vmatmul.mubr.bf16.gmra.mxu0 %v690
      %v906 = vpop.f32.mrf.mxu0
      %v907 = vadd.f32 0.0, %v906
      %v908 = vpop.f32.mrf.mxu0
      %v909 = vpop.f32.mrf.mxu0
      %v910 = vadd.f32 0.0, %v909
      %v911 = vpop.f32.mrf.mxu0
      %912 = vmatprep.mubr.bf16.mxu0 0
      %913 = vmatmul.mubr.bf16.gmra.mxu0 %v691
      %v914 = vpop.f32.mrf.mxu0
      %v915 = vadd.f32 0.0, %v914
      %v916 = vpop.f32.mrf.mxu0
      %v917 = vpop.f32.mrf.mxu0
      %v918 = vadd.f32 0.0, %v917
      %v919 = vpop.f32.mrf.mxu0
      %920 = vmatprep.mubr.bf16.mxu0 0
      %921 = vmatmul.mubr.bf16.gmra.mxu0 %v692
      %v922 = vpop.f32.mrf.mxu0
      %v923 = vadd.f32 0.0, %v922
      %v924 = vpop.f32.mrf.mxu0
      %v925 = vpop.f32.mrf.mxu0
      %v926 = vadd.f32 0.0, %v925
      %v927 = vpop.f32.mrf.mxu0
      %928 = vmatprep.mubr.bf16.mxu0 0
      %929 = vmatmul.mubr.bf16.gmra.mxu0 %v693
      %v930 = vpop.f32.mrf.mxu0
      %v931 = vadd.f32 0.0, %v930
      %v932 = vpop.f32.mrf.mxu0
      %v933 = vpop.f32.mrf.mxu0
      %v934 = vadd.f32 0.0, %v933
      %v935 = vpop.f32.mrf.mxu0
      %936 = vmatprep.mubr.bf16.mxu0 0
      %937 = vmatmul.mubr.bf16.gmra.mxu0 %v694
      %v938 = vpop.f32.mrf.mxu0
      %v939 = vadd.f32 0.0, %v938
      %v940 = vpop.f32.mrf.mxu0
      %v941 = vpop.f32.mrf.mxu0
      %v942 = vadd.f32 0.0, %v941
      %v943 = vpop.f32.mrf.mxu0
      %944 = vmatprep.mubr.bf16.mxu0 0
      %945 = vmatmul.mubr.bf16.gmra.mxu0 %v695
      %v946 = vpop.f32.mrf.mxu0
      %v947 = vadd.f32 0.0, %v946
      %v948 = vpop.f32.mrf.mxu0
      %v949 = vpop.f32.mrf.mxu0
      %v950 = vadd.f32 0.0, %v949
      %v951 = vpop.f32.mrf.mxu0
      %952 = vmatprep.mubr.bf16.mxu0 0
      %953 = vmatmul.mubr.bf16.gmra.mxu0 %v696
      %v954 = vpop.f32.mrf.mxu0
      %v955 = vadd.f32 0.0, %v954
      %v956 = vpop.f32.mrf.mxu0
      %v957 = vpop.f32.mrf.mxu0
      %v958 = vadd.f32 0.0, %v957
      %v959 = vpop.f32.mrf.mxu0
      %960 = vmatprep.mubr.bf16.mxu0 0
      %961 = vmatmul.mubr.bf16.gmra.mxu0 %v697
      %v962 = vpop.f32.mrf.mxu0
      %v963 = vadd.f32 0.0, %v962
      %v964 = vpop.f32.mrf.mxu0
      %v965 = vpop.f32.mrf.mxu0
      %v966 = vadd.f32 0.0, %v965
      %v967 = vpop.f32.mrf.mxu0
      %968 = vmatprep.mubr.bf16.mxu0 0
      %969 = vmatmul.mubr.bf16.gmra.mxu0 %v698
      %v970 = vpop.f32.mrf.mxu0
      %v971 = vadd.f32 0.0, %v970
      %v972 = vpop.f32.mrf.mxu0
      %v973 = vpop.f32.mrf.mxu0
      %v974 = vadd.f32 0.0, %v973
      %v975 = vpop.f32.mrf.mxu0
      %976 = vdwg.mxu0
      %v977 = vadd.f32 %v699, %v835
      %v978 = vadd.f32 %v700, %v838
      %v979 = vadd.f32 %v701, %v843
      %v980 = vadd.f32 %v702, %v846
      %v981 = vadd.f32 %v703, %v851
      %v982 = vadd.f32 %v704, %v854
      %v983 = vadd.f32 %v705, %v859
      %v984 = vadd.f32 %v706, %v862
      %v985 = vadd.f32 %v707, %v867
      %v986 = vadd.f32 %v708, %v870
      %v987 = vadd.f32 %v709, %v875
      %v988 = vadd.f32 %v710, %v878
      %v989 = vadd.f32 %v711, %v883
      %v990 = vadd.f32 %v712, %v886
      %v991 = vadd.f32 %v713, %v891
      %v992 = vadd.f32 %v714, %v894
      %v993 = vadd.f32 %v715, %v899
      %v994 = vadd.f32 %v716, %v902
      %v995 = vadd.f32 %v717, %v907
      %v996 = vadd.f32 %v718, %v910
      %v997 = vadd.f32 %v719, %v915
      %v998 = vadd.f32 %v720, %v918
      %v999 = vadd.f32 %v721, %v923
      %v1000 = vadd.f32 %v722, %v926
      %v1001 = vadd.f32 %v723, %v931
      %v1002 = vadd.f32 %v724, %v934
      %v1003 = vadd.f32 %v725, %v939
      %v1004 = vadd.f32 %v726, %v942
      %v1005 = vadd.f32 %v727, %v947
      %v1006 = vadd.f32 %v728, %v950
      %v1007 = vadd.f32 %v729, %v955
      %v1008 = vadd.f32 %v730, %v958
      %v1009 = vadd.f32 %v731, %v963
      %v1010 = vadd.f32 %v732, %v966
      %v1011 = vadd.f32 %v733, %v971
      %v1012 = vadd.f32 %v734, %v974
      %1013 = vst [vmem:[#allocation2] sm:$0xff] %v977
      %1014 = vst [vmem:[#allocation2 + $0x8] sm:$0xff] %v978
      %1015 = vst [vmem:[#allocation2 + $0x10] sm:$0xff] %v979
      %1016 = vst [vmem:[#allocation2 + $0x18] sm:$0xff] %v980
      %1017 = vst [vmem:[#allocation2 + $0x20] sm:$0xff] %v981
      %1018 = vst [vmem:[#allocation2 + $0x28] sm:$0xff] %v982
      %1019 = vst [vmem:[#allocation2 + $0x30] sm:$0xff] %v983
      %1020 = vst [vmem:[#allocation2 + $0x38] sm:$0xff] %v984
      %1021 = vst [vmem:[#allocation2 + $0x40] sm:$0xff] %v985
      %1022 = vst [vmem:[#allocation2 + $0x48] sm:$0xff] %v986
      %1023 = vst [vmem:[#allocation2 + $0x50] sm:$0xff] %v987
      %1024 = vst [vmem:[#allocation2 + $0x58] sm:$0xff] %v988
      %1025 = vst [vmem:[#allocation2 + $0x60] sm:$0xff] %v989
      %1026 = vst [vmem:[#allocation2 + $0x68] sm:$0xff] %v990
      %1027 = vst [vmem:[#allocation2 + $0x70] sm:$0xff] %v991
      %1028 = vst [vmem:[#allocation2 + $0x78] sm:$0xff] %v992
      %1029 = vst [vmem:[#allocation2 + $0x80] sm:$0xff] %v993
      %1030 = vst [vmem:[#allocation2 + $0x88] sm:$0xff] %v994
      %1031 = vst [vmem:[#allocation2 + $0x90] sm:$0xff] %v995
      %1032 = vst [vmem:[#allocation2 + $0x98] sm:$0xff] %v996
      %1033 = vst [vmem:[#allocation2 + $0xa0] sm:$0xff] %v997
      %1034 = vst [vmem:[#allocation2 + $0xa8] sm:$0xff] %v998
      %1035 = vst [vmem:[#allocation2 + $0xb0] sm:$0xff] %v999
      %1036 = vst [vmem:[#allocation2 + $0xb8] sm:$0xff] %v1000
      %1037 = vst [vmem:[#allocation2 + $0xc0] sm:$0xff] %v1001
      %1038 = vst [vmem:[#allocation2 + $0xc8] sm:$0xff] %v1002
      %1039 = vst [vmem:[#allocation2 + $0xd0] sm:$0xff] %v1003
      %1040 = vst [vmem:[#allocation2 + $0xd8] sm:$0xff] %v1004
      %1041 = vst [vmem:[#allocation2 + $0xe0] sm:$0xff] %v1005
      %1042 = vst [vmem:[#allocation2 + $0xe8] sm:$0xff] %v1006
      %1043 = vst [vmem:[#allocation2 + $0xf0] sm:$0xff] %v1007
      %1044 = vst [vmem:[#allocation2 + $0xf8] sm:$0xff] %v1008
      %1045 = vst [vmem:[#allocation2 + $0x100] sm:$0xff] %v1009
      %1046 = vst [vmem:[#allocation2 + $0x108] sm:$0xff] %v1010
      %1047 = vst [vmem:[#allocation2 + $0x110] sm:$0xff] %v1011
      %1048 = vst [vmem:[#allocation2 + $0x118] sm:$0xff] %v1012
      %v1049 = vld [vmem:[%s192 + $0x7] sm:$0xff]
      %v1050 = vld [vmem:[%s192 + $0xf] sm:$0xff]
      %v1051 = vld [vmem:[%s192 + $0x17] sm:$0xff]
      %v1052 = vld [vmem:[%s192 + $0x1f] sm:$0xff]
      %v1053 = vld [vmem:[%s192 + $0x27] sm:$0xff]
      %v1054 = vld [vmem:[%s192 + $0x2f] sm:$0xff]
      %v1055 = vld [vmem:[%s192 + $0x37] sm:$0xff]
      %v1056 = vld [vmem:[%s192 + $0x3f] sm:$0xff]
      %v1057 = vld [vmem:[%s192 + $0x47] sm:$0xff]
      %v1058 = vld [vmem:[%s192 + $0x4f] sm:$0xff]
      %v1059 = vld [vmem:[%s192 + $0x57] sm:$0xff]
      %v1060 = vld [vmem:[%s192 + $0x5f] sm:$0xff]
      %v1061 = vld [vmem:[%s192 + $0x67] sm:$0xff]
      %v1062 = vld [vmem:[%s192 + $0x6f] sm:$0xff]
      %v1063 = vld [vmem:[%s192 + $0x77] sm:$0xff]
      %v1064 = vld [vmem:[%s192 + $0x7f] sm:$0xff]
      %v1065 = vld [vmem:[%s192 + $0x87] sm:$0xff]
      %v1066 = vld [vmem:[%s192 + $0x8f] sm:$0xff]
      %v1067 = vld [vmem:[%s192 + $0x97] sm:$0xff]
      %v1068 = vld [vmem:[%s192 + $0x9f] sm:$0xff]
      %v1069 = vld [vmem:[%s192 + $0xa7] sm:$0xff]
      %v1070 = vld [vmem:[%s192 + $0xaf] sm:$0xff]
      %v1071 = vld [vmem:[%s192 + $0xb7] sm:$0xff]
      %v1072 = vld [vmem:[%s192 + $0xbf] sm:$0xff]
      %v1073 = vld [vmem:[%s192 + $0xc7] sm:$0xff]
      %v1074 = vld [vmem:[%s192 + $0xcf] sm:$0xff]
      %v1075 = vld [vmem:[%s192 + $0xd7] sm:$0xff]
      %v1076 = vld [vmem:[%s192 + $0xdf] sm:$0xff]
      %v1077 = vld [vmem:[%s192 + $0xe7] sm:$0xff]
      %v1078 = vld [vmem:[%s192 + $0xef] sm:$0xff]
      %v1079 = vld [vmem:[%s192 + $0xf7] sm:$0xff]
      %v1080 = vld [vmem:[%s192 + $0xff] sm:$0xff]
      %v1081 = vld [vmem:[%s192 + $0x107] sm:$0xff]
      %v1082 = vld [vmem:[%s192 + $0x10f] sm:$0xff]
      %v1083 = vld [vmem:[%s192 + $0x117] sm:$0xff]
      %v1084 = vld [vmem:[%s192 + $0x11f] sm:$0xff]
      %v1085 = vpack.c.bf16 %v1050, %v1049
      %v1086 = vpack.c.bf16 %v1052, %v1051
      %v1087 = vpack.c.bf16 %v1054, %v1053
      %v1088 = vpack.c.bf16 %v1056, %v1055
      %v1089 = vpack.c.bf16 %v1058, %v1057
      %v1090 = vpack.c.bf16 %v1060, %v1059
      %v1091 = vpack.c.bf16 %v1062, %v1061
      %v1092 = vpack.c.bf16 %v1064, %v1063
      %v1093 = vpack.c.bf16 %v1066, %v1065
      %v1094 = vpack.c.bf16 %v1068, %v1067
      %v1095 = vpack.c.bf16 %v1070, %v1069
      %v1096 = vpack.c.bf16 %v1072, %v1071
      %v1097 = vpack.c.bf16 %v1074, %v1073
      %v1098 = vpack.c.bf16 %v1076, %v1075
      %v1099 = vpack.c.bf16 %v1078, %v1077
      %v1100 = vpack.c.bf16 %v1080, %v1079
      %v1101 = vpack.c.bf16 %v1082, %v1081
      %v1102 = vpack.c.bf16 %v1084, %v1083
      %v1103 = vld [vmem:[#allocation2] sm:$0xff]
      %v1104 = vld [vmem:[#allocation2 + $0x8] sm:$0xff]
      %v1105 = vld [vmem:[#allocation2 + $0x10] sm:$0xff]
      %v1106 = vld [vmem:[#allocation2 + $0x18] sm:$0xff]
      %v1107 = vld [vmem:[#allocation2 + $0x20] sm:$0xff]
      %v1108 = vld [vmem:[#allocation2 + $0x28] sm:$0xff]
      %v1109 = vld [vmem:[#allocation2 + $0x30] sm:$0xff]
      %v1110 = vld [vmem:[#allocation2 + $0x38] sm:$0xff]
      %v1111 = vld [vmem:[#allocation2 + $0x40] sm:$0xff]
      %v1112 = vld [vmem:[#allocation2 + $0x48] sm:$0xff]
      %v1113 = vld [vmem:[#allocation2 + $0x50] sm:$0xff]
      %v1114 = vld [vmem:[#allocation2 + $0x58] sm:$0xff]
      %v1115 = vld [vmem:[#allocation2 + $0x60] sm:$0xff]
      %v1116 = vld [vmem:[#allocation2 + $0x68] sm:$0xff]
      %v1117 = vld [vmem:[#allocation2 + $0x70] sm:$0xff]
      %v1118 = vld [vmem:[#allocation2 + $0x78] sm:$0xff]
      %v1119 = vld [vmem:[#allocation2 + $0x80] sm:$0xff]
      %v1120 = vld [vmem:[#allocation2 + $0x88] sm:$0xff]
      %v1121 = vld [vmem:[#allocation2 + $0x90] sm:$0xff]
      %v1122 = vld [vmem:[#allocation2 + $0x98] sm:$0xff]
      %v1123 = vld [vmem:[#allocation2 + $0xa0] sm:$0xff]
      %v1124 = vld [vmem:[#allocation2 + $0xa8] sm:$0xff]
      %v1125 = vld [vmem:[#allocation2 + $0xb0] sm:$0xff]
      %v1126 = vld [vmem:[#allocation2 + $0xb8] sm:$0xff]
      %v1127 = vld [vmem:[#allocation2 + $0xc0] sm:$0xff]
      %v1128 = vld [vmem:[#allocation2 + $0xc8] sm:$0xff]
      %v1129 = vld [vmem:[#allocation2 + $0xd0] sm:$0xff]
      %v1130 = vld [vmem:[#allocation2 + $0xd8] sm:$0xff]
      %v1131 = vld [vmem:[#allocation2 + $0xe0] sm:$0xff]
      %v1132 = vld [vmem:[#allocation2 + $0xe8] sm:$0xff]
      %v1133 = vld [vmem:[#allocation2 + $0xf0] sm:$0xff]
      %v1134 = vld [vmem:[#allocation2 + $0xf8] sm:$0xff]
      %v1135 = vld [vmem:[#allocation2 + $0x100] sm:$0xff]
      %v1136 = vld [vmem:[#allocation2 + $0x108] sm:$0xff]
      %v1137 = vld [vmem:[#allocation2 + $0x110] sm:$0xff]
      %v1138 = vld [vmem:[#allocation2 + $0x118] sm:$0xff]
      %s1139 = scalar_lea.vmem %s1, 128
      %v1140 = vld [vmem:[%s1139] sm:$0xf]
      %v1141 = vld [vmem:[%s1139 + $0x4] sm:$0xf]
      %v1142 = vld [vmem:[%s1139 + $0x8] sm:$0xf]
      %v1143 = vld [vmem:[%s1139 + $0xc] sm:$0xf]
      %v1144 = vld [vmem:[%s1139 + $0x10] sm:$0xf]
      %v1145 = vld [vmem:[%s1139 + $0x14] sm:$0xf]
      %v1146 = vld [vmem:[%s1139 + $0x18] sm:$0xf]
      %v1147 = vld [vmem:[%s1139 + $0x1c] sm:$0xf]
      %v1148 = vld [vmem:[%s1139 + $0x20] sm:$0xf]
      %v1149 = vld [vmem:[%s1139 + $0x24] sm:$0xf]
      %v1150 = vld [vmem:[%s1139 + $0x28] sm:$0xf]
      %v1151 = vld [vmem:[%s1139 + $0x2c] sm:$0xf]
      %v1152 = vld [vmem:[%s1139 + $0x30] sm:$0xf]
      %v1153 = vld [vmem:[%s1139 + $0x34] sm:$0xf]
      %v1154 = vld [vmem:[%s1139 + $0x38] sm:$0xf]
      %v1155 = vld [vmem:[%s1139 + $0x3c] sm:$0xf]
      %v1172 = vunpack.c.l.b16 %v1140
      %v1173 = vunpack.c.l.b16 %v1141
      %v1174 = vunpack.c.l.b16 %v1142
      %v1175 = vunpack.c.l.b16 %v1143
      %v1176 = vunpack.c.l.b16 %v1144
      %v1177 = vunpack.c.l.b16 %v1145
      %v1178 = vunpack.c.l.b16 %v1146
      %v1179 = vunpack.c.l.b16 %v1147
      %v1180 = vunpack.c.l.b16 %v1148
      %v1181 = vunpack.c.l.b16 %v1149
      %v1182 = vunpack.c.l.b16 %v1150
      %v1183 = vunpack.c.l.b16 %v1151
      %v1184 = vunpack.c.l.b16 %v1152
      %v1185 = vunpack.c.l.b16 %v1153
      %v1186 = vunpack.c.l.b16 %v1154
      %v1187 = vunpack.c.l.b16 %v1155
      %v1188 = vpack.c.b16 %v1173, %v1172
      %v1189 = vpack.c.b16 %v1175, %v1174
      %v1190 = vpack.c.b16 %v1177, %v1176
      %v1191 = vpack.c.b16 %v1179, %v1178
      %v1192 = vpack.c.b16 %v1181, %v1180
      %v1193 = vpack.c.b16 %v1183, %v1182
      %v1194 = vpack.c.b16 %v1185, %v1184
      %v1195 = vpack.c.b16 %v1187, %v1186
      %1204 = vmatprep.subr.bf16.mxu0 0
      %1205 = vmatpush1.bf16.msra.mxu0 %v1195
      %1206 = vmatprep.subr.bf16.mxu0 0
      %1207 = vmatpush1.bf16.msra.mxu0 %v1194
      %1208 = vmatprep.subr.bf16.mxu0 0
      %1209 = vmatpush1.bf16.msra.mxu0 %v1193
      %1210 = vmatprep.subr.bf16.mxu0 0
      %1211 = vmatpush1.bf16.msra.mxu0 %v1192
      %1212 = vmatprep.subr.bf16.mxu0 0
      %1213 = vmatpush1.bf16.msra.mxu0 %v1191
      %1214 = vmatprep.subr.bf16.mxu0 0
      %1215 = vmatpush1.bf16.msra.mxu0 %v1190
      %1216 = vmatprep.subr.bf16.mxu0 0
      %1217 = vmatpush1.bf16.msra.mxu0 %v1189
      %1218 = vmatprep.subr.bf16.mxu0 0
      %1219 = vmatpush1.bf16.msra.mxu0 %v1188
      %1220 = vmatprep.subr.bf16.mxu0 0
      %1221 = vmatpush2.bf16.msra.mxu0 0
      %1222 = vmatprep.subr.bf16.mxu0 0
      %1223 = vmatpush2.bf16.msra.mxu0 0
      %1224 = vmatprep.subr.bf16.mxu0 0
      %1225 = vmatpush2.bf16.msra.mxu0 0
      %1226 = vmatprep.subr.bf16.mxu0 0
      %1227 = vmatpush2.bf16.msra.mxu0 0
      %1228 = vmatprep.subr.bf16.mxu0 0
      %1229 = vmatpush2.bf16.msra.mxu0 0
      %1230 = vmatprep.subr.bf16.mxu0 0
      %1231 = vmatpush2.bf16.msra.mxu0 0
      %1232 = vmatprep.subr.bf16.mxu0 0
      %1233 = vmatpush2.bf16.msra.mxu0 0
      %1234 = vmatprep.subr.bf16.mxu0 0
      %1235 = vmatpush2.bf16.msra.mxu0 0
      %1236 = vmatprep.mubr.bf16.mxu0 0
      %1237 = vmatmul.mubr.bf16.gmra.mxu0 %v1085
      %v1238 = vpop.f32.mrf.mxu0
      %v1239 = vadd.f32 0.0, %v1238
      %v1240 = vpop.f32.mrf.mxu0
      %v1241 = vpop.f32.mrf.mxu0
      %v1242 = vadd.f32 0.0, %v1241
      %v1243 = vpop.f32.mrf.mxu0
      %1244 = vmatprep.mubr.bf16.mxu0 0
      %1245 = vmatmul.mubr.bf16.gmra.mxu0 %v1086
      %v1246 = vpop.f32.mrf.mxu0
      %v1247 = vadd.f32 0.0, %v1246
      %v1248 = vpop.f32.mrf.mxu0
      %v1249 = vpop.f32.mrf.mxu0
      %v1250 = vadd.f32 0.0, %v1249
      %v1251 = vpop.f32.mrf.mxu0
      %1252 = vmatprep.mubr.bf16.mxu0 0
      %1253 = vmatmul.mubr.bf16.gmra.mxu0 %v1087
      %v1254 = vpop.f32.mrf.mxu0
      %v1255 = vadd.f32 0.0, %v1254
      %v1256 = vpop.f32.mrf.mxu0
      %v1257 = vpop.f32.mrf.mxu0
      %v1258 = vadd.f32 0.0, %v1257
      %v1259 = vpop.f32.mrf.mxu0
      %1260 = vmatprep.mubr.bf16.mxu0 0
      %1261 = vmatmul.mubr.bf16.gmra.mxu0 %v1088
      %v1262 = vpop.f32.mrf.mxu0
      %v1263 = vadd.f32 0.0, %v1262
      %v1264 = vpop.f32.mrf.mxu0
      %v1265 = vpop.f32.mrf.mxu0
      %v1266 = vadd.f32 0.0, %v1265
      %v1267 = vpop.f32.mrf.mxu0
      %1268 = vmatprep.mubr.bf16.mxu0 0
      %1269 = vmatmul.mubr.bf16.gmra.mxu0 %v1089
      %v1270 = vpop.f32.mrf.mxu0
      %v1271 = vadd.f32 0.0, %v1270
      %v1272 = vpop.f32.mrf.mxu0
      %v1273 = vpop.f32.mrf.mxu0
      %v1274 = vadd.f32 0.0, %v1273
      %v1275 = vpop.f32.mrf.mxu0
      %1276 = vmatprep.mubr.bf16.mxu0 0
      %1277 = vmatmul.mubr.bf16.gmra.mxu0 %v1090
      %v1278 = vpop.f32.mrf.mxu0
      %v1279 = vadd.f32 0.0, %v1278
      %v1280 = vpop.f32.mrf.mxu0
      %v1281 = vpop.f32.mrf.mxu0
      %v1282 = vadd.f32 0.0, %v1281
      %v1283 = vpop.f32.mrf.mxu0
      %1284 = vmatprep.mubr.bf16.mxu0 0
      %1285 = vmatmul.mubr.bf16.gmra.mxu0 %v1091
      %v1286 = vpop.f32.mrf.mxu0
      %v1287 = vadd.f32 0.0, %v1286
      %v1288 = vpop.f32.mrf.mxu0
      %v1289 = vpop.f32.mrf.mxu0
      %v1290 = vadd.f32 0.0, %v1289
      %v1291 = vpop.f32.mrf.mxu0
      %1292 = vmatprep.mubr.bf16.mxu0 0
      %1293 = vmatmul.mubr.bf16.gmra.mxu0 %v1092
      %v1294 = vpop.f32.mrf.mxu0
      %v1295 = vadd.f32 0.0, %v1294
      %v1296 = vpop.f32.mrf.mxu0
      %v1297 = vpop.f32.mrf.mxu0
      %v1298 = vadd.f32 0.0, %v1297
      %v1299 = vpop.f32.mrf.mxu0
      %1300 = vmatprep.mubr.bf16.mxu0 0
      %1301 = vmatmul.mubr.bf16.gmra.mxu0 %v1093
      %v1302 = vpop.f32.mrf.mxu0
      %v1303 = vadd.f32 0.0, %v1302
      %v1304 = vpop.f32.mrf.mxu0
      %v1305 = vpop.f32.mrf.mxu0
      %v1306 = vadd.f32 0.0, %v1305
      %v1307 = vpop.f32.mrf.mxu0
      %1308 = vmatprep.mubr.bf16.mxu0 0
      %1309 = vmatmul.mubr.bf16.gmra.mxu0 %v1094
      %v1310 = vpop.f32.mrf.mxu0
      %v1311 = vadd.f32 0.0, %v1310
      %v1312 = vpop.f32.mrf.mxu0
      %v1313 = vpop.f32.mrf.mxu0
      %v1314 = vadd.f32 0.0, %v1313
      %v1315 = vpop.f32.mrf.mxu0
      %1316 = vmatprep.mubr.bf16.mxu0 0
      %1317 = vmatmul.mubr.bf16.gmra.mxu0 %v1095
      %v1318 = vpop.f32.mrf.mxu0
      %v1319 = vadd.f32 0.0, %v1318
      %v1320 = vpop.f32.mrf.mxu0
      %v1321 = vpop.f32.mrf.mxu0
      %v1322 = vadd.f32 0.0, %v1321
      %v1323 = vpop.f32.mrf.mxu0
      %1324 = vmatprep.mubr.bf16.mxu0 0
      %1325 = vmatmul.mubr.bf16.gmra.mxu0 %v1096
      %v1326 = vpop.f32.mrf.mxu0
      %v1327 = vadd.f32 0.0, %v1326
      %v1328 = vpop.f32.mrf.mxu0
      %v1329 = vpop.f32.mrf.mxu0
      %v1330 = vadd.f32 0.0, %v1329
      %v1331 = vpop.f32.mrf.mxu0
      %1332 = vmatprep.mubr.bf16.mxu0 0
      %1333 = vmatmul.mubr.bf16.gmra.mxu0 %v1097
      %v1334 = vpop.f32.mrf.mxu0
      %v1335 = vadd.f32 0.0, %v1334
      %v1336 = vpop.f32.mrf.mxu0
      %v1337 = vpop.f32.mrf.mxu0
      %v1338 = vadd.f32 0.0, %v1337
      %v1339 = vpop.f32.mrf.mxu0
      %1340 = vmatprep.mubr.bf16.mxu0 0
      %1341 = vmatmul.mubr.bf16.gmra.mxu0 %v1098
      %v1342 = vpop.f32.mrf.mxu0
      %v1343 = vadd.f32 0.0, %v1342
      %v1344 = vpop.f32.mrf.mxu0
      %v1345 = vpop.f32.mrf.mxu0
      %v1346 = vadd.f32 0.0, %v1345
      %v1347 = vpop.f32.mrf.mxu0
      %1348 = vmatprep.mubr.bf16.mxu0 0
      %1349 = vmatmul.mubr.bf16.gmra.mxu0 %v1099
      %v1350 = vpop.f32.mrf.mxu0
      %v1351 = vadd.f32 0.0, %v1350
      %v1352 = vpop.f32.mrf.mxu0
      %v1353 = vpop.f32.mrf.mxu0
      %v1354 = vadd.f32 0.0, %v1353
      %v1355 = vpop.f32.mrf.mxu0
      %1356 = vmatprep.mubr.bf16.mxu0 0
      %1357 = vmatmul.mubr.bf16.gmra.mxu0 %v1100
      %v1358 = vpop.f32.mrf.mxu0
      %v1359 = vadd.f32 0.0, %v1358
      %v1360 = vpop.f32.mrf.mxu0
      %v1361 = vpop.f32.mrf.mxu0
      %v1362 = vadd.f32 0.0, %v1361
      %v1363 = vpop.f32.mrf.mxu0
      %1364 = vmatprep.mubr.bf16.mxu0 0
      %1365 = vmatmul.mubr.bf16.gmra.mxu0 %v1101
      %v1366 = vpop.f32.mrf.mxu0
      %v1367 = vadd.f32 0.0, %v1366
      %v1368 = vpop.f32.mrf.mxu0
      %v1369 = vpop.f32.mrf.mxu0
      %v1370 = vadd.f32 0.0, %v1369
      %v1371 = vpop.f32.mrf.mxu0
      %1372 = vmatprep.mubr.bf16.mxu0 0
      %1373 = vmatmul.mubr.bf16.gmra.mxu0 %v1102
      %v1374 = vpop.f32.mrf.mxu0
      %v1375 = vadd.f32 0.0, %v1374
      %v1376 = vpop.f32.mrf.mxu0
      %v1377 = vpop.f32.mrf.mxu0
      %v1378 = vadd.f32 0.0, %v1377
      %v1379 = vpop.f32.mrf.mxu0
      %1380 = vdwg.mxu0
      %v1381 = vadd.f32 %v1103, %v1239
      %v1382 = vadd.f32 %v1104, %v1242
      %v1383 = vadd.f32 %v1105, %v1247
      %v1384 = vadd.f32 %v1106, %v1250
      %v1385 = vadd.f32 %v1107, %v1255
      %v1386 = vadd.f32 %v1108, %v1258
      %v1387 = vadd.f32 %v1109, %v1263
      %v1388 = vadd.f32 %v1110, %v1266
      %v1389 = vadd.f32 %v1111, %v1271
      %v1390 = vadd.f32 %v1112, %v1274
      %v1391 = vadd.f32 %v1113, %v1279
      %v1392 = vadd.f32 %v1114, %v1282
      %v1393 = vadd.f32 %v1115, %v1287
      %v1394 = vadd.f32 %v1116, %v1290
      %v1395 = vadd.f32 %v1117, %v1295
      %v1396 = vadd.f32 %v1118, %v1298
      %v1397 = vadd.f32 %v1119, %v1303
      %v1398 = vadd.f32 %v1120, %v1306
      %v1399 = vadd.f32 %v1121, %v1311
      %v1400 = vadd.f32 %v1122, %v1314
      %v1401 = vadd.f32 %v1123, %v1319
      %v1402 = vadd.f32 %v1124, %v1322
      %v1403 = vadd.f32 %v1125, %v1327
      %v1404 = vadd.f32 %v1126, %v1330
      %v1405 = vadd.f32 %v1127, %v1335
      %v1406 = vadd.f32 %v1128, %v1338
      %v1407 = vadd.f32 %v1129, %v1343
      %v1408 = vadd.f32 %v1130, %v1346
      %v1409 = vadd.f32 %v1131, %v1351
      %v1410 = vadd.f32 %v1132, %v1354
      %v1411 = vadd.f32 %v1133, %v1359
      %v1412 = vadd.f32 %v1134, %v1362
      %v1413 = vadd.f32 %v1135, %v1367
      %v1414 = vadd.f32 %v1136, %v1370
      %v1415 = vadd.f32 %v1137, %v1375
      %v1416 = vadd.f32 %v1138, %v1378
      %1417 = vst [vmem:[#allocation2] sm:$0xff] %v1381
      %1418 = vst [vmem:[#allocation2 + $0x8] sm:$0xff] %v1382
      %1419 = vst [vmem:[#allocation2 + $0x10] sm:$0xff] %v1383
      %1420 = vst [vmem:[#allocation2 + $0x18] sm:$0xff] %v1384
      %1421 = vst [vmem:[#allocation2 + $0x20] sm:$0xff] %v1385
      %1422 = vst [vmem:[#allocation2 + $0x28] sm:$0xff] %v1386
      %1423 = vst [vmem:[#allocation2 + $0x30] sm:$0xff] %v1387
      %1424 = vst [vmem:[#allocation2 + $0x38] sm:$0xff] %v1388
      %1425 = vst [vmem:[#allocation2 + $0x40] sm:$0xff] %v1389
      %1426 = vst [vmem:[#allocation2 + $0x48] sm:$0xff] %v1390
      %1427 = vst [vmem:[#allocation2 + $0x50] sm:$0xff] %v1391
      %1428 = vst [vmem:[#allocation2 + $0x58] sm:$0xff] %v1392
      %1429 = vst [vmem:[#allocation2 + $0x60] sm:$0xff] %v1393
      %1430 = vst [vmem:[#allocation2 + $0x68] sm:$0xff] %v1394
      %1431 = vst [vmem:[#allocation2 + $0x70] sm:$0xff] %v1395
      %1432 = vst [vmem:[#allocation2 + $0x78] sm:$0xff] %v1396
      %1433 = vst [vmem:[#allocation2 + $0x80] sm:$0xff] %v1397
      %1434 = vst [vmem:[#allocation2 + $0x88] sm:$0xff] %v1398
      %1435 = vst [vmem:[#allocation2 + $0x90] sm:$0xff] %v1399
      %1436 = vst [vmem:[#allocation2 + $0x98] sm:$0xff] %v1400
      %1437 = vst [vmem:[#allocation2 + $0xa0] sm:$0xff] %v1401
      %1438 = vst [vmem:[#allocation2 + $0xa8] sm:$0xff] %v1402
      %1439 = vst [vmem:[#allocation2 + $0xb0] sm:$0xff] %v1403
      %1440 = vst [vmem:[#allocation2 + $0xb8] sm:$0xff] %v1404
      %1441 = vst [vmem:[#allocation2 + $0xc0] sm:$0xff] %v1405
      %1442 = vst [vmem:[#allocation2 + $0xc8] sm:$0xff] %v1406
      %1443 = vst [vmem:[#allocation2 + $0xd0] sm:$0xff] %v1407
      %1444 = vst [vmem:[#allocation2 + $0xd8] sm:$0xff] %v1408
      %1445 = vst [vmem:[#allocation2 + $0xe0] sm:$0xff] %v1409
      %1446 = vst [vmem:[#allocation2 + $0xe8] sm:$0xff] %v1410
      %1447 = vst [vmem:[#allocation2 + $0xf0] sm:$0xff] %v1411
      %1448 = vst [vmem:[#allocation2 + $0xf8] sm:$0xff] %v1412
      %1449 = vst [vmem:[#allocation2 + $0x100] sm:$0xff] %v1413
      %1450 = vst [vmem:[#allocation2 + $0x108] sm:$0xff] %v1414
      %1451 = vst [vmem:[#allocation2 + $0x110] sm:$0xff] %v1415
      %1452 = vst [vmem:[#allocation2 + $0x118] sm:$0xff] %v1416
      %v1453 = vld [vmem:[%s192 + $0x17] sm:$0xff]
      %v1454 = vld [vmem:[%s192 + $0x1f] sm:$0xff]
      %v1455 = vld [vmem:[%s192 + $0x27] sm:$0xff]
      %v1456 = vld [vmem:[%s192 + $0x2f] sm:$0xff]
      %v1457 = vld [vmem:[%s192 + $0x37] sm:$0xff]
      %v1458 = vld [vmem:[%s192 + $0x3f] sm:$0xff]
      %v1459 = vld [vmem:[%s192 + $0x47] sm:$0xff]
      %v1460 = vld [vmem:[%s192 + $0x4f] sm:$0xff]
      %v1461 = vld [vmem:[%s192 + $0x57] sm:$0xff]
      %v1462 = vld [vmem:[%s192 + $0x5f] sm:$0xff]
      %v1463 = vld [vmem:[%s192 + $0x67] sm:$0xff]
      %v1464 = vld [vmem:[%s192 + $0x6f] sm:$0xff]
      %v1465 = vld [vmem:[%s192 + $0x77] sm:$0xff]
      %v1466 = vld [vmem:[%s192 + $0x7f] sm:$0xff]
      %v1467 = vld [vmem:[%s192 + $0x87] sm:$0xff]
      %v1468 = vld [vmem:[%s192 + $0x8f] sm:$0xff]
      %v1469 = vld [vmem:[%s192 + $0x97] sm:$0xff]
      %v1470 = vld [vmem:[%s192 + $0x9f] sm:$0xff]
      %v1471 = vld [vmem:[%s192 + $0xa7] sm:$0xff]
      %v1472 = vld [vmem:[%s192 + $0xaf] sm:$0xff]
      %v1473 = vld [vmem:[%s192 + $0xb7] sm:$0xff]
      %v1474 = vld [vmem:[%s192 + $0xbf] sm:$0xff]
      %v1475 = vld [vmem:[%s192 + $0xc7] sm:$0xff]
      %v1476 = vld [vmem:[%s192 + $0xcf] sm:$0xff]
      %v1477 = vld [vmem:[%s192 + $0xd7] sm:$0xff]
      %v1478 = vld [vmem:[%s192 + $0xdf] sm:$0xff]
      %v1479 = vld [vmem:[%s192 + $0xe7] sm:$0xff]
      %v1480 = vld [vmem:[%s192 + $0xef] sm:$0xff]
      %v1481 = vld [vmem:[%s192 + $0xf7] sm:$0xff]
      %v1482 = vld [vmem:[%s192 + $0xff] sm:$0xff]
      %v1483 = vld [vmem:[%s192 + $0x107] sm:$0xff]
      %v1484 = vld [vmem:[%s192 + $0x10f] sm:$0xff]
      %v1485 = vld [vmem:[%s192 + $0x117] sm:$0xff]
      %v1486 = vld [vmem:[%s192 + $0x11f] sm:$0xff]
      %v1487 = vld [vmem:[%s192 + $0x127] sm:$0xff]
      %v1488 = vld [vmem:[%s192 + $0x12f] sm:$0xff]
      %v1489 = vpack.c.bf16 %v1454, %v1453
      %v1490 = vpack.c.bf16 %v1456, %v1455
      %v1491 = vpack.c.bf16 %v1458, %v1457
      %v1492 = vpack.c.bf16 %v1460, %v1459
      %v1493 = vpack.c.bf16 %v1462, %v1461
      %v1494 = vpack.c.bf16 %v1464, %v1463
      %v1495 = vpack.c.bf16 %v1466, %v1465
      %v1496 = vpack.c.bf16 %v1468, %v1467
      %v1497 = vpack.c.bf16 %v1470, %v1469
      %v1498 = vpack.c.bf16 %v1472, %v1471
      %v1499 = vpack.c.bf16 %v1474, %v1473
      %v1500 = vpack.c.bf16 %v1476, %v1475
      %v1501 = vpack.c.bf16 %v1478, %v1477
      %v1502 = vpack.c.bf16 %v1480, %v1479
      %v1503 = vpack.c.bf16 %v1482, %v1481
      %v1504 = vpack.c.bf16 %v1484, %v1483
      %v1505 = vpack.c.bf16 %v1486, %v1485
      %v1506 = vpack.c.bf16 %v1488, %v1487
      %v1507 = vld [vmem:[#allocation2] sm:$0xff]
      %v1508 = vld [vmem:[#allocation2 + $0x8] sm:$0xff]
      %v1509 = vld [vmem:[#allocation2 + $0x10] sm:$0xff]
      %v1510 = vld [vmem:[#allocation2 + $0x18] sm:$0xff]
      %v1511 = vld [vmem:[#allocation2 + $0x20] sm:$0xff]
      %v1512 = vld [vmem:[#allocation2 + $0x28] sm:$0xff]
      %v1513 = vld [vmem:[#allocation2 + $0x30] sm:$0xff]
      %v1514 = vld [vmem:[#allocation2 + $0x38] sm:$0xff]
      %v1515 = vld [vmem:[#allocation2 + $0x40] sm:$0xff]
      %v1516 = vld [vmem:[#allocation2 + $0x48] sm:$0xff]
      %v1517 = vld [vmem:[#allocation2 + $0x50] sm:$0xff]
      %v1518 = vld [vmem:[#allocation2 + $0x58] sm:$0xff]
      %v1519 = vld [vmem:[#allocation2 + $0x60] sm:$0xff]
      %v1520 = vld [vmem:[#allocation2 + $0x68] sm:$0xff]
      %v1521 = vld [vmem:[#allocation2 + $0x70] sm:$0xff]
      %v1522 = vld [vmem:[#allocation2 + $0x78] sm:$0xff]
      %v1523 = vld [vmem:[#allocation2 + $0x80] sm:$0xff]
      %v1524 = vld [vmem:[#allocation2 + $0x88] sm:$0xff]
      %v1525 = vld [vmem:[#allocation2 + $0x90] sm:$0xff]
      %v1526 = vld [vmem:[#allocation2 + $0x98] sm:$0xff]
      %v1527 = vld [vmem:[#allocation2 + $0xa0] sm:$0xff]
      %v1528 = vld [vmem:[#allocation2 + $0xa8] sm:$0xff]
      %v1529 = vld [vmem:[#allocation2 + $0xb0] sm:$0xff]
      %v1530 = vld [vmem:[#allocation2 + $0xb8] sm:$0xff]
      %v1531 = vld [vmem:[#allocation2 + $0xc0] sm:$0xff]
      %v1532 = vld [vmem:[#allocation2 + $0xc8] sm:$0xff]
      %v1533 = vld [vmem:[#allocation2 + $0xd0] sm:$0xff]
      %v1534 = vld [vmem:[#allocation2 + $0xd8] sm:$0xff]
      %v1535 = vld [vmem:[#allocation2 + $0xe0] sm:$0xff]
      %v1536 = vld [vmem:[#allocation2 + $0xe8] sm:$0xff]
      %v1537 = vld [vmem:[#allocation2 + $0xf0] sm:$0xff]
      %v1538 = vld [vmem:[#allocation2 + $0xf8] sm:$0xff]
      %v1539 = vld [vmem:[#allocation2 + $0x100] sm:$0xff]
      %v1540 = vld [vmem:[#allocation2 + $0x108] sm:$0xff]
      %v1541 = vld [vmem:[#allocation2 + $0x110] sm:$0xff]
      %v1542 = vld [vmem:[#allocation2 + $0x118] sm:$0xff]
      %s1543 = scalar_lea.vmem %s1, 192
      %v1544 = vld [vmem:[%s1543] sm:$0xf]
      %v1545 = vld [vmem:[%s1543 + $0x4] sm:$0xf]
      %v1546 = vld [vmem:[%s1543 + $0x8] sm:$0xf]
      %v1547 = vld [vmem:[%s1543 + $0xc] sm:$0xf]
      %v1548 = vld [vmem:[%s1543 + $0x10] sm:$0xf]
      %v1549 = vld [vmem:[%s1543 + $0x14] sm:$0xf]
      %v1550 = vld [vmem:[%s1543 + $0x18] sm:$0xf]
      %v1551 = vld [vmem:[%s1543 + $0x1c] sm:$0xf]
      %v1552 = vld [vmem:[%s1543 + $0x20] sm:$0xf]
      %v1553 = vld [vmem:[%s1543 + $0x24] sm:$0xf]
      %v1554 = vld [vmem:[%s1543 + $0x28] sm:$0xf]
      %v1555 = vld [vmem:[%s1543 + $0x2c] sm:$0xf]
      %v1556 = vld [vmem:[%s1543 + $0x30] sm:$0xf]
      %v1557 = vld [vmem:[%s1543 + $0x34] sm:$0xf]
      %v1558 = vld [vmem:[%s1543 + $0x38] sm:$0xf]
      %v1559 = vld [vmem:[%s1543 + $0x3c] sm:$0xf]
      %v1576 = vunpack.c.l.b16 %v1544
      %v1577 = vunpack.c.l.b16 %v1545
      %v1578 = vunpack.c.l.b16 %v1546
      %v1579 = vunpack.c.l.b16 %v1547
      %v1580 = vunpack.c.l.b16 %v1548
      %v1581 = vunpack.c.l.b16 %v1549
      %v1582 = vunpack.c.l.b16 %v1550
      %v1583 = vunpack.c.l.b16 %v1551
      %v1584 = vunpack.c.l.b16 %v1552
      %v1585 = vunpack.c.l.b16 %v1553
      %v1586 = vunpack.c.l.b16 %v1554
      %v1587 = vunpack.c.l.b16 %v1555
      %v1588 = vunpack.c.l.b16 %v1556
      %v1589 = vunpack.c.l.b16 %v1557
      %v1590 = vunpack.c.l.b16 %v1558
      %v1591 = vunpack.c.l.b16 %v1559
      %v1592 = vpack.c.b16 %v1577, %v1576
      %v1593 = vpack.c.b16 %v1579, %v1578
      %v1594 = vpack.c.b16 %v1581, %v1580
      %v1595 = vpack.c.b16 %v1583, %v1582
      %v1596 = vpack.c.b16 %v1585, %v1584
      %v1597 = vpack.c.b16 %v1587, %v1586
      %v1598 = vpack.c.b16 %v1589, %v1588
      %v1599 = vpack.c.b16 %v1591, %v1590
      %1608 = vmatprep.subr.bf16.mxu0 0
      %1609 = vmatpush1.bf16.msra.mxu0 %v1599
      %1610 = vmatprep.subr.bf16.mxu0 0
      %1611 = vmatpush1.bf16.msra.mxu0 %v1598
      %1612 = vmatprep.subr.bf16.mxu0 0
      %1613 = vmatpush1.bf16.msra.mxu0 %v1597
      %1614 = vmatprep.subr.bf16.mxu0 0
      %1615 = vmatpush1.bf16.msra.mxu0 %v1596
      %1616 = vmatprep.subr.bf16.mxu0 0
      %1617 = vmatpush1.bf16.msra.mxu0 %v1595
      %1618 = vmatprep.subr.bf16.mxu0 0
      %1619 = vmatpush1.bf16.msra.mxu0 %v1594
      %1620 = vmatprep.subr.bf16.mxu0 0
      %1621 = vmatpush1.bf16.msra.mxu0 %v1593
      %1622 = vmatprep.subr.bf16.mxu0 0
      %1623 = vmatpush1.bf16.msra.mxu0 %v1592
      %1624 = vmatprep.subr.bf16.mxu0 0
      %1625 = vmatpush2.bf16.msra.mxu0 0
      %1626 = vmatprep.subr.bf16.mxu0 0
      %1627 = vmatpush2.bf16.msra.mxu0 0
      %1628 = vmatprep.subr.bf16.mxu0 0
      %1629 = vmatpush2.bf16.msra.mxu0 0
      %1630 = vmatprep.subr.bf16.mxu0 0
      %1631 = vmatpush2.bf16.msra.mxu0 0
      %1632 = vmatprep.subr.bf16.mxu0 0
      %1633 = vmatpush2.bf16.msra.mxu0 0
      %1634 = vmatprep.subr.bf16.mxu0 0
      %1635 = vmatpush2.bf16.msra.mxu0 0
      %1636 = vmatprep.subr.bf16.mxu0 0
      %1637 = vmatpush2.bf16.msra.mxu0 0
      %1638 = vmatprep.subr.bf16.mxu0 0
      %1639 = vmatpush2.bf16.msra.mxu0 0
      %1640 = vmatprep.mubr.bf16.mxu0 0
      %1641 = vmatmul.mubr.bf16.gmra.mxu0 %v1489
      %v1642 = vpop.f32.mrf.mxu0
      %v1643 = vadd.f32 0.0, %v1642
      %v1644 = vpop.f32.mrf.mxu0
      %v1645 = vpop.f32.mrf.mxu0
      %v1646 = vadd.f32 0.0, %v1645
      %v1647 = vpop.f32.mrf.mxu0
      %1648 = vmatprep.mubr.bf16.mxu0 0
      %1649 = vmatmul.mubr.bf16.gmra.mxu0 %v1490
      %v1650 = vpop.f32.mrf.mxu0
      %v1651 = vadd.f32 0.0, %v1650
      %v1652 = vpop.f32.mrf.mxu0
      %v1653 = vpop.f32.mrf.mxu0
      %v1654 = vadd.f32 0.0, %v1653
      %v1655 = vpop.f32.mrf.mxu0
      %1656 = vmatprep.mubr.bf16.mxu0 0
      %1657 = vmatmul.mubr.bf16.gmra.mxu0 %v1491
      %v1658 = vpop.f32.mrf.mxu0
      %v1659 = vadd.f32 0.0, %v1658
      %v1660 = vpop.f32.mrf.mxu0
      %v1661 = vpop.f32.mrf.mxu0
      %v1662 = vadd.f32 0.0, %v1661
      %v1663 = vpop.f32.mrf.mxu0
      %1664 = vmatprep.mubr.bf16.mxu0 0
      %1665 = vmatmul.mubr.bf16.gmra.mxu0 %v1492
      %v1666 = vpop.f32.mrf.mxu0
      %v1667 = vadd.f32 0.0, %v1666
      %v1668 = vpop.f32.mrf.mxu0
      %v1669 = vpop.f32.mrf.mxu0
      %v1670 = vadd.f32 0.0, %v1669
      %v1671 = vpop.f32.mrf.mxu0
      %1672 = vmatprep.mubr.bf16.mxu0 0
      %1673 = vmatmul.mubr.bf16.gmra.mxu0 %v1493
      %v1674 = vpop.f32.mrf.mxu0
      %v1675 = vadd.f32 0.0, %v1674
      %v1676 = vpop.f32.mrf.mxu0
      %v1677 = vpop.f32.mrf.mxu0
      %v1678 = vadd.f32 0.0, %v1677
      %v1679 = vpop.f32.mrf.mxu0
      %1680 = vmatprep.mubr.bf16.mxu0 0
      %1681 = vmatmul.mubr.bf16.gmra.mxu0 %v1494
      %v1682 = vpop.f32.mrf.mxu0
      %v1683 = vadd.f32 0.0, %v1682
      %v1684 = vpop.f32.mrf.mxu0
      %v1685 = vpop.f32.mrf.mxu0
      %v1686 = vadd.f32 0.0, %v1685
      %v1687 = vpop.f32.mrf.mxu0
      %1688 = vmatprep.mubr.bf16.mxu0 0
      %1689 = vmatmul.mubr.bf16.gmra.mxu0 %v1495
      %v1690 = vpop.f32.mrf.mxu0
      %v1691 = vadd.f32 0.0, %v1690
      %v1692 = vpop.f32.mrf.mxu0
      %v1693 = vpop.f32.mrf.mxu0
      %v1694 = vadd.f32 0.0, %v1693
      %v1695 = vpop.f32.mrf.mxu0
      %1696 = vmatprep.mubr.bf16.mxu0 0
      %1697 = vmatmul.mubr.bf16.gmra.mxu0 %v1496
      %v1698 = vpop.f32.mrf.mxu0
      %v1699 = vadd.f32 0.0, %v1698
      %v1700 = vpop.f32.mrf.mxu0
      %v1701 = vpop.f32.mrf.mxu0
      %v1702 = vadd.f32 0.0, %v1701
      %v1703 = vpop.f32.mrf.mxu0
      %1704 = vmatprep.mubr.bf16.mxu0 0
      %1705 = vmatmul.mubr.bf16.gmra.mxu0 %v1497
      %v1706 = vpop.f32.mrf.mxu0
      %v1707 = vadd.f32 0.0, %v1706
      %v1708 = vpop.f32.mrf.mxu0
      %v1709 = vpop.f32.mrf.mxu0
      %v1710 = vadd.f32 0.0, %v1709
      %v1711 = vpop.f32.mrf.mxu0
      %1712 = vmatprep.mubr.bf16.mxu0 0
      %1713 = vmatmul.mubr.bf16.gmra.mxu0 %v1498
      %v1714 = vpop.f32.mrf.mxu0
      %v1715 = vadd.f32 0.0, %v1714
      %v1716 = vpop.f32.mrf.mxu0
      %v1717 = vpop.f32.mrf.mxu0
      %v1718 = vadd.f32 0.0, %v1717
      %v1719 = vpop.f32.mrf.mxu0
      %1720 = vmatprep.mubr.bf16.mxu0 0
      %1721 = vmatmul.mubr.bf16.gmra.mxu0 %v1499
      %v1722 = vpop.f32.mrf.mxu0
      %v1723 = vadd.f32 0.0, %v1722
      %v1724 = vpop.f32.mrf.mxu0
      %v1725 = vpop.f32.mrf.mxu0
      %v1726 = vadd.f32 0.0, %v1725
      %v1727 = vpop.f32.mrf.mxu0
      %1728 = vmatprep.mubr.bf16.mxu0 0
      %1729 = vmatmul.mubr.bf16.gmra.mxu0 %v1500
      %v1730 = vpop.f32.mrf.mxu0
      %v1731 = vadd.f32 0.0, %v1730
      %v1732 = vpop.f32.mrf.mxu0
      %v1733 = vpop.f32.mrf.mxu0
      %v1734 = vadd.f32 0.0, %v1733
      %v1735 = vpop.f32.mrf.mxu0
      %1736 = vmatprep.mubr.bf16.mxu0 0
      %1737 = vmatmul.mubr.bf16.gmra.mxu0 %v1501
      %v1738 = vpop.f32.mrf.mxu0
      %v1739 = vadd.f32 0.0, %v1738
      %v1740 = vpop.f32.mrf.mxu0
      %v1741 = vpop.f32.mrf.mxu0
      %v1742 = vadd.f32 0.0, %v1741
      %v1743 = vpop.f32.mrf.mxu0
      %1744 = vmatprep.mubr.bf16.mxu0 0
      %1745 = vmatmul.mubr.bf16.gmra.mxu0 %v1502
      %v1746 = vpop.f32.mrf.mxu0
      %v1747 = vadd.f32 0.0, %v1746
      %v1748 = vpop.f32.mrf.mxu0
      %v1749 = vpop.f32.mrf.mxu0
      %v1750 = vadd.f32 0.0, %v1749
      %v1751 = vpop.f32.mrf.mxu0
      %1752 = vmatprep.mubr.bf16.mxu0 0
      %1753 = vmatmul.mubr.bf16.gmra.mxu0 %v1503
      %v1754 = vpop.f32.mrf.mxu0
      %v1755 = vadd.f32 0.0, %v1754
      %v1756 = vpop.f32.mrf.mxu0
      %v1757 = vpop.f32.mrf.mxu0
      %v1758 = vadd.f32 0.0, %v1757
      %v1759 = vpop.f32.mrf.mxu0
      %1760 = vmatprep.mubr.bf16.mxu0 0
      %1761 = vmatmul.mubr.bf16.gmra.mxu0 %v1504
      %v1762 = vpop.f32.mrf.mxu0
      %v1763 = vadd.f32 0.0, %v1762
      %v1764 = vpop.f32.mrf.mxu0
      %v1765 = vpop.f32.mrf.mxu0
      %v1766 = vadd.f32 0.0, %v1765
      %v1767 = vpop.f32.mrf.mxu0
      %1768 = vmatprep.mubr.bf16.mxu0 0
      %1769 = vmatmul.mubr.bf16.gmra.mxu0 %v1505
      %v1770 = vpop.f32.mrf.mxu0
      %v1771 = vadd.f32 0.0, %v1770
      %v1772 = vpop.f32.mrf.mxu0
      %v1773 = vpop.f32.mrf.mxu0
      %v1774 = vadd.f32 0.0, %v1773
      %v1775 = vpop.f32.mrf.mxu0
      %1776 = vmatprep.mubr.bf16.mxu0 0
      %1777 = vmatmul.mubr.bf16.gmra.mxu0 %v1506
      %v1778 = vpop.f32.mrf.mxu0
      %v1779 = vadd.f32 0.0, %v1778
      %v1780 = vpop.f32.mrf.mxu0
      %v1781 = vpop.f32.mrf.mxu0
      %v1782 = vadd.f32 0.0, %v1781
      %v1783 = vpop.f32.mrf.mxu0
      %1784 = vdwg.mxu0
      %v1785 = vadd.f32 %v1507, %v1643
      %v1786 = vadd.f32 %v1508, %v1646
      %v1787 = vadd.f32 %v1509, %v1651
      %v1788 = vadd.f32 %v1510, %v1654
      %v1789 = vadd.f32 %v1511, %v1659
      %v1790 = vadd.f32 %v1512, %v1662
      %v1791 = vadd.f32 %v1513, %v1667
      %v1792 = vadd.f32 %v1514, %v1670
      %v1793 = vadd.f32 %v1515, %v1675
      %v1794 = vadd.f32 %v1516, %v1678
      %v1795 = vadd.f32 %v1517, %v1683
      %v1796 = vadd.f32 %v1518, %v1686
      %v1797 = vadd.f32 %v1519, %v1691
      %v1798 = vadd.f32 %v1520, %v1694
      %v1799 = vadd.f32 %v1521, %v1699
      %v1800 = vadd.f32 %v1522, %v1702
      %v1801 = vadd.f32 %v1523, %v1707
      %v1802 = vadd.f32 %v1524, %v1710
      %v1803 = vadd.f32 %v1525, %v1715
      %v1804 = vadd.f32 %v1526, %v1718
      %v1805 = vadd.f32 %v1527, %v1723
      %v1806 = vadd.f32 %v1528, %v1726
      %v1807 = vadd.f32 %v1529, %v1731
      %v1808 = vadd.f32 %v1530, %v1734
      %v1809 = vadd.f32 %v1531, %v1739
      %v1810 = vadd.f32 %v1532, %v1742
      %v1811 = vadd.f32 %v1533, %v1747
      %v1812 = vadd.f32 %v1534, %v1750
      %v1813 = vadd.f32 %v1535, %v1755
      %v1814 = vadd.f32 %v1536, %v1758
      %v1815 = vadd.f32 %v1537, %v1763
      %v1816 = vadd.f32 %v1538, %v1766
      %v1817 = vadd.f32 %v1539, %v1771
      %v1818 = vadd.f32 %v1540, %v1774
      %v1819 = vadd.f32 %v1541, %v1779
      %v1820 = vadd.f32 %v1542, %v1782
      %1821 = vst [vmem:[#allocation2] sm:$0xff] %v1785
      %1822 = vst [vmem:[#allocation2 + $0x8] sm:$0xff] %v1786
      %1823 = vst [vmem:[#allocation2 + $0x10] sm:$0xff] %v1787
      %1824 = vst [vmem:[#allocation2 + $0x18] sm:$0xff] %v1788
      %1825 = vst [vmem:[#allocation2 + $0x20] sm:$0xff] %v1789
      %1826 = vst [vmem:[#allocation2 + $0x28] sm:$0xff] %v1790
      %1827 = vst [vmem:[#allocation2 + $0x30] sm:$0xff] %v1791
      %1828 = vst [vmem:[#allocation2 + $0x38] sm:$0xff] %v1792
      %1829 = vst [vmem:[#allocation2 + $0x40] sm:$0xff] %v1793
      %1830 = vst [vmem:[#allocation2 + $0x48] sm:$0xff] %v1794
      %1831 = vst [vmem:[#allocation2 + $0x50] sm:$0xff] %v1795
      %1832 = vst [vmem:[#allocation2 + $0x58] sm:$0xff] %v1796
      %1833 = vst [vmem:[#allocation2 + $0x60] sm:$0xff] %v1797
      %1834 = vst [vmem:[#allocation2 + $0x68] sm:$0xff] %v1798
      %1835 = vst [vmem:[#allocation2 + $0x70] sm:$0xff] %v1799
      %1836 = vst [vmem:[#allocation2 + $0x78] sm:$0xff] %v1800
      %1837 = vst [vmem:[#allocation2 + $0x80] sm:$0xff] %v1801
      %1838 = vst [vmem:[#allocation2 + $0x88] sm:$0xff] %v1802
      %1839 = vst [vmem:[#allocation2 + $0x90] sm:$0xff] %v1803
      %1840 = vst [vmem:[#allocation2 + $0x98] sm:$0xff] %v1804
      %1841 = vst [vmem:[#allocation2 + $0xa0] sm:$0xff] %v1805
      %1842 = vst [vmem:[#allocation2 + $0xa8] sm:$0xff] %v1806
      %1843 = vst [vmem:[#allocation2 + $0xb0] sm:$0xff] %v1807
      %1844 = vst [vmem:[#allocation2 + $0xb8] sm:$0xff] %v1808
      %1845 = vst [vmem:[#allocation2 + $0xc0] sm:$0xff] %v1809
      %1846 = vst [vmem:[#allocation2 + $0xc8] sm:$0xff] %v1810
      %1847 = vst [vmem:[#allocation2 + $0xd0] sm:$0xff] %v1811
      %1848 = vst [vmem:[#allocation2 + $0xd8] sm:$0xff] %v1812
      %1849 = vst [vmem:[#allocation2 + $0xe0] sm:$0xff] %v1813
      %1850 = vst [vmem:[#allocation2 + $0xe8] sm:$0xff] %v1814
      %1851 = vst [vmem:[#allocation2 + $0xf0] sm:$0xff] %v1815
      %1852 = vst [vmem:[#allocation2 + $0xf8] sm:$0xff] %v1816
      %1853 = vst [vmem:[#allocation2 + $0x100] sm:$0xff] %v1817
      %1854 = vst [vmem:[#allocation2 + $0x108] sm:$0xff] %v1818
      %1855 = vst [vmem:[#allocation2 + $0x110] sm:$0xff] %v1819
      %1856 = vst [vmem:[#allocation2 + $0x118] sm:$0xff] %v1820
      %v1857 = vld [vmem:[%s192 + $0x18] sm:$0xff]
      %v1858 = vld [vmem:[%s192 + $0x20] sm:$0xff]
      %v1859 = vld [vmem:[%s192 + $0x28] sm:$0xff]
      %v1860 = vld [vmem:[%s192 + $0x30] sm:$0xff]
      %v1861 = vld [vmem:[%s192 + $0x38] sm:$0xff]
      %v1862 = vld [vmem:[%s192 + $0x40] sm:$0xff]
      %v1863 = vld [vmem:[%s192 + $0x48] sm:$0xff]
      %v1864 = vld [vmem:[%s192 + $0x50] sm:$0xff]
      %v1865 = vld [vmem:[%s192 + $0x58] sm:$0xff]
      %v1866 = vld [vmem:[%s192 + $0x60] sm:$0xff]
      %v1867 = vld [vmem:[%s192 + $0x68] sm:$0xff]
      %v1868 = vld [vmem:[%s192 + $0x70] sm:$0xff]
      %v1869 = vld [vmem:[%s192 + $0x78] sm:$0xff]
      %v1870 = vld [vmem:[%s192 + $0x80] sm:$0xff]
      %v1871 = vld [vmem:[%s192 + $0x88] sm:$0xff]
      %v1872 = vld [vmem:[%s192 + $0x90] sm:$0xff]
      %v1873 = vld [vmem:[%s192 + $0x98] sm:$0xff]
      %v1874 = vld [vmem:[%s192 + $0xa0] sm:$0xff]
      %v1875 = vld [vmem:[%s192 + $0xa8] sm:$0xff]
      %v1876 = vld [vmem:[%s192 + $0xb0] sm:$0xff]
      %v1877 = vld [vmem:[%s192 + $0xb8] sm:$0xff]
      %v1878 = vld [vmem:[%s192 + $0xc0] sm:$0xff]
      %v1879 = vld [vmem:[%s192 + $0xc8] sm:$0xff]
      %v1880 = vld [vmem:[%s192 + $0xd0] sm:$0xff]
      %v1881 = vld [vmem:[%s192 + $0xd8] sm:$0xff]
      %v1882 = vld [vmem:[%s192 + $0xe0] sm:$0xff]
      %v1883 = vld [vmem:[%s192 + $0xe8] sm:$0xff]
      %v1884 = vld [vmem:[%s192 + $0xf0] sm:$0xff]
      %v1885 = vld [vmem:[%s192 + $0xf8] sm:$0xff]
      %v1886 = vld [vmem:[%s192 + $0x100] sm:$0xff]
      %v1887 = vld [vmem:[%s192 + $0x108] sm:$0xff]
      %v1888 = vld [vmem:[%s192 + $0x110] sm:$0xff]
      %v1889 = vld [vmem:[%s192 + $0x118] sm:$0xff]
      %v1890 = vld [vmem:[%s192 + $0x120] sm:$0xff]
      %v1891 = vld [vmem:[%s192 + $0x128] sm:$0xff]
      %v1892 = vld [vmem:[%s192 + $0x130] sm:$0xff]
      %v1893 = vpack.c.bf16 %v1858, %v1857
      %v1894 = vpack.c.bf16 %v1860, %v1859
      %v1895 = vpack.c.bf16 %v1862, %v1861
      %v1896 = vpack.c.bf16 %v1864, %v1863
      %v1897 = vpack.c.bf16 %v1866, %v1865
      %v1898 = vpack.c.bf16 %v1868, %v1867
      %v1899 = vpack.c.bf16 %v1870, %v1869
      %v1900 = vpack.c.bf16 %v1872, %v1871
      %v1901 = vpack.c.bf16 %v1874, %v1873
      %v1902 = vpack.c.bf16 %v1876, %v1875
      %v1903 = vpack.c.bf16 %v1878, %v1877
      %v1904 = vpack.c.bf16 %v1880, %v1879
      %v1905 = vpack.c.bf16 %v1882, %v1881
      %v1906 = vpack.c.bf16 %v1884, %v1883
      %v1907 = vpack.c.bf16 %v1886, %v1885
      %v1908 = vpack.c.bf16 %v1888, %v1887
      %v1909 = vpack.c.bf16 %v1890, %v1889
      %v1910 = vpack.c.bf16 %v1892, %v1891
      %v1911 = vld [vmem:[#allocation2] sm:$0xff]
      %v1912 = vld [vmem:[#allocation2 + $0x8] sm:$0xff]
      %v1913 = vld [vmem:[#allocation2 + $0x10] sm:$0xff]
      %v1914 = vld [vmem:[#allocation2 + $0x18] sm:$0xff]
      %v1915 = vld [vmem:[#allocation2 + $0x20] sm:$0xff]
      %v1916 = vld [vmem:[#allocation2 + $0x28] sm:$0xff]
      %v1917 = vld [vmem:[#allocation2 + $0x30] sm:$0xff]
      %v1918 = vld [vmem:[#allocation2 + $0x38] sm:$0xff]
      %v1919 = vld [vmem:[#allocation2 + $0x40] sm:$0xff]
      %v1920 = vld [vmem:[#allocation2 + $0x48] sm:$0xff]
      %v1921 = vld [vmem:[#allocation2 + $0x50] sm:$0xff]
      %v1922 = vld [vmem:[#allocation2 + $0x58] sm:$0xff]
      %v1923 = vld [vmem:[#allocation2 + $0x60] sm:$0xff]
      %v1924 = vld [vmem:[#allocation2 + $0x68] sm:$0xff]
      %v1925 = vld [vmem:[#allocation2 + $0x70] sm:$0xff]
      %v1926 = vld [vmem:[#allocation2 + $0x78] sm:$0xff]
      %v1927 = vld [vmem:[#allocation2 + $0x80] sm:$0xff]
      %v1928 = vld [vmem:[#allocation2 + $0x88] sm:$0xff]
      %v1929 = vld [vmem:[#allocation2 + $0x90] sm:$0xff]
      %v1930 = vld [vmem:[#allocation2 + $0x98] sm:$0xff]
      %v1931 = vld [vmem:[#allocation2 + $0xa0] sm:$0xff]
      %v1932 = vld [vmem:[#allocation2 + $0xa8] sm:$0xff]
      %v1933 = vld [vmem:[#allocation2 + $0xb0] sm:$0xff]
      %v1934 = vld [vmem:[#allocation2 + $0xb8] sm:$0xff]
      %v1935 = vld [vmem:[#allocation2 + $0xc0] sm:$0xff]
      %v1936 = vld [vmem:[#allocation2 + $0xc8] sm:$0xff]
      %v1937 = vld [vmem:[#allocation2 + $0xd0] sm:$0xff]
      %v1938 = vld [vmem:[#allocation2 + $0xd8] sm:$0xff]
      %v1939 = vld [vmem:[#allocation2 + $0xe0] sm:$0xff]
      %v1940 = vld [vmem:[#allocation2 + $0xe8] sm:$0xff]
      %v1941 = vld [vmem:[#allocation2 + $0xf0] sm:$0xff]
      %v1942 = vld [vmem:[#allocation2 + $0xf8] sm:$0xff]
      %v1943 = vld [vmem:[#allocation2 + $0x100] sm:$0xff]
      %v1944 = vld [vmem:[#allocation2 + $0x108] sm:$0xff]
      %v1945 = vld [vmem:[#allocation2 + $0x110] sm:$0xff]
      %v1946 = vld [vmem:[#allocation2 + $0x118] sm:$0xff]
      %s1947 = scalar_lea.vmem %s1, 256
      %v1948 = vld [vmem:[%s1947] sm:$0xf]
      %v1949 = vld [vmem:[%s1947 + $0x4] sm:$0xf]
      %v1950 = vld [vmem:[%s1947 + $0x8] sm:$0xf]
      %v1951 = vld [vmem:[%s1947 + $0xc] sm:$0xf]
      %v1952 = vld [vmem:[%s1947 + $0x10] sm:$0xf]
      %v1953 = vld [vmem:[%s1947 + $0x14] sm:$0xf]
      %v1954 = vld [vmem:[%s1947 + $0x18] sm:$0xf]
      %v1955 = vld [vmem:[%s1947 + $0x1c] sm:$0xf]
      %v1956 = vld [vmem:[%s1947 + $0x20] sm:$0xf]
      %v1957 = vld [vmem:[%s1947 + $0x24] sm:$0xf]
      %v1958 = vld [vmem:[%s1947 + $0x28] sm:$0xf]
      %v1959 = vld [vmem:[%s1947 + $0x2c] sm:$0xf]
      %v1960 = vld [vmem:[%s1947 + $0x30] sm:$0xf]
      %v1961 = vld [vmem:[%s1947 + $0x34] sm:$0xf]
      %v1962 = vld [vmem:[%s1947 + $0x38] sm:$0xf]
      %v1963 = vld [vmem:[%s1947 + $0x3c] sm:$0xf]
      %v1980 = vunpack.c.l.b16 %v1948
      %v1981 = vunpack.c.l.b16 %v1949
      %v1982 = vunpack.c.l.b16 %v1950
      %v1983 = vunpack.c.l.b16 %v1951
      %v1984 = vunpack.c.l.b16 %v1952
      %v1985 = vunpack.c.l.b16 %v1953
      %v1986 = vunpack.c.l.b16 %v1954
      %v1987 = vunpack.c.l.b16 %v1955
      %v1988 = vunpack.c.l.b16 %v1956
      %v1989 = vunpack.c.l.b16 %v1957
      %v1990 = vunpack.c.l.b16 %v1958
      %v1991 = vunpack.c.l.b16 %v1959
      %v1992 = vunpack.c.l.b16 %v1960
      %v1993 = vunpack.c.l.b16 %v1961
      %v1994 = vunpack.c.l.b16 %v1962
      %v1995 = vunpack.c.l.b16 %v1963
      %v1996 = vpack.c.b16 %v1981, %v1980
      %v1997 = vpack.c.b16 %v1983, %v1982
      %v1998 = vpack.c.b16 %v1985, %v1984
      %v1999 = vpack.c.b16 %v1987, %v1986
      %v2000 = vpack.c.b16 %v1989, %v1988
      %v2001 = vpack.c.b16 %v1991, %v1990
      %v2002 = vpack.c.b16 %v1993, %v1992
      %v2003 = vpack.c.b16 %v1995, %v1994
      %2012 = vmatprep.subr.bf16.mxu0 0
      %2013 = vmatpush1.bf16.msra.mxu0 %v2003
      %2014 = vmatprep.subr.bf16.mxu0 0
      %2015 = vmatpush1.bf16.msra.mxu0 %v2002
      %2016 = vmatprep.subr.bf16.mxu0 0
      %2017 = vmatpush1.bf16.msra.mxu0 %v2001
      %2018 = vmatprep.subr.bf16.mxu0 0
      %2019 = vmatpush1.bf16.msra.mxu0 %v2000
      %2020 = vmatprep.subr.bf16.mxu0 0
      %2021 = vmatpush1.bf16.msra.mxu0 %v1999
      %2022 = vmatprep.subr.bf16.mxu0 0
      %2023 = vmatpush1.bf16.msra.mxu0 %v1998
      %2024 = vmatprep.subr.bf16.mxu0 0
      %2025 = vmatpush1.bf16.msra.mxu0 %v1997
      %2026 = vmatprep.subr.bf16.mxu0 0
      %2027 = vmatpush1.bf16.msra.mxu0 %v1996
      %2028 = vmatprep.subr.bf16.mxu0 0
      %2029 = vmatpush2.bf16.msra.mxu0 0
      %2030 = vmatprep.subr.bf16.mxu0 0
      %2031 = vmatpush2.bf16.msra.mxu0 0
      %2032 = vmatprep.subr.bf16.mxu0 0
      %2033 = vmatpush2.bf16.msra.mxu0 0
      %2034 = vmatprep.subr.bf16.mxu0 0
      %2035 = vmatpush2.bf16.msra.mxu0 0
      %2036 = vmatprep.subr.bf16.mxu0 0
      %2037 = vmatpush2.bf16.msra.mxu0 0
      %2038 = vmatprep.subr.bf16.mxu0 0
      %2039 = vmatpush2.bf16.msra.mxu0 0
      %2040 = vmatprep.subr.bf16.mxu0 0
      %2041 = vmatpush2.bf16.msra.mxu0 0
      %2042 = vmatprep.subr.bf16.mxu0 0
      %2043 = vmatpush2.bf16.msra.mxu0 0
      %2044 = vmatprep.mubr.bf16.mxu0 0
      %2045 = vmatmul.mubr.bf16.gmra.mxu0 %v1893
      %v2046 = vpop.f32.mrf.mxu0
      %v2047 = vadd.f32 0.0, %v2046
      %v2048 = vpop.f32.mrf.mxu0
      %v2049 = vpop.f32.mrf.mxu0
      %v2050 = vadd.f32 0.0, %v2049
      %v2051 = vpop.f32.mrf.mxu0
      %2052 = vmatprep.mubr.bf16.mxu0 0
      %2053 = vmatmul.mubr.bf16.gmra.mxu0 %v1894
      %v2054 = vpop.f32.mrf.mxu0
      %v2055 = vadd.f32 0.0, %v2054
      %v2056 = vpop.f32.mrf.mxu0
      %v2057 = vpop.f32.mrf.mxu0
      %v2058 = vadd.f32 0.0, %v2057
      %v2059 = vpop.f32.mrf.mxu0
      %2060 = vmatprep.mubr.bf16.mxu0 0
      %2061 = vmatmul.mubr.bf16.gmra.mxu0 %v1895
      %v2062 = vpop.f32.mrf.mxu0
      %v2063 = vadd.f32 0.0, %v2062
      %v2064 = vpop.f32.mrf.mxu0
      %v2065 = vpop.f32.mrf.mxu0
      %v2066 = vadd.f32 0.0, %v2065
      %v2067 = vpop.f32.mrf.mxu0
      %2068 = vmatprep.mubr.bf16.mxu0 0
      %2069 = vmatmul.mubr.bf16.gmra.mxu0 %v1896
      %v2070 = vpop.f32.mrf.mxu0
      %v2071 = vadd.f32 0.0, %v2070
      %v2072 = vpop.f32.mrf.mxu0
      %v2073 = vpop.f32.mrf.mxu0
      %v2074 = vadd.f32 0.0, %v2073
      %v2075 = vpop.f32.mrf.mxu0
      %2076 = vmatprep.mubr.bf16.mxu0 0
      %2077 = vmatmul.mubr.bf16.gmra.mxu0 %v1897
      %v2078 = vpop.f32.mrf.mxu0
      %v2079 = vadd.f32 0.0, %v2078
      %v2080 = vpop.f32.mrf.mxu0
      %v2081 = vpop.f32.mrf.mxu0
      %v2082 = vadd.f32 0.0, %v2081
      %v2083 = vpop.f32.mrf.mxu0
      %2084 = vmatprep.mubr.bf16.mxu0 0
      %2085 = vmatmul.mubr.bf16.gmra.mxu0 %v1898
      %v2086 = vpop.f32.mrf.mxu0
      %v2087 = vadd.f32 0.0, %v2086
      %v2088 = vpop.f32.mrf.mxu0
      %v2089 = vpop.f32.mrf.mxu0
      %v2090 = vadd.f32 0.0, %v2089
      %v2091 = vpop.f32.mrf.mxu0
      %2092 = vmatprep.mubr.bf16.mxu0 0
      %2093 = vmatmul.mubr.bf16.gmra.mxu0 %v1899
      %v2094 = vpop.f32.mrf.mxu0
      %v2095 = vadd.f32 0.0, %v2094
      %v2096 = vpop.f32.mrf.mxu0
      %v2097 = vpop.f32.mrf.mxu0
      %v2098 = vadd.f32 0.0, %v2097
      %v2099 = vpop.f32.mrf.mxu0
      %2100 = vmatprep.mubr.bf16.mxu0 0
      %2101 = vmatmul.mubr.bf16.gmra.mxu0 %v1900
      %v2102 = vpop.f32.mrf.mxu0
      %v2103 = vadd.f32 0.0, %v2102
      %v2104 = vpop.f32.mrf.mxu0
      %v2105 = vpop.f32.mrf.mxu0
      %v2106 = vadd.f32 0.0, %v2105
      %v2107 = vpop.f32.mrf.mxu0
      %2108 = vmatprep.mubr.bf16.mxu0 0
      %2109 = vmatmul.mubr.bf16.gmra.mxu0 %v1901
      %v2110 = vpop.f32.mrf.mxu0
      %v2111 = vadd.f32 0.0, %v2110
      %v2112 = vpop.f32.mrf.mxu0
      %v2113 = vpop.f32.mrf.mxu0
      %v2114 = vadd.f32 0.0, %v2113
      %v2115 = vpop.f32.mrf.mxu0
      %2116 = vmatprep.mubr.bf16.mxu0 0
      %2117 = vmatmul.mubr.bf16.gmra.mxu0 %v1902
      %v2118 = vpop.f32.mrf.mxu0
      %v2119 = vadd.f32 0.0, %v2118
      %v2120 = vpop.f32.mrf.mxu0
      %v2121 = vpop.f32.mrf.mxu0
      %v2122 = vadd.f32 0.0, %v2121
      %v2123 = vpop.f32.mrf.mxu0
      %2124 = vmatprep.mubr.bf16.mxu0 0
      %2125 = vmatmul.mubr.bf16.gmra.mxu0 %v1903
      %v2126 = vpop.f32.mrf.mxu0
      %v2127 = vadd.f32 0.0, %v2126
      %v2128 = vpop.f32.mrf.mxu0
      %v2129 = vpop.f32.mrf.mxu0
      %v2130 = vadd.f32 0.0, %v2129
      %v2131 = vpop.f32.mrf.mxu0
      %2132 = vmatprep.mubr.bf16.mxu0 0
      %2133 = vmatmul.mubr.bf16.gmra.mxu0 %v1904
      %v2134 = vpop.f32.mrf.mxu0
      %v2135 = vadd.f32 0.0, %v2134
      %v2136 = vpop.f32.mrf.mxu0
      %v2137 = vpop.f32.mrf.mxu0
      %v2138 = vadd.f32 0.0, %v2137
      %v2139 = vpop.f32.mrf.mxu0
      %2140 = vmatprep.mubr.bf16.mxu0 0
      %2141 = vmatmul.mubr.bf16.gmra.mxu0 %v1905
      %v2142 = vpop.f32.mrf.mxu0
      %v2143 = vadd.f32 0.0, %v2142
      %v2144 = vpop.f32.mrf.mxu0
      %v2145 = vpop.f32.mrf.mxu0
      %v2146 = vadd.f32 0.0, %v2145
      %v2147 = vpop.f32.mrf.mxu0
      %2148 = vmatprep.mubr.bf16.mxu0 0
      %2149 = vmatmul.mubr.bf16.gmra.mxu0 %v1906
      %v2150 = vpop.f32.mrf.mxu0
      %v2151 = vadd.f32 0.0, %v2150
      %v2152 = vpop.f32.mrf.mxu0
      %v2153 = vpop.f32.mrf.mxu0
      %v2154 = vadd.f32 0.0, %v2153
      %v2155 = vpop.f32.mrf.mxu0
      %2156 = vmatprep.mubr.bf16.mxu0 0
      %2157 = vmatmul.mubr.bf16.gmra.mxu0 %v1907
      %v2158 = vpop.f32.mrf.mxu0
      %v2159 = vadd.f32 0.0, %v2158
      %v2160 = vpop.f32.mrf.mxu0
      %v2161 = vpop.f32.mrf.mxu0
      %v2162 = vadd.f32 0.0, %v2161
      %v2163 = vpop.f32.mrf.mxu0
      %2164 = vmatprep.mubr.bf16.mxu0 0
      %2165 = vmatmul.mubr.bf16.gmra.mxu0 %v1908
      %v2166 = vpop.f32.mrf.mxu0
      %v2167 = vadd.f32 0.0, %v2166
      %v2168 = vpop.f32.mrf.mxu0
      %v2169 = vpop.f32.mrf.mxu0
      %v2170 = vadd.f32 0.0, %v2169
      %v2171 = vpop.f32.mrf.mxu0
      %2172 = vmatprep.mubr.bf16.mxu0 0
      %2173 = vmatmul.mubr.bf16.gmra.mxu0 %v1909
      %v2174 = vpop.f32.mrf.mxu0
      %v2175 = vadd.f32 0.0, %v2174
      %v2176 = vpop.f32.mrf.mxu0
      %v2177 = vpop.f32.mrf.mxu0
      %v2178 = vadd.f32 0.0, %v2177
      %v2179 = vpop.f32.mrf.mxu0
      %2180 = vmatprep.mubr.bf16.mxu0 0
      %2181 = vmatmul.mubr.bf16.gmra.mxu0 %v1910
      %v2182 = vpop.f32.mrf.mxu0
      %v2183 = vadd.f32 0.0, %v2182
      %v2184 = vpop.f32.mrf.mxu0
      %v2185 = vpop.f32.mrf.mxu0
      %v2186 = vadd.f32 0.0, %v2185
      %v2187 = vpop.f32.mrf.mxu0
      %2188 = vdwg.mxu0
      %v2189 = vadd.f32 %v1911, %v2047
      %v2190 = vadd.f32 %v1912, %v2050
      %v2191 = vadd.f32 %v1913, %v2055
      %v2192 = vadd.f32 %v1914, %v2058
      %v2193 = vadd.f32 %v1915, %v2063
      %v2194 = vadd.f32 %v1916, %v2066
      %v2195 = vadd.f32 %v1917, %v2071
      %v2196 = vadd.f32 %v1918, %v2074
      %v2197 = vadd.f32 %v1919, %v2079
      %v2198 = vadd.f32 %v1920, %v2082
      %v2199 = vadd.f32 %v1921, %v2087
      %v2200 = vadd.f32 %v1922, %v2090
      %v2201 = vadd.f32 %v1923, %v2095
      %v2202 = vadd.f32 %v1924, %v2098
      %v2203 = vadd.f32 %v1925, %v2103
      %v2204 = vadd.f32 %v1926, %v2106
      %v2205 = vadd.f32 %v1927, %v2111
      %v2206 = vadd.f32 %v1928, %v2114
      %v2207 = vadd.f32 %v1929, %v2119
      %v2208 = vadd.f32 %v1930, %v2122
      %v2209 = vadd.f32 %v1931, %v2127
      %v2210 = vadd.f32 %v1932, %v2130
      %v2211 = vadd.f32 %v1933, %v2135
      %v2212 = vadd.f32 %v1934, %v2138
      %v2213 = vadd.f32 %v1935, %v2143
      %v2214 = vadd.f32 %v1936, %v2146
      %v2215 = vadd.f32 %v1937, %v2151
      %v2216 = vadd.f32 %v1938, %v2154
      %v2217 = vadd.f32 %v1939, %v2159
      %v2218 = vadd.f32 %v1940, %v2162
      %v2219 = vadd.f32 %v1941, %v2167
      %v2220 = vadd.f32 %v1942, %v2170
      %v2221 = vadd.f32 %v1943, %v2175
      %v2222 = vadd.f32 %v1944, %v2178
      %v2223 = vadd.f32 %v1945, %v2183
      %v2224 = vadd.f32 %v1946, %v2186
      %2225 = vst [vmem:[#allocation2] sm:$0xff] %v2189
      %2226 = vst [vmem:[#allocation2 + $0x8] sm:$0xff] %v2190
      %2227 = vst [vmem:[#allocation2 + $0x10] sm:$0xff] %v2191
      %2228 = vst [vmem:[#allocation2 + $0x18] sm:$0xff] %v2192
      %2229 = vst [vmem:[#allocation2 + $0x20] sm:$0xff] %v2193
      %2230 = vst [vmem:[#allocation2 + $0x28] sm:$0xff] %v2194
      %2231 = vst [vmem:[#allocation2 + $0x30] sm:$0xff] %v2195
      %2232 = vst [vmem:[#allocation2 + $0x38] sm:$0xff] %v2196
      %2233 = vst [vmem:[#allocation2 + $0x40] sm:$0xff] %v2197
      %2234 = vst [vmem:[#allocation2 + $0x48] sm:$0xff] %v2198
      %2235 = vst [vmem:[#allocation2 + $0x50] sm:$0xff] %v2199
      %2236 = vst [vmem:[#allocation2 + $0x58] sm:$0xff] %v2200
      %2237 = vst [vmem:[#allocation2 + $0x60] sm:$0xff] %v2201
      %2238 = vst [vmem:[#allocation2 + $0x68] sm:$0xff] %v2202
      %2239 = vst [vmem:[#allocation2 + $0x70] sm:$0xff] %v2203
      %2240 = vst [vmem:[#allocation2 + $0x78] sm:$0xff] %v2204
      %2241 = vst [vmem:[#allocation2 + $0x80] sm:$0xff] %v2205
      %2242 = vst [vmem:[#allocation2 + $0x88] sm:$0xff] %v2206
      %2243 = vst [vmem:[#allocation2 + $0x90] sm:$0xff] %v2207
      %2244 = vst [vmem:[#allocation2 + $0x98] sm:$0xff] %v2208
      %2245 = vst [vmem:[#allocation2 + $0xa0] sm:$0xff] %v2209
      %2246 = vst [vmem:[#allocation2 + $0xa8] sm:$0xff] %v2210
      %2247 = vst [vmem:[#allocation2 + $0xb0] sm:$0xff] %v2211
      %2248 = vst [vmem:[#allocation2 + $0xb8] sm:$0xff] %v2212
      %2249 = vst [vmem:[#allocation2 + $0xc0] sm:$0xff] %v2213
      %2250 = vst [vmem:[#allocation2 + $0xc8] sm:$0xff] %v2214
      %2251 = vst [vmem:[#allocation2 + $0xd0] sm:$0xff] %v2215
      %2252 = vst [vmem:[#allocation2 + $0xd8] sm:$0xff] %v2216
      %2253 = vst [vmem:[#allocation2 + $0xe0] sm:$0xff] %v2217
      %2254 = vst [vmem:[#allocation2 + $0xe8] sm:$0xff] %v2218
      %2255 = vst [vmem:[#allocation2 + $0xf0] sm:$0xff] %v2219
      %2256 = vst [vmem:[#allocation2 + $0xf8] sm:$0xff] %v2220
      %2257 = vst [vmem:[#allocation2 + $0x100] sm:$0xff] %v2221
      %2258 = vst [vmem:[#allocation2 + $0x108] sm:$0xff] %v2222
      %2259 = vst [vmem:[#allocation2 + $0x110] sm:$0xff] %v2223
      %2260 = vst [vmem:[#allocation2 + $0x118] sm:$0xff] %v2224
      %v2261 = vld [vmem:[%s192 + $0x19] sm:$0xff]
      %v2262 = vld [vmem:[%s192 + $0x21] sm:$0xff]
      %v2263 = vld [vmem:[%s192 + $0x29] sm:$0xff]
      %v2264 = vld [vmem:[%s192 + $0x31] sm:$0xff]
      %v2265 = vld [vmem:[%s192 + $0x39] sm:$0xff]
      %v2266 = vld [vmem:[%s192 + $0x41] sm:$0xff]
      %v2267 = vld [vmem:[%s192 + $0x49] sm:$0xff]
      %v2268 = vld [vmem:[%s192 + $0x51] sm:$0xff]
      %v2269 = vld [vmem:[%s192 + $0x59] sm:$0xff]
      %v2270 = vld [vmem:[%s192 + $0x61] sm:$0xff]
      %v2271 = vld [vmem:[%s192 + $0x69] sm:$0xff]
      %v2272 = vld [vmem:[%s192 + $0x71] sm:$0xff]
      %v2273 = vld [vmem:[%s192 + $0x79] sm:$0xff]
      %v2274 = vld [vmem:[%s192 + $0x81] sm:$0xff]
      %v2275 = vld [vmem:[%s192 + $0x89] sm:$0xff]
      %v2276 = vld [vmem:[%s192 + $0x91] sm:$0xff]
      %v2277 = vld [vmem:[%s192 + $0x99] sm:$0xff]
      %v2278 = vld [vmem:[%s192 + $0xa1] sm:$0xff]
      %v2279 = vld [vmem:[%s192 + $0xa9] sm:$0xff]
      %v2280 = vld [vmem:[%s192 + $0xb1] sm:$0xff]
      %v2281 = vld [vmem:[%s192 + $0xb9] sm:$0xff]
      %v2282 = vld [vmem:[%s192 + $0xc1] sm:$0xff]
      %v2283 = vld [vmem:[%s192 + $0xc9] sm:$0xff]
      %v2284 = vld [vmem:[%s192 + $0xd1] sm:$0xff]
      %v2285 = vld [vmem:[%s192 + $0xd9] sm:$0xff]
      %v2286 = vld [vmem:[%s192 + $0xe1] sm:$0xff]
      %v2287 = vld [vmem:[%s192 + $0xe9] sm:$0xff]
      %v2288 = vld [vmem:[%s192 + $0xf1] sm:$0xff]
      %v2289 = vld [vmem:[%s192 + $0xf9] sm:$0xff]
      %v2290 = vld [vmem:[%s192 + $0x101] sm:$0xff]
      %v2291 = vld [vmem:[%s192 + $0x109] sm:$0xff]
      %v2292 = vld [vmem:[%s192 + $0x111] sm:$0xff]
      %v2293 = vld [vmem:[%s192 + $0x119] sm:$0xff]
      %v2294 = vld [vmem:[%s192 + $0x121] sm:$0xff]
      %v2295 = vld [vmem:[%s192 + $0x129] sm:$0xff]
      %v2296 = vld [vmem:[%s192 + $0x131] sm:$0xff]
      %v2297 = vpack.c.bf16 %v2262, %v2261
      %v2298 = vpack.c.bf16 %v2264, %v2263
      %v2299 = vpack.c.bf16 %v2266, %v2265
      %v2300 = vpack.c.bf16 %v2268, %v2267
      %v2301 = vpack.c.bf16 %v2270, %v2269
      %v2302 = vpack.c.bf16 %v2272, %v2271
      %v2303 = vpack.c.bf16 %v2274, %v2273
      %v2304 = vpack.c.bf16 %v2276, %v2275
      %v2305 = vpack.c.bf16 %v2278, %v2277
      %v2306 = vpack.c.bf16 %v2280, %v2279
      %v2307 = vpack.c.bf16 %v2282, %v2281
      %v2308 = vpack.c.bf16 %v2284, %v2283
      %v2309 = vpack.c.bf16 %v2286, %v2285
      %v2310 = vpack.c.bf16 %v2288, %v2287
      %v2311 = vpack.c.bf16 %v2290, %v2289
      %v2312 = vpack.c.bf16 %v2292, %v2291
      %v2313 = vpack.c.bf16 %v2294, %v2293
      %v2314 = vpack.c.bf16 %v2296, %v2295
      %v2315 = vld [vmem:[#allocation2] sm:$0xff]
      %v2316 = vld [vmem:[#allocation2 + $0x8] sm:$0xff]
      %v2317 = vld [vmem:[#allocation2 + $0x10] sm:$0xff]
      %v2318 = vld [vmem:[#allocation2 + $0x18] sm:$0xff]
      %v2319 = vld [vmem:[#allocation2 + $0x20] sm:$0xff]
      %v2320 = vld [vmem:[#allocation2 + $0x28] sm:$0xff]
      %v2321 = vld [vmem:[#allocation2 + $0x30] sm:$0xff]
      %v2322 = vld [vmem:[#allocation2 + $0x38] sm:$0xff]
      %v2323 = vld [vmem:[#allocation2 + $0x40] sm:$0xff]
      %v2324 = vld [vmem:[#allocation2 + $0x48] sm:$0xff]
      %v2325 = vld [vmem:[#allocation2 + $0x50] sm:$0xff]
      %v2326 = vld [vmem:[#allocation2 + $0x58] sm:$0xff]
      %v2327 = vld [vmem:[#allocation2 + $0x60] sm:$0xff]
      %v2328 = vld [vmem:[#allocation2 + $0x68] sm:$0xff]
      %v2329 = vld [vmem:[#allocation2 + $0x70] sm:$0xff]
      %v2330 = vld [vmem:[#allocation2 + $0x78] sm:$0xff]
      %v2331 = vld [vmem:[#allocation2 + $0x80] sm:$0xff]
      %v2332 = vld [vmem:[#allocation2 + $0x88] sm:$0xff]
      %v2333 = vld [vmem:[#allocation2 + $0x90] sm:$0xff]
      %v2334 = vld [vmem:[#allocation2 + $0x98] sm:$0xff]
      %v2335 = vld [vmem:[#allocation2 + $0xa0] sm:$0xff]
      %v2336 = vld [vmem:[#allocation2 + $0xa8] sm:$0xff]
      %v2337 = vld [vmem:[#allocation2 + $0xb0] sm:$0xff]
      %v2338 = vld [vmem:[#allocation2 + $0xb8] sm:$0xff]
      %v2339 = vld [vmem:[#allocation2 + $0xc0] sm:$0xff]
      %v2340 = vld [vmem:[#allocation2 + $0xc8] sm:$0xff]
      %v2341 = vld [vmem:[#allocation2 + $0xd0] sm:$0xff]
      %v2342 = vld [vmem:[#allocation2 + $0xd8] sm:$0xff]
      %v2343 = vld [vmem:[#allocation2 + $0xe0] sm:$0xff]
      %v2344 = vld [vmem:[#allocation2 + $0xe8] sm:$0xff]
      %v2345 = vld [vmem:[#allocation2 + $0xf0] sm:$0xff]
      %v2346 = vld [vmem:[#allocation2 + $0xf8] sm:$0xff]
      %v2347 = vld [vmem:[#allocation2 + $0x100] sm:$0xff]
      %v2348 = vld [vmem:[#allocation2 + $0x108] sm:$0xff]
      %v2349 = vld [vmem:[#allocation2 + $0x110] sm:$0xff]
      %v2350 = vld [vmem:[#allocation2 + $0x118] sm:$0xff]
      %s2351 = scalar_lea.vmem %s1, 320
      %v2352 = vld [vmem:[%s2351] sm:$0xf]
      %v2353 = vld [vmem:[%s2351 + $0x4] sm:$0xf]
      %v2354 = vld [vmem:[%s2351 + $0x8] sm:$0xf]
      %v2355 = vld [vmem:[%s2351 + $0xc] sm:$0xf]
      %v2356 = vld [vmem:[%s2351 + $0x10] sm:$0xf]
      %v2357 = vld [vmem:[%s2351 + $0x14] sm:$0xf]
      %v2358 = vld [vmem:[%s2351 + $0x18] sm:$0xf]
      %v2359 = vld [vmem:[%s2351 + $0x1c] sm:$0xf]
      %v2360 = vld [vmem:[%s2351 + $0x20] sm:$0xf]
      %v2361 = vld [vmem:[%s2351 + $0x24] sm:$0xf]
      %v2362 = vld [vmem:[%s2351 + $0x28] sm:$0xf]
      %v2363 = vld [vmem:[%s2351 + $0x2c] sm:$0xf]
      %v2364 = vld [vmem:[%s2351 + $0x30] sm:$0xf]
      %v2365 = vld [vmem:[%s2351 + $0x34] sm:$0xf]
      %v2366 = vld [vmem:[%s2351 + $0x38] sm:$0xf]
      %v2367 = vld [vmem:[%s2351 + $0x3c] sm:$0xf]
      %v2384 = vunpack.c.l.b16 %v2352
      %v2385 = vunpack.c.l.b16 %v2353
      %v2386 = vunpack.c.l.b16 %v2354
      %v2387 = vunpack.c.l.b16 %v2355
      %v2388 = vunpack.c.l.b16 %v2356
      %v2389 = vunpack.c.l.b16 %v2357
      %v2390 = vunpack.c.l.b16 %v2358
      %v2391 = vunpack.c.l.b16 %v2359
      %v2392 = vunpack.c.l.b16 %v2360
      %v2393 = vunpack.c.l.b16 %v2361
      %v2394 = vunpack.c.l.b16 %v2362
      %v2395 = vunpack.c.l.b16 %v2363
      %v2396 = vunpack.c.l.b16 %v2364
      %v2397 = vunpack.c.l.b16 %v2365
      %v2398 = vunpack.c.l.b16 %v2366
      %v2399 = vunpack.c.l.b16 %v2367
      %v2400 = vpack.c.b16 %v2385, %v2384
      %v2401 = vpack.c.b16 %v2387, %v2386
      %v2402 = vpack.c.b16 %v2389, %v2388
      %v2403 = vpack.c.b16 %v2391, %v2390
      %v2404 = vpack.c.b16 %v2393, %v2392
      %v2405 = vpack.c.b16 %v2395, %v2394
      %v2406 = vpack.c.b16 %v2397, %v2396
      %v2407 = vpack.c.b16 %v2399, %v2398
      %2416 = vmatprep.subr.bf16.mxu0 0
      %2417 = vmatpush1.bf16.msra.mxu0 %v2407
      %2418 = vmatprep.subr.bf16.mxu0 0
      %2419 = vmatpush1.bf16.msra.mxu0 %v2406
      %2420 = vmatprep.subr.bf16.mxu0 0
      %2421 = vmatpush1.bf16.msra.mxu0 %v2405
      %2422 = vmatprep.subr.bf16.mxu0 0
      %2423 = vmatpush1.bf16.msra.mxu0 %v2404
      %2424 = vmatprep.subr.bf16.mxu0 0
      %2425 = vmatpush1.bf16.msra.mxu0 %v2403
      %2426 = vmatprep.subr.bf16.mxu0 0
      %2427 = vmatpush1.bf16.msra.mxu0 %v2402
      %2428 = vmatprep.subr.bf16.mxu0 0
      %2429 = vmatpush1.bf16.msra.mxu0 %v2401
      %2430 = vmatprep.subr.bf16.mxu0 0
      %2431 = vmatpush1.bf16.msra.mxu0 %v2400
      %2432 = vmatprep.subr.bf16.mxu0 0
      %2433 = vmatpush2.bf16.msra.mxu0 0
      %2434 = vmatprep.subr.bf16.mxu0 0
      %2435 = vmatpush2.bf16.msra.mxu0 0
      %2436 = vmatprep.subr.bf16.mxu0 0
      %2437 = vmatpush2.bf16.msra.mxu0 0
      %2438 = vmatprep.subr.bf16.mxu0 0
      %2439 = vmatpush2.bf16.msra.mxu0 0
      %2440 = vmatprep.subr.bf16.mxu0 0
      %2441 = vmatpush2.bf16.msra.mxu0 0
      %2442 = vmatprep.subr.bf16.mxu0 0
      %2443 = vmatpush2.bf16.msra.mxu0 0
      %2444 = vmatprep.subr.bf16.mxu0 0
      %2445 = vmatpush2.bf16.msra.mxu0 0
      %2446 = vmatprep.subr.bf16.mxu0 0
      %2447 = vmatpush2.bf16.msra.mxu0 0
      %2448 = vmatprep.mubr.bf16.mxu0 0
      %2449 = vmatmul.mubr.bf16.gmra.mxu0 %v2297
      %v2450 = vpop.f32.mrf.mxu0
      %v2451 = vadd.f32 0.0, %v2450
      %v2452 = vpop.f32.mrf.mxu0
      %v2453 = vpop.f32.mrf.mxu0
      %v2454 = vadd.f32 0.0, %v2453
      %v2455 = vpop.f32.mrf.mxu0
      %2456 = vmatprep.mubr.bf16.mxu0 0
      %2457 = vmatmul.mubr.bf16.gmra.mxu0 %v2298
      %v2458 = vpop.f32.mrf.mxu0
      %v2459 = vadd.f32 0.0, %v2458
      %v2460 = vpop.f32.mrf.mxu0
      %v2461 = vpop.f32.mrf.mxu0
      %v2462 = vadd.f32 0.0, %v2461
      %v2463 = vpop.f32.mrf.mxu0
      %2464 = vmatprep.mubr.bf16.mxu0 0
      %2465 = vmatmul.mubr.bf16.gmra.mxu0 %v2299
      %v2466 = vpop.f32.mrf.mxu0
      %v2467 = vadd.f32 0.0, %v2466
      %v2468 = vpop.f32.mrf.mxu0
      %v2469 = vpop.f32.mrf.mxu0
      %v2470 = vadd.f32 0.0, %v2469
      %v2471 = vpop.f32.mrf.mxu0
      %2472 = vmatprep.mubr.bf16.mxu0 0
      %2473 = vmatmul.mubr.bf16.gmra.mxu0 %v2300
      %v2474 = vpop.f32.mrf.mxu0
      %v2475 = vadd.f32 0.0, %v2474
      %v2476 = vpop.f32.mrf.mxu0
      %v2477 = vpop.f32.mrf.mxu0
      %v2478 = vadd.f32 0.0, %v2477
      %v2479 = vpop.f32.mrf.mxu0
      %2480 = vmatprep.mubr.bf16.mxu0 0
      %2481 = vmatmul.mubr.bf16.gmra.mxu0 %v2301
      %v2482 = vpop.f32.mrf.mxu0
      %v2483 = vadd.f32 0.0, %v2482
      %v2484 = vpop.f32.mrf.mxu0
      %v2485 = vpop.f32.mrf.mxu0
      %v2486 = vadd.f32 0.0, %v2485
      %v2487 = vpop.f32.mrf.mxu0
      %2488 = vmatprep.mubr.bf16.mxu0 0
      %2489 = vmatmul.mubr.bf16.gmra.mxu0 %v2302
      %v2490 = vpop.f32.mrf.mxu0
      %v2491 = vadd.f32 0.0, %v2490
      %v2492 = vpop.f32.mrf.mxu0
      %v2493 = vpop.f32.mrf.mxu0
      %v2494 = vadd.f32 0.0, %v2493
      %v2495 = vpop.f32.mrf.mxu0
      %2496 = vmatprep.mubr.bf16.mxu0 0
      %2497 = vmatmul.mubr.bf16.gmra.mxu0 %v2303
      %v2498 = vpop.f32.mrf.mxu0
      %v2499 = vadd.f32 0.0, %v2498
      %v2500 = vpop.f32.mrf.mxu0
      %v2501 = vpop.f32.mrf.mxu0
      %v2502 = vadd.f32 0.0, %v2501
      %v2503 = vpop.f32.mrf.mxu0
      %2504 = vmatprep.mubr.bf16.mxu0 0
      %2505 = vmatmul.mubr.bf16.gmra.mxu0 %v2304
      %v2506 = vpop.f32.mrf.mxu0
      %v2507 = vadd.f32 0.0, %v2506
      %v2508 = vpop.f32.mrf.mxu0
      %v2509 = vpop.f32.mrf.mxu0
      %v2510 = vadd.f32 0.0, %v2509
      %v2511 = vpop.f32.mrf.mxu0
      %2512 = vmatprep.mubr.bf16.mxu0 0
      %2513 = vmatmul.mubr.bf16.gmra.mxu0 %v2305
      %v2514 = vpop.f32.mrf.mxu0
      %v2515 = vadd.f32 0.0, %v2514
      %v2516 = vpop.f32.mrf.mxu0
      %v2517 = vpop.f32.mrf.mxu0
      %v2518 = vadd.f32 0.0, %v2517
      %v2519 = vpop.f32.mrf.mxu0
      %2520 = vmatprep.mubr.bf16.mxu0 0
      %2521 = vmatmul.mubr.bf16.gmra.mxu0 %v2306
      %v2522 = vpop.f32.mrf.mxu0
      %v2523 = vadd.f32 0.0, %v2522
      %v2524 = vpop.f32.mrf.mxu0
      %v2525 = vpop.f32.mrf.mxu0
      %v2526 = vadd.f32 0.0, %v2525
      %v2527 = vpop.f32.mrf.mxu0
      %2528 = vmatprep.mubr.bf16.mxu0 0
      %2529 = vmatmul.mubr.bf16.gmra.mxu0 %v2307
      %v2530 = vpop.f32.mrf.mxu0
      %v2531 = vadd.f32 0.0, %v2530
      %v2532 = vpop.f32.mrf.mxu0
      %v2533 = vpop.f32.mrf.mxu0
      %v2534 = vadd.f32 0.0, %v2533
      %v2535 = vpop.f32.mrf.mxu0
      %2536 = vmatprep.mubr.bf16.mxu0 0
      %2537 = vmatmul.mubr.bf16.gmra.mxu0 %v2308
      %v2538 = vpop.f32.mrf.mxu0
      %v2539 = vadd.f32 0.0, %v2538
      %v2540 = vpop.f32.mrf.mxu0
      %v2541 = vpop.f32.mrf.mxu0
      %v2542 = vadd.f32 0.0, %v2541
      %v2543 = vpop.f32.mrf.mxu0
      %2544 = vmatprep.mubr.bf16.mxu0 0
      %2545 = vmatmul.mubr.bf16.gmra.mxu0 %v2309
      %v2546 = vpop.f32.mrf.mxu0
      %v2547 = vadd.f32 0.0, %v2546
      %v2548 = vpop.f32.mrf.mxu0
      %v2549 = vpop.f32.mrf.mxu0
      %v2550 = vadd.f32 0.0, %v2549
      %v2551 = vpop.f32.mrf.mxu0
      %2552 = vmatprep.mubr.bf16.mxu0 0
      %2553 = vmatmul.mubr.bf16.gmra.mxu0 %v2310
      %v2554 = vpop.f32.mrf.mxu0
      %v2555 = vadd.f32 0.0, %v2554
      %v2556 = vpop.f32.mrf.mxu0
      %v2557 = vpop.f32.mrf.mxu0
      %v2558 = vadd.f32 0.0, %v2557
      %v2559 = vpop.f32.mrf.mxu0
      %2560 = vmatprep.mubr.bf16.mxu0 0
      %2561 = vmatmul.mubr.bf16.gmra.mxu0 %v2311
      %v2562 = vpop.f32.mrf.mxu0
      %v2563 = vadd.f32 0.0, %v2562
      %v2564 = vpop.f32.mrf.mxu0
      %v2565 = vpop.f32.mrf.mxu0
      %v2566 = vadd.f32 0.0, %v2565
      %v2567 = vpop.f32.mrf.mxu0
      %2568 = vmatprep.mubr.bf16.mxu0 0
      %2569 = vmatmul.mubr.bf16.gmra.mxu0 %v2312
      %v2570 = vpop.f32.mrf.mxu0
      %v2571 = vadd.f32 0.0, %v2570
      %v2572 = vpop.f32.mrf.mxu0
      %v2573 = vpop.f32.mrf.mxu0
      %v2574 = vadd.f32 0.0, %v2573
      %v2575 = vpop.f32.mrf.mxu0
      %2576 = vmatprep.mubr.bf16.mxu0 0
      %2577 = vmatmul.mubr.bf16.gmra.mxu0 %v2313
      %v2578 = vpop.f32.mrf.mxu0
      %v2579 = vadd.f32 0.0, %v2578
      %v2580 = vpop.f32.mrf.mxu0
      %v2581 = vpop.f32.mrf.mxu0
      %v2582 = vadd.f32 0.0, %v2581
      %v2583 = vpop.f32.mrf.mxu0
      %2584 = vmatprep.mubr.bf16.mxu0 0
      %2585 = vmatmul.mubr.bf16.gmra.mxu0 %v2314
      %v2586 = vpop.f32.mrf.mxu0
      %v2587 = vadd.f32 0.0, %v2586
      %v2588 = vpop.f32.mrf.mxu0
      %v2589 = vpop.f32.mrf.mxu0
      %v2590 = vadd.f32 0.0, %v2589
      %v2591 = vpop.f32.mrf.mxu0
      %2592 = vdwg.mxu0
      %v2593 = vadd.f32 %v2315, %v2451
      %v2594 = vadd.f32 %v2316, %v2454
      %v2595 = vadd.f32 %v2317, %v2459
      %v2596 = vadd.f32 %v2318, %v2462
      %v2597 = vadd.f32 %v2319, %v2467
      %v2598 = vadd.f32 %v2320, %v2470
      %v2599 = vadd.f32 %v2321, %v2475
      %v2600 = vadd.f32 %v2322, %v2478
      %v2601 = vadd.f32 %v2323, %v2483
      %v2602 = vadd.f32 %v2324, %v2486
      %v2603 = vadd.f32 %v2325, %v2491
      %v2604 = vadd.f32 %v2326, %v2494
      %v2605 = vadd.f32 %v2327, %v2499
      %v2606 = vadd.f32 %v2328, %v2502
      %v2607 = vadd.f32 %v2329, %v2507
      %v2608 = vadd.f32 %v2330, %v2510
      %v2609 = vadd.f32 %v2331, %v2515
      %v2610 = vadd.f32 %v2332, %v2518
      %v2611 = vadd.f32 %v2333, %v2523
      %v2612 = vadd.f32 %v2334, %v2526
      %v2613 = vadd.f32 %v2335, %v2531
      %v2614 = vadd.f32 %v2336, %v2534
      %v2615 = vadd.f32 %v2337, %v2539
      %v2616 = vadd.f32 %v2338, %v2542
      %v2617 = vadd.f32 %v2339, %v2547
      %v2618 = vadd.f32 %v2340, %v2550
      %v2619 = vadd.f32 %v2341, %v2555
      %v2620 = vadd.f32 %v2342, %v2558
      %v2621 = vadd.f32 %v2343, %v2563
      %v2622 = vadd.f32 %v2344, %v2566
      %v2623 = vadd.f32 %v2345, %v2571
      %v2624 = vadd.f32 %v2346, %v2574
      %v2625 = vadd.f32 %v2347, %v2579
      %v2626 = vadd.f32 %v2348, %v2582
      %v2627 = vadd.f32 %v2349, %v2587
      %v2628 = vadd.f32 %v2350, %v2590
      %2629 = vst [vmem:[#allocation2] sm:$0xff] %v2593
      %2630 = vst [vmem:[#allocation2 + $0x8] sm:$0xff] %v2594
      %2631 = vst [vmem:[#allocation2 + $0x10] sm:$0xff] %v2595
      %2632 = vst [vmem:[#allocation2 + $0x18] sm:$0xff] %v2596
      %2633 = vst [vmem:[#allocation2 + $0x20] sm:$0xff] %v2597
      %2634 = vst [vmem:[#allocation2 + $0x28] sm:$0xff] %v2598
      %2635 = vst [vmem:[#allocation2 + $0x30] sm:$0xff] %v2599
      %2636 = vst [vmem:[#allocation2 + $0x38] sm:$0xff] %v2600
      %2637 = vst [vmem:[#allocation2 + $0x40] sm:$0xff] %v2601
      %2638 = vst [vmem:[#allocation2 + $0x48] sm:$0xff] %v2602
      %2639 = vst [vmem:[#allocation2 + $0x50] sm:$0xff] %v2603
      %2640 = vst [vmem:[#allocation2 + $0x58] sm:$0xff] %v2604
      %2641 = vst [vmem:[#allocation2 + $0x60] sm:$0xff] %v2605
      %2642 = vst [vmem:[#allocation2 + $0x68] sm:$0xff] %v2606
      %2643 = vst [vmem:[#allocation2 + $0x70] sm:$0xff] %v2607
      %2644 = vst [vmem:[#allocation2 + $0x78] sm:$0xff] %v2608
      %2645 = vst [vmem:[#allocation2 + $0x80] sm:$0xff] %v2609
      %2646 = vst [vmem:[#allocation2 + $0x88] sm:$0xff] %v2610
      %2647 = vst [vmem:[#allocation2 + $0x90] sm:$0xff] %v2611
      %2648 = vst [vmem:[#allocation2 + $0x98] sm:$0xff] %v2612
      %2649 = vst [vmem:[#allocation2 + $0xa0] sm:$0xff] %v2613
      %2650 = vst [vmem:[#allocation2 + $0xa8] sm:$0xff] %v2614
      %2651 = vst [vmem:[#allocation2 + $0xb0] sm:$0xff] %v2615
      %2652 = vst [vmem:[#allocation2 + $0xb8] sm:$0xff] %v2616
      %2653 = vst [vmem:[#allocation2 + $0xc0] sm:$0xff] %v2617
      %2654 = vst [vmem:[#allocation2 + $0xc8] sm:$0xff] %v2618
      %2655 = vst [vmem:[#allocation2 + $0xd0] sm:$0xff] %v2619
      %2656 = vst [vmem:[#allocation2 + $0xd8] sm:$0xff] %v2620
      %2657 = vst [vmem:[#allocation2 + $0xe0] sm:$0xff] %v2621
      %2658 = vst [vmem:[#allocation2 + $0xe8] sm:$0xff] %v2622
      %2659 = vst [vmem:[#allocation2 + $0xf0] sm:$0xff] %v2623
      %2660 = vst [vmem:[#allocation2 + $0xf8] sm:$0xff] %v2624
      %2661 = vst [vmem:[#allocation2 + $0x100] sm:$0xff] %v2625
      %2662 = vst [vmem:[#allocation2 + $0x108] sm:$0xff] %v2626
      %2663 = vst [vmem:[#allocation2 + $0x110] sm:$0xff] %v2627
      %2664 = vst [vmem:[#allocation2 + $0x118] sm:$0xff] %v2628
      %v2665 = vld [vmem:[%s192 + $0x29] sm:$0xff]
      %v2666 = vld [vmem:[%s192 + $0x31] sm:$0xff]
      %v2667 = vld [vmem:[%s192 + $0x39] sm:$0xff]
      %v2668 = vld [vmem:[%s192 + $0x41] sm:$0xff]
      %v2669 = vld [vmem:[%s192 + $0x49] sm:$0xff]
      %v2670 = vld [vmem:[%s192 + $0x51] sm:$0xff]
      %v2671 = vld [vmem:[%s192 + $0x59] sm:$0xff]
      %v2672 = vld [vmem:[%s192 + $0x61] sm:$0xff]
      %v2673 = vld [vmem:[%s192 + $0x69] sm:$0xff]
      %v2674 = vld [vmem:[%s192 + $0x71] sm:$0xff]
      %v2675 = vld [vmem:[%s192 + $0x79] sm:$0xff]
      %v2676 = vld [vmem:[%s192 + $0x81] sm:$0xff]
      %v2677 = vld [vmem:[%s192 + $0x89] sm:$0xff]
      %v2678 = vld [vmem:[%s192 + $0x91] sm:$0xff]
      %v2679 = vld [vmem:[%s192 + $0x99] sm:$0xff]
      %v2680 = vld [vmem:[%s192 + $0xa1] sm:$0xff]
      %v2681 = vld [vmem:[%s192 + $0xa9] sm:$0xff]
      %v2682 = vld [vmem:[%s192 + $0xb1] sm:$0xff]
      %v2683 = vld [vmem:[%s192 + $0xb9] sm:$0xff]
      %v2684 = vld [vmem:[%s192 + $0xc1] sm:$0xff]
      %v2685 = vld [vmem:[%s192 + $0xc9] sm:$0xff]
      %v2686 = vld [vmem:[%s192 + $0xd1] sm:$0xff]
      %v2687 = vld [vmem:[%s192 + $0xd9] sm:$0xff]
      %v2688 = vld [vmem:[%s192 + $0xe1] sm:$0xff]
      %v2689 = vld [vmem:[%s192 + $0xe9] sm:$0xff]
      %v2690 = vld [vmem:[%s192 + $0xf1] sm:$0xff]
      %v2691 = vld [vmem:[%s192 + $0xf9] sm:$0xff]
      %v2692 = vld [vmem:[%s192 + $0x101] sm:$0xff]
      %v2693 = vld [vmem:[%s192 + $0x109] sm:$0xff]
      %v2694 = vld [vmem:[%s192 + $0x111] sm:$0xff]
      %v2695 = vld [vmem:[%s192 + $0x119] sm:$0xff]
      %v2696 = vld [vmem:[%s192 + $0x121] sm:$0xff]
      %v2697 = vld [vmem:[%s192 + $0x129] sm:$0xff]
      %v2698 = vld [vmem:[%s192 + $0x131] sm:$0xff]
      %v2699 = vld [vmem:[%s192 + $0x139] sm:$0xff]
      %v2700 = vld [vmem:[%s192 + $0x141] sm:$0xff]
      %v2701 = vpack.c.bf16 %v2666, %v2665
      %v2702 = vpack.c.bf16 %v2668, %v2667
      %v2703 = vpack.c.bf16 %v2670, %v2669
      %v2704 = vpack.c.bf16 %v2672, %v2671
      %v2705 = vpack.c.bf16 %v2674, %v2673
      %v2706 = vpack.c.bf16 %v2676, %v2675
      %v2707 = vpack.c.bf16 %v2678, %v2677
      %v2708 = vpack.c.bf16 %v2680, %v2679
      %v2709 = vpack.c.bf16 %v2682, %v2681
      %v2710 = vpack.c.bf16 %v2684, %v2683
      %v2711 = vpack.c.bf16 %v2686, %v2685
      %v2712 = vpack.c.bf16 %v2688, %v2687
      %v2713 = vpack.c.bf16 %v2690, %v2689
      %v2714 = vpack.c.bf16 %v2692, %v2691
      %v2715 = vpack.c.bf16 %v2694, %v2693
      %v2716 = vpack.c.bf16 %v2696, %v2695
      %v2717 = vpack.c.bf16 %v2698, %v2697
      %v2718 = vpack.c.bf16 %v2700, %v2699
      %v2719 = vld [vmem:[#allocation2] sm:$0xff]
      %v2720 = vld [vmem:[#allocation2 + $0x8] sm:$0xff]
      %v2721 = vld [vmem:[#allocation2 + $0x10] sm:$0xff]
      %v2722 = vld [vmem:[#allocation2 + $0x18] sm:$0xff]
      %v2723 = vld [vmem:[#allocation2 + $0x20] sm:$0xff]
      %v2724 = vld [vmem:[#allocation2 + $0x28] sm:$0xff]
      %v2725 = vld [vmem:[#allocation2 + $0x30] sm:$0xff]
      %v2726 = vld [vmem:[#allocation2 + $0x38] sm:$0xff]
      %v2727 = vld [vmem:[#allocation2 + $0x40] sm:$0xff]
      %v2728 = vld [vmem:[#allocation2 + $0x48] sm:$0xff]
      %v2729 = vld [vmem:[#allocation2 + $0x50] sm:$0xff]
      %v2730 = vld [vmem:[#allocation2 + $0x58] sm:$0xff]
      %v2731 = vld [vmem:[#allocation2 + $0x60] sm:$0xff]
      %v2732 = vld [vmem:[#allocation2 + $0x68] sm:$0xff]
      %v2733 = vld [vmem:[#allocation2 + $0x70] sm:$0xff]
      %v2734 = vld [vmem:[#allocation2 + $0x78] sm:$0xff]
      %v2735 = vld [vmem:[#allocation2 + $0x80] sm:$0xff]
      %v2736 = vld [vmem:[#allocation2 + $0x88] sm:$0xff]
      %v2737 = vld [vmem:[#allocation2 + $0x90] sm:$0xff]
      %v2738 = vld [vmem:[#allocation2 + $0x98] sm:$0xff]
      %v2739 = vld [vmem:[#allocation2 + $0xa0] sm:$0xff]
      %v2740 = vld [vmem:[#allocation2 + $0xa8] sm:$0xff]
      %v2741 = vld [vmem:[#allocation2 + $0xb0] sm:$0xff]
      %v2742 = vld [vmem:[#allocation2 + $0xb8] sm:$0xff]
      %v2743 = vld [vmem:[#allocation2 + $0xc0] sm:$0xff]
      %v2744 = vld [vmem:[#allocation2 + $0xc8] sm:$0xff]
      %v2745 = vld [vmem:[#allocation2 + $0xd0] sm:$0xff]
      %v2746 = vld [vmem:[#allocation2 + $0xd8] sm:$0xff]
      %v2747 = vld [vmem:[#allocation2 + $0xe0] sm:$0xff]
      %v2748 = vld [vmem:[#allocation2 + $0xe8] sm:$0xff]
      %v2749 = vld [vmem:[#allocation2 + $0xf0] sm:$0xff]
      %v2750 = vld [vmem:[#allocation2 + $0xf8] sm:$0xff]
      %v2751 = vld [vmem:[#allocation2 + $0x100] sm:$0xff]
      %v2752 = vld [vmem:[#allocation2 + $0x108] sm:$0xff]
      %v2753 = vld [vmem:[#allocation2 + $0x110] sm:$0xff]
      %v2754 = vld [vmem:[#allocation2 + $0x118] sm:$0xff]
      %s2755 = scalar_lea.vmem %s1, 384
      %v2756 = vld [vmem:[%s2755] sm:$0xf]
      %v2757 = vld [vmem:[%s2755 + $0x4] sm:$0xf]
      %v2758 = vld [vmem:[%s2755 + $0x8] sm:$0xf]
      %v2759 = vld [vmem:[%s2755 + $0xc] sm:$0xf]
      %v2760 = vld [vmem:[%s2755 + $0x10] sm:$0xf]
      %v2761 = vld [vmem:[%s2755 + $0x14] sm:$0xf]
      %v2762 = vld [vmem:[%s2755 + $0x18] sm:$0xf]
      %v2763 = vld [vmem:[%s2755 + $0x1c] sm:$0xf]
      %v2764 = vld [vmem:[%s2755 + $0x20] sm:$0xf]
      %v2765 = vld [vmem:[%s2755 + $0x24] sm:$0xf]
      %v2766 = vld [vmem:[%s2755 + $0x28] sm:$0xf]
      %v2767 = vld [vmem:[%s2755 + $0x2c] sm:$0xf]
      %v2768 = vld [vmem:[%s2755 + $0x30] sm:$0xf]
      %v2769 = vld [vmem:[%s2755 + $0x34] sm:$0xf]
      %v2770 = vld [vmem:[%s2755 + $0x38] sm:$0xf]
      %v2771 = vld [vmem:[%s2755 + $0x3c] sm:$0xf]
      %v2788 = vunpack.c.l.b16 %v2756
      %v2789 = vunpack.c.l.b16 %v2757
      %v2790 = vunpack.c.l.b16 %v2758
      %v2791 = vunpack.c.l.b16 %v2759
      %v2792 = vunpack.c.l.b16 %v2760
      %v2793 = vunpack.c.l.b16 %v2761
      %v2794 = vunpack.c.l.b16 %v2762
      %v2795 = vunpack.c.l.b16 %v2763
      %v2796 = vunpack.c.l.b16 %v2764
      %v2797 = vunpack.c.l.b16 %v2765
      %v2798 = vunpack.c.l.b16 %v2766
      %v2799 = vunpack.c.l.b16 %v2767
      %v2800 = vunpack.c.l.b16 %v2768
      %v2801 = vunpack.c.l.b16 %v2769
      %v2802 = vunpack.c.l.b16 %v2770
      %v2803 = vunpack.c.l.b16 %v2771
      %v2804 = vpack.c.b16 %v2789, %v2788
      %v2805 = vpack.c.b16 %v2791, %v2790
      %v2806 = vpack.c.b16 %v2793, %v2792
      %v2807 = vpack.c.b16 %v2795, %v2794
      %v2808 = vpack.c.b16 %v2797, %v2796
      %v2809 = vpack.c.b16 %v2799, %v2798
      %v2810 = vpack.c.b16 %v2801, %v2800
      %v2811 = vpack.c.b16 %v2803, %v2802
      %2820 = vmatprep.subr.bf16.mxu0 0
      %2821 = vmatpush1.bf16.msra.mxu0 %v2811
      %2822 = vmatprep.subr.bf16.mxu0 0
      %2823 = vmatpush1.bf16.msra.mxu0 %v2810
      %2824 = vmatprep.subr.bf16.mxu0 0
      %2825 = vmatpush1.bf16.msra.mxu0 %v2809
      %2826 = vmatprep.subr.bf16.mxu0 0
      %2827 = vmatpush1.bf16.msra.mxu0 %v2808
      %2828 = vmatprep.subr.bf16.mxu0 0
      %2829 = vmatpush1.bf16.msra.mxu0 %v2807
      %2830 = vmatprep.subr.bf16.mxu0 0
      %2831 = vmatpush1.bf16.msra.mxu0 %v2806
      %2832 = vmatprep.subr.bf16.mxu0 0
      %2833 = vmatpush1.bf16.msra.mxu0 %v2805
      %2834 = vmatprep.subr.bf16.mxu0 0
      %2835 = vmatpush1.bf16.msra.mxu0 %v2804
      %2836 = vmatprep.subr.bf16.mxu0 0
      %2837 = vmatpush2.bf16.msra.mxu0 0
      %2838 = vmatprep.subr.bf16.mxu0 0
      %2839 = vmatpush2.bf16.msra.mxu0 0
      %2840 = vmatprep.subr.bf16.mxu0 0
      %2841 = vmatpush2.bf16.msra.mxu0 0
      %2842 = vmatprep.subr.bf16.mxu0 0
      %2843 = vmatpush2.bf16.msra.mxu0 0
      %2844 = vmatprep.subr.bf16.mxu0 0
      %2845 = vmatpush2.bf16.msra.mxu0 0
      %2846 = vmatprep.subr.bf16.mxu0 0
      %2847 = vmatpush2.bf16.msra.mxu0 0
      %2848 = vmatprep.subr.bf16.mxu0 0
      %2849 = vmatpush2.bf16.msra.mxu0 0
      %2850 = vmatprep.subr.bf16.mxu0 0
      %2851 = vmatpush2.bf16.msra.mxu0 0
      %2852 = vmatprep.mubr.bf16.mxu0 0
      %2853 = vmatmul.mubr.bf16.gmra.mxu0 %v2701
      %v2854 = vpop.f32.mrf.mxu0
      %v2855 = vadd.f32 0.0, %v2854
      %v2856 = vpop.f32.mrf.mxu0
      %v2857 = vpop.f32.mrf.mxu0
      %v2858 = vadd.f32 0.0, %v2857
      %v2859 = vpop.f32.mrf.mxu0
      %2860 = vmatprep.mubr.bf16.mxu0 0
      %2861 = vmatmul.mubr.bf16.gmra.mxu0 %v2702
      %v2862 = vpop.f32.mrf.mxu0
      %v2863 = vadd.f32 0.0, %v2862
      %v2864 = vpop.f32.mrf.mxu0
      %v2865 = vpop.f32.mrf.mxu0
      %v2866 = vadd.f32 0.0, %v2865
      %v2867 = vpop.f32.mrf.mxu0
      %2868 = vmatprep.mubr.bf16.mxu0 0
      %2869 = vmatmul.mubr.bf16.gmra.mxu0 %v2703
      %v2870 = vpop.f32.mrf.mxu0
      %v2871 = vadd.f32 0.0, %v2870
      %v2872 = vpop.f32.mrf.mxu0
      %v2873 = vpop.f32.mrf.mxu0
      %v2874 = vadd.f32 0.0, %v2873
      %v2875 = vpop.f32.mrf.mxu0
      %2876 = vmatprep.mubr.bf16.mxu0 0
      %2877 = vmatmul.mubr.bf16.gmra.mxu0 %v2704
      %v2878 = vpop.f32.mrf.mxu0
      %v2879 = vadd.f32 0.0, %v2878
      %v2880 = vpop.f32.mrf.mxu0
      %v2881 = vpop.f32.mrf.mxu0
      %v2882 = vadd.f32 0.0, %v2881
      %v2883 = vpop.f32.mrf.mxu0
      %2884 = vmatprep.mubr.bf16.mxu0 0
      %2885 = vmatmul.mubr.bf16.gmra.mxu0 %v2705
      %v2886 = vpop.f32.mrf.mxu0
      %v2887 = vadd.f32 0.0, %v2886
      %v2888 = vpop.f32.mrf.mxu0
      %v2889 = vpop.f32.mrf.mxu0
      %v2890 = vadd.f32 0.0, %v2889
      %v2891 = vpop.f32.mrf.mxu0
      %2892 = vmatprep.mubr.bf16.mxu0 0
      %2893 = vmatmul.mubr.bf16.gmra.mxu0 %v2706
      %v2894 = vpop.f32.mrf.mxu0
      %v2895 = vadd.f32 0.0, %v2894
      %v2896 = vpop.f32.mrf.mxu0
      %v2897 = vpop.f32.mrf.mxu0
      %v2898 = vadd.f32 0.0, %v2897
      %v2899 = vpop.f32.mrf.mxu0
      %2900 = vmatprep.mubr.bf16.mxu0 0
      %2901 = vmatmul.mubr.bf16.gmra.mxu0 %v2707
      %v2902 = vpop.f32.mrf.mxu0
      %v2903 = vadd.f32 0.0, %v2902
      %v2904 = vpop.f32.mrf.mxu0
      %v2905 = vpop.f32.mrf.mxu0
      %v2906 = vadd.f32 0.0, %v2905
      %v2907 = vpop.f32.mrf.mxu0
      %2908 = vmatprep.mubr.bf16.mxu0 0
      %2909 = vmatmul.mubr.bf16.gmra.mxu0 %v2708
      %v2910 = vpop.f32.mrf.mxu0
      %v2911 = vadd.f32 0.0, %v2910
      %v2912 = vpop.f32.mrf.mxu0
      %v2913 = vpop.f32.mrf.mxu0
      %v2914 = vadd.f32 0.0, %v2913
      %v2915 = vpop.f32.mrf.mxu0
      %2916 = vmatprep.mubr.bf16.mxu0 0
      %2917 = vmatmul.mubr.bf16.gmra.mxu0 %v2709
      %v2918 = vpop.f32.mrf.mxu0
      %v2919 = vadd.f32 0.0, %v2918
      %v2920 = vpop.f32.mrf.mxu0
      %v2921 = vpop.f32.mrf.mxu0
      %v2922 = vadd.f32 0.0, %v2921
      %v2923 = vpop.f32.mrf.mxu0
      %2924 = vmatprep.mubr.bf16.mxu0 0
      %2925 = vmatmul.mubr.bf16.gmra.mxu0 %v2710
      %v2926 = vpop.f32.mrf.mxu0
      %v2927 = vadd.f32 0.0, %v2926
      %v2928 = vpop.f32.mrf.mxu0
      %v2929 = vpop.f32.mrf.mxu0
      %v2930 = vadd.f32 0.0, %v2929
      %v2931 = vpop.f32.mrf.mxu0
      %2932 = vmatprep.mubr.bf16.mxu0 0
      %2933 = vmatmul.mubr.bf16.gmra.mxu0 %v2711
      %v2934 = vpop.f32.mrf.mxu0
      %v2935 = vadd.f32 0.0, %v2934
      %v2936 = vpop.f32.mrf.mxu0
      %v2937 = vpop.f32.mrf.mxu0
      %v2938 = vadd.f32 0.0, %v2937
      %v2939 = vpop.f32.mrf.mxu0
      %2940 = vmatprep.mubr.bf16.mxu0 0
      %2941 = vmatmul.mubr.bf16.gmra.mxu0 %v2712
      %v2942 = vpop.f32.mrf.mxu0
      %v2943 = vadd.f32 0.0, %v2942
      %v2944 = vpop.f32.mrf.mxu0
      %v2945 = vpop.f32.mrf.mxu0
      %v2946 = vadd.f32 0.0, %v2945
      %v2947 = vpop.f32.mrf.mxu0
      %2948 = vmatprep.mubr.bf16.mxu0 0
      %2949 = vmatmul.mubr.bf16.gmra.mxu0 %v2713
      %v2950 = vpop.f32.mrf.mxu0
      %v2951 = vadd.f32 0.0, %v2950
      %v2952 = vpop.f32.mrf.mxu0
      %v2953 = vpop.f32.mrf.mxu0
      %v2954 = vadd.f32 0.0, %v2953
      %v2955 = vpop.f32.mrf.mxu0
      %2956 = vmatprep.mubr.bf16.mxu0 0
      %2957 = vmatmul.mubr.bf16.gmra.mxu0 %v2714
      %v2958 = vpop.f32.mrf.mxu0
      %v2959 = vadd.f32 0.0, %v2958
      %v2960 = vpop.f32.mrf.mxu0
      %v2961 = vpop.f32.mrf.mxu0
      %v2962 = vadd.f32 0.0, %v2961
      %v2963 = vpop.f32.mrf.mxu0
      %2964 = vmatprep.mubr.bf16.mxu0 0
      %2965 = vmatmul.mubr.bf16.gmra.mxu0 %v2715
      %v2966 = vpop.f32.mrf.mxu0
      %v2967 = vadd.f32 0.0, %v2966
      %v2968 = vpop.f32.mrf.mxu0
      %v2969 = vpop.f32.mrf.mxu0
      %v2970 = vadd.f32 0.0, %v2969
      %v2971 = vpop.f32.mrf.mxu0
      %2972 = vmatprep.mubr.bf16.mxu0 0
      %2973 = vmatmul.mubr.bf16.gmra.mxu0 %v2716
      %v2974 = vpop.f32.mrf.mxu0
      %v2975 = vadd.f32 0.0, %v2974
      %v2976 = vpop.f32.mrf.mxu0
      %v2977 = vpop.f32.mrf.mxu0
      %v2978 = vadd.f32 0.0, %v2977
      %v2979 = vpop.f32.mrf.mxu0
      %2980 = vmatprep.mubr.bf16.mxu0 0
      %2981 = vmatmul.mubr.bf16.gmra.mxu0 %v2717
      %v2982 = vpop.f32.mrf.mxu0
      %v2983 = vadd.f32 0.0, %v2982
      %v2984 = vpop.f32.mrf.mxu0
      %v2985 = vpop.f32.mrf.mxu0
      %v2986 = vadd.f32 0.0, %v2985
      %v2987 = vpop.f32.mrf.mxu0
      %2988 = vmatprep.mubr.bf16.mxu0 0
      %2989 = vmatmul.mubr.bf16.gmra.mxu0 %v2718
      %v2990 = vpop.f32.mrf.mxu0
      %v2991 = vadd.f32 0.0, %v2990
      %v2992 = vpop.f32.mrf.mxu0
      %v2993 = vpop.f32.mrf.mxu0
      %v2994 = vadd.f32 0.0, %v2993
      %v2995 = vpop.f32.mrf.mxu0
      %2996 = vdwg.mxu0
      %v2997 = vadd.f32 %v2719, %v2855
      %v2998 = vadd.f32 %v2720, %v2858
      %v2999 = vadd.f32 %v2721, %v2863
      %v3000 = vadd.f32 %v2722, %v2866
      %v3001 = vadd.f32 %v2723, %v2871
      %v3002 = vadd.f32 %v2724, %v2874
      %v3003 = vadd.f32 %v2725, %v2879
      %v3004 = vadd.f32 %v2726, %v2882
      %v3005 = vadd.f32 %v2727, %v2887
      %v3006 = vadd.f32 %v2728, %v2890
      %v3007 = vadd.f32 %v2729, %v2895
      %v3008 = vadd.f32 %v2730, %v2898
      %v3009 = vadd.f32 %v2731, %v2903
      %v3010 = vadd.f32 %v2732, %v2906
      %v3011 = vadd.f32 %v2733, %v2911
      %v3012 = vadd.f32 %v2734, %v2914
      %v3013 = vadd.f32 %v2735, %v2919
      %v3014 = vadd.f32 %v2736, %v2922
      %v3015 = vadd.f32 %v2737, %v2927
      %v3016 = vadd.f32 %v2738, %v2930
      %v3017 = vadd.f32 %v2739, %v2935
      %v3018 = vadd.f32 %v2740, %v2938
      %v3019 = vadd.f32 %v2741, %v2943
      %v3020 = vadd.f32 %v2742, %v2946
      %v3021 = vadd.f32 %v2743, %v2951
      %v3022 = vadd.f32 %v2744, %v2954
      %v3023 = vadd.f32 %v2745, %v2959
      %v3024 = vadd.f32 %v2746, %v2962
      %v3025 = vadd.f32 %v2747, %v2967
      %v3026 = vadd.f32 %v2748, %v2970
      %v3027 = vadd.f32 %v2749, %v2975
      %v3028 = vadd.f32 %v2750, %v2978
      %v3029 = vadd.f32 %v2751, %v2983
      %v3030 = vadd.f32 %v2752, %v2986
      %v3031 = vadd.f32 %v2753, %v2991
      %v3032 = vadd.f32 %v2754, %v2994
      %3033 = vst [vmem:[#allocation2] sm:$0xff] %v2997
      %3034 = vst [vmem:[#allocation2 + $0x8] sm:$0xff] %v2998
      %3035 = vst [vmem:[#allocation2 + $0x10] sm:$0xff] %v2999
      %3036 = vst [vmem:[#allocation2 + $0x18] sm:$0xff] %v3000
      %3037 = vst [vmem:[#allocation2 + $0x20] sm:$0xff] %v3001
      %3038 = vst [vmem:[#allocation2 + $0x28] sm:$0xff] %v3002
      %3039 = vst [vmem:[#allocation2 + $0x30] sm:$0xff] %v3003
      %3040 = vst [vmem:[#allocation2 + $0x38] sm:$0xff] %v3004
      %3041 = vst [vmem:[#allocation2 + $0x40] sm:$0xff] %v3005
      %3042 = vst [vmem:[#allocation2 + $0x48] sm:$0xff] %v3006
      %3043 = vst [vmem:[#allocation2 + $0x50] sm:$0xff] %v3007
      %3044 = vst [vmem:[#allocation2 + $0x58] sm:$0xff] %v3008
      %3045 = vst [vmem:[#allocation2 + $0x60] sm:$0xff] %v3009
      %3046 = vst [vmem:[#allocation2 + $0x68] sm:$0xff] %v3010
      %3047 = vst [vmem:[#allocation2 + $0x70] sm:$0xff] %v3011
      %3048 = vst [vmem:[#allocation2 + $0x78] sm:$0xff] %v3012
      %3049 = vst [vmem:[#allocation2 + $0x80] sm:$0xff] %v3013
      %3050 = vst [vmem:[#allocation2 + $0x88] sm:$0xff] %v3014
      %3051 = vst [vmem:[#allocation2 + $0x90] sm:$0xff] %v3015
      %3052 = vst [vmem:[#allocation2 + $0x98] sm:$0xff] %v3016
      %3053 = vst [vmem:[#allocation2 + $0xa0] sm:$0xff] %v3017
      %3054 = vst [vmem:[#allocation2 + $0xa8] sm:$0xff] %v3018
      %3055 = vst [vmem:[#allocation2 + $0xb0] sm:$0xff] %v3019
      %3056 = vst [vmem:[#allocation2 + $0xb8] sm:$0xff] %v3020
      %3057 = vst [vmem:[#allocation2 + $0xc0] sm:$0xff] %v3021
      %3058 = vst [vmem:[#allocation2 + $0xc8] sm:$0xff] %v3022
      %3059 = vst [vmem:[#allocation2 + $0xd0] sm:$0xff] %v3023
      %3060 = vst [vmem:[#allocation2 + $0xd8] sm:$0xff] %v3024
      %3061 = vst [vmem:[#allocation2 + $0xe0] sm:$0xff] %v3025
      %3062 = vst [vmem:[#allocation2 + $0xe8] sm:$0xff] %v3026
      %3063 = vst [vmem:[#allocation2 + $0xf0] sm:$0xff] %v3027
      %3064 = vst [vmem:[#allocation2 + $0xf8] sm:$0xff] %v3028
      %3065 = vst [vmem:[#allocation2 + $0x100] sm:$0xff] %v3029
      %3066 = vst [vmem:[#allocation2 + $0x108] sm:$0xff] %v3030
      %3067 = vst [vmem:[#allocation2 + $0x110] sm:$0xff] %v3031
      %3068 = vst [vmem:[#allocation2 + $0x118] sm:$0xff] %v3032
      %v3069 = vld [vmem:[%s192 + $0x2a] sm:$0xff]
      %v3070 = vld [vmem:[%s192 + $0x32] sm:$0xff]
      %v3071 = vld [vmem:[%s192 + $0x3a] sm:$0xff]
      %v3072 = vld [vmem:[%s192 + $0x42] sm:$0xff]
      %v3073 = vld [vmem:[%s192 + $0x4a] sm:$0xff]
      %v3074 = vld [vmem:[%s192 + $0x52] sm:$0xff]
      %v3075 = vld [vmem:[%s192 + $0x5a] sm:$0xff]
      %v3076 = vld [vmem:[%s192 + $0x62] sm:$0xff]
      %v3077 = vld [vmem:[%s192 + $0x6a] sm:$0xff]
      %v3078 = vld [vmem:[%s192 + $0x72] sm:$0xff]
      %v3079 = vld [vmem:[%s192 + $0x7a] sm:$0xff]
      %v3080 = vld [vmem:[%s192 + $0x82] sm:$0xff]
      %v3081 = vld [vmem:[%s192 + $0x8a] sm:$0xff]
      %v3082 = vld [vmem:[%s192 + $0x92] sm:$0xff]
      %v3083 = vld [vmem:[%s192 + $0x9a] sm:$0xff]
      %v3084 = vld [vmem:[%s192 + $0xa2] sm:$0xff]
      %v3085 = vld [vmem:[%s192 + $0xaa] sm:$0xff]
      %v3086 = vld [vmem:[%s192 + $0xb2] sm:$0xff]
      %v3087 = vld [vmem:[%s192 + $0xba] sm:$0xff]
      %v3088 = vld [vmem:[%s192 + $0xc2] sm:$0xff]
      %v3089 = vld [vmem:[%s192 + $0xca] sm:$0xff]
      %v3090 = vld [vmem:[%s192 + $0xd2] sm:$0xff]
      %v3091 = vld [vmem:[%s192 + $0xda] sm:$0xff]
      %v3092 = vld [vmem:[%s192 + $0xe2] sm:$0xff]
      %v3093 = vld [vmem:[%s192 + $0xea] sm:$0xff]
      %v3094 = vld [vmem:[%s192 + $0xf2] sm:$0xff]
      %v3095 = vld [vmem:[%s192 + $0xfa] sm:$0xff]
      %v3096 = vld [vmem:[%s192 + $0x102] sm:$0xff]
      %v3097 = vld [vmem:[%s192 + $0x10a] sm:$0xff]
      %v3098 = vld [vmem:[%s192 + $0x112] sm:$0xff]
      %v3099 = vld [vmem:[%s192 + $0x11a] sm:$0xff]
      %v3100 = vld [vmem:[%s192 + $0x122] sm:$0xff]
      %v3101 = vld [vmem:[%s192 + $0x12a] sm:$0xff]
      %v3102 = vld [vmem:[%s192 + $0x132] sm:$0xff]
      %v3103 = vld [vmem:[%s192 + $0x13a] sm:$0xff]
      %v3104 = vld [vmem:[%s192 + $0x142] sm:$0xff]
      %v3105 = vpack.c.bf16 %v3070, %v3069
      %v3106 = vpack.c.bf16 %v3072, %v3071
      %v3107 = vpack.c.bf16 %v3074, %v3073
      %v3108 = vpack.c.bf16 %v3076, %v3075
      %v3109 = vpack.c.bf16 %v3078, %v3077
      %v3110 = vpack.c.bf16 %v3080, %v3079
      %v3111 = vpack.c.bf16 %v3082, %v3081
      %v3112 = vpack.c.bf16 %v3084, %v3083
      %v3113 = vpack.c.bf16 %v3086, %v3085
      %v3114 = vpack.c.bf16 %v3088, %v3087
      %v3115 = vpack.c.bf16 %v3090, %v3089
      %v3116 = vpack.c.bf16 %v3092, %v3091
      %v3117 = vpack.c.bf16 %v3094, %v3093
      %v3118 = vpack.c.bf16 %v3096, %v3095
      %v3119 = vpack.c.bf16 %v3098, %v3097
      %v3120 = vpack.c.bf16 %v3100, %v3099
      %v3121 = vpack.c.bf16 %v3102, %v3101
      %v3122 = vpack.c.bf16 %v3104, %v3103
      %v3123 = vld [vmem:[#allocation2] sm:$0xff]
      %v3124 = vld [vmem:[#allocation2 + $0x8] sm:$0xff]
      %v3125 = vld [vmem:[#allocation2 + $0x10] sm:$0xff]
      %v3126 = vld [vmem:[#allocation2 + $0x18] sm:$0xff]
      %v3127 = vld [vmem:[#allocation2 + $0x20] sm:$0xff]
      %v3128 = vld [vmem:[#allocation2 + $0x28] sm:$0xff]
      %v3129 = vld [vmem:[#allocation2 + $0x30] sm:$0xff]
      %v3130 = vld [vmem:[#allocation2 + $0x38] sm:$0xff]
      %v3131 = vld [vmem:[#allocation2 + $0x40] sm:$0xff]
      %v3132 = vld [vmem:[#allocation2 + $0x48] sm:$0xff]
      %v3133 = vld [vmem:[#allocation2 + $0x50] sm:$0xff]
      %v3134 = vld [vmem:[#allocation2 + $0x58] sm:$0xff]
      %v3135 = vld [vmem:[#allocation2 + $0x60] sm:$0xff]
      %v3136 = vld [vmem:[#allocation2 + $0x68] sm:$0xff]
      %v3137 = vld [vmem:[#allocation2 + $0x70] sm:$0xff]
      %v3138 = vld [vmem:[#allocation2 + $0x78] sm:$0xff]
      %v3139 = vld [vmem:[#allocation2 + $0x80] sm:$0xff]
      %v3140 = vld [vmem:[#allocation2 + $0x88] sm:$0xff]
      %v3141 = vld [vmem:[#allocation2 + $0x90] sm:$0xff]
      %v3142 = vld [vmem:[#allocation2 + $0x98] sm:$0xff]
      %v3143 = vld [vmem:[#allocation2 + $0xa0] sm:$0xff]
      %v3144 = vld [vmem:[#allocation2 + $0xa8] sm:$0xff]
      %v3145 = vld [vmem:[#allocation2 + $0xb0] sm:$0xff]
      %v3146 = vld [vmem:[#allocation2 + $0xb8] sm:$0xff]
      %v3147 = vld [vmem:[#allocation2 + $0xc0] sm:$0xff]
      %v3148 = vld [vmem:[#allocation2 + $0xc8] sm:$0xff]
      %v3149 = vld [vmem:[#allocation2 + $0xd0] sm:$0xff]
      %v3150 = vld [vmem:[#allocation2 + $0xd8] sm:$0xff]
      %v3151 = vld [vmem:[#allocation2 + $0xe0] sm:$0xff]
      %v3152 = vld [vmem:[#allocation2 + $0xe8] sm:$0xff]
      %v3153 = vld [vmem:[#allocation2 + $0xf0] sm:$0xff]
      %v3154 = vld [vmem:[#allocation2 + $0xf8] sm:$0xff]
      %v3155 = vld [vmem:[#allocation2 + $0x100] sm:$0xff]
      %v3156 = vld [vmem:[#allocation2 + $0x108] sm:$0xff]
      %v3157 = vld [vmem:[#allocation2 + $0x110] sm:$0xff]
      %v3158 = vld [vmem:[#allocation2 + $0x118] sm:$0xff]
      %s3159 = scalar_lea.vmem %s1, 448
      %v3160 = vld [vmem:[%s3159] sm:$0xf]
      %v3161 = vld [vmem:[%s3159 + $0x4] sm:$0xf]
      %v3162 = vld [vmem:[%s3159 + $0x8] sm:$0xf]
      %v3163 = vld [vmem:[%s3159 + $0xc] sm:$0xf]
      %v3164 = vld [vmem:[%s3159 + $0x10] sm:$0xf]
      %v3165 = vld [vmem:[%s3159 + $0x14] sm:$0xf]
      %v3166 = vld [vmem:[%s3159 + $0x18] sm:$0xf]
      %v3167 = vld [vmem:[%s3159 + $0x1c] sm:$0xf]
      %v3168 = vld [vmem:[%s3159 + $0x20] sm:$0xf]
      %v3169 = vld [vmem:[%s3159 + $0x24] sm:$0xf]
      %v3170 = vld [vmem:[%s3159 + $0x28] sm:$0xf]
      %v3171 = vld [vmem:[%s3159 + $0x2c] sm:$0xf]
      %v3172 = vld [vmem:[%s3159 + $0x30] sm:$0xf]
      %v3173 = vld [vmem:[%s3159 + $0x34] sm:$0xf]
      %v3174 = vld [vmem:[%s3159 + $0x38] sm:$0xf]
      %v3175 = vld [vmem:[%s3159 + $0x3c] sm:$0xf]
      %v3192 = vunpack.c.l.b16 %v3160
      %v3193 = vunpack.c.l.b16 %v3161
      %v3194 = vunpack.c.l.b16 %v3162
      %v3195 = vunpack.c.l.b16 %v3163
      %v3196 = vunpack.c.l.b16 %v3164
      %v3197 = vunpack.c.l.b16 %v3165
      %v3198 = vunpack.c.l.b16 %v3166
      %v3199 = vunpack.c.l.b16 %v3167
      %v3200 = vunpack.c.l.b16 %v3168
      %v3201 = vunpack.c.l.b16 %v3169
      %v3202 = vunpack.c.l.b16 %v3170
      %v3203 = vunpack.c.l.b16 %v3171
      %v3204 = vunpack.c.l.b16 %v3172
      %v3205 = vunpack.c.l.b16 %v3173
      %v3206 = vunpack.c.l.b16 %v3174
      %v3207 = vunpack.c.l.b16 %v3175
      %v3208 = vpack.c.b16 %v3193, %v3192
      %v3209 = vpack.c.b16 %v3195, %v3194
      %v3210 = vpack.c.b16 %v3197, %v3196
      %v3211 = vpack.c.b16 %v3199, %v3198
      %v3212 = vpack.c.b16 %v3201, %v3200
      %v3213 = vpack.c.b16 %v3203, %v3202
      %v3214 = vpack.c.b16 %v3205, %v3204
      %v3215 = vpack.c.b16 %v3207, %v3206
      %3224 = vmatprep.subr.bf16.mxu0 0
      %3225 = vmatpush1.bf16.msra.mxu0 %v3215
      %3226 = vmatprep.subr.bf16.mxu0 0
      %3227 = vmatpush1.bf16.msra.mxu0 %v3214
      %3228 = vmatprep.subr.bf16.mxu0 0
      %3229 = vmatpush1.bf16.msra.mxu0 %v3213
      %3230 = vmatprep.subr.bf16.mxu0 0
      %3231 = vmatpush1.bf16.msra.mxu0 %v3212
      %3232 = vmatprep.subr.bf16.mxu0 0
      %3233 = vmatpush1.bf16.msra.mxu0 %v3211
      %3234 = vmatprep.subr.bf16.mxu0 0
      %3235 = vmatpush1.bf16.msra.mxu0 %v3210
      %3236 = vmatprep.subr.bf16.mxu0 0
      %3237 = vmatpush1.bf16.msra.mxu0 %v3209
      %3238 = vmatprep.subr.bf16.mxu0 0
      %3239 = vmatpush1.bf16.msra.mxu0 %v3208
      %3240 = vmatprep.subr.bf16.mxu0 0
      %3241 = vmatpush2.bf16.msra.mxu0 0
      %3242 = vmatprep.subr.bf16.mxu0 0
      %3243 = vmatpush2.bf16.msra.mxu0 0
      %3244 = vmatprep.subr.bf16.mxu0 0
      %3245 = vmatpush2.bf16.msra.mxu0 0
      %3246 = vmatprep.subr.bf16.mxu0 0
      %3247 = vmatpush2.bf16.msra.mxu0 0
      %3248 = vmatprep.subr.bf16.mxu0 0
      %3249 = vmatpush2.bf16.msra.mxu0 0
      %3250 = vmatprep.subr.bf16.mxu0 0
      %3251 = vmatpush2.bf16.msra.mxu0 0
      %3252 = vmatprep.subr.bf16.mxu0 0
      %3253 = vmatpush2.bf16.msra.mxu0 0
      %3254 = vmatprep.subr.bf16.mxu0 0
      %3255 = vmatpush2.bf16.msra.mxu0 0
      %3256 = vmatprep.mubr.bf16.mxu0 0
      %3257 = vmatmul.mubr.bf16.gmra.mxu0 %v3105
      %v3258 = vpop.f32.mrf.mxu0
      %v3259 = vadd.f32 0.0, %v3258
      %v3260 = vpop.f32.mrf.mxu0
      %v3261 = vpop.f32.mrf.mxu0
      %v3262 = vadd.f32 0.0, %v3261
      %v3263 = vpop.f32.mrf.mxu0
      %3264 = vmatprep.mubr.bf16.mxu0 0
      %3265 = vmatmul.mubr.bf16.gmra.mxu0 %v3106
      %v3266 = vpop.f32.mrf.mxu0
      %v3267 = vadd.f32 0.0, %v3266
      %v3268 = vpop.f32.mrf.mxu0
      %v3269 = vpop.f32.mrf.mxu0
      %v3270 = vadd.f32 0.0, %v3269
      %v3271 = vpop.f32.mrf.mxu0
      %3272 = vmatprep.mubr.bf16.mxu0 0
      %3273 = vmatmul.mubr.bf16.gmra.mxu0 %v3107
      %v3274 = vpop.f32.mrf.mxu0
      %v3275 = vadd.f32 0.0, %v3274
      %v3276 = vpop.f32.mrf.mxu0
      %v3277 = vpop.f32.mrf.mxu0
      %v3278 = vadd.f32 0.0, %v3277
      %v3279 = vpop.f32.mrf.mxu0
      %3280 = vmatprep.mubr.bf16.mxu0 0
      %3281 = vmatmul.mubr.bf16.gmra.mxu0 %v3108
      %v3282 = vpop.f32.mrf.mxu0
      %v3283 = vadd.f32 0.0, %v3282
      %v3284 = vpop.f32.mrf.mxu0
      %v3285 = vpop.f32.mrf.mxu0
      %v3286 = vadd.f32 0.0, %v3285
      %v3287 = vpop.f32.mrf.mxu0
      %3288 = vmatprep.mubr.bf16.mxu0 0
      %3289 = vmatmul.mubr.bf16.gmra.mxu0 %v3109
      %v3290 = vpop.f32.mrf.mxu0
      %v3291 = vadd.f32 0.0, %v3290
      %v3292 = vpop.f32.mrf.mxu0
      %v3293 = vpop.f32.mrf.mxu0
      %v3294 = vadd.f32 0.0, %v3293
      %v3295 = vpop.f32.mrf.mxu0
      %3296 = vmatprep.mubr.bf16.mxu0 0
      %3297 = vmatmul.mubr.bf16.gmra.mxu0 %v3110
      %v3298 = vpop.f32.mrf.mxu0
      %v3299 = vadd.f32 0.0, %v3298
      %v3300 = vpop.f32.mrf.mxu0
      %v3301 = vpop.f32.mrf.mxu0
      %v3302 = vadd.f32 0.0, %v3301
      %v3303 = vpop.f32.mrf.mxu0
      %3304 = vmatprep.mubr.bf16.mxu0 0
      %3305 = vmatmul.mubr.bf16.gmra.mxu0 %v3111
      %v3306 = vpop.f32.mrf.mxu0
      %v3307 = vadd.f32 0.0, %v3306
      %v3308 = vpop.f32.mrf.mxu0
      %v3309 = vpop.f32.mrf.mxu0
      %v3310 = vadd.f32 0.0, %v3309
      %v3311 = vpop.f32.mrf.mxu0
      %3312 = vmatprep.mubr.bf16.mxu0 0
      %3313 = vmatmul.mubr.bf16.gmra.mxu0 %v3112
      %v3314 = vpop.f32.mrf.mxu0
      %v3315 = vadd.f32 0.0, %v3314
      %v3316 = vpop.f32.mrf.mxu0
      %v3317 = vpop.f32.mrf.mxu0
      %v3318 = vadd.f32 0.0, %v3317
      %v3319 = vpop.f32.mrf.mxu0
      %3320 = vmatprep.mubr.bf16.mxu0 0
      %3321 = vmatmul.mubr.bf16.gmra.mxu0 %v3113
      %v3322 = vpop.f32.mrf.mxu0
      %v3323 = vadd.f32 0.0, %v3322
      %v3324 = vpop.f32.mrf.mxu0
      %v3325 = vpop.f32.mrf.mxu0
      %v3326 = vadd.f32 0.0, %v3325
      %v3327 = vpop.f32.mrf.mxu0
      %3328 = vmatprep.mubr.bf16.mxu0 0
      %3329 = vmatmul.mubr.bf16.gmra.mxu0 %v3114
      %v3330 = vpop.f32.mrf.mxu0
      %v3331 = vadd.f32 0.0, %v3330
      %v3332 = vpop.f32.mrf.mxu0
      %v3333 = vpop.f32.mrf.mxu0
      %v3334 = vadd.f32 0.0, %v3333
      %v3335 = vpop.f32.mrf.mxu0
      %3336 = vmatprep.mubr.bf16.mxu0 0
      %3337 = vmatmul.mubr.bf16.gmra.mxu0 %v3115
      %v3338 = vpop.f32.mrf.mxu0
      %v3339 = vadd.f32 0.0, %v3338
      %v3340 = vpop.f32.mrf.mxu0
      %v3341 = vpop.f32.mrf.mxu0
      %v3342 = vadd.f32 0.0, %v3341
      %v3343 = vpop.f32.mrf.mxu0
      %3344 = vmatprep.mubr.bf16.mxu0 0
      %3345 = vmatmul.mubr.bf16.gmra.mxu0 %v3116
      %v3346 = vpop.f32.mrf.mxu0
      %v3347 = vadd.f32 0.0, %v3346
      %v3348 = vpop.f32.mrf.mxu0
      %v3349 = vpop.f32.mrf.mxu0
      %v3350 = vadd.f32 0.0, %v3349
      %v3351 = vpop.f32.mrf.mxu0
      %3352 = vmatprep.mubr.bf16.mxu0 0
      %3353 = vmatmul.mubr.bf16.gmra.mxu0 %v3117
      %v3354 = vpop.f32.mrf.mxu0
      %v3355 = vadd.f32 0.0, %v3354
      %v3356 = vpop.f32.mrf.mxu0
      %v3357 = vpop.f32.mrf.mxu0
      %v3358 = vadd.f32 0.0, %v3357
      %v3359 = vpop.f32.mrf.mxu0
      %3360 = vmatprep.mubr.bf16.mxu0 0
      %3361 = vmatmul.mubr.bf16.gmra.mxu0 %v3118
      %v3362 = vpop.f32.mrf.mxu0
      %v3363 = vadd.f32 0.0, %v3362
      %v3364 = vpop.f32.mrf.mxu0
      %v3365 = vpop.f32.mrf.mxu0
      %v3366 = vadd.f32 0.0, %v3365
      %v3367 = vpop.f32.mrf.mxu0
      %3368 = vmatprep.mubr.bf16.mxu0 0
      %3369 = vmatmul.mubr.bf16.gmra.mxu0 %v3119
      %v3370 = vpop.f32.mrf.mxu0
      %v3371 = vadd.f32 0.0, %v3370
      %v3372 = vpop.f32.mrf.mxu0
      %v3373 = vpop.f32.mrf.mxu0
      %v3374 = vadd.f32 0.0, %v3373
      %v3375 = vpop.f32.mrf.mxu0
      %3376 = vmatprep.mubr.bf16.mxu0 0
      %3377 = vmatmul.mubr.bf16.gmra.mxu0 %v3120
      %v3378 = vpop.f32.mrf.mxu0
      %v3379 = vadd.f32 0.0, %v3378
      %v3380 = vpop.f32.mrf.mxu0
      %v3381 = vpop.f32.mrf.mxu0
      %v3382 = vadd.f32 0.0, %v3381
      %v3383 = vpop.f32.mrf.mxu0
      %3384 = vmatprep.mubr.bf16.mxu0 0
      %3385 = vmatmul.mubr.bf16.gmra.mxu0 %v3121
      %v3386 = vpop.f32.mrf.mxu0
      %v3387 = vadd.f32 0.0, %v3386
      %v3388 = vpop.f32.mrf.mxu0
      %v3389 = vpop.f32.mrf.mxu0
      %v3390 = vadd.f32 0.0, %v3389
      %v3391 = vpop.f32.mrf.mxu0
      %3392 = vmatprep.mubr.bf16.mxu0 0
      %3393 = vmatmul.mubr.bf16.gmra.mxu0 %v3122
      %v3394 = vpop.f32.mrf.mxu0
      %v3395 = vadd.f32 0.0, %v3394
      %v3396 = vpop.f32.mrf.mxu0
      %v3397 = vpop.f32.mrf.mxu0
      %v3398 = vadd.f32 0.0, %v3397
      %v3399 = vpop.f32.mrf.mxu0
      %3400 = vdwg.mxu0
      %v3401 = vadd.f32 %v3123, %v3259
      %v3402 = vadd.f32 %v3124, %v3262
      %v3403 = vadd.f32 %v3125, %v3267
      %v3404 = vadd.f32 %v3126, %v3270
      %v3405 = vadd.f32 %v3127, %v3275
      %v3406 = vadd.f32 %v3128, %v3278
      %v3407 = vadd.f32 %v3129, %v3283
      %v3408 = vadd.f32 %v3130, %v3286
      %v3409 = vadd.f32 %v3131, %v3291
      %v3410 = vadd.f32 %v3132, %v3294
      %v3411 = vadd.f32 %v3133, %v3299
      %v3412 = vadd.f32 %v3134, %v3302
      %v3413 = vadd.f32 %v3135, %v3307
      %v3414 = vadd.f32 %v3136, %v3310
      %v3415 = vadd.f32 %v3137, %v3315
      %v3416 = vadd.f32 %v3138, %v3318
      %v3417 = vadd.f32 %v3139, %v3323
      %v3418 = vadd.f32 %v3140, %v3326
      %v3419 = vadd.f32 %v3141, %v3331
      %v3420 = vadd.f32 %v3142, %v3334
      %v3421 = vadd.f32 %v3143, %v3339
      %v3422 = vadd.f32 %v3144, %v3342
      %v3423 = vadd.f32 %v3145, %v3347
      %v3424 = vadd.f32 %v3146, %v3350
      %v3425 = vadd.f32 %v3147, %v3355
      %v3426 = vadd.f32 %v3148, %v3358
      %v3427 = vadd.f32 %v3149, %v3363
      %v3428 = vadd.f32 %v3150, %v3366
      %v3429 = vadd.f32 %v3151, %v3371
      %v3430 = vadd.f32 %v3152, %v3374
      %v3431 = vadd.f32 %v3153, %v3379
      %v3432 = vadd.f32 %v3154, %v3382
      %v3433 = vadd.f32 %v3155, %v3387
      %v3434 = vadd.f32 %v3156, %v3390
      %v3435 = vadd.f32 %v3157, %v3395
      %v3436 = vadd.f32 %v3158, %v3398
      %3437 = vst [vmem:[#allocation2] sm:$0xff] %v3401
      %3438 = vst [vmem:[#allocation2 + $0x8] sm:$0xff] %v3402
      %3439 = vst [vmem:[#allocation2 + $0x10] sm:$0xff] %v3403
      %3440 = vst [vmem:[#allocation2 + $0x18] sm:$0xff] %v3404
      %3441 = vst [vmem:[#allocation2 + $0x20] sm:$0xff] %v3405
      %3442 = vst [vmem:[#allocation2 + $0x28] sm:$0xff] %v3406
      %3443 = vst [vmem:[#allocation2 + $0x30] sm:$0xff] %v3407
      %3444 = vst [vmem:[#allocation2 + $0x38] sm:$0xff] %v3408
      %3445 = vst [vmem:[#allocation2 + $0x40] sm:$0xff] %v3409
      %3446 = vst [vmem:[#allocation2 + $0x48] sm:$0xff] %v3410
      %3447 = vst [vmem:[#allocation2 + $0x50] sm:$0xff] %v3411
      %3448 = vst [vmem:[#allocation2 + $0x58] sm:$0xff] %v3412
      %3449 = vst [vmem:[#allocation2 + $0x60] sm:$0xff] %v3413
      %3450 = vst [vmem:[#allocation2 + $0x68] sm:$0xff] %v3414
      %3451 = vst [vmem:[#allocation2 + $0x70] sm:$0xff] %v3415
      %3452 = vst [vmem:[#allocation2 + $0x78] sm:$0xff] %v3416
      %3453 = vst [vmem:[#allocation2 + $0x80] sm:$0xff] %v3417
      %3454 = vst [vmem:[#allocation2 + $0x88] sm:$0xff] %v3418
      %3455 = vst [vmem:[#allocation2 + $0x90] sm:$0xff] %v3419
      %3456 = vst [vmem:[#allocation2 + $0x98] sm:$0xff] %v3420
      %3457 = vst [vmem:[#allocation2 + $0xa0] sm:$0xff] %v3421
      %3458 = vst [vmem:[#allocation2 + $0xa8] sm:$0xff] %v3422
      %3459 = vst [vmem:[#allocation2 + $0xb0] sm:$0xff] %v3423
      %3460 = vst [vmem:[#allocation2 + $0xb8] sm:$0xff] %v3424
      %3461 = vst [vmem:[#allocation2 + $0xc0] sm:$0xff] %v3425
      %3462 = vst [vmem:[#allocation2 + $0xc8] sm:$0xff] %v3426
      %3463 = vst [vmem:[#allocation2 + $0xd0] sm:$0xff] %v3427
      %3464 = vst [vmem:[#allocation2 + $0xd8] sm:$0xff] %v3428
      %3465 = vst [vmem:[#allocation2 + $0xe0] sm:$0xff] %v3429
      %3466 = vst [vmem:[#allocation2 + $0xe8] sm:$0xff] %v3430
      %3467 = vst [vmem:[#allocation2 + $0xf0] sm:$0xff] %v3431
      %3468 = vst [vmem:[#allocation2 + $0xf8] sm:$0xff] %v3432
      %3469 = vst [vmem:[#allocation2 + $0x100] sm:$0xff] %v3433
      %3470 = vst [vmem:[#allocation2 + $0x108] sm:$0xff] %v3434
      %3471 = vst [vmem:[#allocation2 + $0x110] sm:$0xff] %v3435
      %3472 = vst [vmem:[#allocation2 + $0x118] sm:$0xff] %v3436
      %v3473 = vld [vmem:[%s192 + $0x2b] sm:$0xff]
      %v3474 = vld [vmem:[%s192 + $0x33] sm:$0xff]
      %v3475 = vld [vmem:[%s192 + $0x3b] sm:$0xff]
      %v3476 = vld [vmem:[%s192 + $0x43] sm:$0xff]
      %v3477 = vld [vmem:[%s192 + $0x4b] sm:$0xff]
      %v3478 = vld [vmem:[%s192 + $0x53] sm:$0xff]
      %v3479 = vld [vmem:[%s192 + $0x5b] sm:$0xff]
      %v3480 = vld [vmem:[%s192 + $0x63] sm:$0xff]
      %v3481 = vld [vmem:[%s192 + $0x6b] sm:$0xff]
      %v3482 = vld [vmem:[%s192 + $0x73] sm:$0xff]
      %v3483 = vld [vmem:[%s192 + $0x7b] sm:$0xff]
      %v3484 = vld [vmem:[%s192 + $0x83] sm:$0xff]
      %v3485 = vld [vmem:[%s192 + $0x8b] sm:$0xff]
      %v3486 = vld [vmem:[%s192 + $0x93] sm:$0xff]
      %v3487 = vld [vmem:[%s192 + $0x9b] sm:$0xff]
      %v3488 = vld [vmem:[%s192 + $0xa3] sm:$0xff]
      %v3489 = vld [vmem:[%s192 + $0xab] sm:$0xff]
      %v3490 = vld [vmem:[%s192 + $0xb3] sm:$0xff]
      %v3491 = vld [vmem:[%s192 + $0xbb] sm:$0xff]
      %v3492 = vld [vmem:[%s192 + $0xc3] sm:$0xff]
      %v3493 = vld [vmem:[%s192 + $0xcb] sm:$0xff]
      %v3494 = vld [vmem:[%s192 + $0xd3] sm:$0xff]
      %v3495 = vld [vmem:[%s192 + $0xdb] sm:$0xff]
      %v3496 = vld [vmem:[%s192 + $0xe3] sm:$0xff]
      %v3497 = vld [vmem:[%s192 + $0xeb] sm:$0xff]
      %v3498 = vld [vmem:[%s192 + $0xf3] sm:$0xff]
      %v3499 = vld [vmem:[%s192 + $0xfb] sm:$0xff]
      %v3500 = vld [vmem:[%s192 + $0x103] sm:$0xff]
      %v3501 = vld [vmem:[%s192 + $0x10b] sm:$0xff]
      %v3502 = vld [vmem:[%s192 + $0x113] sm:$0xff]
      %v3503 = vld [vmem:[%s192 + $0x11b] sm:$0xff]
      %v3504 = vld [vmem:[%s192 + $0x123] sm:$0xff]
      %v3505 = vld [vmem:[%s192 + $0x12b] sm:$0xff]
      %v3506 = vld [vmem:[%s192 + $0x133] sm:$0xff]
      %v3507 = vld [vmem:[%s192 + $0x13b] sm:$0xff]
      %v3508 = vld [vmem:[%s192 + $0x143] sm:$0xff]
      %v3509 = vpack.c.bf16 %v3474, %v3473
      %v3510 = vpack.c.bf16 %v3476, %v3475
      %v3511 = vpack.c.bf16 %v3478, %v3477
      %v3512 = vpack.c.bf16 %v3480, %v3479
      %v3513 = vpack.c.bf16 %v3482, %v3481
      %v3514 = vpack.c.bf16 %v3484, %v3483
      %v3515 = vpack.c.bf16 %v3486, %v3485
      %v3516 = vpack.c.bf16 %v3488, %v3487
      %v3517 = vpack.c.bf16 %v3490, %v3489
      %v3518 = vpack.c.bf16 %v3492, %v3491
      %v3519 = vpack.c.bf16 %v3494, %v3493
      %v3520 = vpack.c.bf16 %v3496, %v3495
      %v3521 = vpack.c.bf16 %v3498, %v3497
      %v3522 = vpack.c.bf16 %v3500, %v3499
      %v3523 = vpack.c.bf16 %v3502, %v3501
      %v3524 = vpack.c.bf16 %v3504, %v3503
      %v3525 = vpack.c.bf16 %v3506, %v3505
      %v3526 = vpack.c.bf16 %v3508, %v3507
      %v3527 = vld [vmem:[#allocation2] sm:$0xff]
      %v3528 = vld [vmem:[#allocation2 + $0x8] sm:$0xff]
      %v3529 = vld [vmem:[#allocation2 + $0x10] sm:$0xff]
      %v3530 = vld [vmem:[#allocation2 + $0x18] sm:$0xff]
      %v3531 = vld [vmem:[#allocation2 + $0x20] sm:$0xff]
      %v3532 = vld [vmem:[#allocation2 + $0x28] sm:$0xff]
      %v3533 = vld [vmem:[#allocation2 + $0x30] sm:$0xff]
      %v3534 = vld [vmem:[#allocation2 + $0x38] sm:$0xff]
      %v3535 = vld [vmem:[#allocation2 + $0x40] sm:$0xff]
      %v3536 = vld [vmem:[#allocation2 + $0x48] sm:$0xff]
      %v3537 = vld [vmem:[#allocation2 + $0x50] sm:$0xff]
      %v3538 = vld [vmem:[#allocation2 + $0x58] sm:$0xff]
      %v3539 = vld [vmem:[#allocation2 + $0x60] sm:$0xff]
      %v3540 = vld [vmem:[#allocation2 + $0x68] sm:$0xff]
      %v3541 = vld [vmem:[#allocation2 + $0x70] sm:$0xff]
      %v3542 = vld [vmem:[#allocation2 + $0x78] sm:$0xff]
      %v3543 = vld [vmem:[#allocation2 + $0x80] sm:$0xff]
      %v3544 = vld [vmem:[#allocation2 + $0x88] sm:$0xff]
      %v3545 = vld [vmem:[#allocation2 + $0x90] sm:$0xff]
      %v3546 = vld [vmem:[#allocation2 + $0x98] sm:$0xff]
      %v3547 = vld [vmem:[#allocation2 + $0xa0] sm:$0xff]
      %v3548 = vld [vmem:[#allocation2 + $0xa8] sm:$0xff]
      %v3549 = vld [vmem:[#allocation2 + $0xb0] sm:$0xff]
      %v3550 = vld [vmem:[#allocation2 + $0xb8] sm:$0xff]
      %v3551 = vld [vmem:[#allocation2 + $0xc0] sm:$0xff]
      %v3552 = vld [vmem:[#allocation2 + $0xc8] sm:$0xff]
      %v3553 = vld [vmem:[#allocation2 + $0xd0] sm:$0xff]
      %v3554 = vld [vmem:[#allocation2 + $0xd8] sm:$0xff]
      %v3555 = vld [vmem:[#allocation2 + $0xe0] sm:$0xff]
      %v3556 = vld [vmem:[#allocation2 + $0xe8] sm:$0xff]
      %v3557 = vld [vmem:[#allocation2 + $0xf0] sm:$0xff]
      %v3558 = vld [vmem:[#allocation2 + $0xf8] sm:$0xff]
      %v3559 = vld [vmem:[#allocation2 + $0x100] sm:$0xff]
      %v3560 = vld [vmem:[#allocation2 + $0x108] sm:$0xff]
      %v3561 = vld [vmem:[#allocation2 + $0x110] sm:$0xff]
      %v3562 = vld [vmem:[#allocation2 + $0x118] sm:$0xff]
      %s3563 = scalar_lea.vmem %s1, 512
      %v3564 = vld [vmem:[%s3563] sm:$0xf]
      %v3565 = vld [vmem:[%s3563 + $0x4] sm:$0xf]
      %v3566 = vld [vmem:[%s3563 + $0x8] sm:$0xf]
      %v3567 = vld [vmem:[%s3563 + $0xc] sm:$0xf]
      %v3568 = vld [vmem:[%s3563 + $0x10] sm:$0xf]
      %v3569 = vld [vmem:[%s3563 + $0x14] sm:$0xf]
      %v3570 = vld [vmem:[%s3563 + $0x18] sm:$0xf]
      %v3571 = vld [vmem:[%s3563 + $0x1c] sm:$0xf]
      %v3572 = vld [vmem:[%s3563 + $0x20] sm:$0xf]
      %v3573 = vld [vmem:[%s3563 + $0x24] sm:$0xf]
      %v3574 = vld [vmem:[%s3563 + $0x28] sm:$0xf]
      %v3575 = vld [vmem:[%s3563 + $0x2c] sm:$0xf]
      %v3576 = vld [vmem:[%s3563 + $0x30] sm:$0xf]
      %v3577 = vld [vmem:[%s3563 + $0x34] sm:$0xf]
      %v3578 = vld [vmem:[%s3563 + $0x38] sm:$0xf]
      %v3579 = vld [vmem:[%s3563 + $0x3c] sm:$0xf]
      %v3596 = vunpack.c.l.b16 %v3564
      %v3597 = vunpack.c.l.b16 %v3565
      %v3598 = vunpack.c.l.b16 %v3566
      %v3599 = vunpack.c.l.b16 %v3567
      %v3600 = vunpack.c.l.b16 %v3568
      %v3601 = vunpack.c.l.b16 %v3569
      %v3602 = vunpack.c.l.b16 %v3570
      %v3603 = vunpack.c.l.b16 %v3571
      %v3604 = vunpack.c.l.b16 %v3572
      %v3605 = vunpack.c.l.b16 %v3573
      %v3606 = vunpack.c.l.b16 %v3574
      %v3607 = vunpack.c.l.b16 %v3575
      %v3608 = vunpack.c.l.b16 %v3576
      %v3609 = vunpack.c.l.b16 %v3577
      %v3610 = vunpack.c.l.b16 %v3578
      %v3611 = vunpack.c.l.b16 %v3579
      %v3612 = vpack.c.b16 %v3597, %v3596
      %v3613 = vpack.c.b16 %v3599, %v3598
      %v3614 = vpack.c.b16 %v3601, %v3600
      %v3615 = vpack.c.b16 %v3603, %v3602
      %v3616 = vpack.c.b16 %v3605, %v3604
      %v3617 = vpack.c.b16 %v3607, %v3606
      %v3618 = vpack.c.b16 %v3609, %v3608
      %v3619 = vpack.c.b16 %v3611, %v3610
      %3628 = vmatprep.subr.bf16.mxu0 0
      %3629 = vmatpush1.bf16.msra.mxu0 %v3619
      %3630 = vmatprep.subr.bf16.mxu0 0
      %3631 = vmatpush1.bf16.msra.mxu0 %v3618
      %3632 = vmatprep.subr.bf16.mxu0 0
      %3633 = vmatpush1.bf16.msra.mxu0 %v3617
      %3634 = vmatprep.subr.bf16.mxu0 0
      %3635 = vmatpush1.bf16.msra.mxu0 %v3616
      %3636 = vmatprep.subr.bf16.mxu0 0
      %3637 = vmatpush1.bf16.msra.mxu0 %v3615
      %3638 = vmatprep.subr.bf16.mxu0 0
      %3639 = vmatpush1.bf16.msra.mxu0 %v3614
      %3640 = vmatprep.subr.bf16.mxu0 0
      %3641 = vmatpush1.bf16.msra.mxu0 %v3613
      %3642 = vmatprep.subr.bf16.mxu0 0
      %3643 = vmatpush1.bf16.msra.mxu0 %v3612
      %3644 = vmatprep.subr.bf16.mxu0 0
      %3645 = vmatpush2.bf16.msra.mxu0 0
      %3646 = vmatprep.subr.bf16.mxu0 0
      %3647 = vmatpush2.bf16.msra.mxu0 0
      %3648 = vmatprep.subr.bf16.mxu0 0
      %3649 = vmatpush2.bf16.msra.mxu0 0
      %3650 = vmatprep.subr.bf16.mxu0 0
      %3651 = vmatpush2.bf16.msra.mxu0 0
      %3652 = vmatprep.subr.bf16.mxu0 0
      %3653 = vmatpush2.bf16.msra.mxu0 0
      %3654 = vmatprep.subr.bf16.mxu0 0
      %3655 = vmatpush2.bf16.msra.mxu0 0
      %3656 = vmatprep.subr.bf16.mxu0 0
      %3657 = vmatpush2.bf16.msra.mxu0 0
      %3658 = vmatprep.subr.bf16.mxu0 0
      %3659 = vmatpush2.bf16.msra.mxu0 0
      %3660 = vmatprep.mubr.bf16.mxu0 0
      %3661 = vmatmul.mubr.bf16.gmra.mxu0 %v3509
      %v3662 = vpop.f32.mrf.mxu0
      %v3663 = vadd.f32 0.0, %v3662
      %v3664 = vpop.f32.mrf.mxu0
      %v3665 = vpop.f32.mrf.mxu0
      %v3666 = vadd.f32 0.0, %v3665
      %v3667 = vpop.f32.mrf.mxu0
      %3668 = vmatprep.mubr.bf16.mxu0 0
      %3669 = vmatmul.mubr.bf16.gmra.mxu0 %v3510
      %v3670 = vpop.f32.mrf.mxu0
      %v3671 = vadd.f32 0.0, %v3670
      %v3672 = vpop.f32.mrf.mxu0
      %v3673 = vpop.f32.mrf.mxu0
      %v3674 = vadd.f32 0.0, %v3673
      %v3675 = vpop.f32.mrf.mxu0
      %3676 = vmatprep.mubr.bf16.mxu0 0
      %3677 = vmatmul.mubr.bf16.gmra.mxu0 %v3511
      %v3678 = vpop.f32.mrf.mxu0
      %v3679 = vadd.f32 0.0, %v3678
      %v3680 = vpop.f32.mrf.mxu0
      %v3681 = vpop.f32.mrf.mxu0
      %v3682 = vadd.f32 0.0, %v3681
      %v3683 = vpop.f32.mrf.mxu0
      %3684 = vmatprep.mubr.bf16.mxu0 0
      %3685 = vmatmul.mubr.bf16.gmra.mxu0 %v3512
      %v3686 = vpop.f32.mrf.mxu0
      %v3687 = vadd.f32 0.0, %v3686
      %v3688 = vpop.f32.mrf.mxu0
      %v3689 = vpop.f32.mrf.mxu0
      %v3690 = vadd.f32 0.0, %v3689
      %v3691 = vpop.f32.mrf.mxu0
      %3692 = vmatprep.mubr.bf16.mxu0 0
      %3693 = vmatmul.mubr.bf16.gmra.mxu0 %v3513
      %v3694 = vpop.f32.mrf.mxu0
      %v3695 = vadd.f32 0.0, %v3694
      %v3696 = vpop.f32.mrf.mxu0
      %v3697 = vpop.f32.mrf.mxu0
      %v3698 = vadd.f32 0.0, %v3697
      %v3699 = vpop.f32.mrf.mxu0
      %3700 = vmatprep.mubr.bf16.mxu0 0
      %3701 = vmatmul.mubr.bf16.gmra.mxu0 %v3514
      %v3702 = vpop.f32.mrf.mxu0
      %v3703 = vadd.f32 0.0, %v3702
      %v3704 = vpop.f32.mrf.mxu0
      %v3705 = vpop.f32.mrf.mxu0
      %v3706 = vadd.f32 0.0, %v3705
      %v3707 = vpop.f32.mrf.mxu0
      %3708 = vmatprep.mubr.bf16.mxu0 0
      %3709 = vmatmul.mubr.bf16.gmra.mxu0 %v3515
      %v3710 = vpop.f32.mrf.mxu0
      %v3711 = vadd.f32 0.0, %v3710
      %v3712 = vpop.f32.mrf.mxu0
      %v3713 = vpop.f32.mrf.mxu0
      %v3714 = vadd.f32 0.0, %v3713
      %v3715 = vpop.f32.mrf.mxu0
      %3716 = vmatprep.mubr.bf16.mxu0 0
      %3717 = vmatmul.mubr.bf16.gmra.mxu0 %v3516
      %v3718 = vpop.f32.mrf.mxu0
      %v3719 = vadd.f32 0.0, %v3718
      %v3720 = vpop.f32.mrf.mxu0
      %v3721 = vpop.f32.mrf.mxu0
      %v3722 = vadd.f32 0.0, %v3721
      %v3723 = vpop.f32.mrf.mxu0
      %3724 = vmatprep.mubr.bf16.mxu0 0
      %3725 = vmatmul.mubr.bf16.gmra.mxu0 %v3517
      %v3726 = vpop.f32.mrf.mxu0
      %v3727 = vadd.f32 0.0, %v3726
      %v3728 = vpop.f32.mrf.mxu0
      %v3729 = vpop.f32.mrf.mxu0
      %v3730 = vadd.f32 0.0, %v3729
      %v3731 = vpop.f32.mrf.mxu0
      %3732 = vmatprep.mubr.bf16.mxu0 0
      %3733 = vmatmul.mubr.bf16.gmra.mxu0 %v3518
      %v3734 = vpop.f32.mrf.mxu0
      %v3735 = vadd.f32 0.0, %v3734
      %v3736 = vpop.f32.mrf.mxu0
      %v3737 = vpop.f32.mrf.mxu0
      %v3738 = vadd.f32 0.0, %v3737
      %v3739 = vpop.f32.mrf.mxu0
      %3740 = vmatprep.mubr.bf16.mxu0 0
      %3741 = vmatmul.mubr.bf16.gmra.mxu0 %v3519
      %v3742 = vpop.f32.mrf.mxu0
      %v3743 = vadd.f32 0.0, %v3742
      %v3744 = vpop.f32.mrf.mxu0
      %v3745 = vpop.f32.mrf.mxu0
      %v3746 = vadd.f32 0.0, %v3745
      %v3747 = vpop.f32.mrf.mxu0
      %3748 = vmatprep.mubr.bf16.mxu0 0
      %3749 = vmatmul.mubr.bf16.gmra.mxu0 %v3520
      %v3750 = vpop.f32.mrf.mxu0
      %v3751 = vadd.f32 0.0, %v3750
      %v3752 = vpop.f32.mrf.mxu0
      %v3753 = vpop.f32.mrf.mxu0
      %v3754 = vadd.f32 0.0, %v3753
      %v3755 = vpop.f32.mrf.mxu0
      %3756 = vmatprep.mubr.bf16.mxu0 0
      %3757 = vmatmul.mubr.bf16.gmra.mxu0 %v3521
      %v3758 = vpop.f32.mrf.mxu0
      %v3759 = vadd.f32 0.0, %v3758
      %v3760 = vpop.f32.mrf.mxu0
      %v3761 = vpop.f32.mrf.mxu0
      %v3762 = vadd.f32 0.0, %v3761
      %v3763 = vpop.f32.mrf.mxu0
      %3764 = vmatprep.mubr.bf16.mxu0 0
      %3765 = vmatmul.mubr.bf16.gmra.mxu0 %v3522
      %v3766 = vpop.f32.mrf.mxu0
      %v3767 = vadd.f32 0.0, %v3766
      %v3768 = vpop.f32.mrf.mxu0
      %v3769 = vpop.f32.mrf.mxu0
      %v3770 = vadd.f32 0.0, %v3769
      %v3771 = vpop.f32.mrf.mxu0
      %3772 = vmatprep.mubr.bf16.mxu0 0
      %3773 = vmatmul.mubr.bf16.gmra.mxu0 %v3523
      %v3774 = vpop.f32.mrf.mxu0
      %v3775 = vadd.f32 0.0, %v3774
      %v3776 = vpop.f32.mrf.mxu0
      %v3777 = vpop.f32.mrf.mxu0
      %v3778 = vadd.f32 0.0, %v3777
      %v3779 = vpop.f32.mrf.mxu0
      %3780 = vmatprep.mubr.bf16.mxu0 0
      %3781 = vmatmul.mubr.bf16.gmra.mxu0 %v3524
      %v3782 = vpop.f32.mrf.mxu0
      %v3783 = vadd.f32 0.0, %v3782
      %v3784 = vpop.f32.mrf.mxu0
      %v3785 = vpop.f32.mrf.mxu0
      %v3786 = vadd.f32 0.0, %v3785
      %v3787 = vpop.f32.mrf.mxu0
      %3788 = vmatprep.mubr.bf16.mxu0 0
      %3789 = vmatmul.mubr.bf16.gmra.mxu0 %v3525
      %v3790 = vpop.f32.mrf.mxu0
      %v3791 = vadd.f32 0.0, %v3790
      %v3792 = vpop.f32.mrf.mxu0
      %v3793 = vpop.f32.mrf.mxu0
      %v3794 = vadd.f32 0.0, %v3793
      %v3795 = vpop.f32.mrf.mxu0
      %3796 = vmatprep.mubr.bf16.mxu0 0
      %3797 = vmatmul.mubr.bf16.gmra.mxu0 %v3526
      %v3798 = vpop.f32.mrf.mxu0
      %v3799 = vadd.f32 0.0, %v3798
      %v3800 = vpop.f32.mrf.mxu0
      %v3801 = vpop.f32.mrf.mxu0
      %v3802 = vadd.f32 0.0, %v3801
      %v3803 = vpop.f32.mrf.mxu0
      %3804 = vdwg.mxu0
      %v3805 = vadd.f32 %v3527, %v3663
      %v3806 = vadd.f32 %v3528, %v3666
      %v3807 = vadd.f32 %v3529, %v3671
      %v3808 = vadd.f32 %v3530, %v3674
      %v3809 = vadd.f32 %v3531, %v3679
      %v3810 = vadd.f32 %v3532, %v3682
      %v3811 = vadd.f32 %v3533, %v3687
      %v3812 = vadd.f32 %v3534, %v3690
      %v3813 = vadd.f32 %v3535, %v3695
      %v3814 = vadd.f32 %v3536, %v3698
      %v3815 = vadd.f32 %v3537, %v3703
      %v3816 = vadd.f32 %v3538, %v3706
      %v3817 = vadd.f32 %v3539, %v3711
      %v3818 = vadd.f32 %v3540, %v3714
      %v3819 = vadd.f32 %v3541, %v3719
      %v3820 = vadd.f32 %v3542, %v3722
      %v3821 = vadd.f32 %v3543, %v3727
      %v3822 = vadd.f32 %v3544, %v3730
      %v3823 = vadd.f32 %v3545, %v3735
      %v3824 = vadd.f32 %v3546, %v3738
      %v3825 = vadd.f32 %v3547, %v3743
      %v3826 = vadd.f32 %v3548, %v3746
      %v3827 = vadd.f32 %v3549, %v3751
      %v3828 = vadd.f32 %v3550, %v3754
      %v3829 = vadd.f32 %v3551, %v3759
      %v3830 = vadd.f32 %v3552, %v3762
      %v3831 = vadd.f32 %v3553, %v3767
      %v3832 = vadd.f32 %v3554, %v3770
      %v3833 = vadd.f32 %v3555, %v3775
      %v3834 = vadd.f32 %v3556, %v3778
      %v3835 = vadd.f32 %v3557, %v3783
      %v3836 = vadd.f32 %v3558, %v3786
      %v3837 = vadd.f32 %v3559, %v3791
      %v3838 = vadd.f32 %v3560, %v3794
      %v3839 = vadd.f32 %v3561, %v3799
      %v3840 = vadd.f32 %v3562, %v3802
      %3841 = vst [vmem:[#allocation2] sm:$0xff] %v3805
      %3842 = vst [vmem:[#allocation2 + $0x8] sm:$0xff] %v3806
      %3843 = vst [vmem:[#allocation2 + $0x10] sm:$0xff] %v3807
      %3844 = vst [vmem:[#allocation2 + $0x18] sm:$0xff] %v3808
      %3845 = vst [vmem:[#allocation2 + $0x20] sm:$0xff] %v3809
      %3846 = vst [vmem:[#allocation2 + $0x28] sm:$0xff] %v3810
      %3847 = vst [vmem:[#allocation2 + $0x30] sm:$0xff] %v3811
      %3848 = vst [vmem:[#allocation2 + $0x38] sm:$0xff] %v3812
      %3849 = vst [vmem:[#allocation2 + $0x40] sm:$0xff] %v3813
      %3850 = vst [vmem:[#allocation2 + $0x48] sm:$0xff] %v3814
      %3851 = vst [vmem:[#allocation2 + $0x50] sm:$0xff] %v3815
      %3852 = vst [vmem:[#allocation2 + $0x58] sm:$0xff] %v3816
      %3853 = vst [vmem:[#allocation2 + $0x60] sm:$0xff] %v3817
      %3854 = vst [vmem:[#allocation2 + $0x68] sm:$0xff] %v3818
      %3855 = vst [vmem:[#allocation2 + $0x70] sm:$0xff] %v3819
      %3856 = vst [vmem:[#allocation2 + $0x78] sm:$0xff] %v3820
      %3857 = vst [vmem:[#allocation2 + $0x80] sm:$0xff] %v3821
      %3858 = vst [vmem:[#allocation2 + $0x88] sm:$0xff] %v3822
      %3859 = vst [vmem:[#allocation2 + $0x90] sm:$0xff] %v3823
      %3860 = vst [vmem:[#allocation2 + $0x98] sm:$0xff] %v3824
      %3861 = vst [vmem:[#allocation2 + $0xa0] sm:$0xff] %v3825
      %3862 = vst [vmem:[#allocation2 + $0xa8] sm:$0xff] %v3826
      %3863 = vst [vmem:[#allocation2 + $0xb0] sm:$0xff] %v3827
      %3864 = vst [vmem:[#allocation2 + $0xb8] sm:$0xff] %v3828
      %3865 = vst [vmem:[#allocation2 + $0xc0] sm:$0xff] %v3829
      %3866 = vst [vmem:[#allocation2 + $0xc8] sm:$0xff] %v3830
      %3867 = vst [vmem:[#allocation2 + $0xd0] sm:$0xff] %v3831
      %3868 = vst [vmem:[#allocation2 + $0xd8] sm:$0xff] %v3832
      %3869 = vst [vmem:[#allocation2 + $0xe0] sm:$0xff] %v3833
      %3870 = vst [vmem:[#allocation2 + $0xe8] sm:$0xff] %v3834
      %3871 = vst [vmem:[#allocation2 + $0xf0] sm:$0xff] %v3835
      %3872 = vst [vmem:[#allocation2 + $0xf8] sm:$0xff] %v3836
      %3873 = vst [vmem:[#allocation2 + $0x100] sm:$0xff] %v3837
      %3874 = vst [vmem:[#allocation2 + $0x108] sm:$0xff] %v3838
      %3875 = vst [vmem:[#allocation2 + $0x110] sm:$0xff] %v3839
      %3876 = vst [vmem:[#allocation2 + $0x118] sm:$0xff] %v3840
      %v3877 = vld [vmem:[#allocation2] sm:$0xff]
      %v3878 = vld [vmem:[#allocation2 + $0x8] sm:$0xff]
      %v3879 = vld [vmem:[#allocation2 + $0x10] sm:$0xff]
      %v3880 = vld [vmem:[#allocation2 + $0x18] sm:$0xff]
      %v3881 = vld [vmem:[#allocation2 + $0x20] sm:$0xff]
      %v3882 = vld [vmem:[#allocation2 + $0x28] sm:$0xff]
      %v3883 = vld [vmem:[#allocation2 + $0x30] sm:$0xff]
      %v3884 = vld [vmem:[#allocation2 + $0x38] sm:$0xff]
      %v3885 = vld [vmem:[#allocation2 + $0x40] sm:$0xff]
      %v3886 = vld [vmem:[#allocation2 + $0x48] sm:$0xff]
      %v3887 = vld [vmem:[#allocation2 + $0x50] sm:$0xff]
      %v3888 = vld [vmem:[#allocation2 + $0x58] sm:$0xff]
      %v3889 = vld [vmem:[#allocation2 + $0x60] sm:$0xff]
      %v3890 = vld [vmem:[#allocation2 + $0x68] sm:$0xff]
      %v3891 = vld [vmem:[#allocation2 + $0x70] sm:$0xff]
      %v3892 = vld [vmem:[#allocation2 + $0x78] sm:$0xff]
      %v3893 = vld [vmem:[#allocation2 + $0x80] sm:$0xff]
      %v3894 = vld [vmem:[#allocation2 + $0x88] sm:$0xff]
      %v3895 = vld [vmem:[#allocation2 + $0x90] sm:$0xff]
      %v3896 = vld [vmem:[#allocation2 + $0x98] sm:$0xff]
      %v3897 = vld [vmem:[#allocation2 + $0xa0] sm:$0xff]
      %v3898 = vld [vmem:[#allocation2 + $0xa8] sm:$0xff]
      %v3899 = vld [vmem:[#allocation2 + $0xb0] sm:$0xff]
      %v3900 = vld [vmem:[#allocation2 + $0xb8] sm:$0xff]
      %v3901 = vld [vmem:[#allocation2 + $0xc0] sm:$0xff]
      %v3902 = vld [vmem:[#allocation2 + $0xc8] sm:$0xff]
      %v3903 = vld [vmem:[#allocation2 + $0xd0] sm:$0xff]
      %v3904 = vld [vmem:[#allocation2 + $0xd8] sm:$0xff]
      %v3905 = vld [vmem:[#allocation2 + $0xe0] sm:$0xff]
      %v3906 = vld [vmem:[#allocation2 + $0xe8] sm:$0xff]
      %v3907 = vld [vmem:[#allocation2 + $0xf0] sm:$0xff]
      %v3908 = vld [vmem:[#allocation2 + $0xf8] sm:$0xff]
      %v3909 = vld [vmem:[#allocation2 + $0x100] sm:$0xff]
      %v3910 = vld [vmem:[#allocation2 + $0x108] sm:$0xff]
      %v3911 = vld [vmem:[#allocation2 + $0x110] sm:$0xff]
      %v3912 = vld [vmem:[#allocation2 + $0x118] sm:$0xff]
      %v3913 = vmax.f32 %v3877, 0.0
      %v3914 = vmax.f32 %v3878, 0.0
      %v3915 = vmax.f32 %v3879, 0.0
      %v3916 = vmax.f32 %v3880, 0.0
      %v3917 = vmax.f32 %v3881, 0.0
      %v3918 = vmax.f32 %v3882, 0.0
      %v3919 = vmax.f32 %v3883, 0.0
      %v3920 = vmax.f32 %v3884, 0.0
      %v3921 = vmax.f32 %v3885, 0.0
      %v3922 = vmax.f32 %v3886, 0.0
      %v3923 = vmax.f32 %v3887, 0.0
      %v3924 = vmax.f32 %v3888, 0.0
      %v3925 = vmax.f32 %v3889, 0.0
      %v3926 = vmax.f32 %v3890, 0.0
      %v3927 = vmax.f32 %v3891, 0.0
      %v3928 = vmax.f32 %v3892, 0.0
      %v3929 = vmax.f32 %v3893, 0.0
      %v3930 = vmax.f32 %v3894, 0.0
      %v3931 = vmax.f32 %v3895, 0.0
      %v3932 = vmax.f32 %v3896, 0.0
      %v3933 = vmax.f32 %v3897, 0.0
      %v3934 = vmax.f32 %v3898, 0.0
      %v3935 = vmax.f32 %v3899, 0.0
      %v3936 = vmax.f32 %v3900, 0.0
      %v3937 = vmax.f32 %v3901, 0.0
      %v3938 = vmax.f32 %v3902, 0.0
      %v3939 = vmax.f32 %v3903, 0.0
      %v3940 = vmax.f32 %v3904, 0.0
      %v3941 = vmax.f32 %v3905, 0.0
      %v3942 = vmax.f32 %v3906, 0.0
      %v3943 = vmax.f32 %v3907, 0.0
      %v3944 = vmax.f32 %v3908, 0.0
      %v3945 = vmax.f32 %v3909, 0.0
      %v3946 = vmax.f32 %v3910, 0.0
      %v3947 = vmax.f32 %v3911, 0.0
      %v3948 = vmax.f32 %v3912, 0.0
      %v3949 = vld [vmem:[%s3] sm:$0xff]
      %v3950 = vld [vmem:[%s3 + $0x8] sm:$0xff]
      %v3951 = vld [vmem:[%s3 + $0x10] sm:$0xff]
      %v3952 = vld [vmem:[%s3 + $0x18] sm:$0xff]
      %v3953 = vld [vmem:[%s3 + $0x20] sm:$0xff]
      %v3954 = vld [vmem:[%s3 + $0x28] sm:$0xff]
      %v3955 = vld [vmem:[%s3 + $0x30] sm:$0xff]
      %v3956 = vld [vmem:[%s3 + $0x38] sm:$0xff]
      %v3957 = vld [vmem:[%s3 + $0x40] sm:$0xff]
      %v3958 = vld [vmem:[%s3 + $0x48] sm:$0xff]
      %v3959 = vld [vmem:[%s3 + $0x50] sm:$0xff]
      %v3960 = vld [vmem:[%s3 + $0x58] sm:$0xff]
      %v3961 = vld [vmem:[%s3 + $0x60] sm:$0xff]
      %v3962 = vld [vmem:[%s3 + $0x68] sm:$0xff]
      %v3963 = vld [vmem:[%s3 + $0x70] sm:$0xff]
      %v3964 = vld [vmem:[%s3 + $0x78] sm:$0xff]
      %v3965 = vld [vmem:[%s3 + $0x80] sm:$0xff]
      %v3966 = vld [vmem:[%s3 + $0x88] sm:$0xff]
      %v3967 = vld [vmem:[%s3 + $0x90] sm:$0xff]
      %v3968 = vld [vmem:[%s3 + $0x98] sm:$0xff]
      %v3969 = vld [vmem:[%s3 + $0xa0] sm:$0xff]
      %v3970 = vld [vmem:[%s3 + $0xa8] sm:$0xff]
      %v3971 = vld [vmem:[%s3 + $0xb0] sm:$0xff]
      %v3972 = vld [vmem:[%s3 + $0xb8] sm:$0xff]
      %v3973 = vld [vmem:[%s3 + $0xc0] sm:$0xff]
      %v3974 = vld [vmem:[%s3 + $0xc8] sm:$0xff]
      %v3975 = vld [vmem:[%s3 + $0xd0] sm:$0xff]
      %v3976 = vld [vmem:[%s3 + $0xd8] sm:$0xff]
      %v3977 = vld [vmem:[%s3 + $0xe0] sm:$0xff]
      %v3978 = vld [vmem:[%s3 + $0xe8] sm:$0xff]
      %v3979 = vld [vmem:[%s3 + $0xf0] sm:$0xff]
      %v3980 = vld [vmem:[%s3 + $0xf8] sm:$0xff]
      %v3981 = vld [vmem:[%s3 + $0x100] sm:$0xff]
      %v3982 = vld [vmem:[%s3 + $0x108] sm:$0xff]
      %v3983 = vld [vmem:[%s3 + $0x110] sm:$0xff]
      %v3984 = vld [vmem:[%s3 + $0x118] sm:$0xff]
      %3986 = vset.pattern.permute.xlu0 0
      %3987 = vperm.xlu0 %3986, %v3949
      %v3988 = vpop.permute.xlu0 %3987
      %3991 = vset.pattern.permute.xlu0 0
      %3992 = vperm.xlu0 %3991, %v3950
      %v3993 = vpop.permute.xlu0 %3992
      %3996 = vset.pattern.permute.xlu0 0
      %3997 = vperm.xlu0 %3996, %v3951
      %v3998 = vpop.permute.xlu0 %3997
      %4001 = vset.pattern.permute.xlu0 0
      %4002 = vperm.xlu0 %4001, %v3952
      %v4003 = vpop.permute.xlu0 %4002
      %4006 = vset.pattern.permute.xlu0 0
      %4007 = vperm.xlu0 %4006, %v3953
      %v4008 = vpop.permute.xlu0 %4007
      %4011 = vset.pattern.permute.xlu0 0
      %4012 = vperm.xlu0 %4011, %v3954
      %v4013 = vpop.permute.xlu0 %4012
      %4016 = vset.pattern.permute.xlu0 0
      %4017 = vperm.xlu0 %4016, %v3955
      %v4018 = vpop.permute.xlu0 %4017
      %4021 = vset.pattern.permute.xlu0 0
      %4022 = vperm.xlu0 %4021, %v3956
      %v4023 = vpop.permute.xlu0 %4022
      %4026 = vset.pattern.permute.xlu0 0
      %4027 = vperm.xlu0 %4026, %v3957
      %v4028 = vpop.permute.xlu0 %4027
      %4031 = vset.pattern.permute.xlu0 0
      %4032 = vperm.xlu0 %4031, %v3958
      %v4033 = vpop.permute.xlu0 %4032
      %4036 = vset.pattern.permute.xlu0 0
      %4037 = vperm.xlu0 %4036, %v3959
      %v4038 = vpop.permute.xlu0 %4037
      %4041 = vset.pattern.permute.xlu0 0
      %4042 = vperm.xlu0 %4041, %v3960
      %v4043 = vpop.permute.xlu0 %4042
      %4046 = vset.pattern.permute.xlu0 0
      %4047 = vperm.xlu0 %4046, %v3961
      %v4048 = vpop.permute.xlu0 %4047
      %4051 = vset.pattern.permute.xlu0 0
      %4052 = vperm.xlu0 %4051, %v3962
      %v4053 = vpop.permute.xlu0 %4052
      %4056 = vset.pattern.permute.xlu0 0
      %4057 = vperm.xlu0 %4056, %v3963
      %v4058 = vpop.permute.xlu0 %4057
      %4061 = vset.pattern.permute.xlu0 0
      %4062 = vperm.xlu0 %4061, %v3964
      %v4063 = vpop.permute.xlu0 %4062
      %4066 = vset.pattern.permute.xlu0 0
      %4067 = vperm.xlu0 %4066, %v3965
      %v4068 = vpop.permute.xlu0 %4067
      %4071 = vset.pattern.permute.xlu0 0
      %4072 = vperm.xlu0 %4071, %v3966
      %v4073 = vpop.permute.xlu0 %4072
      %4076 = vset.pattern.permute.xlu0 0
      %4077 = vperm.xlu0 %4076, %v3967
      %v4078 = vpop.permute.xlu0 %4077
      %4081 = vset.pattern.permute.xlu0 0
      %4082 = vperm.xlu0 %4081, %v3968
      %v4083 = vpop.permute.xlu0 %4082
      %4086 = vset.pattern.permute.xlu0 0
      %4087 = vperm.xlu0 %4086, %v3969
      %v4088 = vpop.permute.xlu0 %4087
      %4091 = vset.pattern.permute.xlu0 0
      %4092 = vperm.xlu0 %4091, %v3970
      %v4093 = vpop.permute.xlu0 %4092
      %4096 = vset.pattern.permute.xlu0 0
      %4097 = vperm.xlu0 %4096, %v3971
      %v4098 = vpop.permute.xlu0 %4097
      %4101 = vset.pattern.permute.xlu0 0
      %4102 = vperm.xlu0 %4101, %v3972
      %v4103 = vpop.permute.xlu0 %4102
      %4106 = vset.pattern.permute.xlu0 0
      %4107 = vperm.xlu0 %4106, %v3973
      %v4108 = vpop.permute.xlu0 %4107
      %4111 = vset.pattern.permute.xlu0 0
      %4112 = vperm.xlu0 %4111, %v3974
      %v4113 = vpop.permute.xlu0 %4112
      %4116 = vset.pattern.permute.xlu0 0
      %4117 = vperm.xlu0 %4116, %v3975
      %v4118 = vpop.permute.xlu0 %4117
      %4121 = vset.pattern.permute.xlu0 0
      %4122 = vperm.xlu0 %4121, %v3976
      %v4123 = vpop.permute.xlu0 %4122
      %4126 = vset.pattern.permute.xlu0 0
      %4127 = vperm.xlu0 %4126, %v3977
      %v4128 = vpop.permute.xlu0 %4127
      %4131 = vset.pattern.permute.xlu0 0
      %4132 = vperm.xlu0 %4131, %v3978
      %v4133 = vpop.permute.xlu0 %4132
      %4136 = vset.pattern.permute.xlu0 0
      %4137 = vperm.xlu0 %4136, %v3979
      %v4138 = vpop.permute.xlu0 %4137
      %4141 = vset.pattern.permute.xlu0 0
      %4142 = vperm.xlu0 %4141, %v3980
      %v4143 = vpop.permute.xlu0 %4142
      %4146 = vset.pattern.permute.xlu0 0
      %4147 = vperm.xlu0 %4146, %v3981
      %v4148 = vpop.permute.xlu0 %4147
      %4151 = vset.pattern.permute.xlu0 0
      %4152 = vperm.xlu0 %4151, %v3982
      %v4153 = vpop.permute.xlu0 %4152
      %4156 = vset.pattern.permute.xlu0 0
      %4157 = vperm.xlu0 %4156, %v3983
      %v4158 = vpop.permute.xlu0 %4157
      %4161 = vset.pattern.permute.xlu0 0
      %4162 = vperm.xlu0 %4161, %v3984
      %v4163 = vpop.permute.xlu0 %4162
      %v4165 = vmul.f32 %v3913, %v3988
      %v4166 = vmul.f32 %v3914, %v3993
      %v4167 = vmul.f32 %v3915, %v3998
      %v4168 = vmul.f32 %v3916, %v4003
      %v4169 = vmul.f32 %v3917, %v4008
      %v4170 = vmul.f32 %v3918, %v4013
      %v4171 = vmul.f32 %v3919, %v4018
      %v4172 = vmul.f32 %v3920, %v4023
      %v4173 = vmul.f32 %v3921, %v4028
      %v4174 = vmul.f32 %v3922, %v4033
      %v4175 = vmul.f32 %v3923, %v4038
      %v4176 = vmul.f32 %v3924, %v4043
      %v4177 = vmul.f32 %v3925, %v4048
      %v4178 = vmul.f32 %v3926, %v4053
      %v4179 = vmul.f32 %v3927, %v4058
      %v4180 = vmul.f32 %v3928, %v4063
      %v4181 = vmul.f32 %v3929, %v4068
      %v4182 = vmul.f32 %v3930, %v4073
      %v4183 = vmul.f32 %v3931, %v4078
      %v4184 = vmul.f32 %v3932, %v4083
      %v4185 = vmul.f32 %v3933, %v4088
      %v4186 = vmul.f32 %v3934, %v4093
      %v4187 = vmul.f32 %v3935, %v4098
      %v4188 = vmul.f32 %v3936, %v4103
      %v4189 = vmul.f32 %v3937, %v4108
      %v4190 = vmul.f32 %v3938, %v4113
      %v4191 = vmul.f32 %v3939, %v4118
      %v4192 = vmul.f32 %v3940, %v4123
      %v4193 = vmul.f32 %v3941, %v4128
      %v4194 = vmul.f32 %v3942, %v4133
      %v4195 = vmul.f32 %v3943, %v4138
      %v4196 = vmul.f32 %v3944, %v4143
      %v4197 = vmul.f32 %v3945, %v4148
      %v4198 = vmul.f32 %v3946, %v4153
      %v4199 = vmul.f32 %v3947, %v4158
      %v4200 = vmul.f32 %v3948, %v4163
      %4201 = vst [vmem:[%s197] sm:$0xff] 0.0
      %4202 = vst [vmem:[%s197 + $0x8] sm:$0xff] 0.0
      %4203 = vst [vmem:[%s197 + $0x10] sm:$0xff] 0.0
      %4204 = vst [vmem:[%s197 + $0x18] sm:$0xff] 0.0
      %4205 = vst [vmem:[%s197 + $0x20] sm:$0xff] 0.0
      %4206 = vst [vmem:[%s197 + $0x28] sm:$0xff] 0.0
      %4207 = vst [vmem:[%s197 + $0x30] sm:$0xff] 0.0
      %4208 = vst [vmem:[%s197 + $0x38] sm:$0xff] 0.0
      %4209 = vst [vmem:[%s197 + $0x40] sm:$0xff] 0.0
      %4210 = vst [vmem:[%s197 + $0x48] sm:$0xff] 0.0
      %4211 = vst [vmem:[%s197 + $0x50] sm:$0xff] 0.0
      %4212 = vst [vmem:[%s197 + $0x58] sm:$0xff] 0.0
      %4213 = vst [vmem:[%s197 + $0x60] sm:$0xff] 0.0
      %4214 = vst [vmem:[%s197 + $0x68] sm:$0xff] 0.0
      %4215 = vst [vmem:[%s197 + $0x70] sm:$0xff] 0.0
      %4216 = vst [vmem:[%s197 + $0x78] sm:$0xff] 0.0
      %4217 = vst [vmem:[%s197 + $0x80] sm:$0xff] 0.0
      %4218 = vst [vmem:[%s197 + $0x88] sm:$0xff] 0.0
      %4219 = vst [vmem:[%s197 + $0x90] sm:$0xff] 0.0
      %4220 = vst [vmem:[%s197 + $0x98] sm:$0xff] 0.0
      %4221 = vst [vmem:[%s197 + $0xa0] sm:$0xff] 0.0
      %4222 = vst [vmem:[%s197 + $0xa8] sm:$0xff] 0.0
      %4223 = vst [vmem:[%s197 + $0xb0] sm:$0xff] 0.0
      %4224 = vst [vmem:[%s197 + $0xb8] sm:$0xff] 0.0
      %4225 = vst [vmem:[%s197 + $0xc0] sm:$0xff] 0.0
      %4226 = vst [vmem:[%s197 + $0xc8] sm:$0xff] 0.0
      %4227 = vst [vmem:[%s197 + $0xd0] sm:$0xff] 0.0
      %4228 = vst [vmem:[%s197 + $0xd8] sm:$0xff] 0.0
      %4229 = vst [vmem:[%s197 + $0xe0] sm:$0xff] 0.0
      %4230 = vst [vmem:[%s197 + $0xe8] sm:$0xff] 0.0
      %4231 = vst [vmem:[%s197 + $0xf0] sm:$0xff] 0.0
      %4232 = vst [vmem:[%s197 + $0xf8] sm:$0xff] 0.0
      %4233 = vst [vmem:[%s197 + $0x100] sm:$0xff] 0.0
      %4234 = vst [vmem:[%s197 + $0x108] sm:$0xff] 0.0
      %4235 = vst [vmem:[%s197 + $0x110] sm:$0xff] 0.0
      %4236 = vst [vmem:[%s197 + $0x118] sm:$0xff] 0.0
      %4237 = vst [vmem:[%s197 + $0x120] sm:$0xff] 0.0
      %4238 = vst [vmem:[%s197 + $0x128] sm:$0xff] 0.0
      %4239 = vst [vmem:[%s197 + $0x130] sm:$0xff] 0.0
      %4240 = vst [vmem:[%s197 + $0x138] sm:$0xff] 0.0
      %4241 = vst [vmem:[%s197 + $0x140] sm:$0xff] 0.0
      %4242 = vst [vmem:[%s197 + $0x148] sm:$0xff] 0.0
      %4243 = vst [vmem:[%s197 + $0x18] sm:$0xff] %v4165
      %4244 = vst [vmem:[%s197 + $0x20] sm:$0xff] %v4166
      %4245 = vst [vmem:[%s197 + $0x28] sm:$0xff] %v4167
      %4246 = vst [vmem:[%s197 + $0x30] sm:$0xff] %v4168
      %4247 = vst [vmem:[%s197 + $0x38] sm:$0xff] %v4169
      %4248 = vst [vmem:[%s197 + $0x40] sm:$0xff] %v4170
      %4249 = vst [vmem:[%s197 + $0x48] sm:$0xff] %v4171
      %4250 = vst [vmem:[%s197 + $0x50] sm:$0xff] %v4172
      %4251 = vst [vmem:[%s197 + $0x58] sm:$0xff] %v4173
      %4252 = vst [vmem:[%s197 + $0x60] sm:$0xff] %v4174
      %4253 = vst [vmem:[%s197 + $0x68] sm:$0xff] %v4175
      %4254 = vst [vmem:[%s197 + $0x70] sm:$0xff] %v4176
      %4255 = vst [vmem:[%s197 + $0x78] sm:$0xff] %v4177
      %4256 = vst [vmem:[%s197 + $0x80] sm:$0xff] %v4178
      %4257 = vst [vmem:[%s197 + $0x88] sm:$0xff] %v4179
      %4258 = vst [vmem:[%s197 + $0x90] sm:$0xff] %v4180
      %4259 = vst [vmem:[%s197 + $0x98] sm:$0xff] %v4181
      %4260 = vst [vmem:[%s197 + $0xa0] sm:$0xff] %v4182
      %4261 = vst [vmem:[%s197 + $0xa8] sm:$0xff] %v4183
      %4262 = vst [vmem:[%s197 + $0xb0] sm:$0xff] %v4184
      %4263 = vst [vmem:[%s197 + $0xb8] sm:$0xff] %v4185
      %4264 = vst [vmem:[%s197 + $0xc0] sm:$0xff] %v4186
      %4265 = vst [vmem:[%s197 + $0xc8] sm:$0xff] %v4187
      %4266 = vst [vmem:[%s197 + $0xd0] sm:$0xff] %v4188
      %4267 = vst [vmem:[%s197 + $0xd8] sm:$0xff] %v4189
      %4268 = vst [vmem:[%s197 + $0xe0] sm:$0xff] %v4190
      %4269 = vst [vmem:[%s197 + $0xe8] sm:$0xff] %v4191
      %4270 = vst [vmem:[%s197 + $0xf0] sm:$0xff] %v4192
      %4271 = vst [vmem:[%s197 + $0xf8] sm:$0xff] %v4193
      %4272 = vst [vmem:[%s197 + $0x100] sm:$0xff] %v4194
      %4273 = vst [vmem:[%s197 + $0x108] sm:$0xff] %v4195
      %4274 = vst [vmem:[%s197 + $0x110] sm:$0xff] %v4196
      %4275 = vst [vmem:[%s197 + $0x118] sm:$0xff] %v4197
      %4276 = vst [vmem:[%s197 + $0x120] sm:$0xff] %v4198
      %4277 = vst [vmem:[%s197 + $0x128] sm:$0xff] %v4199
      %4278 = vst [vmem:[%s197 + $0x130] sm:$0xff] %v4200
      %p4279 = scmp.lt.s32.totalorder %s15, 1
      %s4280 = scalar_select %p4279, %s15, 1
      %s4281 = smul.addr %s4280, 42
      %s4282 = smul.addr %s4281, 8
      %s4283 = scalar_lea.vmem %s4, %s4282
      // Predicated region
      $region37: #{faster_rcnn_forward.3} parent=35 // pred_check
        %p4284 = pneg %p122
      $region38: #{faster_rcnn_forward.3} parent=35 // pred_check_branch
        %4286 = sbr.rel (%p4284) target = $region40
      $region39: #{faster_rcnn_forward.3} parent=35 // pred_region
        _
      $region40: #{faster_rcnn_forward.3} parent=35 // pred_fallthru
        _
    $region36: #{faster_rcnn_forward.3} parent=5 // pred_fallthru
      _
    %p4287 = scmp.le.s32.totalorder 2, %s10
    // Predicated region
    $region41: #{faster_rcnn_forward.3} parent=5 // pred_check
      %p4288 = pneg %p4287
    $region42: #{faster_rcnn_forward.3} parent=5 // pred_check_branch
      %4290 = sbr.rel (%p4288) target = $region44
    $region43: #{faster_rcnn_forward.3} parent=5 // pred_region
      %s4291 = ssub.s32 %s10, 2
      // Predicated region
      $region45: #{faster_rcnn_forward.3} parent=43 // pred_check
        %p4292 = pneg %p128
      $region46: #{faster_rcnn_forward.3} parent=43 // pred_check_branch
        %4294 = sbr.rel (%p4292) target = $region48
      $region47: #{faster_rcnn_forward.3} parent=43 // pred_region
        %p4295 = scmp.lt.s32.totalorder %s16, 1
        %s4296 = scalar_select %p4295, %s16, 1
        %s4297 = smul.addr %s4296, 42
        %s4298 = smul.addr %s4297, 8
        %s4299 = scalar_lea.vmem %s4, %s4298
      $region48: #{faster_rcnn_forward.3} parent=43 // pred_fallthru
        _
    $region44: #{faster_rcnn_forward.3} parent=5 // pred_fallthru
      _
  $region6: #{faster_rcnn_forward.3} parent=0 // loop_footer
    %s14 = sadd.s32 1, %s10
  $region7: #{faster_rcnn_forward.3} parent=0 // loop_footer_branch
    %9 = sbr.rel target = $region3
  $region8: #{faster_rcnn_forward.3} parent=0 // loop_exit
    _

// kernel: faster_rcnn_forward.4
$region0: #{faster_rcnn_forward.4}
  #allocation0 [shape = 'u32[]', space=smem, size = 0x4, offset = 0x4, fixed_abs, tag = 'smem constant byte address 0x4 - core index']
  #allocation1 [shape = 'u32[144,128]{1,0:T(1,128)}', space=vmem, size = 0x12000, scoped, tag = 'internal scratch']
  #allocation2 [shape = 'f32[288,128]{1,0:T(8,128)}', space=vmem, size = 0x24000, scoped, tag = 'scratch operand']
  %s0 = inlined_call_operand.vmem [shape: f32[2,336,128], index: 0, kind: input, shape index: {}]
  %s1 = inlined_call_operand.vmem [shape: bf16[9,128,128], index: 1, kind: input, shape index: {}]
  %s2 = inlined_call_operand.vmem [shape: f32[1,128], index: 2, kind: input, shape index: {}]
  %s3 = inlined_call_operand.vmem [shape: bf16[128,128], index: 3, kind: input, shape index: {}]
  %s4 = inlined_call_operand.vmem [shape: f32[1,128], index: 4, kind: input, shape index: {}]
  %s5 = inlined_call_operand.vmem [shape: f32[2,288,128], index: 5, kind: output, shape index: {}]
  %s6 = sld [smem:[#allocation0]]
  $region53: #{faster_rcnn_forward.4} parent=0
    _
  %s8 = ssub.s32 1, %s6
  %s9 = scalar_select 0, %s8, %s6
  loop: start=0, step=1, limit=4
  $region2: #{faster_rcnn_forward.4} parent=0 // loop_pre_header
    _
  $region3: #{faster_rcnn_forward.4} parent=0 // loop_header
    %s11 = sphi 0, %s15
    %p12 = scmp.ge.s32.totalorder %s11, 4
    %s21 = sphi 0, %s23
    %s24 = sphi 0, %s21
    %s25 = sphi 0, %s24
    %s41 = sphi 0, %s25
    %s45 = sphi 0, %s45
    %s47 = sphi 0, %s45
    %s48 = sphi 0, %s47
    %s62 = sphi 0, %s48
    %s66 = sphi 0, %s66
    %s68 = sphi 0, %s66
    %s69 = sphi 0, %s68
    %s83 = sphi 0, %s69
    %s87 = sphi 0, %s87
    %s89 = sphi 0, %s87
    %s90 = sphi 0, %s89
    %s104 = sphi 0, %s90
    %s108 = sphi 0, %s108
    %s110 = sphi 0, %s108
    %s111 = sphi 0, %s110
    %s125 = sphi 0, %s111
    %s131 = sphi 0, %s133
    %s134 = sphi 0, %s131
    %s135 = sphi 0, %s134
    %s151 = sphi 0, %s135
  $region4: #{faster_rcnn_forward.4} parent=0 // loop_header_branch
    %14 = sbr.rel (%p12) target = $region8
  $region5: #{faster_rcnn_forward.4} parent=0 // loop_body
    %s16 = ssub.s32 %s11, 1
    %s17 = ssub.s32 %s11, 2
    %s18 = sadd.s32 %s11, 1
    %s19 = ssub.s32 %s11, %s18
    %p20 = scmp.eq.s32.totalorder %s19, 0
    %s22 = sadd.s32 %s21, 1
    %s23 = scalar_select %p20, %s21, %s22
    %p26 = pneg %p20
    %p27 = scmp.eq.s32.totalorder %s11, 1
    %p28 = por %p26, %p27
    %p29 = scmp.ne.s32.totalorder %s21, %s24
    %p30 = scmp.eq.s32.totalorder %s11, 0
    %p31 = por %p29, %p30
    %p32 = scmp.ne.s32.totalorder %s21, %s24
    %p33 = scmp.eq.s32.totalorder %s16, 1
    %p34 = por %p32, %p33
    %p35 = scmp.ne.s32.totalorder %s24, %s25
    %p36 = scmp.eq.s32.totalorder %s16, 0
    %p37 = por %p35, %p36
    %p38 = scmp.ne.s32.totalorder %s24, %s25
    %p39 = scmp.eq.s32.totalorder %s17, 1
    %p40 = por %p38, %p39
    %p42 = scmp.ne.s32.totalorder %s25, %s41
    %p43 = scmp.eq.s32.totalorder %s17, 0
    %p44 = por %p42, %p43
    %s46 = sadd.s32 %s45, 1
    %p49 = scmp.eq.s32.totalorder %s11, 1
    %p50 = scmp.ne.s32.totalorder %s45, %s47
    %p51 = scmp.eq.s32.totalorder %s11, 0
    %p52 = por %p50, %p51
    %p53 = scmp.ne.s32.totalorder %s45, %s47
    %p54 = scmp.eq.s32.totalorder %s16, 1
    %p55 = por %p53, %p54
    %p56 = scmp.ne.s32.totalorder %s47, %s48
    %p57 = scmp.eq.s32.totalorder %s16, 0
    %p58 = por %p56, %p57
    %p59 = scmp.ne.s32.totalorder %s47, %s48
    %p60 = scmp.eq.s32.totalorder %s17, 1
    %p61 = por %p59, %p60
    %p63 = scmp.ne.s32.totalorder %s48, %s62
    %p64 = scmp.eq.s32.totalorder %s17, 0
    %p65 = por %p63, %p64
    %s67 = sadd.s32 %s66, 1
    %p70 = scmp.eq.s32.totalorder %s11, 1
    %p71 = scmp.ne.s32.totalorder %s66, %s68
    %p72 = scmp.eq.s32.totalorder %s11, 0
    %p73 = por %p71, %p72
    %p74 = scmp.ne.s32.totalorder %s66, %s68
    %p75 = scmp.eq.s32.totalorder %s16, 1
    %p76 = por %p74, %p75
    %p77 = scmp.ne.s32.totalorder %s68, %s69
    %p78 = scmp.eq.s32.totalorder %s16, 0
    %p79 = por %p77, %p78
    %p80 = scmp.ne.s32.totalorder %s68, %s69
    %p81 = scmp.eq.s32.totalorder %s17, 1
    %p82 = por %p80, %p81
    %p84 = scmp.ne.s32.totalorder %s69, %s83
    %p85 = scmp.eq.s32.totalorder %s17, 0
    %p86 = por %p84, %p85
    %s88 = sadd.s32 %s87, 1
    %p91 = scmp.eq.s32.totalorder %s11, 1
    %p92 = scmp.ne.s32.totalorder %s87, %s89
    %p93 = scmp.eq.s32.totalorder %s11, 0
    %p94 = por %p92, %p93
    %p95 = scmp.ne.s32.totalorder %s87, %s89
    %p96 = scmp.eq.s32.totalorder %s16, 1
    %p97 = por %p95, %p96
    %p98 = scmp.ne.s32.totalorder %s89, %s90
    %p99 = scmp.eq.s32.totalorder %s16, 0
    %p100 = por %p98, %p99
    %p101 = scmp.ne.s32.totalorder %s89, %s90
    %p102 = scmp.eq.s32.totalorder %s17, 1
    %p103 = por %p101, %p102
    %p105 = scmp.ne.s32.totalorder %s90, %s104
    %p106 = scmp.eq.s32.totalorder %s17, 0
    %p107 = por %p105, %p106
    %s109 = sadd.s32 %s108, 1
    %p112 = scmp.eq.s32.totalorder %s11, 1
    %p113 = scmp.ne.s32.totalorder %s108, %s110
    %p114 = scmp.eq.s32.totalorder %s11, 0
    %p115 = por %p113, %p114
    %p116 = scmp.ne.s32.totalorder %s108, %s110
    %p117 = scmp.eq.s32.totalorder %s16, 1
    %p118 = por %p116, %p117
    %p119 = scmp.ne.s32.totalorder %s110, %s111
    %p120 = scmp.eq.s32.totalorder %s16, 0
    %p121 = por %p119, %p120
    %p122 = scmp.ne.s32.totalorder %s110, %s111
    %p123 = scmp.eq.s32.totalorder %s17, 1
    %p124 = por %p122, %p123
    %p126 = scmp.ne.s32.totalorder %s111, %s125
    %p127 = scmp.eq.s32.totalorder %s17, 0
    %p128 = por %p126, %p127
    %s129 = ssub.s32 %s11, %s18
    %p130 = scmp.eq.s32.totalorder %s129, 0
    %s132 = sadd.s32 %s131, 1
    %s133 = scalar_select %p130, %s131, %s132
    %p136 = pneg %p130
    %p137 = scmp.eq.s32.totalorder %s11, 1
    %p138 = por %p136, %p137
    %p139 = scmp.ne.s32.totalorder %s131, %s134
    %p140 = scmp.eq.s32.totalorder %s11, 0
    %p141 = por %p139, %p140
    %p142 = scmp.ne.s32.totalorder %s131, %s134
    %p143 = scmp.eq.s32.totalorder %s16, 1
    %p144 = por %p142, %p143
    %p145 = scmp.ne.s32.totalorder %s134, %s135
    %p146 = scmp.eq.s32.totalorder %s16, 0
    %p147 = por %p145, %p146
    %p148 = scmp.ne.s32.totalorder %s134, %s135
    %p149 = scmp.eq.s32.totalorder %s17, 1
    %p150 = por %p148, %p149
    %p152 = scmp.ne.s32.totalorder %s135, %s151
    %p153 = scmp.eq.s32.totalorder %s17, 0
    %p154 = por %p152, %p153
    %p155 = scmp.le.s32.totalorder 1, %s11
    %p156 = scmp.lt.s32.totalorder %s11, 3
    %p157 = pnand %p155, %p156
    %p158 = pneg %p157
    // Predicated region
    $region9: #{faster_rcnn_forward.4} parent=5 // pred_check
      _
    $region10: #{faster_rcnn_forward.4} parent=5 // pred_check_branch
      %160 = sbr.rel (%p157) target = $region12
    $region11: #{faster_rcnn_forward.4} parent=5 // pred_region
      %s161 = ssub.s32 %s11, 1
      // Predicated region
      $region13: #{faster_rcnn_forward.4} parent=11 // pred_check
        %p162 = pneg %p58
      $region14: #{faster_rcnn_forward.4} parent=11 // pred_check_branch
        %164 = sbr.rel (%p162) target = $region16
      $region15: #{faster_rcnn_forward.4} parent=11 // pred_region
        _
      $region16: #{faster_rcnn_forward.4} parent=11 // pred_fallthru
        _
      // Predicated region
      $region17: #{faster_rcnn_forward.4} parent=11 // pred_check
        %p165 = pneg %p79
      $region18: #{faster_rcnn_forward.4} parent=11 // pred_check_branch
        %167 = sbr.rel (%p165) target = $region20
      $region19: #{faster_rcnn_forward.4} parent=11 // pred_region
        _
      $region20: #{faster_rcnn_forward.4} parent=11 // pred_fallthru
        _
      // Predicated region
      $region21: #{faster_rcnn_forward.4} parent=11 // pred_check
        %p168 = pneg %p100
      $region22: #{faster_rcnn_forward.4} parent=11 // pred_check_branch
        %170 = sbr.rel (%p168) target = $region24
      $region23: #{faster_rcnn_forward.4} parent=11 // pred_region
        _
      $region24: #{faster_rcnn_forward.4} parent=11 // pred_fallthru
        _
      // Predicated region
      $region25: #{faster_rcnn_forward.4} parent=11 // pred_check
        %p171 = pneg %p121
      $region26: #{faster_rcnn_forward.4} parent=11 // pred_check_branch
        %173 = sbr.rel (%p171) target = $region28
      $region27: #{faster_rcnn_forward.4} parent=11 // pred_region
        _
      $region28: #{faster_rcnn_forward.4} parent=11 // pred_fallthru
        _
    $region12: #{faster_rcnn_forward.4} parent=5 // pred_fallthru
      _
    %p174 = scmp.lt.s32.totalorder %s11, 2
    // Predicated region
    $region29: #{faster_rcnn_forward.4} parent=5 // pred_check
      %p175 = pneg %p174
    $region30: #{faster_rcnn_forward.4} parent=5 // pred_check_branch
      %177 = sbr.rel (%p175) target = $region32
    $region31: #{faster_rcnn_forward.4} parent=5 // pred_region
      // Predicated region
      $region33: #{faster_rcnn_forward.4} parent=31 // pred_check
        %p178 = pneg %p31
      $region34: #{faster_rcnn_forward.4} parent=31 // pred_check_branch
        %180 = sbr.rel (%p178) target = $region36
      $region35: #{faster_rcnn_forward.4} parent=31 // pred_region
        %p181 = scmp.lt.s32.totalorder %s11, 1
        %s182 = scalar_select %p181, %s11, 1
        %s183 = smul.addr %s182, 42
        %s184 = smul.addr %s183, 8
        %s185 = scalar_lea.vmem %s0, %s184
      $region36: #{faster_rcnn_forward.4} parent=31 // pred_fallthru
        _
    $region32: #{faster_rcnn_forward.4} parent=5 // pred_fallthru
      _
    %p186 = scmp.le.s32.totalorder 1, %s11
    %p187 = scmp.lt.s32.totalorder %s11, 3
    %p188 = pnand %p186, %p187
    %p189 = pneg %p188
    // Predicated region
    $region37: #{faster_rcnn_forward.4} parent=5 // pred_check
      _
    $region38: #{faster_rcnn_forward.4} parent=5 // pred_check_branch
      %191 = sbr.rel (%p188) target = $region40
    $region39: #{faster_rcnn_forward.4} parent=5 // pred_region
      %s192 = ssub.s32 %s11, 1
      %p193 = scmp.lt.s32.totalorder %s16, 1
      %s194 = scalar_select %p193, %s16, 1
      %s195 = smul.addr %s194, 42
      %s196 = smul.addr %s195, 8
      %s197 = scalar_lea.vmem %s0, %s196
      %p198 = pneg %p37
      %p199 = pneg %p34
      %p200 = pneg %p58
      %p201 = pneg %p55
      %p202 = pneg %p79
      %p203 = pneg %p76
      %p204 = pneg %p100
      %p205 = pneg %p97
      %p206 = pneg %p121
      %p207 = pneg %p118
      %p208 = pneg %p147
      %p209 = pneg %p144
      %p210 = scmp.lt.s32.totalorder %s16, 1
      %s211 = scalar_select %p210, %s16, 1
      %s212 = smul.addr %s211, 36
      %s213 = smul.addr %s212, 8
      %s214 = scalar_lea.vmem %s5, %s213
      %p215 = scmp.lt.s32.totalorder %s16, 1
      %s216 = scalar_select %p215, %s16, 1
      %s217 = smul.addr %s216, 42
      %s218 = smul.addr %s217, 8
      %s219 = scalar_lea.vmem %s0, %s218
      %p220 = scmp.lt.s32.totalorder %s16, 1
      %s221 = scalar_select %p220, %s16, 1
      %s222 = smul.addr %s221, 36
      %s223 = smul.addr %s222, 8
      %s224 = scalar_lea.vmem %s5, %s223
      %v226 = vld [vmem:[%s2] sm:$0x1]
      %v228 = vlaneseq
      %v229 = vshrl.u32 %v228, 7
      %v230 = vsub.s32 0, %v229
      %v231 = vrot.slane %v226, %v230
      %233 = vst [vmem:[#allocation2] sm:$0xff] %v231
      %234 = vst [vmem:[#allocation2 + $0x8] sm:$0xff] %v231
      %235 = vst [vmem:[#allocation2 + $0x10] sm:$0xff] %v231
      %236 = vst [vmem:[#allocation2 + $0x18] sm:$0xff] %v231
      %237 = vst [vmem:[#allocation2 + $0x20] sm:$0xff] %v231
      %238 = vst [vmem:[#allocation2 + $0x28] sm:$0xff] %v231
      %239 = vst [vmem:[#allocation2 + $0x30] sm:$0xff] %v231
      %240 = vst [vmem:[#allocation2 + $0x38] sm:$0xff] %v231
      %241 = vst [vmem:[#allocation2 + $0x40] sm:$0xff] %v231
      %242 = vst [vmem:[#allocation2 + $0x48] sm:$0xff] %v231
      %243 = vst [vmem:[#allocation2 + $0x50] sm:$0xff] %v231
      %244 = vst [vmem:[#allocation2 + $0x58] sm:$0xff] %v231
      %245 = vst [vmem:[#allocation2 + $0x60] sm:$0xff] %v231
      %246 = vst [vmem:[#allocation2 + $0x68] sm:$0xff] %v231
      %247 = vst [vmem:[#allocation2 + $0x70] sm:$0xff] %v231
      %248 = vst [vmem:[#allocation2 + $0x78] sm:$0xff] %v231
      %249 = vst [vmem:[#allocation2 + $0x80] sm:$0xff] %v231
      %250 = vst [vmem:[#allocation2 + $0x88] sm:$0xff] %v231
      %251 = vst [vmem:[#allocation2 + $0x90] sm:$0xff] %v231
      %252 = vst [vmem:[#allocation2 + $0x98] sm:$0xff] %v231
      %253 = vst [vmem:[#allocation2 + $0xa0] sm:$0xff] %v231
      %254 = vst [vmem:[#allocation2 + $0xa8] sm:$0xff] %v231
      %255 = vst [vmem:[#allocation2 + $0xb0] sm:$0xff] %v231
      %256 = vst [vmem:[#allocation2 + $0xb8] sm:$0xff] %v231
      %257 = vst [vmem:[#allocation2 + $0xc0] sm:$0xff] %v231
      %258 = vst [vmem:[#allocation2 + $0xc8] sm:$0xff] %v231
      %259 = vst [vmem:[#allocation2 + $0xd0] sm:$0xff] %v231
      %260 = vst [vmem:[#allocation2 + $0xd8] sm:$0xff] %v231
      %261 = vst [vmem:[#allocation2 + $0xe0] sm:$0xff] %v231
      %262 = vst [vmem:[#allocation2 + $0xe8] sm:$0xff] %v231
      %263 = vst [vmem:[#allocation2 + $0xf0] sm:$0xff] %v231
      %264 = vst [vmem:[#allocation2 + $0xf8] sm:$0xff] %v231
      %265 = vst [vmem:[#allocation2 + $0x100] sm:$0xff] %v231
      %266 = vst [vmem:[#allocation2 + $0x108] sm:$0xff] %v231
      %267 = vst [vmem:[#allocation2 + $0x110] sm:$0xff] %v231
      %268 = vst [vmem:[#allocation2 + $0x118] sm:$0xff] %v231
      %v269 = vld [vmem:[%s219 + $0x5] sm:$0xff]
      %v270 = vld [vmem:[%s219 + $0xd] sm:$0xff]
      %v271 = vld [vmem:[%s219 + $0x15] sm:$0xff]
      %v272 = vld [vmem:[%s219 + $0x1d] sm:$0xff]
      %v273 = vld [vmem:[%s219 + $0x25] sm:$0xff]
      %v274 = vld [vmem:[%s219 + $0x2d] sm:$0xff]
      %v275 = vld [vmem:[%s219 + $0x35] sm:$0xff]
      %v276 = vld [vmem:[%s219 + $0x3d] sm:$0xff]
      %v277 = vld [vmem:[%s219 + $0x45] sm:$0xff]
      %v278 = vld [vmem:[%s219 + $0x4d] sm:$0xff]
      %v279 = vld [vmem:[%s219 + $0x55] sm:$0xff]
      %v280 = vld [vmem:[%s219 + $0x5d] sm:$0xff]
      %v281 = vld [vmem:[%s219 + $0x65] sm:$0xff]
      %v282 = vld [vmem:[%s219 + $0x6d] sm:$0xff]
      %v283 = vld [vmem:[%s219 + $0x75] sm:$0xff]
      %v284 = vld [vmem:[%s219 + $0x7d] sm:$0xff]
      %v285 = vld [vmem:[%s219 + $0x85] sm:$0xff]
      %v286 = vld [vmem:[%s219 + $0x8d] sm:$0xff]
      %v287 = vld [vmem:[%s219 + $0x95] sm:$0xff]
      %v288 = vld [vmem:[%s219 + $0x9d] sm:$0xff]
      %v289 = vld [vmem:[%s219 + $0xa5] sm:$0xff]
      %v290 = vld [vmem:[%s219 + $0xad] sm:$0xff]
      %v291 = vld [vmem:[%s219 + $0xb5] sm:$0xff]
      %v292 = vld [vmem:[%s219 + $0xbd] sm:$0xff]
      %v293 = vld [vmem:[%s219 + $0xc5] sm:$0xff]
      %v294 = vld [vmem:[%s219 + $0xcd] sm:$0xff]
      %v295 = vld [vmem:[%s219 + $0xd5] sm:$0xff]
      %v296 = vld [vmem:[%s219 + $0xdd] sm:$0xff]
      %v297 = vld [vmem:[%s219 + $0xe5] sm:$0xff]
      %v298 = vld [vmem:[%s219 + $0xed] sm:$0xff]
      %v299 = vld [vmem:[%s219 + $0xf5] sm:$0xff]
      %v300 = vld [vmem:[%s219 + $0xfd] sm:$0xff]
      %v301 = vld [vmem:[%s219 + $0x105] sm:$0xff]
      %v302 = vld [vmem:[%s219 + $0x10d] sm:$0xff]
      %v303 = vld [vmem:[%s219 + $0x115] sm:$0xff]
      %v304 = vld [vmem:[%s219 + $0x11d] sm:$0xff]
      %v305 = vpack.c.bf16 %v270, %v269
      %v306 = vpack.c.bf16 %v272, %v271
      %v307 = vpack.c.bf16 %v274, %v273
      %v308 = vpack.c.bf16 %v276, %v275
      %v309 = vpack.c.bf16 %v278, %v277
      %v310 = vpack.c.bf16 %v280, %v279
      %v311 = vpack.c.bf16 %v282, %v281
      %v312 = vpack.c.bf16 %v284, %v283
      %v313 = vpack.c.bf16 %v286, %v285
      %v314 = vpack.c.bf16 %v288, %v287
      %v315 = vpack.c.bf16 %v290, %v289
      %v316 = vpack.c.bf16 %v292, %v291
      %v317 = vpack.c.bf16 %v294, %v293
      %v318 = vpack.c.bf16 %v296, %v295
      %v319 = vpack.c.bf16 %v298, %v297
      %v320 = vpack.c.bf16 %v300, %v299
      %v321 = vpack.c.bf16 %v302, %v301
      %v322 = vpack.c.bf16 %v304, %v303
      %v323 = vld [vmem:[#allocation2] sm:$0xff]
      %v324 = vld [vmem:[#allocation2 + $0x8] sm:$0xff]
      %v325 = vld [vmem:[#allocation2 + $0x10] sm:$0xff]
      %v326 = vld [vmem:[#allocation2 + $0x18] sm:$0xff]
      %v327 = vld [vmem:[#allocation2 + $0x20] sm:$0xff]
      %v328 = vld [vmem:[#allocation2 + $0x28] sm:$0xff]
      %v329 = vld [vmem:[#allocation2 + $0x30] sm:$0xff]
      %v330 = vld [vmem:[#allocation2 + $0x38] sm:$0xff]
      %v331 = vld [vmem:[#allocation2 + $0x40] sm:$0xff]
      %v332 = vld [vmem:[#allocation2 + $0x48] sm:$0xff]
      %v333 = vld [vmem:[#allocation2 + $0x50] sm:$0xff]
      %v334 = vld [vmem:[#allocation2 + $0x58] sm:$0xff]
      %v335 = vld [vmem:[#allocation2 + $0x60] sm:$0xff]
      %v336 = vld [vmem:[#allocation2 + $0x68] sm:$0xff]
      %v337 = vld [vmem:[#allocation2 + $0x70] sm:$0xff]
      %v338 = vld [vmem:[#allocation2 + $0x78] sm:$0xff]
      %v339 = vld [vmem:[#allocation2 + $0x80] sm:$0xff]
      %v340 = vld [vmem:[#allocation2 + $0x88] sm:$0xff]
      %v341 = vld [vmem:[#allocation2 + $0x90] sm:$0xff]
      %v342 = vld [vmem:[#allocation2 + $0x98] sm:$0xff]
      %v343 = vld [vmem:[#allocation2 + $0xa0] sm:$0xff]
      %v344 = vld [vmem:[#allocation2 + $0xa8] sm:$0xff]
      %v345 = vld [vmem:[#allocation2 + $0xb0] sm:$0xff]
      %v346 = vld [vmem:[#allocation2 + $0xb8] sm:$0xff]
      %v347 = vld [vmem:[#allocation2 + $0xc0] sm:$0xff]
      %v348 = vld [vmem:[#allocation2 + $0xc8] sm:$0xff]
      %v349 = vld [vmem:[#allocation2 + $0xd0] sm:$0xff]
      %v350 = vld [vmem:[#allocation2 + $0xd8] sm:$0xff]
      %v351 = vld [vmem:[#allocation2 + $0xe0] sm:$0xff]
      %v352 = vld [vmem:[#allocation2 + $0xe8] sm:$0xff]
      %v353 = vld [vmem:[#allocation2 + $0xf0] sm:$0xff]
      %v354 = vld [vmem:[#allocation2 + $0xf8] sm:$0xff]
      %v355 = vld [vmem:[#allocation2 + $0x100] sm:$0xff]
      %v356 = vld [vmem:[#allocation2 + $0x108] sm:$0xff]
      %v357 = vld [vmem:[#allocation2 + $0x110] sm:$0xff]
      %v358 = vld [vmem:[#allocation2 + $0x118] sm:$0xff]
      %v359 = vld [vmem:[%s1] sm:$0xf]
      %v360 = vld [vmem:[%s1 + $0x4] sm:$0xf]
      %v361 = vld [vmem:[%s1 + $0x8] sm:$0xf]
      %v362 = vld [vmem:[%s1 + $0xc] sm:$0xf]
      %v363 = vld [vmem:[%s1 + $0x10] sm:$0xf]
      %v364 = vld [vmem:[%s1 + $0x14] sm:$0xf]
      %v365 = vld [vmem:[%s1 + $0x18] sm:$0xf]
      %v366 = vld [vmem:[%s1 + $0x1c] sm:$0xf]
      %v367 = vld [vmem:[%s1 + $0x20] sm:$0xf]
      %v368 = vld [vmem:[%s1 + $0x24] sm:$0xf]
      %v369 = vld [vmem:[%s1 + $0x28] sm:$0xf]
      %v370 = vld [vmem:[%s1 + $0x2c] sm:$0xf]
      %v371 = vld [vmem:[%s1 + $0x30] sm:$0xf]
      %v372 = vld [vmem:[%s1 + $0x34] sm:$0xf]
      %v373 = vld [vmem:[%s1 + $0x38] sm:$0xf]
      %v374 = vld [vmem:[%s1 + $0x3c] sm:$0xf]
      %v391 = vunpack.c.l.b16 %v359
      %v392 = vunpack.c.l.b16 %v360
      %v393 = vunpack.c.l.b16 %v361
      %v394 = vunpack.c.l.b16 %v362
      %v395 = vunpack.c.l.b16 %v363
      %v396 = vunpack.c.l.b16 %v364
      %v397 = vunpack.c.l.b16 %v365
      %v398 = vunpack.c.l.b16 %v366
      %v399 = vunpack.c.l.b16 %v367
      %v400 = vunpack.c.l.b16 %v368
      %v401 = vunpack.c.l.b16 %v369
      %v402 = vunpack.c.l.b16 %v370
      %v403 = vunpack.c.l.b16 %v371
      %v404 = vunpack.c.l.b16 %v372
      %v405 = vunpack.c.l.b16 %v373
      %v406 = vunpack.c.l.b16 %v374
      %v407 = vpack.c.b16 %v392, %v391
      %v408 = vpack.c.b16 %v394, %v393
      %v409 = vpack.c.b16 %v396, %v395
      %v410 = vpack.c.b16 %v398, %v397
      %v411 = vpack.c.b16 %v400, %v399
      %v412 = vpack.c.b16 %v402, %v401
      %v413 = vpack.c.b16 %v404, %v403
      %v414 = vpack.c.b16 %v406, %v405
      %423 = vmatprep.subr.bf16.mxu0 0
      %424 = vmatpush1.bf16.msra.mxu0 %v414
      %425 = vmatprep.subr.bf16.mxu0 0
      %426 = vmatpush1.bf16.msra.mxu0 %v413
      %427 = vmatprep.subr.bf16.mxu0 0
      %428 = vmatpush1.bf16.msra.mxu0 %v412
      %429 = vmatprep.subr.bf16.mxu0 0
      %430 = vmatpush1.bf16.msra.mxu0 %v411
      %431 = vmatprep.subr.bf16.mxu0 0
      %432 = vmatpush1.bf16.msra.mxu0 %v410
      %433 = vmatprep.subr.bf16.mxu0 0
      %434 = vmatpush1.bf16.msra.mxu0 %v409
      %435 = vmatprep.subr.bf16.mxu0 0
      %436 = vmatpush1.bf16.msra.mxu0 %v408
      %437 = vmatprep.subr.bf16.mxu0 0
      %438 = vmatpush1.bf16.msra.mxu0 %v407
      %439 = vmatprep.subr.bf16.mxu0 0
      %440 = vmatpush2.bf16.msra.mxu0 0
      %441 = vmatprep.subr.bf16.mxu0 0
      %442 = vmatpush2.bf16.msra.mxu0 0
      %443 = vmatprep.subr.bf16.mxu0 0
      %444 = vmatpush2.bf16.msra.mxu0 0
      %445 = vmatprep.subr.bf16.mxu0 0
      %446 = vmatpush2.bf16.msra.mxu0 0
      %447 = vmatprep.subr.bf16.mxu0 0
      %448 = vmatpush2.bf16.msra.mxu0 0
      %449 = vmatprep.subr.bf16.mxu0 0
      %450 = vmatpush2.bf16.msra.mxu0 0
      %451 = vmatprep.subr.bf16.mxu0 0
      %452 = vmatpush2.bf16.msra.mxu0 0
      %453 = vmatprep.subr.bf16.mxu0 0
      %454 = vmatpush2.bf16.msra.mxu0 0
      %455 = vmatprep.mubr.bf16.mxu0 0
      %456 = vmatmul.mubr.bf16.gmra.mxu0 %v305
      %v457 = vpop.f32.mrf.mxu0
      %v458 = vadd.f32 0.0, %v457
      %v459 = vpop.f32.mrf.mxu0
      %v460 = vpop.f32.mrf.mxu0
      %v461 = vadd.f32 0.0, %v460
      %v462 = vpop.f32.mrf.mxu0
      %463 = vmatprep.mubr.bf16.mxu0 0
      %464 = vmatmul.mubr.bf16.gmra.mxu0 %v306
      %v465 = vpop.f32.mrf.mxu0
      %v466 = vadd.f32 0.0, %v465
      %v467 = vpop.f32.mrf.mxu0
      %v468 = vpop.f32.mrf.mxu0
      %v469 = vadd.f32 0.0, %v468
      %v470 = vpop.f32.mrf.mxu0
      %471 = vmatprep.mubr.bf16.mxu0 0
      %472 = vmatmul.mubr.bf16.gmra.mxu0 %v307
      %v473 = vpop.f32.mrf.mxu0
      %v474 = vadd.f32 0.0, %v473
      %v475 = vpop.f32.mrf.mxu0
      %v476 = vpop.f32.mrf.mxu0
      %v477 = vadd.f32 0.0, %v476
      %v478 = vpop.f32.mrf.mxu0
      %479 = vmatprep.mubr.bf16.mxu0 0
      %480 = vmatmul.mubr.bf16.gmra.mxu0 %v308
      %v481 = vpop.f32.mrf.mxu0
      %v482 = vadd.f32 0.0, %v481
      %v483 = vpop.f32.mrf.mxu0
      %v484 = vpop.f32.mrf.mxu0
      %v485 = vadd.f32 0.0, %v484
      %v486 = vpop.f32.mrf.mxu0
      %487 = vmatprep.mubr.bf16.mxu0 0
      %488 = vmatmul.mubr.bf16.gmra.mxu0 %v309
      %v489 = vpop.f32.mrf.mxu0
      %v490 = vadd.f32 0.0, %v489
      %v491 = vpop.f32.mrf.mxu0
      %v492 = vpop.f32.mrf.mxu0
      %v493 = vadd.f32 0.0, %v492
      %v494 = vpop.f32.mrf.mxu0
      %495 = vmatprep.mubr.bf16.mxu0 0
      %496 = vmatmul.mubr.bf16.gmra.mxu0 %v310
      %v497 = vpop.f32.mrf.mxu0
      %v498 = vadd.f32 0.0, %v497
      %v499 = vpop.f32.mrf.mxu0
      %v500 = vpop.f32.mrf.mxu0
      %v501 = vadd.f32 0.0, %v500
      %v502 = vpop.f32.mrf.mxu0
      %503 = vmatprep.mubr.bf16.mxu0 0
      %504 = vmatmul.mubr.bf16.gmra.mxu0 %v311
      %v505 = vpop.f32.mrf.mxu0
      %v506 = vadd.f32 0.0, %v505
      %v507 = vpop.f32.mrf.mxu0
      %v508 = vpop.f32.mrf.mxu0
      %v509 = vadd.f32 0.0, %v508
      %v510 = vpop.f32.mrf.mxu0
      %511 = vmatprep.mubr.bf16.mxu0 0
      %512 = vmatmul.mubr.bf16.gmra.mxu0 %v312
      %v513 = vpop.f32.mrf.mxu0
      %v514 = vadd.f32 0.0, %v513
      %v515 = vpop.f32.mrf.mxu0
      %v516 = vpop.f32.mrf.mxu0
      %v517 = vadd.f32 0.0, %v516
      %v518 = vpop.f32.mrf.mxu0
      %519 = vmatprep.mubr.bf16.mxu0 0
      %520 = vmatmul.mubr.bf16.gmra.mxu0 %v313
      %v521 = vpop.f32.mrf.mxu0
      %v522 = vadd.f32 0.0, %v521
      %v523 = vpop.f32.mrf.mxu0
      %v524 = vpop.f32.mrf.mxu0
      %v525 = vadd.f32 0.0, %v524
      %v526 = vpop.f32.mrf.mxu0
      %527 = vmatprep.mubr.bf16.mxu0 0
      %528 = vmatmul.mubr.bf16.gmra.mxu0 %v314
      %v529 = vpop.f32.mrf.mxu0
      %v530 = vadd.f32 0.0, %v529
      %v531 = vpop.f32.mrf.mxu0
      %v532 = vpop.f32.mrf.mxu0
      %v533 = vadd.f32 0.0, %v532
      %v534 = vpop.f32.mrf.mxu0
      %535 = vmatprep.mubr.bf16.mxu0 0
      %536 = vmatmul.mubr.bf16.gmra.mxu0 %v315
      %v537 = vpop.f32.mrf.mxu0
      %v538 = vadd.f32 0.0, %v537
      %v539 = vpop.f32.mrf.mxu0
      %v540 = vpop.f32.mrf.mxu0
      %v541 = vadd.f32 0.0, %v540
      %v542 = vpop.f32.mrf.mxu0
      %543 = vmatprep.mubr.bf16.mxu0 0
      %544 = vmatmul.mubr.bf16.gmra.mxu0 %v316
      %v545 = vpop.f32.mrf.mxu0
      %v546 = vadd.f32 0.0, %v545
      %v547 = vpop.f32.mrf.mxu0
      %v548 = vpop.f32.mrf.mxu0
      %v549 = vadd.f32 0.0, %v548
      %v550 = vpop.f32.mrf.mxu0
      %551 = vmatprep.mubr.bf16.mxu0 0
      %552 = vmatmul.mubr.bf16.gmra.mxu0 %v317
      %v553 = vpop.f32.mrf.mxu0
      %v554 = vadd.f32 0.0, %v553
      %v555 = vpop.f32.mrf.mxu0
      %v556 = vpop.f32.mrf.mxu0
      %v557 = vadd.f32 0.0, %v556
      %v558 = vpop.f32.mrf.mxu0
      %559 = vmatprep.mubr.bf16.mxu0 0
      %560 = vmatmul.mubr.bf16.gmra.mxu0 %v318
      %v561 = vpop.f32.mrf.mxu0
      %v562 = vadd.f32 0.0, %v561
      %v563 = vpop.f32.mrf.mxu0
      %v564 = vpop.f32.mrf.mxu0
      %v565 = vadd.f32 0.0, %v564
      %v566 = vpop.f32.mrf.mxu0
      %567 = vmatprep.mubr.bf16.mxu0 0
      %568 = vmatmul.mubr.bf16.gmra.mxu0 %v319
      %v569 = vpop.f32.mrf.mxu0
      %v570 = vadd.f32 0.0, %v569
      %v571 = vpop.f32.mrf.mxu0
      %v572 = vpop.f32.mrf.mxu0
      %v573 = vadd.f32 0.0, %v572
      %v574 = vpop.f32.mrf.mxu0
      %575 = vmatprep.mubr.bf16.mxu0 0
      %576 = vmatmul.mubr.bf16.gmra.mxu0 %v320
      %v577 = vpop.f32.mrf.mxu0
      %v578 = vadd.f32 0.0, %v577
      %v579 = vpop.f32.mrf.mxu0
      %v580 = vpop.f32.mrf.mxu0
      %v581 = vadd.f32 0.0, %v580
      %v582 = vpop.f32.mrf.mxu0
      %583 = vmatprep.mubr.bf16.mxu0 0
      %584 = vmatmul.mubr.bf16.gmra.mxu0 %v321
      %v585 = vpop.f32.mrf.mxu0
      %v586 = vadd.f32 0.0, %v585
      %v587 = vpop.f32.mrf.mxu0
      %v588 = vpop.f32.mrf.mxu0
      %v589 = vadd.f32 0.0, %v588
      %v590 = vpop.f32.mrf.mxu0
      %591 = vmatprep.mubr.bf16.mxu0 0
      %592 = vmatmul.mubr.bf16.gmra.mxu0 %v322
      %v593 = vpop.f32.mrf.mxu0
      %v594 = vadd.f32 0.0, %v593
      %v595 = vpop.f32.mrf.mxu0
      %v596 = vpop.f32.mrf.mxu0
      %v597 = vadd.f32 0.0, %v596
      %v598 = vpop.f32.mrf.mxu0
      %599 = vdwg.mxu0
      %v600 = vadd.f32 %v323, %v458
      %v601 = vadd.f32 %v324, %v461
      %v602 = vadd.f32 %v325, %v466
      %v603 = vadd.f32 %v326, %v469
      %v604 = vadd.f32 %v327, %v474
      %v605 = vadd.f32 %v328, %v477
      %v606 = vadd.f32 %v329, %v482
      %v607 = vadd.f32 %v330, %v485
      %v608 = vadd.f32 %v331, %v490
      %v609 = vadd.f32 %v332, %v493
      %v610 = vadd.f32 %v333, %v498
      %v611 = vadd.f32 %v334, %v501
      %v612 = vadd.f32 %v335, %v506
      %v613 = vadd.f32 %v336, %v509
      %v614 = vadd.f32 %v337, %v514
      %v615 = vadd.f32 %v338, %v517
      %v616 = vadd.f32 %v339, %v522
      %v617 = vadd.f32 %v340, %v525
      %v618 = vadd.f32 %v341, %v530
      %v619 = vadd.f32 %v342, %v533
      %v620 = vadd.f32 %v343, %v538
      %v621 = vadd.f32 %v344, %v541
      %v622 = vadd.f32 %v345, %v546
      %v623 = vadd.f32 %v346, %v549
      %v624 = vadd.f32 %v347, %v554
      %v625 = vadd.f32 %v348, %v557
      %v626 = vadd.f32 %v349, %v562
      %v627 = vadd.f32 %v350, %v565
      %v628 = vadd.f32 %v351, %v570
      %v629 = vadd.f32 %v352, %v573
      %v630 = vadd.f32 %v353, %v578
      %v631 = vadd.f32 %v354, %v581
      %v632 = vadd.f32 %v355, %v586
      %v633 = vadd.f32 %v356, %v589
      %v634 = vadd.f32 %v357, %v594
      %v635 = vadd.f32 %v358, %v597
      %636 = vst [vmem:[#allocation2] sm:$0xff] %v600
      %637 = vst [vmem:[#allocation2 + $0x8] sm:$0xff] %v601
      %638 = vst [vmem:[#allocation2 + $0x10] sm:$0xff] %v602
      %639 = vst [vmem:[#allocation2 + $0x18] sm:$0xff] %v603
      %640 = vst [vmem:[#allocation2 + $0x20] sm:$0xff] %v604
      %641 = vst [vmem:[#allocation2 + $0x28] sm:$0xff] %v605
      %642 = vst [vmem:[#allocation2 + $0x30] sm:$0xff] %v606
      %643 = vst [vmem:[#allocation2 + $0x38] sm:$0xff] %v607
      %644 = vst [vmem:[#allocation2 + $0x40] sm:$0xff] %v608
      %645 = vst [vmem:[#allocation2 + $0x48] sm:$0xff] %v609
      %646 = vst [vmem:[#allocation2 + $0x50] sm:$0xff] %v610
      %647 = vst [vmem:[#allocation2 + $0x58] sm:$0xff] %v611
      %648 = vst [vmem:[#allocation2 + $0x60] sm:$0xff] %v612
      %649 = vst [vmem:[#allocation2 + $0x68] sm:$0xff] %v613
      %650 = vst [vmem:[#allocation2 + $0x70] sm:$0xff] %v614
      %651 = vst [vmem:[#allocation2 + $0x78] sm:$0xff] %v615
      %652 = vst [vmem:[#allocation2 + $0x80] sm:$0xff] %v616
      %653 = vst [vmem:[#allocation2 + $0x88] sm:$0xff] %v617
      %654 = vst [vmem:[#allocation2 + $0x90] sm:$0xff] %v618
      %655 = vst [vmem:[#allocation2 + $0x98] sm:$0xff] %v619
      %656 = vst [vmem:[#allocation2 + $0xa0] sm:$0xff] %v620
      %657 = vst [vmem:[#allocation2 + $0xa8] sm:$0xff] %v621
      %658 = vst [vmem:[#allocation2 + $0xb0] sm:$0xff] %v622
      %659 = vst [vmem:[#allocation2 + $0xb8] sm:$0xff] %v623
      %660 = vst [vmem:[#allocation2 + $0xc0] sm:$0xff] %v624
      %661 = vst [vmem:[#allocation2 + $0xc8] sm:$0xff] %v625
      %662 = vst [vmem:[#allocation2 + $0xd0] sm:$0xff] %v626
      %663 = vst [vmem:[#allocation2 + $0xd8] sm:$0xff] %v627
      %664 = vst [vmem:[#allocation2 + $0xe0] sm:$0xff] %v628
      %665 = vst [vmem:[#allocation2 + $0xe8] sm:$0xff] %v629
      %666 = vst [vmem:[#allocation2 + $0xf0] sm:$0xff] %v630
      %667 = vst [vmem:[#allocation2 + $0xf8] sm:$0xff] %v631
      %668 = vst [vmem:[#allocation2 + $0x100] sm:$0xff] %v632
      %669 = vst [vmem:[#allocation2 + $0x108] sm:$0xff] %v633
      %670 = vst [vmem:[#allocation2 + $0x110] sm:$0xff] %v634
      %671 = vst [vmem:[#allocation2 + $0x118] sm:$0xff] %v635
      %v672 = vld [vmem:[%s219 + $0x6] sm:$0xff]
      %v673 = vld [vmem:[%s219 + $0xe] sm:$0xff]
      %v674 = vld [vmem:[%s219 + $0x16] sm:$0xff]
      %v675 = vld [vmem:[%s219 + $0x1e] sm:$0xff]
      %v676 = vld [vmem:[%s219 + $0x26] sm:$0xff]
      %v677 = vld [vmem:[%s219 + $0x2e] sm:$0xff]
      %v678 = vld [vmem:[%s219 + $0x36] sm:$0xff]
      %v679 = vld [vmem:[%s219 + $0x3e] sm:$0xff]
      %v680 = vld [vmem:[%s219 + $0x46] sm:$0xff]
      %v681 = vld [vmem:[%s219 + $0x4e] sm:$0xff]
      %v682 = vld [vmem:[%s219 + $0x56] sm:$0xff]
      %v683 = vld [vmem:[%s219 + $0x5e] sm:$0xff]
      %v684 = vld [vmem:[%s219 + $0x66] sm:$0xff]
      %v685 = vld [vmem:[%s219 + $0x6e] sm:$0xff]
      %v686 = vld [vmem:[%s219 + $0x76] sm:$0xff]
      %v687 = vld [vmem:[%s219 + $0x7e] sm:$0xff]
      %v688 = vld [vmem:[%s219 + $0x86] sm:$0xff]
      %v689 = vld [vmem:[%s219 + $0x8e] sm:$0xff]
      %v690 = vld [vmem:[%s219 + $0x96] sm:$0xff]
      %v691 = vld [vmem:[%s219 + $0x9e] sm:$0xff]
      %v692 = vld [vmem:[%s219 + $0xa6] sm:$0xff]
      %v693 = vld [vmem:[%s219 + $0xae] sm:$0xff]
      %v694 = vld [vmem:[%s219 + $0xb6] sm:$0xff]
      %v695 = vld [vmem:[%s219 + $0xbe] sm:$0xff]
      %v696 = vld [vmem:[%s219 + $0xc6] sm:$0xff]
      %v697 = vld [vmem:[%s219 + $0xce] sm:$0xff]
      %v698 = vld [vmem:[%s219 + $0xd6] sm:$0xff]
      %v699 = vld [vmem:[%s219 + $0xde] sm:$0xff]
      %v700 = vld [vmem:[%s219 + $0xe6] sm:$0xff]
      %v701 = vld [vmem:[%s219 + $0xee] sm:$0xff]
      %v702 = vld [vmem:[%s219 + $0xf6] sm:$0xff]
      %v703 = vld [vmem:[%s219 + $0xfe] sm:$0xff]
      %v704 = vld [vmem:[%s219 + $0x106] sm:$0xff]
      %v705 = vld [vmem:[%s219 + $0x10e] sm:$0xff]
      %v706 = vld [vmem:[%s219 + $0x116] sm:$0xff]
      %v707 = vld [vmem:[%s219 + $0x11e] sm:$0xff]
      %v708 = vpack.c.bf16 %v673, %v672
      %v709 = vpack.c.bf16 %v675, %v674
      %v710 = vpack.c.bf16 %v677, %v676
      %v711 = vpack.c.bf16 %v679, %v678
      %v712 = vpack.c.bf16 %v681, %v680
      %v713 = vpack.c.bf16 %v683, %v682
      %v714 = vpack.c.bf16 %v685, %v684
      %v715 = vpack.c.bf16 %v687, %v686
      %v716 = vpack.c.bf16 %v689, %v688
      %v717 = vpack.c.bf16 %v691, %v690
      %v718 = vpack.c.bf16 %v693, %v692
      %v719 = vpack.c.bf16 %v695, %v694
      %v720 = vpack.c.bf16 %v697, %v696
      %v721 = vpack.c.bf16 %v699, %v698
      %v722 = vpack.c.bf16 %v701, %v700
      %v723 = vpack.c.bf16 %v703, %v702
      %v724 = vpack.c.bf16 %v705, %v704
      %v725 = vpack.c.bf16 %v707, %v706
      %v726 = vld [vmem:[#allocation2] sm:$0xff]
      %v727 = vld [vmem:[#allocation2 + $0x8] sm:$0xff]
      %v728 = vld [vmem:[#allocation2 + $0x10] sm:$0xff]
      %v729 = vld [vmem:[#allocation2 + $0x18] sm:$0xff]
      %v730 = vld [vmem:[#allocation2 + $0x20] sm:$0xff]
      %v731 = vld [vmem:[#allocation2 + $0x28] sm:$0xff]
      %v732 = vld [vmem:[#allocation2 + $0x30] sm:$0xff]
      %v733 = vld [vmem:[#allocation2 + $0x38] sm:$0xff]
      %v734 = vld [vmem:[#allocation2 + $0x40] sm:$0xff]
      %v735 = vld [vmem:[#allocation2 + $0x48] sm:$0xff]
      %v736 = vld [vmem:[#allocation2 + $0x50] sm:$0xff]
      %v737 = vld [vmem:[#allocation2 + $0x58] sm:$0xff]
      %v738 = vld [vmem:[#allocation2 + $0x60] sm:$0xff]
      %v739 = vld [vmem:[#allocation2 + $0x68] sm:$0xff]
      %v740 = vld [vmem:[#allocation2 + $0x70] sm:$0xff]
      %v741 = vld [vmem:[#allocation2 + $0x78] sm:$0xff]
      %v742 = vld [vmem:[#allocation2 + $0x80] sm:$0xff]
      %v743 = vld [vmem:[#allocation2 + $0x88] sm:$0xff]
      %v744 = vld [vmem:[#allocation2 + $0x90] sm:$0xff]
      %v745 = vld [vmem:[#allocation2 + $0x98] sm:$0xff]
      %v746 = vld [vmem:[#allocation2 + $0xa0] sm:$0xff]
      %v747 = vld [vmem:[#allocation2 + $0xa8] sm:$0xff]
      %v748 = vld [vmem:[#allocation2 + $0xb0] sm:$0xff]
      %v749 = vld [vmem:[#allocation2 + $0xb8] sm:$0xff]
      %v750 = vld [vmem:[#allocation2 + $0xc0] sm:$0xff]
      %v751 = vld [vmem:[#allocation2 + $0xc8] sm:$0xff]
      %v752 = vld [vmem:[#allocation2 + $0xd0] sm:$0xff]
      %v753 = vld [vmem:[#allocation2 + $0xd8] sm:$0xff]
      %v754 = vld [vmem:[#allocation2 + $0xe0] sm:$0xff]
      %v755 = vld [vmem:[#allocation2 + $0xe8] sm:$0xff]
      %v756 = vld [vmem:[#allocation2 + $0xf0] sm:$0xff]
      %v757 = vld [vmem:[#allocation2 + $0xf8] sm:$0xff]
      %v758 = vld [vmem:[#allocation2 + $0x100] sm:$0xff]
      %v759 = vld [vmem:[#allocation2 + $0x108] sm:$0xff]
      %v760 = vld [vmem:[#allocation2 + $0x110] sm:$0xff]
      %v761 = vld [vmem:[#allocation2 + $0x118] sm:$0xff]
      %s762 = scalar_lea.vmem %s1, 64
      %v763 = vld [vmem:[%s762] sm:$0xf]
      %v764 = vld [vmem:[%s762 + $0x4] sm:$0xf]
      %v765 = vld [vmem:[%s762 + $0x8] sm:$0xf]
      %v766 = vld [vmem:[%s762 + $0xc] sm:$0xf]
      %v767 = vld [vmem:[%s762 + $0x10] sm:$0xf]
      %v768 = vld [vmem:[%s762 + $0x14] sm:$0xf]
      %v769 = vld [vmem:[%s762 + $0x18] sm:$0xf]
      %v770 = vld [vmem:[%s762 + $0x1c] sm:$0xf]
      %v771 = vld [vmem:[%s762 + $0x20] sm:$0xf]
      %v772 = vld [vmem:[%s762 + $0x24] sm:$0xf]
      %v773 = vld [vmem:[%s762 + $0x28] sm:$0xf]
      %v774 = vld [vmem:[%s762 + $0x2c] sm:$0xf]
      %v775 = vld [vmem:[%s762 + $0x30] sm:$0xf]
      %v776 = vld [vmem:[%s762 + $0x34] sm:$0xf]
      %v777 = vld [vmem:[%s762 + $0x38] sm:$0xf]
      %v778 = vld [vmem:[%s762 + $0x3c] sm:$0xf]
      %v795 = vunpack.c.l.b16 %v763
      %v796 = vunpack.c.l.b16 %v764
      %v797 = vunpack.c.l.b16 %v765
      %v798 = vunpack.c.l.b16 %v766
      %v799 = vunpack.c.l.b16 %v767
      %v800 = vunpack.c.l.b16 %v768
      %v801 = vunpack.c.l.b16 %v769
      %v802 = vunpack.c.l.b16 %v770
      %v803 = vunpack.c.l.b16 %v771
      %v804 = vunpack.c.l.b16 %v772
      %v805 = vunpack.c.l.b16 %v773
      %v806 = vunpack.c.l.b16 %v774
      %v807 = vunpack.c.l.b16 %v775
      %v808 = vunpack.c.l.b16 %v776
      %v809 = vunpack.c.l.b16 %v777
      %v810 = vunpack.c.l.b16 %v778
      %v811 = vpack.c.b16 %v796, %v795
      %v812 = vpack.c.b16 %v798, %v797
      %v813 = vpack.c.b16 %v800, %v799
      %v814 = vpack.c.b16 %v802, %v801
      %v815 = vpack.c.b16 %v804, %v803
      %v816 = vpack.c.b16 %v806, %v805
      %v817 = vpack.c.b16 %v808, %v807
      %v818 = vpack.c.b16 %v810, %v809
      %827 = vmatprep.subr.bf16.mxu0 0
      %828 = vmatpush1.bf16.msra.mxu0 %v818
      %829 = vmatprep.subr.bf16.mxu0 0
      %830 = vmatpush1.bf16.msra.mxu0 %v817
      %831 = vmatprep.subr.bf16.mxu0 0
      %832 = vmatpush1.bf16.msra.mxu0 %v816
      %833 = vmatprep.subr.bf16.mxu0 0
      %834 = vmatpush1.bf16.msra.mxu0 %v815
      %835 = vmatprep.subr.bf16.mxu0 0
      %836 = vmatpush1.bf16.msra.mxu0 %v814
      %837 = vmatprep.subr.bf16.mxu0 0
      %838 = vmatpush1.bf16.msra.mxu0 %v813
      %839 = vmatprep.subr.bf16.mxu0 0
      %840 = vmatpush1.bf16.msra.mxu0 %v812
      %841 = vmatprep.subr.bf16.mxu0 0
      %842 = vmatpush1.bf16.msra.mxu0 %v811
      %843 = vmatprep.subr.bf16.mxu0 0
      %844 = vmatpush2.bf16.msra.mxu0 0
      %845 = vmatprep.subr.bf16.mxu0 0
      %846 = vmatpush2.bf16.msra.mxu0 0
      %847 = vmatprep.subr.bf16.mxu0 0
      %848 = vmatpush2.bf16.msra.mxu0 0
      %849 = vmatprep.subr.bf16.mxu0 0
      %850 = vmatpush2.bf16.msra.mxu0 0
      %851 = vmatprep.subr.bf16.mxu0 0
      %852 = vmatpush2.bf16.msra.mxu0 0
      %853 = vmatprep.subr.bf16.mxu0 0
      %854 = vmatpush2.bf16.msra.mxu0 0
      %855 = vmatprep.subr.bf16.mxu0 0
      %856 = vmatpush2.bf16.msra.mxu0 0
      %857 = vmatprep.subr.bf16.mxu0 0
      %858 = vmatpush2.bf16.msra.mxu0 0
      %859 = vmatprep.mubr.bf16.mxu0 0
      %860 = vmatmul.mubr.bf16.gmra.mxu0 %v708
      %v861 = vpop.f32.mrf.mxu0
      %v862 = vadd.f32 0.0, %v861
      %v863 = vpop.f32.mrf.mxu0
      %v864 = vpop.f32.mrf.mxu0
      %v865 = vadd.f32 0.0, %v864
      %v866 = vpop.f32.mrf.mxu0
      %867 = vmatprep.mubr.bf16.mxu0 0
      %868 = vmatmul.mubr.bf16.gmra.mxu0 %v709
      %v869 = vpop.f32.mrf.mxu0
      %v870 = vadd.f32 0.0, %v869
      %v871 = vpop.f32.mrf.mxu0
      %v872 = vpop.f32.mrf.mxu0
      %v873 = vadd.f32 0.0, %v872
      %v874 = vpop.f32.mrf.mxu0
      %875 = vmatprep.mubr.bf16.mxu0 0
      %876 = vmatmul.mubr.bf16.gmra.mxu0 %v710
      %v877 = vpop.f32.mrf.mxu0
      %v878 = vadd.f32 0.0, %v877
      %v879 = vpop.f32.mrf.mxu0
      %v880 = vpop.f32.mrf.mxu0
      %v881 = vadd.f32 0.0, %v880
      %v882 = vpop.f32.mrf.mxu0
      %883 = vmatprep.mubr.bf16.mxu0 0
      %884 = vmatmul.mubr.bf16.gmra.mxu0 %v711
      %v885 = vpop.f32.mrf.mxu0
      %v886 = vadd.f32 0.0, %v885
      %v887 = vpop.f32.mrf.mxu0
      %v888 = vpop.f32.mrf.mxu0
      %v889 = vadd.f32 0.0, %v888
      %v890 = vpop.f32.mrf.mxu0
      %891 = vmatprep.mubr.bf16.mxu0 0
      %892 = vmatmul.mubr.bf16.gmra.mxu0 %v712
      %v893 = vpop.f32.mrf.mxu0
      %v894 = vadd.f32 0.0, %v893
      %v895 = vpop.f32.mrf.mxu0
      %v896 = vpop.f32.mrf.mxu0
      %v897 = vadd.f32 0.0, %v896
      %v898 = vpop.f32.mrf.mxu0
      %899 = vmatprep.mubr.bf16.mxu0 0
      %900 = vmatmul.mubr.bf16.gmra.mxu0 %v713
      %v901 = vpop.f32.mrf.mxu0
      %v902 = vadd.f32 0.0, %v901
      %v903 = vpop.f32.mrf.mxu0
      %v904 = vpop.f32.mrf.mxu0
      %v905 = vadd.f32 0.0, %v904
      %v906 = vpop.f32.mrf.mxu0
      %907 = vmatprep.mubr.bf16.mxu0 0
      %908 = vmatmul.mubr.bf16.gmra.mxu0 %v714
      %v909 = vpop.f32.mrf.mxu0
      %v910 = vadd.f32 0.0, %v909
      %v911 = vpop.f32.mrf.mxu0
      %v912 = vpop.f32.mrf.mxu0
      %v913 = vadd.f32 0.0, %v912
      %v914 = vpop.f32.mrf.mxu0
      %915 = vmatprep.mubr.bf16.mxu0 0
      %916 = vmatmul.mubr.bf16.gmra.mxu0 %v715
      %v917 = vpop.f32.mrf.mxu0
      %v918 = vadd.f32 0.0, %v917
      %v919 = vpop.f32.mrf.mxu0
      %v920 = vpop.f32.mrf.mxu0
      %v921 = vadd.f32 0.0, %v920
      %v922 = vpop.f32.mrf.mxu0
      %923 = vmatprep.mubr.bf16.mxu0 0
      %924 = vmatmul.mubr.bf16.gmra.mxu0 %v716
      %v925 = vpop.f32.mrf.mxu0
      %v926 = vadd.f32 0.0, %v925
      %v927 = vpop.f32.mrf.mxu0
      %v928 = vpop.f32.mrf.mxu0
      %v929 = vadd.f32 0.0, %v928
      %v930 = vpop.f32.mrf.mxu0
      %931 = vmatprep.mubr.bf16.mxu0 0
      %932 = vmatmul.mubr.bf16.gmra.mxu0 %v717
      %v933 = vpop.f32.mrf.mxu0
      %v934 = vadd.f32 0.0, %v933
      %v935 = vpop.f32.mrf.mxu0
      %v936 = vpop.f32.mrf.mxu0
      %v937 = vadd.f32 0.0, %v936
      %v938 = vpop.f32.mrf.mxu0
      %939 = vmatprep.mubr.bf16.mxu0 0
      %940 = vmatmul.mubr.bf16.gmra.mxu0 %v718
      %v941 = vpop.f32.mrf.mxu0
      %v942 = vadd.f32 0.0, %v941
      %v943 = vpop.f32.mrf.mxu0
      %v944 = vpop.f32.mrf.mxu0
      %v945 = vadd.f32 0.0, %v944
      %v946 = vpop.f32.mrf.mxu0
      %947 = vmatprep.mubr.bf16.mxu0 0
      %948 = vmatmul.mubr.bf16.gmra.mxu0 %v719
      %v949 = vpop.f32.mrf.mxu0
      %v950 = vadd.f32 0.0, %v949
      %v951 = vpop.f32.mrf.mxu0
      %v952 = vpop.f32.mrf.mxu0
      %v953 = vadd.f32 0.0, %v952
      %v954 = vpop.f32.mrf.mxu0
      %955 = vmatprep.mubr.bf16.mxu0 0
      %956 = vmatmul.mubr.bf16.gmra.mxu0 %v720
      %v957 = vpop.f32.mrf.mxu0
      %v958 = vadd.f32 0.0, %v957
      %v959 = vpop.f32.mrf.mxu0
      %v960 = vpop.f32.mrf.mxu0
      %v961 = vadd.f32 0.0, %v960
      %v962 = vpop.f32.mrf.mxu0
      %963 = vmatprep.mubr.bf16.mxu0 0
      %964 = vmatmul.mubr.bf16.gmra.mxu0 %v721
      %v965 = vpop.f32.mrf.mxu0
      %v966 = vadd.f32 0.0, %v965
      %v967 = vpop.f32.mrf.mxu0
      %v968 = vpop.f32.mrf.mxu0
      %v969 = vadd.f32 0.0, %v968
      %v970 = vpop.f32.mrf.mxu0
      %971 = vmatprep.mubr.bf16.mxu0 0
      %972 = vmatmul.mubr.bf16.gmra.mxu0 %v722
      %v973 = vpop.f32.mrf.mxu0
      %v974 = vadd.f32 0.0, %v973
      %v975 = vpop.f32.mrf.mxu0
      %v976 = vpop.f32.mrf.mxu0
      %v977 = vadd.f32 0.0, %v976
      %v978 = vpop.f32.mrf.mxu0
      %979 = vmatprep.mubr.bf16.mxu0 0
      %980 = vmatmul.mubr.bf16.gmra.mxu0 %v723
      %v981 = vpop.f32.mrf.mxu0
      %v982 = vadd.f32 0.0, %v981
      %v983 = vpop.f32.mrf.mxu0
      %v984 = vpop.f32.mrf.mxu0
      %v985 = vadd.f32 0.0, %v984
      %v986 = vpop.f32.mrf.mxu0
      %987 = vmatprep.mubr.bf16.mxu0 0
      %988 = vmatmul.mubr.bf16.gmra.mxu0 %v724
      %v989 = vpop.f32.mrf.mxu0
      %v990 = vadd.f32 0.0, %v989
      %v991 = vpop.f32.mrf.mxu0
      %v992 = vpop.f32.mrf.mxu0
      %v993 = vadd.f32 0.0, %v992
      %v994 = vpop.f32.mrf.mxu0
      %995 = vmatprep.mubr.bf16.mxu0 0
      %996 = vmatmul.mubr.bf16.gmra.mxu0 %v725
      %v997 = vpop.f32.mrf.mxu0
      %v998 = vadd.f32 0.0, %v997
      %v999 = vpop.f32.mrf.mxu0
      %v1000 = vpop.f32.mrf.mxu0
      %v1001 = vadd.f32 0.0, %v1000
      %v1002 = vpop.f32.mrf.mxu0
      %1003 = vdwg.mxu0
      %v1004 = vadd.f32 %v726, %v862
      %v1005 = vadd.f32 %v727, %v865
      %v1006 = vadd.f32 %v728, %v870
      %v1007 = vadd.f32 %v729, %v873
      %v1008 = vadd.f32 %v730, %v878
      %v1009 = vadd.f32 %v731, %v881
      %v1010 = vadd.f32 %v732, %v886
      %v1011 = vadd.f32 %v733, %v889
      %v1012 = vadd.f32 %v734, %v894
      %v1013 = vadd.f32 %v735, %v897
      %v1014 = vadd.f32 %v736, %v902
      %v1015 = vadd.f32 %v737, %v905
      %v1016 = vadd.f32 %v738, %v910
      %v1017 = vadd.f32 %v739, %v913
      %v1018 = vadd.f32 %v740, %v918
      %v1019 = vadd.f32 %v741, %v921
      %v1020 = vadd.f32 %v742, %v926
      %v1021 = vadd.f32 %v743, %v929
      %v1022 = vadd.f32 %v744, %v934
      %v1023 = vadd.f32 %v745, %v937
      %v1024 = vadd.f32 %v746, %v942
      %v1025 = vadd.f32 %v747, %v945
      %v1026 = vadd.f32 %v748, %v950
      %v1027 = vadd.f32 %v749, %v953
      %v1028 = vadd.f32 %v750, %v958
      %v1029 = vadd.f32 %v751, %v961
      %v1030 = vadd.f32 %v752, %v966
      %v1031 = vadd.f32 %v753, %v969
      %v1032 = vadd.f32 %v754, %v974
      %v1033 = vadd.f32 %v755, %v977
      %v1034 = vadd.f32 %v756, %v982
      %v1035 = vadd.f32 %v757, %v985
      %v1036 = vadd.f32 %v758, %v990
      %v1037 = vadd.f32 %v759, %v993
      %v1038 = vadd.f32 %v760, %v998
      %v1039 = vadd.f32 %v761, %v1001
      %1040 = vst [vmem:[#allocation2] sm:$0xff] %v1004
      %1041 = vst [vmem:[#allocation2 + $0x8] sm:$0xff] %v1005
      %1042 = vst [vmem:[#allocation2 + $0x10] sm:$0xff] %v1006
      %1043 = vst [vmem:[#allocation2 + $0x18] sm:$0xff] %v1007
      %1044 = vst [vmem:[#allocation2 + $0x20] sm:$0xff] %v1008
      %1045 = vst [vmem:[#allocation2 + $0x28] sm:$0xff] %v1009
      %1046 = vst [vmem:[#allocation2 + $0x30] sm:$0xff] %v1010
      %1047 = vst [vmem:[#allocation2 + $0x38] sm:$0xff] %v1011
      %1048 = vst [vmem:[#allocation2 + $0x40] sm:$0xff] %v1012
      %1049 = vst [vmem:[#allocation2 + $0x48] sm:$0xff] %v1013
      %1050 = vst [vmem:[#allocation2 + $0x50] sm:$0xff] %v1014
      %1051 = vst [vmem:[#allocation2 + $0x58] sm:$0xff] %v1015
      %1052 = vst [vmem:[#allocation2 + $0x60] sm:$0xff] %v1016
      %1053 = vst [vmem:[#allocation2 + $0x68] sm:$0xff] %v1017
      %1054 = vst [vmem:[#allocation2 + $0x70] sm:$0xff] %v1018
      %1055 = vst [vmem:[#allocation2 + $0x78] sm:$0xff] %v1019
      %1056 = vst [vmem:[#allocation2 + $0x80] sm:$0xff] %v1020
      %1057 = vst [vmem:[#allocation2 + $0x88] sm:$0xff] %v1021
      %1058 = vst [vmem:[#allocation2 + $0x90] sm:$0xff] %v1022
      %1059 = vst [vmem:[#allocation2 + $0x98] sm:$0xff] %v1023
      %1060 = vst [vmem:[#allocation2 + $0xa0] sm:$0xff] %v1024
      %1061 = vst [vmem:[#allocation2 + $0xa8] sm:$0xff] %v1025
      %1062 = vst [vmem:[#allocation2 + $0xb0] sm:$0xff] %v1026
      %1063 = vst [vmem:[#allocation2 + $0xb8] sm:$0xff] %v1027
      %1064 = vst [vmem:[#allocation2 + $0xc0] sm:$0xff] %v1028
      %1065 = vst [vmem:[#allocation2 + $0xc8] sm:$0xff] %v1029
      %1066 = vst [vmem:[#allocation2 + $0xd0] sm:$0xff] %v1030
      %1067 = vst [vmem:[#allocation2 + $0xd8] sm:$0xff] %v1031
      %1068 = vst [vmem:[#allocation2 + $0xe0] sm:$0xff] %v1032
      %1069 = vst [vmem:[#allocation2 + $0xe8] sm:$0xff] %v1033
      %1070 = vst [vmem:[#allocation2 + $0xf0] sm:$0xff] %v1034
      %1071 = vst [vmem:[#allocation2 + $0xf8] sm:$0xff] %v1035
      %1072 = vst [vmem:[#allocation2 + $0x100] sm:$0xff] %v1036
      %1073 = vst [vmem:[#allocation2 + $0x108] sm:$0xff] %v1037
      %1074 = vst [vmem:[#allocation2 + $0x110] sm:$0xff] %v1038
      %1075 = vst [vmem:[#allocation2 + $0x118] sm:$0xff] %v1039
      %v1076 = vld [vmem:[%s219 + $0x7] sm:$0xff]
      %v1077 = vld [vmem:[%s219 + $0xf] sm:$0xff]
      %v1078 = vld [vmem:[%s219 + $0x17] sm:$0xff]
      %v1079 = vld [vmem:[%s219 + $0x1f] sm:$0xff]
      %v1080 = vld [vmem:[%s219 + $0x27] sm:$0xff]
      %v1081 = vld [vmem:[%s219 + $0x2f] sm:$0xff]
      %v1082 = vld [vmem:[%s219 + $0x37] sm:$0xff]
      %v1083 = vld [vmem:[%s219 + $0x3f] sm:$0xff]
      %v1084 = vld [vmem:[%s219 + $0x47] sm:$0xff]
      %v1085 = vld [vmem:[%s219 + $0x4f] sm:$0xff]
      %v1086 = vld [vmem:[%s219 + $0x57] sm:$0xff]
      %v1087 = vld [vmem:[%s219 + $0x5f] sm:$0xff]
      %v1088 = vld [vmem:[%s219 + $0x67] sm:$0xff]
      %v1089 = vld [vmem:[%s219 + $0x6f] sm:$0xff]
      %v1090 = vld [vmem:[%s219 + $0x77] sm:$0xff]
      %v1091 = vld [vmem:[%s219 + $0x7f] sm:$0xff]
      %v1092 = vld [vmem:[%s219 + $0x87] sm:$0xff]
      %v1093 = vld [vmem:[%s219 + $0x8f] sm:$0xff]
      %v1094 = vld [vmem:[%s219 + $0x97] sm:$0xff]
      %v1095 = vld [vmem:[%s219 + $0x9f] sm:$0xff]
      %v1096 = vld [vmem:[%s219 + $0xa7] sm:$0xff]
      %v1097 = vld [vmem:[%s219 + $0xaf] sm:$0xff]
      %v1098 = vld [vmem:[%s219 + $0xb7] sm:$0xff]
      %v1099 = vld [vmem:[%s219 + $0xbf] sm:$0xff]
      %v1100 = vld [vmem:[%s219 + $0xc7] sm:$0xff]
      %v1101 = vld [vmem:[%s219 + $0xcf] sm:$0xff]
      %v1102 = vld [vmem:[%s219 + $0xd7] sm:$0xff]
      %v1103 = vld [vmem:[%s219 + $0xdf] sm:$0xff]
      %v1104 = vld [vmem:[%s219 + $0xe7] sm:$0xff]
      %v1105 = vld [vmem:[%s219 + $0xef] sm:$0xff]
      %v1106 = vld [vmem:[%s219 + $0xf7] sm:$0xff]
      %v1107 = vld [vmem:[%s219 + $0xff] sm:$0xff]
      %v1108 = vld [vmem:[%s219 + $0x107] sm:$0xff]
      %v1109 = vld [vmem:[%s219 + $0x10f] sm:$0xff]
      %v1110 = vld [vmem:[%s219 + $0x117] sm:$0xff]
      %v1111 = vld [vmem:[%s219 + $0x11f] sm:$0xff]
      %v1112 = vpack.c.bf16 %v1077, %v1076
      %v1113 = vpack.c.bf16 %v1079, %v1078
      %v1114 = vpack.c.bf16 %v1081, %v1080
      %v1115 = vpack.c.bf16 %v1083, %v1082
      %v1116 = vpack.c.bf16 %v1085, %v1084
      %v1117 = vpack.c.bf16 %v1087, %v1086
      %v1118 = vpack.c.bf16 %v1089, %v1088
      %v1119 = vpack.c.bf16 %v1091, %v1090
      %v1120 = vpack.c.bf16 %v1093, %v1092
      %v1121 = vpack.c.bf16 %v1095, %v1094
      %v1122 = vpack.c.bf16 %v1097, %v1096
      %v1123 = vpack.c.bf16 %v1099, %v1098
      %v1124 = vpack.c.bf16 %v1101, %v1100
      %v1125 = vpack.c.bf16 %v1103, %v1102
      %v1126 = vpack.c.bf16 %v1105, %v1104
      %v1127 = vpack.c.bf16 %v1107, %v1106
      %v1128 = vpack.c.bf16 %v1109, %v1108
      %v1129 = vpack.c.bf16 %v1111, %v1110
      %v1130 = vld [vmem:[#allocation2] sm:$0xff]
      %v1131 = vld [vmem:[#allocation2 + $0x8] sm:$0xff]
      %v1132 = vld [vmem:[#allocation2 + $0x10] sm:$0xff]
      %v1133 = vld [vmem:[#allocation2 + $0x18] sm:$0xff]
      %v1134 = vld [vmem:[#allocation2 + $0x20] sm:$0xff]
      %v1135 = vld [vmem:[#allocation2 + $0x28] sm:$0xff]
      %v1136 = vld [vmem:[#allocation2 + $0x30] sm:$0xff]
      %v1137 = vld [vmem:[#allocation2 + $0x38] sm:$0xff]
      %v1138 = vld [vmem:[#allocation2 + $0x40] sm:$0xff]
      %v1139 = vld [vmem:[#allocation2 + $0x48] sm:$0xff]
      %v1140 = vld [vmem:[#allocation2 + $0x50] sm:$0xff]
      %v1141 = vld [vmem:[#allocation2 + $0x58] sm:$0xff]
      %v1142 = vld [vmem:[#allocation2 + $0x60] sm:$0xff]
      %v1143 = vld [vmem:[#allocation2 + $0x68] sm:$0xff]
      %v1144 = vld [vmem:[#allocation2 + $0x70] sm:$0xff]
      %v1145 = vld [vmem:[#allocation2 + $0x78] sm:$0xff]
      %v1146 = vld [vmem:[#allocation2 + $0x80] sm:$0xff]
      %v1147 = vld [vmem:[#allocation2 + $0x88] sm:$0xff]
      %v1148 = vld [vmem:[#allocation2 + $0x90] sm:$0xff]
      %v1149 = vld [vmem:[#allocation2 + $0x98] sm:$0xff]
      %v1150 = vld [vmem:[#allocation2 + $0xa0] sm:$0xff]
      %v1151 = vld [vmem:[#allocation2 + $0xa8] sm:$0xff]
      %v1152 = vld [vmem:[#allocation2 + $0xb0] sm:$0xff]
      %v1153 = vld [vmem:[#allocation2 + $0xb8] sm:$0xff]
      %v1154 = vld [vmem:[#allocation2 + $0xc0] sm:$0xff]
      %v1155 = vld [vmem:[#allocation2 + $0xc8] sm:$0xff]
      %v1156 = vld [vmem:[#allocation2 + $0xd0] sm:$0xff]
      %v1157 = vld [vmem:[#allocation2 + $0xd8] sm:$0xff]
      %v1158 = vld [vmem:[#allocation2 + $0xe0] sm:$0xff]
      %v1159 = vld [vmem:[#allocation2 + $0xe8] sm:$0xff]
      %v1160 = vld [vmem:[#allocation2 + $0xf0] sm:$0xff]
      %v1161 = vld [vmem:[#allocation2 + $0xf8] sm:$0xff]
      %v1162 = vld [vmem:[#allocation2 + $0x100] sm:$0xff]
      %v1163 = vld [vmem:[#allocation2 + $0x108] sm:$0xff]
      %v1164 = vld [vmem:[#allocation2 + $0x110] sm:$0xff]
      %v1165 = vld [vmem:[#allocation2 + $0x118] sm:$0xff]
      %s1166 = scalar_lea.vmem %s1, 128
      %v1167 = vld [vmem:[%s1166] sm:$0xf]
      %v1168 = vld [vmem:[%s1166 + $0x4] sm:$0xf]
      %v1169 = vld [vmem:[%s1166 + $0x8] sm:$0xf]
      %v1170 = vld [vmem:[%s1166 + $0xc] sm:$0xf]
      %v1171 = vld [vmem:[%s1166 + $0x10] sm:$0xf]
      %v1172 = vld [vmem:[%s1166 + $0x14] sm:$0xf]
      %v1173 = vld [vmem:[%s1166 + $0x18] sm:$0xf]
      %v1174 = vld [vmem:[%s1166 + $0x1c] sm:$0xf]
      %v1175 = vld [vmem:[%s1166 + $0x20] sm:$0xf]
      %v1176 = vld [vmem:[%s1166 + $0x24] sm:$0xf]
      %v1177 = vld [vmem:[%s1166 + $0x28] sm:$0xf]
      %v1178 = vld [vmem:[%s1166 + $0x2c] sm:$0xf]
      %v1179 = vld [vmem:[%s1166 + $0x30] sm:$0xf]
      %v1180 = vld [vmem:[%s1166 + $0x34] sm:$0xf]
      %v1181 = vld [vmem:[%s1166 + $0x38] sm:$0xf]
      %v1182 = vld [vmem:[%s1166 + $0x3c] sm:$0xf]
      %v1199 = vunpack.c.l.b16 %v1167
      %v1200 = vunpack.c.l.b16 %v1168
      %v1201 = vunpack.c.l.b16 %v1169
      %v1202 = vunpack.c.l.b16 %v1170
      %v1203 = vunpack.c.l.b16 %v1171
      %v1204 = vunpack.c.l.b16 %v1172
      %v1205 = vunpack.c.l.b16 %v1173
      %v1206 = vunpack.c.l.b16 %v1174
      %v1207 = vunpack.c.l.b16 %v1175
      %v1208 = vunpack.c.l.b16 %v1176
      %v1209 = vunpack.c.l.b16 %v1177
      %v1210 = vunpack.c.l.b16 %v1178
      %v1211 = vunpack.c.l.b16 %v1179
      %v1212 = vunpack.c.l.b16 %v1180
      %v1213 = vunpack.c.l.b16 %v1181
      %v1214 = vunpack.c.l.b16 %v1182
      %v1215 = vpack.c.b16 %v1200, %v1199
      %v1216 = vpack.c.b16 %v1202, %v1201
      %v1217 = vpack.c.b16 %v1204, %v1203
      %v1218 = vpack.c.b16 %v1206, %v1205
      %v1219 = vpack.c.b16 %v1208, %v1207
      %v1220 = vpack.c.b16 %v1210, %v1209
      %v1221 = vpack.c.b16 %v1212, %v1211
      %v1222 = vpack.c.b16 %v1214, %v1213
      %1231 = vmatprep.subr.bf16.mxu0 0
      %1232 = vmatpush1.bf16.msra.mxu0 %v1222
      %1233 = vmatprep.subr.bf16.mxu0 0
      %1234 = vmatpush1.bf16.msra.mxu0 %v1221
      %1235 = vmatprep.subr.bf16.mxu0 0
      %1236 = vmatpush1.bf16.msra.mxu0 %v1220
      %1237 = vmatprep.subr.bf16.mxu0 0
      %1238 = vmatpush1.bf16.msra.mxu0 %v1219
      %1239 = vmatprep.subr.bf16.mxu0 0
      %1240 = vmatpush1.bf16.msra.mxu0 %v1218
      %1241 = vmatprep.subr.bf16.mxu0 0
      %1242 = vmatpush1.bf16.msra.mxu0 %v1217
      %1243 = vmatprep.subr.bf16.mxu0 0
      %1244 = vmatpush1.bf16.msra.mxu0 %v1216
      %1245 = vmatprep.subr.bf16.mxu0 0
      %1246 = vmatpush1.bf16.msra.mxu0 %v1215
      %1247 = vmatprep.subr.bf16.mxu0 0
      %1248 = vmatpush2.bf16.msra.mxu0 0
      %1249 = vmatprep.subr.bf16.mxu0 0
      %1250 = vmatpush2.bf16.msra.mxu0 0
      %1251 = vmatprep.subr.bf16.mxu0 0
      %1252 = vmatpush2.bf16.msra.mxu0 0
      %1253 = vmatprep.subr.bf16.mxu0 0
      %1254 = vmatpush2.bf16.msra.mxu0 0
      %1255 = vmatprep.subr.bf16.mxu0 0
      %1256 = vmatpush2.bf16.msra.mxu0 0
      %1257 = vmatprep.subr.bf16.mxu0 0
      %1258 = vmatpush2.bf16.msra.mxu0 0
      %1259 = vmatprep.subr.bf16.mxu0 0
      %1260 = vmatpush2.bf16.msra.mxu0 0
      %1261 = vmatprep.subr.bf16.mxu0 0
      %1262 = vmatpush2.bf16.msra.mxu0 0
      %1263 = vmatprep.mubr.bf16.mxu0 0
      %1264 = vmatmul.mubr.bf16.gmra.mxu0 %v1112
      %v1265 = vpop.f32.mrf.mxu0
      %v1266 = vadd.f32 0.0, %v1265
      %v1267 = vpop.f32.mrf.mxu0
      %v1268 = vpop.f32.mrf.mxu0
      %v1269 = vadd.f32 0.0, %v1268
      %v1270 = vpop.f32.mrf.mxu0
      %1271 = vmatprep.mubr.bf16.mxu0 0
      %1272 = vmatmul.mubr.bf16.gmra.mxu0 %v1113
      %v1273 = vpop.f32.mrf.mxu0
      %v1274 = vadd.f32 0.0, %v1273
      %v1275 = vpop.f32.mrf.mxu0
      %v1276 = vpop.f32.mrf.mxu0
      %v1277 = vadd.f32 0.0, %v1276
      %v1278 = vpop.f32.mrf.mxu0
      %1279 = vmatprep.mubr.bf16.mxu0 0
      %1280 = vmatmul.mubr.bf16.gmra.mxu0 %v1114
      %v1281 = vpop.f32.mrf.mxu0
      %v1282 = vadd.f32 0.0, %v1281
      %v1283 = vpop.f32.mrf.mxu0
      %v1284 = vpop.f32.mrf.mxu0
      %v1285 = vadd.f32 0.0, %v1284
      %v1286 = vpop.f32.mrf.mxu0
      %1287 = vmatprep.mubr.bf16.mxu0 0
      %1288 = vmatmul.mubr.bf16.gmra.mxu0 %v1115
      %v1289 = vpop.f32.mrf.mxu0
      %v1290 = vadd.f32 0.0, %v1289
      %v1291 = vpop.f32.mrf.mxu0
      %v1292 = vpop.f32.mrf.mxu0
      %v1293 = vadd.f32 0.0, %v1292
      %v1294 = vpop.f32.mrf.mxu0
      %1295 = vmatprep.mubr.bf16.mxu0 0
      %1296 = vmatmul.mubr.bf16.gmra.mxu0 %v1116
      %v1297 = vpop.f32.mrf.mxu0
      %v1298 = vadd.f32 0.0, %v1297
      %v1299 = vpop.f32.mrf.mxu0
      %v1300 = vpop.f32.mrf.mxu0
      %v1301 = vadd.f32 0.0, %v1300
      %v1302 = vpop.f32.mrf.mxu0
      %1303 = vmatprep.mubr.bf16.mxu0 0
      %1304 = vmatmul.mubr.bf16.gmra.mxu0 %v1117
      %v1305 = vpop.f32.mrf.mxu0
      %v1306 = vadd.f32 0.0, %v1305
      %v1307 = vpop.f32.mrf.mxu0
      %v1308 = vpop.f32.mrf.mxu0
      %v1309 = vadd.f32 0.0, %v1308
      %v1310 = vpop.f32.mrf.mxu0
      %1311 = vmatprep.mubr.bf16.mxu0 0
      %1312 = vmatmul.mubr.bf16.gmra.mxu0 %v1118
      %v1313 = vpop.f32.mrf.mxu0
      %v1314 = vadd.f32 0.0, %v1313
      %v1315 = vpop.f32.mrf.mxu0
      %v1316 = vpop.f32.mrf.mxu0
      %v1317 = vadd.f32 0.0, %v1316
      %v1318 = vpop.f32.mrf.mxu0
      %1319 = vmatprep.mubr.bf16.mxu0 0
      %1320 = vmatmul.mubr.bf16.gmra.mxu0 %v1119
      %v1321 = vpop.f32.mrf.mxu0
      %v1322 = vadd.f32 0.0, %v1321
      %v1323 = vpop.f32.mrf.mxu0
      %v1324 = vpop.f32.mrf.mxu0
      %v1325 = vadd.f32 0.0, %v1324
      %v1326 = vpop.f32.mrf.mxu0
      %1327 = vmatprep.mubr.bf16.mxu0 0
      %1328 = vmatmul.mubr.bf16.gmra.mxu0 %v1120
      %v1329 = vpop.f32.mrf.mxu0
      %v1330 = vadd.f32 0.0, %v1329
      %v1331 = vpop.f32.mrf.mxu0
      %v1332 = vpop.f32.mrf.mxu0
      %v1333 = vadd.f32 0.0, %v1332
      %v1334 = vpop.f32.mrf.mxu0
      %1335 = vmatprep.mubr.bf16.mxu0 0
      %1336 = vmatmul.mubr.bf16.gmra.mxu0 %v1121
      %v1337 = vpop.f32.mrf.mxu0
      %v1338 = vadd.f32 0.0, %v1337
      %v1339 = vpop.f32.mrf.mxu0
      %v1340 = vpop.f32.mrf.mxu0
      %v1341 = vadd.f32 0.0, %v1340
      %v1342 = vpop.f32.mrf.mxu0
      %1343 = vmatprep.mubr.bf16.mxu0 0
      %1344 = vmatmul.mubr.bf16.gmra.mxu0 %v1122
      %v1345 = vpop.f32.mrf.mxu0
      %v1346 = vadd.f32 0.0, %v1345
      %v1347 = vpop.f32.mrf.mxu0
      %v1348 = vpop.f32.mrf.mxu0
      %v1349 = vadd.f32 0.0, %v1348
      %v1350 = vpop.f32.mrf.mxu0
      %1351 = vmatprep.mubr.bf16.mxu0 0
      %1352 = vmatmul.mubr.bf16.gmra.mxu0 %v1123
      %v1353 = vpop.f32.mrf.mxu0
      %v1354 = vadd.f32 0.0, %v1353
      %v1355 = vpop.f32.mrf.mxu0
      %v1356 = vpop.f32.mrf.mxu0
      %v1357 = vadd.f32 0.0, %v1356
      %v1358 = vpop.f32.mrf.mxu0
      %1359 = vmatprep.mubr.bf16.mxu0 0
      %1360 = vmatmul.mubr.bf16.gmra.mxu0 %v1124
      %v1361 = vpop.f32.mrf.mxu0
      %v1362 = vadd.f32 0.0, %v1361
      %v1363 = vpop.f32.mrf.mxu0
      %v1364 = vpop.f32.mrf.mxu0
      %v1365 = vadd.f32 0.0, %v1364
      %v1366 = vpop.f32.mrf.mxu0
      %1367 = vmatprep.mubr.bf16.mxu0 0
      %1368 = vmatmul.mubr.bf16.gmra.mxu0 %v1125
      %v1369 = vpop.f32.mrf.mxu0
      %v1370 = vadd.f32 0.0, %v1369
      %v1371 = vpop.f32.mrf.mxu0
      %v1372 = vpop.f32.mrf.mxu0
      %v1373 = vadd.f32 0.0, %v1372
      %v1374 = vpop.f32.mrf.mxu0
      %1375 = vmatprep.mubr.bf16.mxu0 0
      %1376 = vmatmul.mubr.bf16.gmra.mxu0 %v1126
      %v1377 = vpop.f32.mrf.mxu0
      %v1378 = vadd.f32 0.0, %v1377
      %v1379 = vpop.f32.mrf.mxu0
      %v1380 = vpop.f32.mrf.mxu0
      %v1381 = vadd.f32 0.0, %v1380
      %v1382 = vpop.f32.mrf.mxu0
      %1383 = vmatprep.mubr.bf16.mxu0 0
      %1384 = vmatmul.mubr.bf16.gmra.mxu0 %v1127
      %v1385 = vpop.f32.mrf.mxu0
      %v1386 = vadd.f32 0.0, %v1385
      %v1387 = vpop.f32.mrf.mxu0
      %v1388 = vpop.f32.mrf.mxu0
      %v1389 = vadd.f32 0.0, %v1388
      %v1390 = vpop.f32.mrf.mxu0
      %1391 = vmatprep.mubr.bf16.mxu0 0
      %1392 = vmatmul.mubr.bf16.gmra.mxu0 %v1128
      %v1393 = vpop.f32.mrf.mxu0
      %v1394 = vadd.f32 0.0, %v1393
      %v1395 = vpop.f32.mrf.mxu0
      %v1396 = vpop.f32.mrf.mxu0
      %v1397 = vadd.f32 0.0, %v1396
      %v1398 = vpop.f32.mrf.mxu0
      %1399 = vmatprep.mubr.bf16.mxu0 0
      %1400 = vmatmul.mubr.bf16.gmra.mxu0 %v1129
      %v1401 = vpop.f32.mrf.mxu0
      %v1402 = vadd.f32 0.0, %v1401
      %v1403 = vpop.f32.mrf.mxu0
      %v1404 = vpop.f32.mrf.mxu0
      %v1405 = vadd.f32 0.0, %v1404
      %v1406 = vpop.f32.mrf.mxu0
      %1407 = vdwg.mxu0
      %v1408 = vadd.f32 %v1130, %v1266
      %v1409 = vadd.f32 %v1131, %v1269
      %v1410 = vadd.f32 %v1132, %v1274
      %v1411 = vadd.f32 %v1133, %v1277
      %v1412 = vadd.f32 %v1134, %v1282
      %v1413 = vadd.f32 %v1135, %v1285
      %v1414 = vadd.f32 %v1136, %v1290
      %v1415 = vadd.f32 %v1137, %v1293
      %v1416 = vadd.f32 %v1138, %v1298
      %v1417 = vadd.f32 %v1139, %v1301
      %v1418 = vadd.f32 %v1140, %v1306
      %v1419 = vadd.f32 %v1141, %v1309
      %v1420 = vadd.f32 %v1142, %v1314
      %v1421 = vadd.f32 %v1143, %v1317
      %v1422 = vadd.f32 %v1144, %v1322
      %v1423 = vadd.f32 %v1145, %v1325
      %v1424 = vadd.f32 %v1146, %v1330
      %v1425 = vadd.f32 %v1147, %v1333
      %v1426 = vadd.f32 %v1148, %v1338
      %v1427 = vadd.f32 %v1149, %v1341
      %v1428 = vadd.f32 %v1150, %v1346
      %v1429 = vadd.f32 %v1151, %v1349
      %v1430 = vadd.f32 %v1152, %v1354
      %v1431 = vadd.f32 %v1153, %v1357
      %v1432 = vadd.f32 %v1154, %v1362
      %v1433 = vadd.f32 %v1155, %v1365
      %v1434 = vadd.f32 %v1156, %v1370
      %v1435 = vadd.f32 %v1157, %v1373
      %v1436 = vadd.f32 %v1158, %v1378
      %v1437 = vadd.f32 %v1159, %v1381
      %v1438 = vadd.f32 %v1160, %v1386
      %v1439 = vadd.f32 %v1161, %v1389
      %v1440 = vadd.f32 %v1162, %v1394
      %v1441 = vadd.f32 %v1163, %v1397
      %v1442 = vadd.f32 %v1164, %v1402
      %v1443 = vadd.f32 %v1165, %v1405
      %1444 = vst [vmem:[#allocation2] sm:$0xff] %v1408
      %1445 = vst [vmem:[#allocation2 + $0x8] sm:$0xff] %v1409
      %1446 = vst [vmem:[#allocation2 + $0x10] sm:$0xff] %v1410
      %1447 = vst [vmem:[#allocation2 + $0x18] sm:$0xff] %v1411
      %1448 = vst [vmem:[#allocation2 + $0x20] sm:$0xff] %v1412
      %1449 = vst [vmem:[#allocation2 + $0x28] sm:$0xff] %v1413
      %1450 = vst [vmem:[#allocation2 + $0x30] sm:$0xff] %v1414
      %1451 = vst [vmem:[#allocation2 + $0x38] sm:$0xff] %v1415
      %1452 = vst [vmem:[#allocation2 + $0x40] sm:$0xff] %v1416
      %1453 = vst [vmem:[#allocation2 + $0x48] sm:$0xff] %v1417
      %1454 = vst [vmem:[#allocation2 + $0x50] sm:$0xff] %v1418
      %1455 = vst [vmem:[#allocation2 + $0x58] sm:$0xff] %v1419
      %1456 = vst [vmem:[#allocation2 + $0x60] sm:$0xff] %v1420
      %1457 = vst [vmem:[#allocation2 + $0x68] sm:$0xff] %v1421
      %1458 = vst [vmem:[#allocation2 + $0x70] sm:$0xff] %v1422
      %1459 = vst [vmem:[#allocation2 + $0x78] sm:$0xff] %v1423
      %1460 = vst [vmem:[#allocation2 + $0x80] sm:$0xff] %v1424
      %1461 = vst [vmem:[#allocation2 + $0x88] sm:$0xff] %v1425
      %1462 = vst [vmem:[#allocation2 + $0x90] sm:$0xff] %v1426
      %1463 = vst [vmem:[#allocation2 + $0x98] sm:$0xff] %v1427
      %1464 = vst [vmem:[#allocation2 + $0xa0] sm:$0xff] %v1428
      %1465 = vst [vmem:[#allocation2 + $0xa8] sm:$0xff] %v1429
      %1466 = vst [vmem:[#allocation2 + $0xb0] sm:$0xff] %v1430
      %1467 = vst [vmem:[#allocation2 + $0xb8] sm:$0xff] %v1431
      %1468 = vst [vmem:[#allocation2 + $0xc0] sm:$0xff] %v1432
      %1469 = vst [vmem:[#allocation2 + $0xc8] sm:$0xff] %v1433
      %1470 = vst [vmem:[#allocation2 + $0xd0] sm:$0xff] %v1434
      %1471 = vst [vmem:[#allocation2 + $0xd8] sm:$0xff] %v1435
      %1472 = vst [vmem:[#allocation2 + $0xe0] sm:$0xff] %v1436
      %1473 = vst [vmem:[#allocation2 + $0xe8] sm:$0xff] %v1437
      %1474 = vst [vmem:[#allocation2 + $0xf0] sm:$0xff] %v1438
      %1475 = vst [vmem:[#allocation2 + $0xf8] sm:$0xff] %v1439
      %1476 = vst [vmem:[#allocation2 + $0x100] sm:$0xff] %v1440
      %1477 = vst [vmem:[#allocation2 + $0x108] sm:$0xff] %v1441
      %1478 = vst [vmem:[#allocation2 + $0x110] sm:$0xff] %v1442
      %1479 = vst [vmem:[#allocation2 + $0x118] sm:$0xff] %v1443
      %v1480 = vld [vmem:[%s219 + $0x17] sm:$0xff]
      %v1481 = vld [vmem:[%s219 + $0x1f] sm:$0xff]
      %v1482 = vld [vmem:[%s219 + $0x27] sm:$0xff]
      %v1483 = vld [vmem:[%s219 + $0x2f] sm:$0xff]
      %v1484 = vld [vmem:[%s219 + $0x37] sm:$0xff]
      %v1485 = vld [vmem:[%s219 + $0x3f] sm:$0xff]
      %v1486 = vld [vmem:[%s219 + $0x47] sm:$0xff]
      %v1487 = vld [vmem:[%s219 + $0x4f] sm:$0xff]
      %v1488 = vld [vmem:[%s219 + $0x57] sm:$0xff]
      %v1489 = vld [vmem:[%s219 + $0x5f] sm:$0xff]
      %v1490 = vld [vmem:[%s219 + $0x67] sm:$0xff]
      %v1491 = vld [vmem:[%s219 + $0x6f] sm:$0xff]
      %v1492 = vld [vmem:[%s219 + $0x77] sm:$0xff]
      %v1493 = vld [vmem:[%s219 + $0x7f] sm:$0xff]
      %v1494 = vld [vmem:[%s219 + $0x87] sm:$0xff]
      %v1495 = vld [vmem:[%s219 + $0x8f] sm:$0xff]
      %v1496 = vld [vmem:[%s219 + $0x97] sm:$0xff]
      %v1497 = vld [vmem:[%s219 + $0x9f] sm:$0xff]
      %v1498 = vld [vmem:[%s219 + $0xa7] sm:$0xff]
      %v1499 = vld [vmem:[%s219 + $0xaf] sm:$0xff]
      %v1500 = vld [vmem:[%s219 + $0xb7] sm:$0xff]
      %v1501 = vld [vmem:[%s219 + $0xbf] sm:$0xff]
      %v1502 = vld [vmem:[%s219 + $0xc7] sm:$0xff]
      %v1503 = vld [vmem:[%s219 + $0xcf] sm:$0xff]
      %v1504 = vld [vmem:[%s219 + $0xd7] sm:$0xff]
      %v1505 = vld [vmem:[%s219 + $0xdf] sm:$0xff]
      %v1506 = vld [vmem:[%s219 + $0xe7] sm:$0xff]
      %v1507 = vld [vmem:[%s219 + $0xef] sm:$0xff]
      %v1508 = vld [vmem:[%s219 + $0xf7] sm:$0xff]
      %v1509 = vld [vmem:[%s219 + $0xff] sm:$0xff]
      %v1510 = vld [vmem:[%s219 + $0x107] sm:$0xff]
      %v1511 = vld [vmem:[%s219 + $0x10f] sm:$0xff]
      %v1512 = vld [vmem:[%s219 + $0x117] sm:$0xff]
      %v1513 = vld [vmem:[%s219 + $0x11f] sm:$0xff]
      %v1514 = vld [vmem:[%s219 + $0x127] sm:$0xff]
      %v1515 = vld [vmem:[%s219 + $0x12f] sm:$0xff]
      %v1516 = vpack.c.bf16 %v1481, %v1480
      %v1517 = vpack.c.bf16 %v1483, %v1482
      %v1518 = vpack.c.bf16 %v1485, %v1484
      %v1519 = vpack.c.bf16 %v1487, %v1486
      %v1520 = vpack.c.bf16 %v1489, %v1488
      %v1521 = vpack.c.bf16 %v1491, %v1490
      %v1522 = vpack.c.bf16 %v1493, %v1492
      %v1523 = vpack.c.bf16 %v1495, %v1494
      %v1524 = vpack.c.bf16 %v1497, %v1496
      %v1525 = vpack.c.bf16 %v1499, %v1498
      %v1526 = vpack.c.bf16 %v1501, %v1500
      %v1527 = vpack.c.bf16 %v1503, %v1502
      %v1528 = vpack.c.bf16 %v1505, %v1504
      %v1529 = vpack.c.bf16 %v1507, %v1506
      %v1530 = vpack.c.bf16 %v1509, %v1508
      %v1531 = vpack.c.bf16 %v1511, %v1510
      %v1532 = vpack.c.bf16 %v1513, %v1512
      %v1533 = vpack.c.bf16 %v1515, %v1514
      %v1534 = vld [vmem:[#allocation2] sm:$0xff]
      %v1535 = vld [vmem:[#allocation2 + $0x8] sm:$0xff]
      %v1536 = vld [vmem:[#allocation2 + $0x10] sm:$0xff]
      %v1537 = vld [vmem:[#allocation2 + $0x18] sm:$0xff]
      %v1538 = vld [vmem:[#allocation2 + $0x20] sm:$0xff]
      %v1539 = vld [vmem:[#allocation2 + $0x28] sm:$0xff]
      %v1540 = vld [vmem:[#allocation2 + $0x30] sm:$0xff]
      %v1541 = vld [vmem:[#allocation2 + $0x38] sm:$0xff]
      %v1542 = vld [vmem:[#allocation2 + $0x40] sm:$0xff]
      %v1543 = vld [vmem:[#allocation2 + $0x48] sm:$0xff]
      %v1544 = vld [vmem:[#allocation2 + $0x50] sm:$0xff]
      %v1545 = vld [vmem:[#allocation2 + $0x58] sm:$0xff]
      %v1546 = vld [vmem:[#allocation2 + $0x60] sm:$0xff]
      %v1547 = vld [vmem:[#allocation2 + $0x68] sm:$0xff]
      %v1548 = vld [vmem:[#allocation2 + $0x70] sm:$0xff]
      %v1549 = vld [vmem:[#allocation2 + $0x78] sm:$0xff]
      %v1550 = vld [vmem:[#allocation2 + $0x80] sm:$0xff]
      %v1551 = vld [vmem:[#allocation2 + $0x88] sm:$0xff]
      %v1552 = vld [vmem:[#allocation2 + $0x90] sm:$0xff]
      %v1553 = vld [vmem:[#allocation2 + $0x98] sm:$0xff]
      %v1554 = vld [vmem:[#allocation2 + $0xa0] sm:$0xff]
      %v1555 = vld [vmem:[#allocation2 + $0xa8] sm:$0xff]
      %v1556 = vld [vmem:[#allocation2 + $0xb0] sm:$0xff]
      %v1557 = vld [vmem:[#allocation2 + $0xb8] sm:$0xff]
      %v1558 = vld [vmem:[#allocation2 + $0xc0] sm:$0xff]
      %v1559 = vld [vmem:[#allocation2 + $0xc8] sm:$0xff]
      %v1560 = vld [vmem:[#allocation2 + $0xd0] sm:$0xff]
      %v1561 = vld [vmem:[#allocation2 + $0xd8] sm:$0xff]
      %v1562 = vld [vmem:[#allocation2 + $0xe0] sm:$0xff]
      %v1563 = vld [vmem:[#allocation2 + $0xe8] sm:$0xff]
      %v1564 = vld [vmem:[#allocation2 + $0xf0] sm:$0xff]
      %v1565 = vld [vmem:[#allocation2 + $0xf8] sm:$0xff]
      %v1566 = vld [vmem:[#allocation2 + $0x100] sm:$0xff]
      %v1567 = vld [vmem:[#allocation2 + $0x108] sm:$0xff]
      %v1568 = vld [vmem:[#allocation2 + $0x110] sm:$0xff]
      %v1569 = vld [vmem:[#allocation2 + $0x118] sm:$0xff]
      %s1570 = scalar_lea.vmem %s1, 192
      %v1571 = vld [vmem:[%s1570] sm:$0xf]
      %v1572 = vld [vmem:[%s1570 + $0x4] sm:$0xf]
      %v1573 = vld [vmem:[%s1570 + $0x8] sm:$0xf]
      %v1574 = vld [vmem:[%s1570 + $0xc] sm:$0xf]
      %v1575 = vld [vmem:[%s1570 + $0x10] sm:$0xf]
      %v1576 = vld [vmem:[%s1570 + $0x14] sm:$0xf]
      %v1577 = vld [vmem:[%s1570 + $0x18] sm:$0xf]
      %v1578 = vld [vmem:[%s1570 + $0x1c] sm:$0xf]
      %v1579 = vld [vmem:[%s1570 + $0x20] sm:$0xf]
      %v1580 = vld [vmem:[%s1570 + $0x24] sm:$0xf]
      %v1581 = vld [vmem:[%s1570 + $0x28] sm:$0xf]
      %v1582 = vld [vmem:[%s1570 + $0x2c] sm:$0xf]
      %v1583 = vld [vmem:[%s1570 + $0x30] sm:$0xf]
      %v1584 = vld [vmem:[%s1570 + $0x34] sm:$0xf]
      %v1585 = vld [vmem:[%s1570 + $0x38] sm:$0xf]
      %v1586 = vld [vmem:[%s1570 + $0x3c] sm:$0xf]
      %v1603 = vunpack.c.l.b16 %v1571
      %v1604 = vunpack.c.l.b16 %v1572
      %v1605 = vunpack.c.l.b16 %v1573
      %v1606 = vunpack.c.l.b16 %v1574
      %v1607 = vunpack.c.l.b16 %v1575
      %v1608 = vunpack.c.l.b16 %v1576
      %v1609 = vunpack.c.l.b16 %v1577
      %v1610 = vunpack.c.l.b16 %v1578
      %v1611 = vunpack.c.l.b16 %v1579
      %v1612 = vunpack.c.l.b16 %v1580
      %v1613 = vunpack.c.l.b16 %v1581
      %v1614 = vunpack.c.l.b16 %v1582
      %v1615 = vunpack.c.l.b16 %v1583
      %v1616 = vunpack.c.l.b16 %v1584
      %v1617 = vunpack.c.l.b16 %v1585
      %v1618 = vunpack.c.l.b16 %v1586
      %v1619 = vpack.c.b16 %v1604, %v1603
      %v1620 = vpack.c.b16 %v1606, %v1605
      %v1621 = vpack.c.b16 %v1608, %v1607
      %v1622 = vpack.c.b16 %v1610, %v1609
      %v1623 = vpack.c.b16 %v1612, %v1611
      %v1624 = vpack.c.b16 %v1614, %v1613
      %v1625 = vpack.c.b16 %v1616, %v1615
      %v1626 = vpack.c.b16 %v1618, %v1617
      %1635 = vmatprep.subr.bf16.mxu0 0
      %1636 = vmatpush1.bf16.msra.mxu0 %v1626
      %1637 = vmatprep.subr.bf16.mxu0 0
      %1638 = vmatpush1.bf16.msra.mxu0 %v1625
      %1639 = vmatprep.subr.bf16.mxu0 0
      %1640 = vmatpush1.bf16.msra.mxu0 %v1624
      %1641 = vmatprep.subr.bf16.mxu0 0
      %1642 = vmatpush1.bf16.msra.mxu0 %v1623
      %1643 = vmatprep.subr.bf16.mxu0 0
      %1644 = vmatpush1.bf16.msra.mxu0 %v1622
      %1645 = vmatprep.subr.bf16.mxu0 0
      %1646 = vmatpush1.bf16.msra.mxu0 %v1621
      %1647 = vmatprep.subr.bf16.mxu0 0
      %1648 = vmatpush1.bf16.msra.mxu0 %v1620
      %1649 = vmatprep.subr.bf16.mxu0 0
      %1650 = vmatpush1.bf16.msra.mxu0 %v1619
      %1651 = vmatprep.subr.bf16.mxu0 0
      %1652 = vmatpush2.bf16.msra.mxu0 0
      %1653 = vmatprep.subr.bf16.mxu0 0
      %1654 = vmatpush2.bf16.msra.mxu0 0
      %1655 = vmatprep.subr.bf16.mxu0 0
      %1656 = vmatpush2.bf16.msra.mxu0 0
      %1657 = vmatprep.subr.bf16.mxu0 0
      %1658 = vmatpush2.bf16.msra.mxu0 0
      %1659 = vmatprep.subr.bf16.mxu0 0
      %1660 = vmatpush2.bf16.msra.mxu0 0
      %1661 = vmatprep.subr.bf16.mxu0 0
      %1662 = vmatpush2.bf16.msra.mxu0 0
      %1663 = vmatprep.subr.bf16.mxu0 0
      %1664 = vmatpush2.bf16.msra.mxu0 0
      %1665 = vmatprep.subr.bf16.mxu0 0
      %1666 = vmatpush2.bf16.msra.mxu0 0
      %1667 = vmatprep.mubr.bf16.mxu0 0
      %1668 = vmatmul.mubr.bf16.gmra.mxu0 %v1516
      %v1669 = vpop.f32.mrf.mxu0
      %v1670 = vadd.f32 0.0, %v1669
      %v1671 = vpop.f32.mrf.mxu0
      %v1672 = vpop.f32.mrf.mxu0
      %v1673 = vadd.f32 0.0, %v1672
      %v1674 = vpop.f32.mrf.mxu0
      %1675 = vmatprep.mubr.bf16.mxu0 0
      %1676 = vmatmul.mubr.bf16.gmra.mxu0 %v1517
      %v1677 = vpop.f32.mrf.mxu0
      %v1678 = vadd.f32 0.0, %v1677
      %v1679 = vpop.f32.mrf.mxu0
      %v1680 = vpop.f32.mrf.mxu0
      %v1681 = vadd.f32 0.0, %v1680
      %v1682 = vpop.f32.mrf.mxu0
      %1683 = vmatprep.mubr.bf16.mxu0 0
      %1684 = vmatmul.mubr.bf16.gmra.mxu0 %v1518
      %v1685 = vpop.f32.mrf.mxu0
      %v1686 = vadd.f32 0.0, %v1685
      %v1687 = vpop.f32.mrf.mxu0
      %v1688 = vpop.f32.mrf.mxu0
      %v1689 = vadd.f32 0.0, %v1688
      %v1690 = vpop.f32.mrf.mxu0
      %1691 = vmatprep.mubr.bf16.mxu0 0
      %1692 = vmatmul.mubr.bf16.gmra.mxu0 %v1519
      %v1693 = vpop.f32.mrf.mxu0
      %v1694 = vadd.f32 0.0, %v1693
      %v1695 = vpop.f32.mrf.mxu0
      %v1696 = vpop.f32.mrf.mxu0
      %v1697 = vadd.f32 0.0, %v1696
      %v1698 = vpop.f32.mrf.mxu0
      %1699 = vmatprep.mubr.bf16.mxu0 0
      %1700 = vmatmul.mubr.bf16.gmra.mxu0 %v1520
      %v1701 = vpop.f32.mrf.mxu0
      %v1702 = vadd.f32 0.0, %v1701
      %v1703 = vpop.f32.mrf.mxu0
      %v1704 = vpop.f32.mrf.mxu0
      %v1705 = vadd.f32 0.0, %v1704
      %v1706 = vpop.f32.mrf.mxu0
      %1707 = vmatprep.mubr.bf16.mxu0 0
      %1708 = vmatmul.mubr.bf16.gmra.mxu0 %v1521
      %v1709 = vpop.f32.mrf.mxu0
      %v1710 = vadd.f32 0.0, %v1709
      %v1711 = vpop.f32.mrf.mxu0
      %v1712 = vpop.f32.mrf.mxu0
      %v1713 = vadd.f32 0.0, %v1712
      %v1714 = vpop.f32.mrf.mxu0
      %1715 = vmatprep.mubr.bf16.mxu0 0
      %1716 = vmatmul.mubr.bf16.gmra.mxu0 %v1522
      %v1717 = vpop.f32.mrf.mxu0
      %v1718 = vadd.f32 0.0, %v1717
      %v1719 = vpop.f32.mrf.mxu0
      %v1720 = vpop.f32.mrf.mxu0
      %v1721 = vadd.f32 0.0, %v1720
      %v1722 = vpop.f32.mrf.mxu0
      %1723 = vmatprep.mubr.bf16.mxu0 0
      %1724 = vmatmul.mubr.bf16.gmra.mxu0 %v1523
      %v1725 = vpop.f32.mrf.mxu0
      %v1726 = vadd.f32 0.0, %v1725
      %v1727 = vpop.f32.mrf.mxu0
      %v1728 = vpop.f32.mrf.mxu0
      %v1729 = vadd.f32 0.0, %v1728
      %v1730 = vpop.f32.mrf.mxu0
      %1731 = vmatprep.mubr.bf16.mxu0 0
      %1732 = vmatmul.mubr.bf16.gmra.mxu0 %v1524
      %v1733 = vpop.f32.mrf.mxu0
      %v1734 = vadd.f32 0.0, %v1733
      %v1735 = vpop.f32.mrf.mxu0
      %v1736 = vpop.f32.mrf.mxu0
      %v1737 = vadd.f32 0.0, %v1736
      %v1738 = vpop.f32.mrf.mxu0
      %1739 = vmatprep.mubr.bf16.mxu0 0
      %1740 = vmatmul.mubr.bf16.gmra.mxu0 %v1525
      %v1741 = vpop.f32.mrf.mxu0
      %v1742 = vadd.f32 0.0, %v1741
      %v1743 = vpop.f32.mrf.mxu0
      %v1744 = vpop.f32.mrf.mxu0
      %v1745 = vadd.f32 0.0, %v1744
      %v1746 = vpop.f32.mrf.mxu0
      %1747 = vmatprep.mubr.bf16.mxu0 0
      %1748 = vmatmul.mubr.bf16.gmra.mxu0 %v1526
      %v1749 = vpop.f32.mrf.mxu0
      %v1750 = vadd.f32 0.0, %v1749
      %v1751 = vpop.f32.mrf.mxu0
      %v1752 = vpop.f32.mrf.mxu0
      %v1753 = vadd.f32 0.0, %v1752
      %v1754 = vpop.f32.mrf.mxu0
      %1755 = vmatprep.mubr.bf16.mxu0 0
      %1756 = vmatmul.mubr.bf16.gmra.mxu0 %v1527
      %v1757 = vpop.f32.mrf.mxu0
      %v1758 = vadd.f32 0.0, %v1757
      %v1759 = vpop.f32.mrf.mxu0
      %v1760 = vpop.f32.mrf.mxu0
      %v1761 = vadd.f32 0.0, %v1760
      %v1762 = vpop.f32.mrf.mxu0
      %1763 = vmatprep.mubr.bf16.mxu0 0
      %1764 = vmatmul.mubr.bf16.gmra.mxu0 %v1528
      %v1765 = vpop.f32.mrf.mxu0
      %v1766 = vadd.f32 0.0, %v1765
      %v1767 = vpop.f32.mrf.mxu0
      %v1768 = vpop.f32.mrf.mxu0
      %v1769 = vadd.f32 0.0, %v1768
      %v1770 = vpop.f32.mrf.mxu0
      %1771 = vmatprep.mubr.bf16.mxu0 0
      %1772 = vmatmul.mubr.bf16.gmra.mxu0 %v1529
      %v1773 = vpop.f32.mrf.mxu0
      %v1774 = vadd.f32 0.0, %v1773
      %v1775 = vpop.f32.mrf.mxu0
      %v1776 = vpop.f32.mrf.mxu0
      %v1777 = vadd.f32 0.0, %v1776
      %v1778 = vpop.f32.mrf.mxu0
      %1779 = vmatprep.mubr.bf16.mxu0 0
      %1780 = vmatmul.mubr.bf16.gmra.mxu0 %v1530
      %v1781 = vpop.f32.mrf.mxu0
      %v1782 = vadd.f32 0.0, %v1781
      %v1783 = vpop.f32.mrf.mxu0
      %v1784 = vpop.f32.mrf.mxu0
      %v1785 = vadd.f32 0.0, %v1784
      %v1786 = vpop.f32.mrf.mxu0
      %1787 = vmatprep.mubr.bf16.mxu0 0
      %1788 = vmatmul.mubr.bf16.gmra.mxu0 %v1531
      %v1789 = vpop.f32.mrf.mxu0
      %v1790 = vadd.f32 0.0, %v1789
      %v1791 = vpop.f32.mrf.mxu0
      %v1792 = vpop.f32.mrf.mxu0
      %v1793 = vadd.f32 0.0, %v1792
      %v1794 = vpop.f32.mrf.mxu0
      %1795 = vmatprep.mubr.bf16.mxu0 0
      %1796 = vmatmul.mubr.bf16.gmra.mxu0 %v1532
      %v1797 = vpop.f32.mrf.mxu0
      %v1798 = vadd.f32 0.0, %v1797
      %v1799 = vpop.f32.mrf.mxu0
      %v1800 = vpop.f32.mrf.mxu0
      %v1801 = vadd.f32 0.0, %v1800
      %v1802 = vpop.f32.mrf.mxu0
      %1803 = vmatprep.mubr.bf16.mxu0 0
      %1804 = vmatmul.mubr.bf16.gmra.mxu0 %v1533
      %v1805 = vpop.f32.mrf.mxu0
      %v1806 = vadd.f32 0.0, %v1805
      %v1807 = vpop.f32.mrf.mxu0
      %v1808 = vpop.f32.mrf.mxu0
      %v1809 = vadd.f32 0.0, %v1808
      %v1810 = vpop.f32.mrf.mxu0
      %1811 = vdwg.mxu0
      %v1812 = vadd.f32 %v1534, %v1670
      %v1813 = vadd.f32 %v1535, %v1673
      %v1814 = vadd.f32 %v1536, %v1678
      %v1815 = vadd.f32 %v1537, %v1681
      %v1816 = vadd.f32 %v1538, %v1686
      %v1817 = vadd.f32 %v1539, %v1689
      %v1818 = vadd.f32 %v1540, %v1694
      %v1819 = vadd.f32 %v1541, %v1697
      %v1820 = vadd.f32 %v1542, %v1702
      %v1821 = vadd.f32 %v1543, %v1705
      %v1822 = vadd.f32 %v1544, %v1710
      %v1823 = vadd.f32 %v1545, %v1713
      %v1824 = vadd.f32 %v1546, %v1718
      %v1825 = vadd.f32 %v1547, %v1721
      %v1826 = vadd.f32 %v1548, %v1726
      %v1827 = vadd.f32 %v1549, %v1729
      %v1828 = vadd.f32 %v1550, %v1734
      %v1829 = vadd.f32 %v1551, %v1737
      %v1830 = vadd.f32 %v1552, %v1742
      %v1831 = vadd.f32 %v1553, %v1745
      %v1832 = vadd.f32 %v1554, %v1750
      %v1833 = vadd.f32 %v1555, %v1753
      %v1834 = vadd.f32 %v1556, %v1758
      %v1835 = vadd.f32 %v1557, %v1761
      %v1836 = vadd.f32 %v1558, %v1766
      %v1837 = vadd.f32 %v1559, %v1769
      %v1838 = vadd.f32 %v1560, %v1774
      %v1839 = vadd.f32 %v1561, %v1777
      %v1840 = vadd.f32 %v1562, %v1782
      %v1841 = vadd.f32 %v1563, %v1785
      %v1842 = vadd.f32 %v1564, %v1790
      %v1843 = vadd.f32 %v1565, %v1793
      %v1844 = vadd.f32 %v1566, %v1798
      %v1845 = vadd.f32 %v1567, %v1801
      %v1846 = vadd.f32 %v1568, %v1806
      %v1847 = vadd.f32 %v1569, %v1809
      %1848 = vst [vmem:[#allocation2] sm:$0xff] %v1812
      %1849 = vst [vmem:[#allocation2 + $0x8] sm:$0xff] %v1813
      %1850 = vst [vmem:[#allocation2 + $0x10] sm:$0xff] %v1814
      %1851 = vst [vmem:[#allocation2 + $0x18] sm:$0xff] %v1815
      %1852 = vst [vmem:[#allocation2 + $0x20] sm:$0xff] %v1816
      %1853 = vst [vmem:[#allocation2 + $0x28] sm:$0xff] %v1817
      %1854 = vst [vmem:[#allocation2 + $0x30] sm:$0xff] %v1818
      %1855 = vst [vmem:[#allocation2 + $0x38] sm:$0xff] %v1819
      %1856 = vst [vmem:[#allocation2 + $0x40] sm:$0xff] %v1820
      %1857 = vst [vmem:[#allocation2 + $0x48] sm:$0xff] %v1821
      %1858 = vst [vmem:[#allocation2 + $0x50] sm:$0xff] %v1822
      %1859 = vst [vmem:[#allocation2 + $0x58] sm:$0xff] %v1823
      %1860 = vst [vmem:[#allocation2 + $0x60] sm:$0xff] %v1824
      %1861 = vst [vmem:[#allocation2 + $0x68] sm:$0xff] %v1825
      %1862 = vst [vmem:[#allocation2 + $0x70] sm:$0xff] %v1826
      %1863 = vst [vmem:[#allocation2 + $0x78] sm:$0xff] %v1827
      %1864 = vst [vmem:[#allocation2 + $0x80] sm:$0xff] %v1828
      %1865 = vst [vmem:[#allocation2 + $0x88] sm:$0xff] %v1829
      %1866 = vst [vmem:[#allocation2 + $0x90] sm:$0xff] %v1830
      %1867 = vst [vmem:[#allocation2 + $0x98] sm:$0xff] %v1831
      %1868 = vst [vmem:[#allocation2 + $0xa0] sm:$0xff] %v1832
      %1869 = vst [vmem:[#allocation2 + $0xa8] sm:$0xff] %v1833
      %1870 = vst [vmem:[#allocation2 + $0xb0] sm:$0xff] %v1834
      %1871 = vst [vmem:[#allocation2 + $0xb8] sm:$0xff] %v1835
      %1872 = vst [vmem:[#allocation2 + $0xc0] sm:$0xff] %v1836
      %1873 = vst [vmem:[#allocation2 + $0xc8] sm:$0xff] %v1837
      %1874 = vst [vmem:[#allocation2 + $0xd0] sm:$0xff] %v1838
      %1875 = vst [vmem:[#allocation2 + $0xd8] sm:$0xff] %v1839
      %1876 = vst [vmem:[#allocation2 + $0xe0] sm:$0xff] %v1840
      %1877 = vst [vmem:[#allocation2 + $0xe8] sm:$0xff] %v1841
      %1878 = vst [vmem:[#allocation2 + $0xf0] sm:$0xff] %v1842
      %1879 = vst [vmem:[#allocation2 + $0xf8] sm:$0xff] %v1843
      %1880 = vst [vmem:[#allocation2 + $0x100] sm:$0xff] %v1844
      %1881 = vst [vmem:[#allocation2 + $0x108] sm:$0xff] %v1845
      %1882 = vst [vmem:[#allocation2 + $0x110] sm:$0xff] %v1846
      %1883 = vst [vmem:[#allocation2 + $0x118] sm:$0xff] %v1847
      %v1884 = vld [vmem:[%s219 + $0x18] sm:$0xff]
      %v1885 = vld [vmem:[%s219 + $0x20] sm:$0xff]
      %v1886 = vld [vmem:[%s219 + $0x28] sm:$0xff]
      %v1887 = vld [vmem:[%s219 + $0x30] sm:$0xff]
      %v1888 = vld [vmem:[%s219 + $0x38] sm:$0xff]
      %v1889 = vld [vmem:[%s219 + $0x40] sm:$0xff]
      %v1890 = vld [vmem:[%s219 + $0x48] sm:$0xff]
      %v1891 = vld [vmem:[%s219 + $0x50] sm:$0xff]
      %v1892 = vld [vmem:[%s219 + $0x58] sm:$0xff]
      %v1893 = vld [vmem:[%s219 + $0x60] sm:$0xff]
      %v1894 = vld [vmem:[%s219 + $0x68] sm:$0xff]
      %v1895 = vld [vmem:[%s219 + $0x70] sm:$0xff]
      %v1896 = vld [vmem:[%s219 + $0x78] sm:$0xff]
      %v1897 = vld [vmem:[%s219 + $0x80] sm:$0xff]
      %v1898 = vld [vmem:[%s219 + $0x88] sm:$0xff]
      %v1899 = vld [vmem:[%s219 + $0x90] sm:$0xff]
      %v1900 = vld [vmem:[%s219 + $0x98] sm:$0xff]
      %v1901 = vld [vmem:[%s219 + $0xa0] sm:$0xff]
      %v1902 = vld [vmem:[%s219 + $0xa8] sm:$0xff]
      %v1903 = vld [vmem:[%s219 + $0xb0] sm:$0xff]
      %v1904 = vld [vmem:[%s219 + $0xb8] sm:$0xff]
      %v1905 = vld [vmem:[%s219 + $0xc0] sm:$0xff]
      %v1906 = vld [vmem:[%s219 + $0xc8] sm:$0xff]
      %v1907 = vld [vmem:[%s219 + $0xd0] sm:$0xff]
      %v1908 = vld [vmem:[%s219 + $0xd8] sm:$0xff]
      %v1909 = vld [vmem:[%s219 + $0xe0] sm:$0xff]
      %v1910 = vld [vmem:[%s219 + $0xe8] sm:$0xff]
      %v1911 = vld [vmem:[%s219 + $0xf0] sm:$0xff]
      %v1912 = vld [vmem:[%s219 + $0xf8] sm:$0xff]
      %v1913 = vld [vmem:[%s219 + $0x100] sm:$0xff]
      %v1914 = vld [vmem:[%s219 + $0x108] sm:$0xff]
      %v1915 = vld [vmem:[%s219 + $0x110] sm:$0xff]
      %v1916 = vld [vmem:[%s219 + $0x118] sm:$0xff]
      %v1917 = vld [vmem:[%s219 + $0x120] sm:$0xff]
      %v1918 = vld [vmem:[%s219 + $0x128] sm:$0xff]
      %v1919 = vld [vmem:[%s219 + $0x130] sm:$0xff]
      %v1920 = vpack.c.bf16 %v1885, %v1884
      %v1921 = vpack.c.bf16 %v1887, %v1886
      %v1922 = vpack.c.bf16 %v1889, %v1888
      %v1923 = vpack.c.bf16 %v1891, %v1890
      %v1924 = vpack.c.bf16 %v1893, %v1892
      %v1925 = vpack.c.bf16 %v1895, %v1894
      %v1926 = vpack.c.bf16 %v1897, %v1896
      %v1927 = vpack.c.bf16 %v1899, %v1898
      %v1928 = vpack.c.bf16 %v1901, %v1900
      %v1929 = vpack.c.bf16 %v1903, %v1902
      %v1930 = vpack.c.bf16 %v1905, %v1904
      %v1931 = vpack.c.bf16 %v1907, %v1906
      %v1932 = vpack.c.bf16 %v1909, %v1908
      %v1933 = vpack.c.bf16 %v1911, %v1910
      %v1934 = vpack.c.bf16 %v1913, %v1912
      %v1935 = vpack.c.bf16 %v1915, %v1914
      %v1936 = vpack.c.bf16 %v1917, %v1916
      %v1937 = vpack.c.bf16 %v1919, %v1918
      %v1938 = vld [vmem:[#allocation2] sm:$0xff]
      %v1939 = vld [vmem:[#allocation2 + $0x8] sm:$0xff]
      %v1940 = vld [vmem:[#allocation2 + $0x10] sm:$0xff]
      %v1941 = vld [vmem:[#allocation2 + $0x18] sm:$0xff]
      %v1942 = vld [vmem:[#allocation2 + $0x20] sm:$0xff]
      %v1943 = vld [vmem:[#allocation2 + $0x28] sm:$0xff]
      %v1944 = vld [vmem:[#allocation2 + $0x30] sm:$0xff]
      %v1945 = vld [vmem:[#allocation2 + $0x38] sm:$0xff]
      %v1946 = vld [vmem:[#allocation2 + $0x40] sm:$0xff]
      %v1947 = vld [vmem:[#allocation2 + $0x48] sm:$0xff]
      %v1948 = vld [vmem:[#allocation2 + $0x50] sm:$0xff]
      %v1949 = vld [vmem:[#allocation2 + $0x58] sm:$0xff]
      %v1950 = vld [vmem:[#allocation2 + $0x60] sm:$0xff]
      %v1951 = vld [vmem:[#allocation2 + $0x68] sm:$0xff]
      %v1952 = vld [vmem:[#allocation2 + $0x70] sm:$0xff]
      %v1953 = vld [vmem:[#allocation2 + $0x78] sm:$0xff]
      %v1954 = vld [vmem:[#allocation2 + $0x80] sm:$0xff]
      %v1955 = vld [vmem:[#allocation2 + $0x88] sm:$0xff]
      %v1956 = vld [vmem:[#allocation2 + $0x90] sm:$0xff]
      %v1957 = vld [vmem:[#allocation2 + $0x98] sm:$0xff]
      %v1958 = vld [vmem:[#allocation2 + $0xa0] sm:$0xff]
      %v1959 = vld [vmem:[#allocation2 + $0xa8] sm:$0xff]
      %v1960 = vld [vmem:[#allocation2 + $0xb0] sm:$0xff]
      %v1961 = vld [vmem:[#allocation2 + $0xb8] sm:$0xff]
      %v1962 = vld [vmem:[#allocation2 + $0xc0] sm:$0xff]
      %v1963 = vld [vmem:[#allocation2 + $0xc8] sm:$0xff]
      %v1964 = vld [vmem:[#allocation2 + $0xd0] sm:$0xff]
      %v1965 = vld [vmem:[#allocation2 + $0xd8] sm:$0xff]
      %v1966 = vld [vmem:[#allocation2 + $0xe0] sm:$0xff]
      %v1967 = vld [vmem:[#allocation2 + $0xe8] sm:$0xff]
      %v1968 = vld [vmem:[#allocation2 + $0xf0] sm:$0xff]
      %v1969 = vld [vmem:[#allocation2 + $0xf8] sm:$0xff]
      %v1970 = vld [vmem:[#allocation2 + $0x100] sm:$0xff]
      %v1971 = vld [vmem:[#allocation2 + $0x108] sm:$0xff]
      %v1972 = vld [vmem:[#allocation2 + $0x110] sm:$0xff]
      %v1973 = vld [vmem:[#allocation2 + $0x118] sm:$0xff]
      %s1974 = scalar_lea.vmem %s1, 256
      %v1975 = vld [vmem:[%s1974] sm:$0xf]
      %v1976 = vld [vmem:[%s1974 + $0x4] sm:$0xf]
      %v1977 = vld [vmem:[%s1974 + $0x8] sm:$0xf]
      %v1978 = vld [vmem:[%s1974 + $0xc] sm:$0xf]
      %v1979 = vld [vmem:[%s1974 + $0x10] sm:$0xf]
      %v1980 = vld [vmem:[%s1974 + $0x14] sm:$0xf]
      %v1981 = vld [vmem:[%s1974 + $0x18] sm:$0xf]
      %v1982 = vld [vmem:[%s1974 + $0x1c] sm:$0xf]
      %v1983 = vld [vmem:[%s1974 + $0x20] sm:$0xf]
      %v1984 = vld [vmem:[%s1974 + $0x24] sm:$0xf]
      %v1985 = vld [vmem:[%s1974 + $0x28] sm:$0xf]
      %v1986 = vld [vmem:[%s1974 + $0x2c] sm:$0xf]
      %v1987 = vld [vmem:[%s1974 + $0x30] sm:$0xf]
      %v1988 = vld [vmem:[%s1974 + $0x34] sm:$0xf]
      %v1989 = vld [vmem:[%s1974 + $0x38] sm:$0xf]
      %v1990 = vld [vmem:[%s1974 + $0x3c] sm:$0xf]
      %v2007 = vunpack.c.l.b16 %v1975
      %v2008 = vunpack.c.l.b16 %v1976
      %v2009 = vunpack.c.l.b16 %v1977
      %v2010 = vunpack.c.l.b16 %v1978
      %v2011 = vunpack.c.l.b16 %v1979
      %v2012 = vunpack.c.l.b16 %v1980
      %v2013 = vunpack.c.l.b16 %v1981
      %v2014 = vunpack.c.l.b16 %v1982
      %v2015 = vunpack.c.l.b16 %v1983
      %v2016 = vunpack.c.l.b16 %v1984
      %v2017 = vunpack.c.l.b16 %v1985
      %v2018 = vunpack.c.l.b16 %v1986
      %v2019 = vunpack.c.l.b16 %v1987
      %v2020 = vunpack.c.l.b16 %v1988
      %v2021 = vunpack.c.l.b16 %v1989
      %v2022 = vunpack.c.l.b16 %v1990
      %v2023 = vpack.c.b16 %v2008, %v2007
      %v2024 = vpack.c.b16 %v2010, %v2009
      %v2025 = vpack.c.b16 %v2012, %v2011
      %v2026 = vpack.c.b16 %v2014, %v2013
      %v2027 = vpack.c.b16 %v2016, %v2015
      %v2028 = vpack.c.b16 %v2018, %v2017
      %v2029 = vpack.c.b16 %v2020, %v2019
      %v2030 = vpack.c.b16 %v2022, %v2021
      %2039 = vmatprep.subr.bf16.mxu0 0
      %2040 = vmatpush1.bf16.msra.mxu0 %v2030
      %2041 = vmatprep.subr.bf16.mxu0 0
      %2042 = vmatpush1.bf16.msra.mxu0 %v2029
      %2043 = vmatprep.subr.bf16.mxu0 0
      %2044 = vmatpush1.bf16.msra.mxu0 %v2028
      %2045 = vmatprep.subr.bf16.mxu0 0
      %2046 = vmatpush1.bf16.msra.mxu0 %v2027
      %2047 = vmatprep.subr.bf16.mxu0 0
      %2048 = vmatpush1.bf16.msra.mxu0 %v2026
      %2049 = vmatprep.subr.bf16.mxu0 0
      %2050 = vmatpush1.bf16.msra.mxu0 %v2025
      %2051 = vmatprep.subr.bf16.mxu0 0
      %2052 = vmatpush1.bf16.msra.mxu0 %v2024
      %2053 = vmatprep.subr.bf16.mxu0 0
      %2054 = vmatpush1.bf16.msra.mxu0 %v2023
      %2055 = vmatprep.subr.bf16.mxu0 0
      %2056 = vmatpush2.bf16.msra.mxu0 0
      %2057 = vmatprep.subr.bf16.mxu0 0
      %2058 = vmatpush2.bf16.msra.mxu0 0
      %2059 = vmatprep.subr.bf16.mxu0 0
      %2060 = vmatpush2.bf16.msra.mxu0 0
      %2061 = vmatprep.subr.bf16.mxu0 0
      %2062 = vmatpush2.bf16.msra.mxu0 0
      %2063 = vmatprep.subr.bf16.mxu0 0
      %2064 = vmatpush2.bf16.msra.mxu0 0
      %2065 = vmatprep.subr.bf16.mxu0 0
      %2066 = vmatpush2.bf16.msra.mxu0 0
      %2067 = vmatprep.subr.bf16.mxu0 0
      %2068 = vmatpush2.bf16.msra.mxu0 0
      %2069 = vmatprep.subr.bf16.mxu0 0
      %2070 = vmatpush2.bf16.msra.mxu0 0
      %2071 = vmatprep.mubr.bf16.mxu0 0
      %2072 = vmatmul.mubr.bf16.gmra.mxu0 %v1920
      %v2073 = vpop.f32.mrf.mxu0
      %v2074 = vadd.f32 0.0, %v2073
      %v2075 = vpop.f32.mrf.mxu0
      %v2076 = vpop.f32.mrf.mxu0
      %v2077 = vadd.f32 0.0, %v2076
      %v2078 = vpop.f32.mrf.mxu0
      %2079 = vmatprep.mubr.bf16.mxu0 0
      %2080 = vmatmul.mubr.bf16.gmra.mxu0 %v1921
      %v2081 = vpop.f32.mrf.mxu0
      %v2082 = vadd.f32 0.0, %v2081
      %v2083 = vpop.f32.mrf.mxu0
      %v2084 = vpop.f32.mrf.mxu0
      %v2085 = vadd.f32 0.0, %v2084
      %v2086 = vpop.f32.mrf.mxu0
      %2087 = vmatprep.mubr.bf16.mxu0 0
      %2088 = vmatmul.mubr.bf16.gmra.mxu0 %v1922
      %v2089 = vpop.f32.mrf.mxu0
      %v2090 = vadd.f32 0.0, %v2089
      %v2091 = vpop.f32.mrf.mxu0
      %v2092 = vpop.f32.mrf.mxu0
      %v2093 = vadd.f32 0.0, %v2092
      %v2094 = vpop.f32.mrf.mxu0
      %2095 = vmatprep.mubr.bf16.mxu0 0
      %2096 = vmatmul.mubr.bf16.gmra.mxu0 %v1923
      %v2097 = vpop.f32.mrf.mxu0
      %v2098 = vadd.f32 0.0, %v2097
      %v2099 = vpop.f32.mrf.mxu0
      %v2100 = vpop.f32.mrf.mxu0
      %v2101 = vadd.f32 0.0, %v2100
      %v2102 = vpop.f32.mrf.mxu0
      %2103 = vmatprep.mubr.bf16.mxu0 0
      %2104 = vmatmul.mubr.bf16.gmra.mxu0 %v1924
      %v2105 = vpop.f32.mrf.mxu0
      %v2106 = vadd.f32 0.0, %v2105
      %v2107 = vpop.f32.mrf.mxu0
      %v2108 = vpop.f32.mrf.mxu0
      %v2109 = vadd.f32 0.0, %v2108
      %v2110 = vpop.f32.mrf.mxu0
      %2111 = vmatprep.mubr.bf16.mxu0 0
      %2112 = vmatmul.mubr.bf16.gmra.mxu0 %v1925
      %v2113 = vpop.f32.mrf.mxu0
      %v2114 = vadd.f32 0.0, %v2113
      %v2115 = vpop.f32.mrf.mxu0
      %v2116 = vpop.f32.mrf.mxu0
      %v2117 = vadd.f32 0.0, %v2116
      %v2118 = vpop.f32.mrf.mxu0
      %2119 = vmatprep.mubr.bf16.mxu0 0
      %2120 = vmatmul.mubr.bf16.gmra.mxu0 %v1926
      %v2121 = vpop.f32.mrf.mxu0
      %v2122 = vadd.f32 0.0, %v2121
      %v2123 = vpop.f32.mrf.mxu0
      %v2124 = vpop.f32.mrf.mxu0
      %v2125 = vadd.f32 0.0, %v2124
      %v2126 = vpop.f32.mrf.mxu0
      %2127 = vmatprep.mubr.bf16.mxu0 0
      %2128 = vmatmul.mubr.bf16.gmra.mxu0 %v1927
      %v2129 = vpop.f32.mrf.mxu0
      %v2130 = vadd.f32 0.0, %v2129
      %v2131 = vpop.f32.mrf.mxu0
      %v2132 = vpop.f32.mrf.mxu0
      %v2133 = vadd.f32 0.0, %v2132
      %v2134 = vpop.f32.mrf.mxu0
      %2135 = vmatprep.mubr.bf16.mxu0 0
      %2136 = vmatmul.mubr.bf16.gmra.mxu0 %v1928
      %v2137 = vpop.f32.mrf.mxu0
      %v2138 = vadd.f32 0.0, %v2137
      %v2139 = vpop.f32.mrf.mxu0
      %v2140 = vpop.f32.mrf.mxu0
      %v2141 = vadd.f32 0.0, %v2140
      %v2142 = vpop.f32.mrf.mxu0
      %2143 = vmatprep.mubr.bf16.mxu0 0
      %2144 = vmatmul.mubr.bf16.gmra.mxu0 %v1929
      %v2145 = vpop.f32.mrf.mxu0
      %v2146 = vadd.f32 0.0, %v2145
      %v2147 = vpop.f32.mrf.mxu0
      %v2148 = vpop.f32.mrf.mxu0
      %v2149 = vadd.f32 0.0, %v2148
      %v2150 = vpop.f32.mrf.mxu0
      %2151 = vmatprep.mubr.bf16.mxu0 0
      %2152 = vmatmul.mubr.bf16.gmra.mxu0 %v1930
      %v2153 = vpop.f32.mrf.mxu0
      %v2154 = vadd.f32 0.0, %v2153
      %v2155 = vpop.f32.mrf.mxu0
      %v2156 = vpop.f32.mrf.mxu0
      %v2157 = vadd.f32 0.0, %v2156
      %v2158 = vpop.f32.mrf.mxu0
      %2159 = vmatprep.mubr.bf16.mxu0 0
      %2160 = vmatmul.mubr.bf16.gmra.mxu0 %v1931
      %v2161 = vpop.f32.mrf.mxu0
      %v2162 = vadd.f32 0.0, %v2161
      %v2163 = vpop.f32.mrf.mxu0
      %v2164 = vpop.f32.mrf.mxu0
      %v2165 = vadd.f32 0.0, %v2164
      %v2166 = vpop.f32.mrf.mxu0
      %2167 = vmatprep.mubr.bf16.mxu0 0
      %2168 = vmatmul.mubr.bf16.gmra.mxu0 %v1932
      %v2169 = vpop.f32.mrf.mxu0
      %v2170 = vadd.f32 0.0, %v2169
      %v2171 = vpop.f32.mrf.mxu0
      %v2172 = vpop.f32.mrf.mxu0
      %v2173 = vadd.f32 0.0, %v2172
      %v2174 = vpop.f32.mrf.mxu0
      %2175 = vmatprep.mubr.bf16.mxu0 0
      %2176 = vmatmul.mubr.bf16.gmra.mxu0 %v1933
      %v2177 = vpop.f32.mrf.mxu0
      %v2178 = vadd.f32 0.0, %v2177
      %v2179 = vpop.f32.mrf.mxu0
      %v2180 = vpop.f32.mrf.mxu0
      %v2181 = vadd.f32 0.0, %v2180
      %v2182 = vpop.f32.mrf.mxu0
      %2183 = vmatprep.mubr.bf16.mxu0 0
      %2184 = vmatmul.mubr.bf16.gmra.mxu0 %v1934
      %v2185 = vpop.f32.mrf.mxu0
      %v2186 = vadd.f32 0.0, %v2185
      %v2187 = vpop.f32.mrf.mxu0
      %v2188 = vpop.f32.mrf.mxu0
      %v2189 = vadd.f32 0.0, %v2188
      %v2190 = vpop.f32.mrf.mxu0
      %2191 = vmatprep.mubr.bf16.mxu0 0
      %2192 = vmatmul.mubr.bf16.gmra.mxu0 %v1935
      %v2193 = vpop.f32.mrf.mxu0
      %v2194 = vadd.f32 0.0, %v2193
      %v2195 = vpop.f32.mrf.mxu0
      %v2196 = vpop.f32.mrf.mxu0
      %v2197 = vadd.f32 0.0, %v2196
      %v2198 = vpop.f32.mrf.mxu0
      %2199 = vmatprep.mubr.bf16.mxu0 0
      %2200 = vmatmul.mubr.bf16.gmra.mxu0 %v1936
      %v2201 = vpop.f32.mrf.mxu0
      %v2202 = vadd.f32 0.0, %v2201
      %v2203 = vpop.f32.mrf.mxu0
      %v2204 = vpop.f32.mrf.mxu0
      %v2205 = vadd.f32 0.0, %v2204
      %v2206 = vpop.f32.mrf.mxu0
      %2207 = vmatprep.mubr.bf16.mxu0 0
      %2208 = vmatmul.mubr.bf16.gmra.mxu0 %v1937
      %v2209 = vpop.f32.mrf.mxu0
      %v2210 = vadd.f32 0.0, %v2209
      %v2211 = vpop.f32.mrf.mxu0
      %v2212 = vpop.f32.mrf.mxu0
      %v2213 = vadd.f32 0.0, %v2212
      %v2214 = vpop.f32.mrf.mxu0
      %2215 = vdwg.mxu0
      %v2216 = vadd.f32 %v1938, %v2074
      %v2217 = vadd.f32 %v1939, %v2077
      %v2218 = vadd.f32 %v1940, %v2082
      %v2219 = vadd.f32 %v1941, %v2085
      %v2220 = vadd.f32 %v1942, %v2090
      %v2221 = vadd.f32 %v1943, %v2093
      %v2222 = vadd.f32 %v1944, %v2098
      %v2223 = vadd.f32 %v1945, %v2101
      %v2224 = vadd.f32 %v1946, %v2106
      %v2225 = vadd.f32 %v1947, %v2109
      %v2226 = vadd.f32 %v1948, %v2114
      %v2227 = vadd.f32 %v1949, %v2117
      %v2228 = vadd.f32 %v1950, %v2122
      %v2229 = vadd.f32 %v1951, %v2125
      %v2230 = vadd.f32 %v1952, %v2130
      %v2231 = vadd.f32 %v1953, %v2133
      %v2232 = vadd.f32 %v1954, %v2138
      %v2233 = vadd.f32 %v1955, %v2141
      %v2234 = vadd.f32 %v1956, %v2146
      %v2235 = vadd.f32 %v1957, %v2149
      %v2236 = vadd.f32 %v1958, %v2154
      %v2237 = vadd.f32 %v1959, %v2157
      %v2238 = vadd.f32 %v1960, %v2162
      %v2239 = vadd.f32 %v1961, %v2165
      %v2240 = vadd.f32 %v1962, %v2170
      %v2241 = vadd.f32 %v1963, %v2173
      %v2242 = vadd.f32 %v1964, %v2178
      %v2243 = vadd.f32 %v1965, %v2181
      %v2244 = vadd.f32 %v1966, %v2186
      %v2245 = vadd.f32 %v1967, %v2189
      %v2246 = vadd.f32 %v1968, %v2194
      %v2247 = vadd.f32 %v1969, %v2197
      %v2248 = vadd.f32 %v1970, %v2202
      %v2249 = vadd.f32 %v1971, %v2205
      %v2250 = vadd.f32 %v1972, %v2210
      %v2251 = vadd.f32 %v1973, %v2213
      %2252 = vst [vmem:[#allocation2] sm:$0xff] %v2216
      %2253 = vst [vmem:[#allocation2 + $0x8] sm:$0xff] %v2217
      %2254 = vst [vmem:[#allocation2 + $0x10] sm:$0xff] %v2218
      %2255 = vst [vmem:[#allocation2 + $0x18] sm:$0xff] %v2219
      %2256 = vst [vmem:[#allocation2 + $0x20] sm:$0xff] %v2220
      %2257 = vst [vmem:[#allocation2 + $0x28] sm:$0xff] %v2221
      %2258 = vst [vmem:[#allocation2 + $0x30] sm:$0xff] %v2222
      %2259 = vst [vmem:[#allocation2 + $0x38] sm:$0xff] %v2223
      %2260 = vst [vmem:[#allocation2 + $0x40] sm:$0xff] %v2224
      %2261 = vst [vmem:[#allocation2 + $0x48] sm:$0xff] %v2225
      %2262 = vst [vmem:[#allocation2 + $0x50] sm:$0xff] %v2226
      %2263 = vst [vmem:[#allocation2 + $0x58] sm:$0xff] %v2227
      %2264 = vst [vmem:[#allocation2 + $0x60] sm:$0xff] %v2228
      %2265 = vst [vmem:[#allocation2 + $0x68] sm:$0xff] %v2229
      %2266 = vst [vmem:[#allocation2 + $0x70] sm:$0xff] %v2230
      %2267 = vst [vmem:[#allocation2 + $0x78] sm:$0xff] %v2231
      %2268 = vst [vmem:[#allocation2 + $0x80] sm:$0xff] %v2232
      %2269 = vst [vmem:[#allocation2 + $0x88] sm:$0xff] %v2233
      %2270 = vst [vmem:[#allocation2 + $0x90] sm:$0xff] %v2234
      %2271 = vst [vmem:[#allocation2 + $0x98] sm:$0xff] %v2235
      %2272 = vst [vmem:[#allocation2 + $0xa0] sm:$0xff] %v2236
      %2273 = vst [vmem:[#allocation2 + $0xa8] sm:$0xff] %v2237
      %2274 = vst [vmem:[#allocation2 + $0xb0] sm:$0xff] %v2238
      %2275 = vst [vmem:[#allocation2 + $0xb8] sm:$0xff] %v2239
      %2276 = vst [vmem:[#allocation2 + $0xc0] sm:$0xff] %v2240
      %2277 = vst [vmem:[#allocation2 + $0xc8] sm:$0xff] %v2241
      %2278 = vst [vmem:[#allocation2 + $0xd0] sm:$0xff] %v2242
      %2279 = vst [vmem:[#allocation2 + $0xd8] sm:$0xff] %v2243
      %2280 = vst [vmem:[#allocation2 + $0xe0] sm:$0xff] %v2244
      %2281 = vst [vmem:[#allocation2 + $0xe8] sm:$0xff] %v2245
      %2282 = vst [vmem:[#allocation2 + $0xf0] sm:$0xff] %v2246
      %2283 = vst [vmem:[#allocation2 + $0xf8] sm:$0xff] %v2247
      %2284 = vst [vmem:[#allocation2 + $0x100] sm:$0xff] %v2248
      %2285 = vst [vmem:[#allocation2 + $0x108] sm:$0xff] %v2249
      %2286 = vst [vmem:[#allocation2 + $0x110] sm:$0xff] %v2250
      %2287 = vst [vmem:[#allocation2 + $0x118] sm:$0xff] %v2251
      %v2288 = vld [vmem:[%s219 + $0x19] sm:$0xff]
      %v2289 = vld [vmem:[%s219 + $0x21] sm:$0xff]
      %v2290 = vld [vmem:[%s219 + $0x29] sm:$0xff]
      %v2291 = vld [vmem:[%s219 + $0x31] sm:$0xff]
      %v2292 = vld [vmem:[%s219 + $0x39] sm:$0xff]
      %v2293 = vld [vmem:[%s219 + $0x41] sm:$0xff]
      %v2294 = vld [vmem:[%s219 + $0x49] sm:$0xff]
      %v2295 = vld [vmem:[%s219 + $0x51] sm:$0xff]
      %v2296 = vld [vmem:[%s219 + $0x59] sm:$0xff]
      %v2297 = vld [vmem:[%s219 + $0x61] sm:$0xff]
      %v2298 = vld [vmem:[%s219 + $0x69] sm:$0xff]
      %v2299 = vld [vmem:[%s219 + $0x71] sm:$0xff]
      %v2300 = vld [vmem:[%s219 + $0x79] sm:$0xff]
      %v2301 = vld [vmem:[%s219 + $0x81] sm:$0xff]
      %v2302 = vld [vmem:[%s219 + $0x89] sm:$0xff]
      %v2303 = vld [vmem:[%s219 + $0x91] sm:$0xff]
      %v2304 = vld [vmem:[%s219 + $0x99] sm:$0xff]
      %v2305 = vld [vmem:[%s219 + $0xa1] sm:$0xff]
      %v2306 = vld [vmem:[%s219 + $0xa9] sm:$0xff]
      %v2307 = vld [vmem:[%s219 + $0xb1] sm:$0xff]
      %v2308 = vld [vmem:[%s219 + $0xb9] sm:$0xff]
      %v2309 = vld [vmem:[%s219 + $0xc1] sm:$0xff]
      %v2310 = vld [vmem:[%s219 + $0xc9] sm:$0xff]
      %v2311 = vld [vmem:[%s219 + $0xd1] sm:$0xff]
      %v2312 = vld [vmem:[%s219 + $0xd9] sm:$0xff]
      %v2313 = vld [vmem:[%s219 + $0xe1] sm:$0xff]
      %v2314 = vld [vmem:[%s219 + $0xe9] sm:$0xff]
      %v2315 = vld [vmem:[%s219 + $0xf1] sm:$0xff]
      %v2316 = vld [vmem:[%s219 + $0xf9] sm:$0xff]
      %v2317 = vld [vmem:[%s219 + $0x101] sm:$0xff]
      %v2318 = vld [vmem:[%s219 + $0x109] sm:$0xff]
      %v2319 = vld [vmem:[%s219 + $0x111] sm:$0xff]
      %v2320 = vld [vmem:[%s219 + $0x119] sm:$0xff]
      %v2321 = vld [vmem:[%s219 + $0x121] sm:$0xff]
      %v2322 = vld [vmem:[%s219 + $0x129] sm:$0xff]
      %v2323 = vld [vmem:[%s219 + $0x131] sm:$0xff]
      %v2324 = vpack.c.bf16 %v2289, %v2288
      %v2325 = vpack.c.bf16 %v2291, %v2290
      %v2326 = vpack.c.bf16 %v2293, %v2292
      %v2327 = vpack.c.bf16 %v2295, %v2294
      %v2328 = vpack.c.bf16 %v2297, %v2296
      %v2329 = vpack.c.bf16 %v2299, %v2298
      %v2330 = vpack.c.bf16 %v2301, %v2300
      %v2331 = vpack.c.bf16 %v2303, %v2302
      %v2332 = vpack.c.bf16 %v2305, %v2304
      %v2333 = vpack.c.bf16 %v2307, %v2306
      %v2334 = vpack.c.bf16 %v2309, %v2308
      %v2335 = vpack.c.bf16 %v2311, %v2310
      %v2336 = vpack.c.bf16 %v2313, %v2312
      %v2337 = vpack.c.bf16 %v2315, %v2314
      %v2338 = vpack.c.bf16 %v2317, %v2316
      %v2339 = vpack.c.bf16 %v2319, %v2318
      %v2340 = vpack.c.bf16 %v2321, %v2320
      %v2341 = vpack.c.bf16 %v2323, %v2322
      %v2342 = vld [vmem:[#allocation2] sm:$0xff]
      %v2343 = vld [vmem:[#allocation2 + $0x8] sm:$0xff]
      %v2344 = vld [vmem:[#allocation2 + $0x10] sm:$0xff]
      %v2345 = vld [vmem:[#allocation2 + $0x18] sm:$0xff]
      %v2346 = vld [vmem:[#allocation2 + $0x20] sm:$0xff]
      %v2347 = vld [vmem:[#allocation2 + $0x28] sm:$0xff]
      %v2348 = vld [vmem:[#allocation2 + $0x30] sm:$0xff]
      %v2349 = vld [vmem:[#allocation2 + $0x38] sm:$0xff]
      %v2350 = vld [vmem:[#allocation2 + $0x40] sm:$0xff]
      %v2351 = vld [vmem:[#allocation2 + $0x48] sm:$0xff]
      %v2352 = vld [vmem:[#allocation2 + $0x50] sm:$0xff]
      %v2353 = vld [vmem:[#allocation2 + $0x58] sm:$0xff]
      %v2354 = vld [vmem:[#allocation2 + $0x60] sm:$0xff]
      %v2355 = vld [vmem:[#allocation2 + $0x68] sm:$0xff]
      %v2356 = vld [vmem:[#allocation2 + $0x70] sm:$0xff]
      %v2357 = vld [vmem:[#allocation2 + $0x78] sm:$0xff]
      %v2358 = vld [vmem:[#allocation2 + $0x80] sm:$0xff]
      %v2359 = vld [vmem:[#allocation2 + $0x88] sm:$0xff]
      %v2360 = vld [vmem:[#allocation2 + $0x90] sm:$0xff]
      %v2361 = vld [vmem:[#allocation2 + $0x98] sm:$0xff]
      %v2362 = vld [vmem:[#allocation2 + $0xa0] sm:$0xff]
      %v2363 = vld [vmem:[#allocation2 + $0xa8] sm:$0xff]
      %v2364 = vld [vmem:[#allocation2 + $0xb0] sm:$0xff]
      %v2365 = vld [vmem:[#allocation2 + $0xb8] sm:$0xff]
      %v2366 = vld [vmem:[#allocation2 + $0xc0] sm:$0xff]
      %v2367 = vld [vmem:[#allocation2 + $0xc8] sm:$0xff]
      %v2368 = vld [vmem:[#allocation2 + $0xd0] sm:$0xff]
      %v2369 = vld [vmem:[#allocation2 + $0xd8] sm:$0xff]
      %v2370 = vld [vmem:[#allocation2 + $0xe0] sm:$0xff]
      %v2371 = vld [vmem:[#allocation2 + $0xe8] sm:$0xff]
      %v2372 = vld [vmem:[#allocation2 + $0xf0] sm:$0xff]
      %v2373 = vld [vmem:[#allocation2 + $0xf8] sm:$0xff]
      %v2374 = vld [vmem:[#allocation2 + $0x100] sm:$0xff]
      %v2375 = vld [vmem:[#allocation2 + $0x108] sm:$0xff]
      %v2376 = vld [vmem:[#allocation2 + $0x110] sm:$0xff]
      %v2377 = vld [vmem:[#allocation2 + $0x118] sm:$0xff]
      %s2378 = scalar_lea.vmem %s1, 320
      %v2379 = vld [vmem:[%s2378] sm:$0xf]
      %v2380 = vld [vmem:[%s2378 + $0x4] sm:$0xf]
      %v2381 = vld [vmem:[%s2378 + $0x8] sm:$0xf]
      %v2382 = vld [vmem:[%s2378 + $0xc] sm:$0xf]
      %v2383 = vld [vmem:[%s2378 + $0x10] sm:$0xf]
      %v2384 = vld [vmem:[%s2378 + $0x14] sm:$0xf]
      %v2385 = vld [vmem:[%s2378 + $0x18] sm:$0xf]
      %v2386 = vld [vmem:[%s2378 + $0x1c] sm:$0xf]
      %v2387 = vld [vmem:[%s2378 + $0x20] sm:$0xf]
      %v2388 = vld [vmem:[%s2378 + $0x24] sm:$0xf]
      %v2389 = vld [vmem:[%s2378 + $0x28] sm:$0xf]
      %v2390 = vld [vmem:[%s2378 + $0x2c] sm:$0xf]
      %v2391 = vld [vmem:[%s2378 + $0x30] sm:$0xf]
      %v2392 = vld [vmem:[%s2378 + $0x34] sm:$0xf]
      %v2393 = vld [vmem:[%s2378 + $0x38] sm:$0xf]
      %v2394 = vld [vmem:[%s2378 + $0x3c] sm:$0xf]
      %v2411 = vunpack.c.l.b16 %v2379
      %v2412 = vunpack.c.l.b16 %v2380
      %v2413 = vunpack.c.l.b16 %v2381
      %v2414 = vunpack.c.l.b16 %v2382
      %v2415 = vunpack.c.l.b16 %v2383
      %v2416 = vunpack.c.l.b16 %v2384
      %v2417 = vunpack.c.l.b16 %v2385
      %v2418 = vunpack.c.l.b16 %v2386
      %v2419 = vunpack.c.l.b16 %v2387
      %v2420 = vunpack.c.l.b16 %v2388
      %v2421 = vunpack.c.l.b16 %v2389
      %v2422 = vunpack.c.l.b16 %v2390
      %v2423 = vunpack.c.l.b16 %v2391
      %v2424 = vunpack.c.l.b16 %v2392
      %v2425 = vunpack.c.l.b16 %v2393
      %v2426 = vunpack.c.l.b16 %v2394
      %v2427 = vpack.c.b16 %v2412, %v2411
      %v2428 = vpack.c.b16 %v2414, %v2413
      %v2429 = vpack.c.b16 %v2416, %v2415
      %v2430 = vpack.c.b16 %v2418, %v2417
      %v2431 = vpack.c.b16 %v2420, %v2419
      %v2432 = vpack.c.b16 %v2422, %v2421
      %v2433 = vpack.c.b16 %v2424, %v2423
      %v2434 = vpack.c.b16 %v2426, %v2425
      %2443 = vmatprep.subr.bf16.mxu0 0
      %2444 = vmatpush1.bf16.msra.mxu0 %v2434
      %2445 = vmatprep.subr.bf16.mxu0 0
      %2446 = vmatpush1.bf16.msra.mxu0 %v2433
      %2447 = vmatprep.subr.bf16.mxu0 0
      %2448 = vmatpush1.bf16.msra.mxu0 %v2432
      %2449 = vmatprep.subr.bf16.mxu0 0
      %2450 = vmatpush1.bf16.msra.mxu0 %v2431
      %2451 = vmatprep.subr.bf16.mxu0 0
      %2452 = vmatpush1.bf16.msra.mxu0 %v2430
      %2453 = vmatprep.subr.bf16.mxu0 0
      %2454 = vmatpush1.bf16.msra.mxu0 %v2429
      %2455 = vmatprep.subr.bf16.mxu0 0
      %2456 = vmatpush1.bf16.msra.mxu0 %v2428
      %2457 = vmatprep.subr.bf16.mxu0 0
      %2458 = vmatpush1.bf16.msra.mxu0 %v2427
      %2459 = vmatprep.subr.bf16.mxu0 0
      %2460 = vmatpush2.bf16.msra.mxu0 0
      %2461 = vmatprep.subr.bf16.mxu0 0
      %2462 = vmatpush2.bf16.msra.mxu0 0
      %2463 = vmatprep.subr.bf16.mxu0 0
      %2464 = vmatpush2.bf16.msra.mxu0 0
      %2465 = vmatprep.subr.bf16.mxu0 0
      %2466 = vmatpush2.bf16.msra.mxu0 0
      %2467 = vmatprep.subr.bf16.mxu0 0
      %2468 = vmatpush2.bf16.msra.mxu0 0
      %2469 = vmatprep.subr.bf16.mxu0 0
      %2470 = vmatpush2.bf16.msra.mxu0 0
      %2471 = vmatprep.subr.bf16.mxu0 0
      %2472 = vmatpush2.bf16.msra.mxu0 0
      %2473 = vmatprep.subr.bf16.mxu0 0
      %2474 = vmatpush2.bf16.msra.mxu0 0
      %2475 = vmatprep.mubr.bf16.mxu0 0
      %2476 = vmatmul.mubr.bf16.gmra.mxu0 %v2324
      %v2477 = vpop.f32.mrf.mxu0
      %v2478 = vadd.f32 0.0, %v2477
      %v2479 = vpop.f32.mrf.mxu0
      %v2480 = vpop.f32.mrf.mxu0
      %v2481 = vadd.f32 0.0, %v2480
      %v2482 = vpop.f32.mrf.mxu0
      %2483 = vmatprep.mubr.bf16.mxu0 0
      %2484 = vmatmul.mubr.bf16.gmra.mxu0 %v2325
      %v2485 = vpop.f32.mrf.mxu0
      %v2486 = vadd.f32 0.0, %v2485
      %v2487 = vpop.f32.mrf.mxu0
      %v2488 = vpop.f32.mrf.mxu0
      %v2489 = vadd.f32 0.0, %v2488
      %v2490 = vpop.f32.mrf.mxu0
      %2491 = vmatprep.mubr.bf16.mxu0 0
      %2492 = vmatmul.mubr.bf16.gmra.mxu0 %v2326
      %v2493 = vpop.f32.mrf.mxu0
      %v2494 = vadd.f32 0.0, %v2493
      %v2495 = vpop.f32.mrf.mxu0
      %v2496 = vpop.f32.mrf.mxu0
      %v2497 = vadd.f32 0.0, %v2496
      %v2498 = vpop.f32.mrf.mxu0
      %2499 = vmatprep.mubr.bf16.mxu0 0
      %2500 = vmatmul.mubr.bf16.gmra.mxu0 %v2327
      %v2501 = vpop.f32.mrf.mxu0
      %v2502 = vadd.f32 0.0, %v2501
      %v2503 = vpop.f32.mrf.mxu0
      %v2504 = vpop.f32.mrf.mxu0
      %v2505 = vadd.f32 0.0, %v2504
      %v2506 = vpop.f32.mrf.mxu0
      %2507 = vmatprep.mubr.bf16.mxu0 0
      %2508 = vmatmul.mubr.bf16.gmra.mxu0 %v2328
      %v2509 = vpop.f32.mrf.mxu0
      %v2510 = vadd.f32 0.0, %v2509
      %v2511 = vpop.f32.mrf.mxu0
      %v2512 = vpop.f32.mrf.mxu0
      %v2513 = vadd.f32 0.0, %v2512
      %v2514 = vpop.f32.mrf.mxu0
      %2515 = vmatprep.mubr.bf16.mxu0 0
      %2516 = vmatmul.mubr.bf16.gmra.mxu0 %v2329
      %v2517 = vpop.f32.mrf.mxu0
      %v2518 = vadd.f32 0.0, %v2517
      %v2519 = vpop.f32.mrf.mxu0
      %v2520 = vpop.f32.mrf.mxu0
      %v2521 = vadd.f32 0.0, %v2520
      %v2522 = vpop.f32.mrf.mxu0
      %2523 = vmatprep.mubr.bf16.mxu0 0
      %2524 = vmatmul.mubr.bf16.gmra.mxu0 %v2330
      %v2525 = vpop.f32.mrf.mxu0
      %v2526 = vadd.f32 0.0, %v2525
      %v2527 = vpop.f32.mrf.mxu0
      %v2528 = vpop.f32.mrf.mxu0
      %v2529 = vadd.f32 0.0, %v2528
      %v2530 = vpop.f32.mrf.mxu0
      %2531 = vmatprep.mubr.bf16.mxu0 0
      %2532 = vmatmul.mubr.bf16.gmra.mxu0 %v2331
      %v2533 = vpop.f32.mrf.mxu0
      %v2534 = vadd.f32 0.0, %v2533
      %v2535 = vpop.f32.mrf.mxu0
      %v2536 = vpop.f32.mrf.mxu0
      %v2537 = vadd.f32 0.0, %v2536
      %v2538 = vpop.f32.mrf.mxu0
      %2539 = vmatprep.mubr.bf16.mxu0 0
      %2540 = vmatmul.mubr.bf16.gmra.mxu0 %v2332
      %v2541 = vpop.f32.mrf.mxu0
      %v2542 = vadd.f32 0.0, %v2541
      %v2543 = vpop.f32.mrf.mxu0
      %v2544 = vpop.f32.mrf.mxu0
      %v2545 = vadd.f32 0.0, %v2544
      %v2546 = vpop.f32.mrf.mxu0
      %2547 = vmatprep.mubr.bf16.mxu0 0
      %2548 = vmatmul.mubr.bf16.gmra.mxu0 %v2333
      %v2549 = vpop.f32.mrf.mxu0
      %v2550 = vadd.f32 0.0, %v2549
      %v2551 = vpop.f32.mrf.mxu0
      %v2552 = vpop.f32.mrf.mxu0
      %v2553 = vadd.f32 0.0, %v2552
      %v2554 = vpop.f32.mrf.mxu0
      %2555 = vmatprep.mubr.bf16.mxu0 0
      %2556 = vmatmul.mubr.bf16.gmra.mxu0 %v2334
      %v2557 = vpop.f32.mrf.mxu0
      %v2558 = vadd.f32 0.0, %v2557
      %v2559 = vpop.f32.mrf.mxu0
      %v2560 = vpop.f32.mrf.mxu0
      %v2561 = vadd.f32 0.0, %v2560
      %v2562 = vpop.f32.mrf.mxu0
      %2563 = vmatprep.mubr.bf16.mxu0 0
      %2564 = vmatmul.mubr.bf16.gmra.mxu0 %v2335
      %v2565 = vpop.f32.mrf.mxu0
      %v2566 = vadd.f32 0.0, %v2565
      %v2567 = vpop.f32.mrf.mxu0
      %v2568 = vpop.f32.mrf.mxu0
      %v2569 = vadd.f32 0.0, %v2568
      %v2570 = vpop.f32.mrf.mxu0
      %2571 = vmatprep.mubr.bf16.mxu0 0
      %2572 = vmatmul.mubr.bf16.gmra.mxu0 %v2336
      %v2573 = vpop.f32.mrf.mxu0
      %v2574 = vadd.f32 0.0, %v2573
      %v2575 = vpop.f32.mrf.mxu0
      %v2576 = vpop.f32.mrf.mxu0
      %v2577 = vadd.f32 0.0, %v2576
      %v2578 = vpop.f32.mrf.mxu0
      %2579 = vmatprep.mubr.bf16.mxu0 0
      %2580 = vmatmul.mubr.bf16.gmra.mxu0 %v2337
      %v2581 = vpop.f32.mrf.mxu0
      %v2582 = vadd.f32 0.0, %v2581
      %v2583 = vpop.f32.mrf.mxu0
      %v2584 = vpop.f32.mrf.mxu0
      %v2585 = vadd.f32 0.0, %v2584
      %v2586 = vpop.f32.mrf.mxu0
      %2587 = vmatprep.mubr.bf16.mxu0 0
      %2588 = vmatmul.mubr.bf16.gmra.mxu0 %v2338
      %v2589 = vpop.f32.mrf.mxu0
      %v2590 = vadd.f32 0.0, %v2589
      %v2591 = vpop.f32.mrf.mxu0
      %v2592 = vpop.f32.mrf.mxu0
      %v2593 = vadd.f32 0.0, %v2592
      %v2594 = vpop.f32.mrf.mxu0
      %2595 = vmatprep.mubr.bf16.mxu0 0
      %2596 = vmatmul.mubr.bf16.gmra.mxu0 %v2339
      %v2597 = vpop.f32.mrf.mxu0
      %v2598 = vadd.f32 0.0, %v2597
      %v2599 = vpop.f32.mrf.mxu0
      %v2600 = vpop.f32.mrf.mxu0
      %v2601 = vadd.f32 0.0, %v2600
      %v2602 = vpop.f32.mrf.mxu0
      %2603 = vmatprep.mubr.bf16.mxu0 0
      %2604 = vmatmul.mubr.bf16.gmra.mxu0 %v2340
      %v2605 = vpop.f32.mrf.mxu0
      %v2606 = vadd.f32 0.0, %v2605
      %v2607 = vpop.f32.mrf.mxu0
      %v2608 = vpop.f32.mrf.mxu0
      %v2609 = vadd.f32 0.0, %v2608
      %v2610 = vpop.f32.mrf.mxu0
      %2611 = vmatprep.mubr.bf16.mxu0 0
      %2612 = vmatmul.mubr.bf16.gmra.mxu0 %v2341
      %v2613 = vpop.f32.mrf.mxu0
      %v2614 = vadd.f32 0.0, %v2613
      %v2615 = vpop.f32.mrf.mxu0
      %v2616 = vpop.f32.mrf.mxu0
      %v2617 = vadd.f32 0.0, %v2616
      %v2618 = vpop.f32.mrf.mxu0
      %2619 = vdwg.mxu0
      %v2620 = vadd.f32 %v2342, %v2478
      %v2621 = vadd.f32 %v2343, %v2481
      %v2622 = vadd.f32 %v2344, %v2486
      %v2623 = vadd.f32 %v2345, %v2489
      %v2624 = vadd.f32 %v2346, %v2494
      %v2625 = vadd.f32 %v2347, %v2497
      %v2626 = vadd.f32 %v2348, %v2502
      %v2627 = vadd.f32 %v2349, %v2505
      %v2628 = vadd.f32 %v2350, %v2510
      %v2629 = vadd.f32 %v2351, %v2513
      %v2630 = vadd.f32 %v2352, %v2518
      %v2631 = vadd.f32 %v2353, %v2521
      %v2632 = vadd.f32 %v2354, %v2526
      %v2633 = vadd.f32 %v2355, %v2529
      %v2634 = vadd.f32 %v2356, %v2534
      %v2635 = vadd.f32 %v2357, %v2537
      %v2636 = vadd.f32 %v2358, %v2542
      %v2637 = vadd.f32 %v2359, %v2545
      %v2638 = vadd.f32 %v2360, %v2550
      %v2639 = vadd.f32 %v2361, %v2553
      %v2640 = vadd.f32 %v2362, %v2558
      %v2641 = vadd.f32 %v2363, %v2561
      %v2642 = vadd.f32 %v2364, %v2566
      %v2643 = vadd.f32 %v2365, %v2569
      %v2644 = vadd.f32 %v2366, %v2574
      %v2645 = vadd.f32 %v2367, %v2577
      %v2646 = vadd.f32 %v2368, %v2582
      %v2647 = vadd.f32 %v2369, %v2585
      %v2648 = vadd.f32 %v2370, %v2590
      %v2649 = vadd.f32 %v2371, %v2593
      %v2650 = vadd.f32 %v2372, %v2598
      %v2651 = vadd.f32 %v2373, %v2601
      %v2652 = vadd.f32 %v2374, %v2606
      %v2653 = vadd.f32 %v2375, %v2609
      %v2654 = vadd.f32 %v2376, %v2614
      %v2655 = vadd.f32 %v2377, %v2617
      %2656 = vst [vmem:[#allocation2] sm:$0xff] %v2620
      %2657 = vst [vmem:[#allocation2 + $0x8] sm:$0xff] %v2621
      %2658 = vst [vmem:[#allocation2 + $0x10] sm:$0xff] %v2622
      %2659 = vst [vmem:[#allocation2 + $0x18] sm:$0xff] %v2623
      %2660 = vst [vmem:[#allocation2 + $0x20] sm:$0xff] %v2624
      %2661 = vst [vmem:[#allocation2 + $0x28] sm:$0xff] %v2625
      %2662 = vst [vmem:[#allocation2 + $0x30] sm:$0xff] %v2626
      %2663 = vst [vmem:[#allocation2 + $0x38] sm:$0xff] %v2627
      %2664 = vst [vmem:[#allocation2 + $0x40] sm:$0xff] %v2628
      %2665 = vst [vmem:[#allocation2 + $0x48] sm:$0xff] %v2629
      %2666 = vst [vmem:[#allocation2 + $0x50] sm:$0xff] %v2630
      %2667 = vst [vmem:[#allocation2 + $0x58] sm:$0xff] %v2631
      %2668 = vst [vmem:[#allocation2 + $0x60] sm:$0xff] %v2632
      %2669 = vst [vmem:[#allocation2 + $0x68] sm:$0xff] %v2633
      %2670 = vst [vmem:[#allocation2 + $0x70] sm:$0xff] %v2634
      %2671 = vst [vmem:[#allocation2 + $0x78] sm:$0xff] %v2635
      %2672 = vst [vmem:[#allocation2 + $0x80] sm:$0xff] %v2636
      %2673 = vst [vmem:[#allocation2 + $0x88] sm:$0xff] %v2637
      %2674 = vst [vmem:[#allocation2 + $0x90] sm:$0xff] %v2638
      %2675 = vst [vmem:[#allocation2 + $0x98] sm:$0xff] %v2639
      %2676 = vst [vmem:[#allocation2 + $0xa0] sm:$0xff] %v2640
      %2677 = vst [vmem:[#allocation2 + $0xa8] sm:$0xff] %v2641
      %2678 = vst [vmem:[#allocation2 + $0xb0] sm:$0xff] %v2642
      %2679 = vst [vmem:[#allocation2 + $0xb8] sm:$0xff] %v2643
      %2680 = vst [vmem:[#allocation2 + $0xc0] sm:$0xff] %v2644
      %2681 = vst [vmem:[#allocation2 + $0xc8] sm:$0xff] %v2645
      %2682 = vst [vmem:[#allocation2 + $0xd0] sm:$0xff] %v2646
      %2683 = vst [vmem:[#allocation2 + $0xd8] sm:$0xff] %v2647
      %2684 = vst [vmem:[#allocation2 + $0xe0] sm:$0xff] %v2648
      %2685 = vst [vmem:[#allocation2 + $0xe8] sm:$0xff] %v2649
      %2686 = vst [vmem:[#allocation2 + $0xf0] sm:$0xff] %v2650
      %2687 = vst [vmem:[#allocation2 + $0xf8] sm:$0xff] %v2651
      %2688 = vst [vmem:[#allocation2 + $0x100] sm:$0xff] %v2652
      %2689 = vst [vmem:[#allocation2 + $0x108] sm:$0xff] %v2653
      %2690 = vst [vmem:[#allocation2 + $0x110] sm:$0xff] %v2654
      %2691 = vst [vmem:[#allocation2 + $0x118] sm:$0xff] %v2655
      %v2692 = vld [vmem:[%s219 + $0x29] sm:$0xff]
      %v2693 = vld [vmem:[%s219 + $0x31] sm:$0xff]
      %v2694 = vld [vmem:[%s219 + $0x39] sm:$0xff]
      %v2695 = vld [vmem:[%s219 + $0x41] sm:$0xff]
      %v2696 = vld [vmem:[%s219 + $0x49] sm:$0xff]
      %v2697 = vld [vmem:[%s219 + $0x51] sm:$0xff]
      %v2698 = vld [vmem:[%s219 + $0x59] sm:$0xff]
      %v2699 = vld [vmem:[%s219 + $0x61] sm:$0xff]
      %v2700 = vld [vmem:[%s219 + $0x69] sm:$0xff]
      %v2701 = vld [vmem:[%s219 + $0x71] sm:$0xff]
      %v2702 = vld [vmem:[%s219 + $0x79] sm:$0xff]
      %v2703 = vld [vmem:[%s219 + $0x81] sm:$0xff]
      %v2704 = vld [vmem:[%s219 + $0x89] sm:$0xff]
      %v2705 = vld [vmem:[%s219 + $0x91] sm:$0xff]
      %v2706 = vld [vmem:[%s219 + $0x99] sm:$0xff]
      %v2707 = vld [vmem:[%s219 + $0xa1] sm:$0xff]
      %v2708 = vld [vmem:[%s219 + $0xa9] sm:$0xff]
      %v2709 = vld [vmem:[%s219 + $0xb1] sm:$0xff]
      %v2710 = vld [vmem:[%s219 + $0xb9] sm:$0xff]
      %v2711 = vld [vmem:[%s219 + $0xc1] sm:$0xff]
      %v2712 = vld [vmem:[%s219 + $0xc9] sm:$0xff]
      %v2713 = vld [vmem:[%s219 + $0xd1] sm:$0xff]
      %v2714 = vld [vmem:[%s219 + $0xd9] sm:$0xff]
      %v2715 = vld [vmem:[%s219 + $0xe1] sm:$0xff]
      %v2716 = vld [vmem:[%s219 + $0xe9] sm:$0xff]
      %v2717 = vld [vmem:[%s219 + $0xf1] sm:$0xff]
      %v2718 = vld [vmem:[%s219 + $0xf9] sm:$0xff]
      %v2719 = vld [vmem:[%s219 + $0x101] sm:$0xff]
      %v2720 = vld [vmem:[%s219 + $0x109] sm:$0xff]
      %v2721 = vld [vmem:[%s219 + $0x111] sm:$0xff]
      %v2722 = vld [vmem:[%s219 + $0x119] sm:$0xff]
      %v2723 = vld [vmem:[%s219 + $0x121] sm:$0xff]
      %v2724 = vld [vmem:[%s219 + $0x129] sm:$0xff]
      %v2725 = vld [vmem:[%s219 + $0x131] sm:$0xff]
      %v2726 = vld [vmem:[%s219 + $0x139] sm:$0xff]
      %v2727 = vld [vmem:[%s219 + $0x141] sm:$0xff]
      %v2728 = vpack.c.bf16 %v2693, %v2692
      %v2729 = vpack.c.bf16 %v2695, %v2694
      %v2730 = vpack.c.bf16 %v2697, %v2696
      %v2731 = vpack.c.bf16 %v2699, %v2698
      %v2732 = vpack.c.bf16 %v2701, %v2700
      %v2733 = vpack.c.bf16 %v2703, %v2702
      %v2734 = vpack.c.bf16 %v2705, %v2704
      %v2735 = vpack.c.bf16 %v2707, %v2706
      %v2736 = vpack.c.bf16 %v2709, %v2708
      %v2737 = vpack.c.bf16 %v2711, %v2710
      %v2738 = vpack.c.bf16 %v2713, %v2712
      %v2739 = vpack.c.bf16 %v2715, %v2714
      %v2740 = vpack.c.bf16 %v2717, %v2716
      %v2741 = vpack.c.bf16 %v2719, %v2718
      %v2742 = vpack.c.bf16 %v2721, %v2720
      %v2743 = vpack.c.bf16 %v2723, %v2722
      %v2744 = vpack.c.bf16 %v2725, %v2724
      %v2745 = vpack.c.bf16 %v2727, %v2726
      %v2746 = vld [vmem:[#allocation2] sm:$0xff]
      %v2747 = vld [vmem:[#allocation2 + $0x8] sm:$0xff]
      %v2748 = vld [vmem:[#allocation2 + $0x10] sm:$0xff]
      %v2749 = vld [vmem:[#allocation2 + $0x18] sm:$0xff]
      %v2750 = vld [vmem:[#allocation2 + $0x20] sm:$0xff]
      %v2751 = vld [vmem:[#allocation2 + $0x28] sm:$0xff]
      %v2752 = vld [vmem:[#allocation2 + $0x30] sm:$0xff]
      %v2753 = vld [vmem:[#allocation2 + $0x38] sm:$0xff]
      %v2754 = vld [vmem:[#allocation2 + $0x40] sm:$0xff]
      %v2755 = vld [vmem:[#allocation2 + $0x48] sm:$0xff]
      %v2756 = vld [vmem:[#allocation2 + $0x50] sm:$0xff]
      %v2757 = vld [vmem:[#allocation2 + $0x58] sm:$0xff]
      %v2758 = vld [vmem:[#allocation2 + $0x60] sm:$0xff]
      %v2759 = vld [vmem:[#allocation2 + $0x68] sm:$0xff]
      %v2760 = vld [vmem:[#allocation2 + $0x70] sm:$0xff]
      %v2761 = vld [vmem:[#allocation2 + $0x78] sm:$0xff]
      %v2762 = vld [vmem:[#allocation2 + $0x80] sm:$0xff]
      %v2763 = vld [vmem:[#allocation2 + $0x88] sm:$0xff]
      %v2764 = vld [vmem:[#allocation2 + $0x90] sm:$0xff]
      %v2765 = vld [vmem:[#allocation2 + $0x98] sm:$0xff]
      %v2766 = vld [vmem:[#allocation2 + $0xa0] sm:$0xff]
      %v2767 = vld [vmem:[#allocation2 + $0xa8] sm:$0xff]
      %v2768 = vld [vmem:[#allocation2 + $0xb0] sm:$0xff]
      %v2769 = vld [vmem:[#allocation2 + $0xb8] sm:$0xff]
      %v2770 = vld [vmem:[#allocation2 + $0xc0] sm:$0xff]
      %v2771 = vld [vmem:[#allocation2 + $0xc8] sm:$0xff]
      %v2772 = vld [vmem:[#allocation2 + $0xd0] sm:$0xff]
      %v2773 = vld [vmem:[#allocation2 + $0xd8] sm:$0xff]
      %v2774 = vld [vmem:[#allocation2 + $0xe0] sm:$0xff]
      %v2775 = vld [vmem:[#allocation2 + $0xe8] sm:$0xff]
      %v2776 = vld [vmem:[#allocation2 + $0xf0] sm:$0xff]
      %v2777 = vld [vmem:[#allocation2 + $0xf8] sm:$0xff]
      %v2778 = vld [vmem:[#allocation2 + $0x100] sm:$0xff]
      %v2779 = vld [vmem:[#allocation2 + $0x108] sm:$0xff]
      %v2780 = vld [vmem:[#allocation2 + $0x110] sm:$0xff]
      %v2781 = vld [vmem:[#allocation2 + $0x118] sm:$0xff]
      %s2782 = scalar_lea.vmem %s1, 384
      %v2783 = vld [vmem:[%s2782] sm:$0xf]
      %v2784 = vld [vmem:[%s2782 + $0x4] sm:$0xf]
      %v2785 = vld [vmem:[%s2782 + $0x8] sm:$0xf]
      %v2786 = vld [vmem:[%s2782 + $0xc] sm:$0xf]
      %v2787 = vld [vmem:[%s2782 + $0x10] sm:$0xf]
      %v2788 = vld [vmem:[%s2782 + $0x14] sm:$0xf]
      %v2789 = vld [vmem:[%s2782 + $0x18] sm:$0xf]
      %v2790 = vld [vmem:[%s2782 + $0x1c] sm:$0xf]
      %v2791 = vld [vmem:[%s2782 + $0x20] sm:$0xf]
      %v2792 = vld [vmem:[%s2782 + $0x24] sm:$0xf]
      %v2793 = vld [vmem:[%s2782 + $0x28] sm:$0xf]
      %v2794 = vld [vmem:[%s2782 + $0x2c] sm:$0xf]
      %v2795 = vld [vmem:[%s2782 + $0x30] sm:$0xf]
      %v2796 = vld [vmem:[%s2782 + $0x34] sm:$0xf]
      %v2797 = vld [vmem:[%s2782 + $0x38] sm:$0xf]
      %v2798 = vld [vmem:[%s2782 + $0x3c] sm:$0xf]
      %v2815 = vunpack.c.l.b16 %v2783
      %v2816 = vunpack.c.l.b16 %v2784
      %v2817 = vunpack.c.l.b16 %v2785
      %v2818 = vunpack.c.l.b16 %v2786
      %v2819 = vunpack.c.l.b16 %v2787
      %v2820 = vunpack.c.l.b16 %v2788
      %v2821 = vunpack.c.l.b16 %v2789
      %v2822 = vunpack.c.l.b16 %v2790
      %v2823 = vunpack.c.l.b16 %v2791
      %v2824 = vunpack.c.l.b16 %v2792
      %v2825 = vunpack.c.l.b16 %v2793
      %v2826 = vunpack.c.l.b16 %v2794
      %v2827 = vunpack.c.l.b16 %v2795
      %v2828 = vunpack.c.l.b16 %v2796
      %v2829 = vunpack.c.l.b16 %v2797
      %v2830 = vunpack.c.l.b16 %v2798
      %v2831 = vpack.c.b16 %v2816, %v2815
      %v2832 = vpack.c.b16 %v2818, %v2817
      %v2833 = vpack.c.b16 %v2820, %v2819
      %v2834 = vpack.c.b16 %v2822, %v2821
      %v2835 = vpack.c.b16 %v2824, %v2823
      %v2836 = vpack.c.b16 %v2826, %v2825
      %v2837 = vpack.c.b16 %v2828, %v2827
      %v2838 = vpack.c.b16 %v2830, %v2829
      %2847 = vmatprep.subr.bf16.mxu0 0
      %2848 = vmatpush1.bf16.msra.mxu0 %v2838
      %2849 = vmatprep.subr.bf16.mxu0 0
      %2850 = vmatpush1.bf16.msra.mxu0 %v2837
      %2851 = vmatprep.subr.bf16.mxu0 0
      %2852 = vmatpush1.bf16.msra.mxu0 %v2836
      %2853 = vmatprep.subr.bf16.mxu0 0
      %2854 = vmatpush1.bf16.msra.mxu0 %v2835
      %2855 = vmatprep.subr.bf16.mxu0 0
      %2856 = vmatpush1.bf16.msra.mxu0 %v2834
      %2857 = vmatprep.subr.bf16.mxu0 0
      %2858 = vmatpush1.bf16.msra.mxu0 %v2833
      %2859 = vmatprep.subr.bf16.mxu0 0
      %2860 = vmatpush1.bf16.msra.mxu0 %v2832
      %2861 = vmatprep.subr.bf16.mxu0 0
      %2862 = vmatpush1.bf16.msra.mxu0 %v2831
      %2863 = vmatprep.subr.bf16.mxu0 0
      %2864 = vmatpush2.bf16.msra.mxu0 0
      %2865 = vmatprep.subr.bf16.mxu0 0
      %2866 = vmatpush2.bf16.msra.mxu0 0
      %2867 = vmatprep.subr.bf16.mxu0 0
      %2868 = vmatpush2.bf16.msra.mxu0 0
      %2869 = vmatprep.subr.bf16.mxu0 0
      %2870 = vmatpush2.bf16.msra.mxu0 0
      %2871 = vmatprep.subr.bf16.mxu0 0
      %2872 = vmatpush2.bf16.msra.mxu0 0
      %2873 = vmatprep.subr.bf16.mxu0 0
      %2874 = vmatpush2.bf16.msra.mxu0 0
      %2875 = vmatprep.subr.bf16.mxu0 0
      %2876 = vmatpush2.bf16.msra.mxu0 0
      %2877 = vmatprep.subr.bf16.mxu0 0
      %2878 = vmatpush2.bf16.msra.mxu0 0
      %2879 = vmatprep.mubr.bf16.mxu0 0
      %2880 = vmatmul.mubr.bf16.gmra.mxu0 %v2728
      %v2881 = vpop.f32.mrf.mxu0
      %v2882 = vadd.f32 0.0, %v2881
      %v2883 = vpop.f32.mrf.mxu0
      %v2884 = vpop.f32.mrf.mxu0
      %v2885 = vadd.f32 0.0, %v2884
      %v2886 = vpop.f32.mrf.mxu0
      %2887 = vmatprep.mubr.bf16.mxu0 0
      %2888 = vmatmul.mubr.bf16.gmra.mxu0 %v2729
      %v2889 = vpop.f32.mrf.mxu0
      %v2890 = vadd.f32 0.0, %v2889
      %v2891 = vpop.f32.mrf.mxu0
      %v2892 = vpop.f32.mrf.mxu0
      %v2893 = vadd.f32 0.0, %v2892
      %v2894 = vpop.f32.mrf.mxu0
      %2895 = vmatprep.mubr.bf16.mxu0 0
      %2896 = vmatmul.mubr.bf16.gmra.mxu0 %v2730
      %v2897 = vpop.f32.mrf.mxu0
      %v2898 = vadd.f32 0.0, %v2897
      %v2899 = vpop.f32.mrf.mxu0
      %v2900 = vpop.f32.mrf.mxu0
      %v2901 = vadd.f32 0.0, %v2900
      %v2902 = vpop.f32.mrf.mxu0
      %2903 = vmatprep.mubr.bf16.mxu0 0
      %2904 = vmatmul.mubr.bf16.gmra.mxu0 %v2731
      %v2905 = vpop.f32.mrf.mxu0
      %v2906 = vadd.f32 0.0, %v2905
      %v2907 = vpop.f32.mrf.mxu0
      %v2908 = vpop.f32.mrf.mxu0
      %v2909 = vadd.f32 0.0, %v2908
      %v2910 = vpop.f32.mrf.mxu0
      %2911 = vmatprep.mubr.bf16.mxu0 0
      %2912 = vmatmul.mubr.bf16.gmra.mxu0 %v2732
      %v2913 = vpop.f32.mrf.mxu0
      %v2914 = vadd.f32 0.0, %v2913
      %v2915 = vpop.f32.mrf.mxu0
      %v2916 = vpop.f32.mrf.mxu0
      %v2917 = vadd.f32 0.0, %v2916
      %v2918 = vpop.f32.mrf.mxu0
      %2919 = vmatprep.mubr.bf16.mxu0 0
      %2920 = vmatmul.mubr.bf16.gmra.mxu0 %v2733
      %v2921 = vpop.f32.mrf.mxu0
      %v2922 = vadd.f32 0.0, %v2921
      %v2923 = vpop.f32.mrf.mxu0
      %v2924 = vpop.f32.mrf.mxu0
      %v2925 = vadd.f32 0.0, %v2924
      %v2926 = vpop.f32.mrf.mxu0
      %2927 = vmatprep.mubr.bf16.mxu0 0
      %2928 = vmatmul.mubr.bf16.gmra.mxu0 %v2734
      %v2929 = vpop.f32.mrf.mxu0
      %v2930 = vadd.f32 0.0, %v2929
      %v2931 = vpop.f32.mrf.mxu0
      %v2932 = vpop.f32.mrf.mxu0
      %v2933 = vadd.f32 0.0, %v2932
      %v2934 = vpop.f32.mrf.mxu0
      %2935 = vmatprep.mubr.bf16.mxu0 0
      %2936 = vmatmul.mubr.bf16.gmra.mxu0 %v2735
      %v2937 = vpop.f32.mrf.mxu0
      %v2938 = vadd.f32 0.0, %v2937
      %v2939 = vpop.f32.mrf.mxu0
      %v2940 = vpop.f32.mrf.mxu0
      %v2941 = vadd.f32 0.0, %v2940
      %v2942 = vpop.f32.mrf.mxu0
      %2943 = vmatprep.mubr.bf16.mxu0 0
      %2944 = vmatmul.mubr.bf16.gmra.mxu0 %v2736
      %v2945 = vpop.f32.mrf.mxu0
      %v2946 = vadd.f32 0.0, %v2945
      %v2947 = vpop.f32.mrf.mxu0
      %v2948 = vpop.f32.mrf.mxu0
      %v2949 = vadd.f32 0.0, %v2948
      %v2950 = vpop.f32.mrf.mxu0
      %2951 = vmatprep.mubr.bf16.mxu0 0
      %2952 = vmatmul.mubr.bf16.gmra.mxu0 %v2737
      %v2953 = vpop.f32.mrf.mxu0
      %v2954 = vadd.f32 0.0, %v2953
      %v2955 = vpop.f32.mrf.mxu0
      %v2956 = vpop.f32.mrf.mxu0
      %v2957 = vadd.f32 0.0, %v2956
      %v2958 = vpop.f32.mrf.mxu0
      %2959 = vmatprep.mubr.bf16.mxu0 0
      %2960 = vmatmul.mubr.bf16.gmra.mxu0 %v2738
      %v2961 = vpop.f32.mrf.mxu0
      %v2962 = vadd.f32 0.0, %v2961
      %v2963 = vpop.f32.mrf.mxu0
      %v2964 = vpop.f32.mrf.mxu0
      %v2965 = vadd.f32 0.0, %v2964
      %v2966 = vpop.f32.mrf.mxu0
      %2967 = vmatprep.mubr.bf16.mxu0 0
      %2968 = vmatmul.mubr.bf16.gmra.mxu0 %v2739
      %v2969 = vpop.f32.mrf.mxu0
      %v2970 = vadd.f32 0.0, %v2969
      %v2971 = vpop.f32.mrf.mxu0
      %v2972 = vpop.f32.mrf.mxu0
      %v2973 = vadd.f32 0.0, %v2972
      %v2974 = vpop.f32.mrf.mxu0
      %2975 = vmatprep.mubr.bf16.mxu0 0
      %2976 = vmatmul.mubr.bf16.gmra.mxu0 %v2740
      %v2977 = vpop.f32.mrf.mxu0
      %v2978 = vadd.f32 0.0, %v2977
      %v2979 = vpop.f32.mrf.mxu0
      %v2980 = vpop.f32.mrf.mxu0
      %v2981 = vadd.f32 0.0, %v2980
      %v2982 = vpop.f32.mrf.mxu0
      %2983 = vmatprep.mubr.bf16.mxu0 0
      %2984 = vmatmul.mubr.bf16.gmra.mxu0 %v2741
      %v2985 = vpop.f32.mrf.mxu0
      %v2986 = vadd.f32 0.0, %v2985
      %v2987 = vpop.f32.mrf.mxu0
      %v2988 = vpop.f32.mrf.mxu0
      %v2989 = vadd.f32 0.0, %v2988
      %v2990 = vpop.f32.mrf.mxu0
      %2991 = vmatprep.mubr.bf16.mxu0 0
      %2992 = vmatmul.mubr.bf16.gmra.mxu0 %v2742
      %v2993 = vpop.f32.mrf.mxu0
      %v2994 = vadd.f32 0.0, %v2993
      %v2995 = vpop.f32.mrf.mxu0
      %v2996 = vpop.f32.mrf.mxu0
      %v2997 = vadd.f32 0.0, %v2996
      %v2998 = vpop.f32.mrf.mxu0
      %2999 = vmatprep.mubr.bf16.mxu0 0
      %3000 = vmatmul.mubr.bf16.gmra.mxu0 %v2743
      %v3001 = vpop.f32.mrf.mxu0
      %v3002 = vadd.f32 0.0, %v3001
      %v3003 = vpop.f32.mrf.mxu0
      %v3004 = vpop.f32.mrf.mxu0
      %v3005 = vadd.f32 0.0, %v3004
      %v3006 = vpop.f32.mrf.mxu0
      %3007 = vmatprep.mubr.bf16.mxu0 0
      %3008 = vmatmul.mubr.bf16.gmra.mxu0 %v2744
      %v3009 = vpop.f32.mrf.mxu0
      %v3010 = vadd.f32 0.0, %v3009
      %v3011 = vpop.f32.mrf.mxu0
      %v3012 = vpop.f32.mrf.mxu0
      %v3013 = vadd.f32 0.0, %v3012
      %v3014 = vpop.f32.mrf.mxu0
      %3015 = vmatprep.mubr.bf16.mxu0 0
      %3016 = vmatmul.mubr.bf16.gmra.mxu0 %v2745
      %v3017 = vpop.f32.mrf.mxu0
      %v3018 = vadd.f32 0.0, %v3017
      %v3019 = vpop.f32.mrf.mxu0
      %v3020 = vpop.f32.mrf.mxu0
      %v3021 = vadd.f32 0.0, %v3020
      %v3022 = vpop.f32.mrf.mxu0
      %3023 = vdwg.mxu0
      %v3024 = vadd.f32 %v2746, %v2882
      %v3025 = vadd.f32 %v2747, %v2885
      %v3026 = vadd.f32 %v2748, %v2890
      %v3027 = vadd.f32 %v2749, %v2893
      %v3028 = vadd.f32 %v2750, %v2898
      %v3029 = vadd.f32 %v2751, %v2901
      %v3030 = vadd.f32 %v2752, %v2906
      %v3031 = vadd.f32 %v2753, %v2909
      %v3032 = vadd.f32 %v2754, %v2914
      %v3033 = vadd.f32 %v2755, %v2917
      %v3034 = vadd.f32 %v2756, %v2922
      %v3035 = vadd.f32 %v2757, %v2925
      %v3036 = vadd.f32 %v2758, %v2930
      %v3037 = vadd.f32 %v2759, %v2933
      %v3038 = vadd.f32 %v2760, %v2938
      %v3039 = vadd.f32 %v2761, %v2941
      %v3040 = vadd.f32 %v2762, %v2946
      %v3041 = vadd.f32 %v2763, %v2949
      %v3042 = vadd.f32 %v2764, %v2954
      %v3043 = vadd.f32 %v2765, %v2957
      %v3044 = vadd.f32 %v2766, %v2962
      %v3045 = vadd.f32 %v2767, %v2965
      %v3046 = vadd.f32 %v2768, %v2970
      %v3047 = vadd.f32 %v2769, %v2973
      %v3048 = vadd.f32 %v2770, %v2978
      %v3049 = vadd.f32 %v2771, %v2981
      %v3050 = vadd.f32 %v2772, %v2986
      %v3051 = vadd.f32 %v2773, %v2989
      %v3052 = vadd.f32 %v2774, %v2994
      %v3053 = vadd.f32 %v2775, %v2997
      %v3054 = vadd.f32 %v2776, %v3002
      %v3055 = vadd.f32 %v2777, %v3005
      %v3056 = vadd.f32 %v2778, %v3010
      %v3057 = vadd.f32 %v2779, %v3013
      %v3058 = vadd.f32 %v2780, %v3018
      %v3059 = vadd.f32 %v2781, %v3021
      %3060 = vst [vmem:[#allocation2] sm:$0xff] %v3024
      %3061 = vst [vmem:[#allocation2 + $0x8] sm:$0xff] %v3025
      %3062 = vst [vmem:[#allocation2 + $0x10] sm:$0xff] %v3026
      %3063 = vst [vmem:[#allocation2 + $0x18] sm:$0xff] %v3027
      %3064 = vst [vmem:[#allocation2 + $0x20] sm:$0xff] %v3028
      %3065 = vst [vmem:[#allocation2 + $0x28] sm:$0xff] %v3029
      %3066 = vst [vmem:[#allocation2 + $0x30] sm:$0xff] %v3030
      %3067 = vst [vmem:[#allocation2 + $0x38] sm:$0xff] %v3031
      %3068 = vst [vmem:[#allocation2 + $0x40] sm:$0xff] %v3032
      %3069 = vst [vmem:[#allocation2 + $0x48] sm:$0xff] %v3033
      %3070 = vst [vmem:[#allocation2 + $0x50] sm:$0xff] %v3034
      %3071 = vst [vmem:[#allocation2 + $0x58] sm:$0xff] %v3035
      %3072 = vst [vmem:[#allocation2 + $0x60] sm:$0xff] %v3036
      %3073 = vst [vmem:[#allocation2 + $0x68] sm:$0xff] %v3037
      %3074 = vst [vmem:[#allocation2 + $0x70] sm:$0xff] %v3038
      %3075 = vst [vmem:[#allocation2 + $0x78] sm:$0xff] %v3039
      %3076 = vst [vmem:[#allocation2 + $0x80] sm:$0xff] %v3040
      %3077 = vst [vmem:[#allocation2 + $0x88] sm:$0xff] %v3041
      %3078 = vst [vmem:[#allocation2 + $0x90] sm:$0xff] %v3042
      %3079 = vst [vmem:[#allocation2 + $0x98] sm:$0xff] %v3043
      %3080 = vst [vmem:[#allocation2 + $0xa0] sm:$0xff] %v3044
      %3081 = vst [vmem:[#allocation2 + $0xa8] sm:$0xff] %v3045
      %3082 = vst [vmem:[#allocation2 + $0xb0] sm:$0xff] %v3046
      %3083 = vst [vmem:[#allocation2 + $0xb8] sm:$0xff] %v3047
      %3084 = vst [vmem:[#allocation2 + $0xc0] sm:$0xff] %v3048
      %3085 = vst [vmem:[#allocation2 + $0xc8] sm:$0xff] %v3049
      %3086 = vst [vmem:[#allocation2 + $0xd0] sm:$0xff] %v3050
      %3087 = vst [vmem:[#allocation2 + $0xd8] sm:$0xff] %v3051
      %3088 = vst [vmem:[#allocation2 + $0xe0] sm:$0xff] %v3052
      %3089 = vst [vmem:[#allocation2 + $0xe8] sm:$0xff] %v3053
      %3090 = vst [vmem:[#allocation2 + $0xf0] sm:$0xff] %v3054
      %3091 = vst [vmem:[#allocation2 + $0xf8] sm:$0xff] %v3055
      %3092 = vst [vmem:[#allocation2 + $0x100] sm:$0xff] %v3056
      %3093 = vst [vmem:[#allocation2 + $0x108] sm:$0xff] %v3057
      %3094 = vst [vmem:[#allocation2 + $0x110] sm:$0xff] %v3058
      %3095 = vst [vmem:[#allocation2 + $0x118] sm:$0xff] %v3059
      %v3096 = vld [vmem:[%s219 + $0x2a] sm:$0xff]
      %v3097 = vld [vmem:[%s219 + $0x32] sm:$0xff]
      %v3098 = vld [vmem:[%s219 + $0x3a] sm:$0xff]
      %v3099 = vld [vmem:[%s219 + $0x42] sm:$0xff]
      %v3100 = vld [vmem:[%s219 + $0x4a] sm:$0xff]
      %v3101 = vld [vmem:[%s219 + $0x52] sm:$0xff]
      %v3102 = vld [vmem:[%s219 + $0x5a] sm:$0xff]
      %v3103 = vld [vmem:[%s219 + $0x62] sm:$0xff]
      %v3104 = vld [vmem:[%s219 + $0x6a] sm:$0xff]
      %v3105 = vld [vmem:[%s219 + $0x72] sm:$0xff]
      %v3106 = vld [vmem:[%s219 + $0x7a] sm:$0xff]
      %v3107 = vld [vmem:[%s219 + $0x82] sm:$0xff]
      %v3108 = vld [vmem:[%s219 + $0x8a] sm:$0xff]
      %v3109 = vld [vmem:[%s219 + $0x92] sm:$0xff]
      %v3110 = vld [vmem:[%s219 + $0x9a] sm:$0xff]
      %v3111 = vld [vmem:[%s219 + $0xa2] sm:$0xff]
      %v3112 = vld [vmem:[%s219 + $0xaa] sm:$0xff]
      %v3113 = vld [vmem:[%s219 + $0xb2] sm:$0xff]
      %v3114 = vld [vmem:[%s219 + $0xba] sm:$0xff]
      %v3115 = vld [vmem:[%s219 + $0xc2] sm:$0xff]
      %v3116 = vld [vmem:[%s219 + $0xca] sm:$0xff]
      %v3117 = vld [vmem:[%s219 + $0xd2] sm:$0xff]
      %v3118 = vld [vmem:[%s219 + $0xda] sm:$0xff]
      %v3119 = vld [vmem:[%s219 + $0xe2] sm:$0xff]
      %v3120 = vld [vmem:[%s219 + $0xea] sm:$0xff]
      %v3121 = vld [vmem:[%s219 + $0xf2] sm:$0xff]
      %v3122 = vld [vmem:[%s219 + $0xfa] sm:$0xff]
      %v3123 = vld [vmem:[%s219 + $0x102] sm:$0xff]
      %v3124 = vld [vmem:[%s219 + $0x10a] sm:$0xff]
      %v3125 = vld [vmem:[%s219 + $0x112] sm:$0xff]
      %v3126 = vld [vmem:[%s219 + $0x11a] sm:$0xff]
      %v3127 = vld [vmem:[%s219 + $0x122] sm:$0xff]
      %v3128 = vld [vmem:[%s219 + $0x12a] sm:$0xff]
      %v3129 = vld [vmem:[%s219 + $0x132] sm:$0xff]
      %v3130 = vld [vmem:[%s219 + $0x13a] sm:$0xff]
      %v3131 = vld [vmem:[%s219 + $0x142] sm:$0xff]
      %v3132 = vpack.c.bf16 %v3097, %v3096
      %v3133 = vpack.c.bf16 %v3099, %v3098
      %v3134 = vpack.c.bf16 %v3101, %v3100
      %v3135 = vpack.c.bf16 %v3103, %v3102
      %v3136 = vpack.c.bf16 %v3105, %v3104
      %v3137 = vpack.c.bf16 %v3107, %v3106
      %v3138 = vpack.c.bf16 %v3109, %v3108
      %v3139 = vpack.c.bf16 %v3111, %v3110
      %v3140 = vpack.c.bf16 %v3113, %v3112
      %v3141 = vpack.c.bf16 %v3115, %v3114
      %v3142 = vpack.c.bf16 %v3117, %v3116
      %v3143 = vpack.c.bf16 %v3119, %v3118
      %v3144 = vpack.c.bf16 %v3121, %v3120
      %v3145 = vpack.c.bf16 %v3123, %v3122
      %v3146 = vpack.c.bf16 %v3125, %v3124
      %v3147 = vpack.c.bf16 %v3127, %v3126
      %v3148 = vpack.c.bf16 %v3129, %v3128
      %v3149 = vpack.c.bf16 %v3131, %v3130
      %v3150 = vld [vmem:[#allocation2] sm:$0xff]
      %v3151 = vld [vmem:[#allocation2 + $0x8] sm:$0xff]
      %v3152 = vld [vmem:[#allocation2 + $0x10] sm:$0xff]
      %v3153 = vld [vmem:[#allocation2 + $0x18] sm:$0xff]
      %v3154 = vld [vmem:[#allocation2 + $0x20] sm:$0xff]
      %v3155 = vld [vmem:[#allocation2 + $0x28] sm:$0xff]
      %v3156 = vld [vmem:[#allocation2 + $0x30] sm:$0xff]
      %v3157 = vld [vmem:[#allocation2 + $0x38] sm:$0xff]
      %v3158 = vld [vmem:[#allocation2 + $0x40] sm:$0xff]
      %v3159 = vld [vmem:[#allocation2 + $0x48] sm:$0xff]
      %v3160 = vld [vmem:[#allocation2 + $0x50] sm:$0xff]
      %v3161 = vld [vmem:[#allocation2 + $0x58] sm:$0xff]
      %v3162 = vld [vmem:[#allocation2 + $0x60] sm:$0xff]
      %v3163 = vld [vmem:[#allocation2 + $0x68] sm:$0xff]
      %v3164 = vld [vmem:[#allocation2 + $0x70] sm:$0xff]
      %v3165 = vld [vmem:[#allocation2 + $0x78] sm:$0xff]
      %v3166 = vld [vmem:[#allocation2 + $0x80] sm:$0xff]
      %v3167 = vld [vmem:[#allocation2 + $0x88] sm:$0xff]
      %v3168 = vld [vmem:[#allocation2 + $0x90] sm:$0xff]
      %v3169 = vld [vmem:[#allocation2 + $0x98] sm:$0xff]
      %v3170 = vld [vmem:[#allocation2 + $0xa0] sm:$0xff]
      %v3171 = vld [vmem:[#allocation2 + $0xa8] sm:$0xff]
      %v3172 = vld [vmem:[#allocation2 + $0xb0] sm:$0xff]
      %v3173 = vld [vmem:[#allocation2 + $0xb8] sm:$0xff]
      %v3174 = vld [vmem:[#allocation2 + $0xc0] sm:$0xff]
      %v3175 = vld [vmem:[#allocation2 + $0xc8] sm:$0xff]
      %v3176 = vld [vmem:[#allocation2 + $0xd0] sm:$0xff]
      %v3177 = vld [vmem:[#allocation2 + $0xd8] sm:$0xff]
      %v3178 = vld [vmem:[#allocation2 + $0xe0] sm:$0xff]
      %v3179 = vld [vmem:[#allocation2 + $0xe8] sm:$0xff]
      %v3180 = vld [vmem:[#allocation2 + $0xf0] sm:$0xff]
      %v3181 = vld [vmem:[#allocation2 + $0xf8] sm:$0xff]
      %v3182 = vld [vmem:[#allocation2 + $0x100] sm:$0xff]
      %v3183 = vld [vmem:[#allocation2 + $0x108] sm:$0xff]
      %v3184 = vld [vmem:[#allocation2 + $0x110] sm:$0xff]
      %v3185 = vld [vmem:[#allocation2 + $0x118] sm:$0xff]
      %s3186 = scalar_lea.vmem %s1, 448
      %v3187 = vld [vmem:[%s3186] sm:$0xf]
      %v3188 = vld [vmem:[%s3186 + $0x4] sm:$0xf]
      %v3189 = vld [vmem:[%s3186 + $0x8] sm:$0xf]
      %v3190 = vld [vmem:[%s3186 + $0xc] sm:$0xf]
      %v3191 = vld [vmem:[%s3186 + $0x10] sm:$0xf]
      %v3192 = vld [vmem:[%s3186 + $0x14] sm:$0xf]
      %v3193 = vld [vmem:[%s3186 + $0x18] sm:$0xf]
      %v3194 = vld [vmem:[%s3186 + $0x1c] sm:$0xf]
      %v3195 = vld [vmem:[%s3186 + $0x20] sm:$0xf]
      %v3196 = vld [vmem:[%s3186 + $0x24] sm:$0xf]
      %v3197 = vld [vmem:[%s3186 + $0x28] sm:$0xf]
      %v3198 = vld [vmem:[%s3186 + $0x2c] sm:$0xf]
      %v3199 = vld [vmem:[%s3186 + $0x30] sm:$0xf]
      %v3200 = vld [vmem:[%s3186 + $0x34] sm:$0xf]
      %v3201 = vld [vmem:[%s3186 + $0x38] sm:$0xf]
      %v3202 = vld [vmem:[%s3186 + $0x3c] sm:$0xf]
      %v3219 = vunpack.c.l.b16 %v3187
      %v3220 = vunpack.c.l.b16 %v3188
      %v3221 = vunpack.c.l.b16 %v3189
      %v3222 = vunpack.c.l.b16 %v3190
      %v3223 = vunpack.c.l.b16 %v3191
      %v3224 = vunpack.c.l.b16 %v3192
      %v3225 = vunpack.c.l.b16 %v3193
      %v3226 = vunpack.c.l.b16 %v3194
      %v3227 = vunpack.c.l.b16 %v3195
      %v3228 = vunpack.c.l.b16 %v3196
      %v3229 = vunpack.c.l.b16 %v3197
      %v3230 = vunpack.c.l.b16 %v3198
      %v3231 = vunpack.c.l.b16 %v3199
      %v3232 = vunpack.c.l.b16 %v3200
      %v3233 = vunpack.c.l.b16 %v3201
      %v3234 = vunpack.c.l.b16 %v3202
      %v3235 = vpack.c.b16 %v3220, %v3219
      %v3236 = vpack.c.b16 %v3222, %v3221
      %v3237 = vpack.c.b16 %v3224, %v3223
      %v3238 = vpack.c.b16 %v3226, %v3225
      %v3239 = vpack.c.b16 %v3228, %v3227
      %v3240 = vpack.c.b16 %v3230, %v3229
      %v3241 = vpack.c.b16 %v3232, %v3231
      %v3242 = vpack.c.b16 %v3234, %v3233
      %3251 = vmatprep.subr.bf16.mxu0 0
      %3252 = vmatpush1.bf16.msra.mxu0 %v3242
      %3253 = vmatprep.subr.bf16.mxu0 0
      %3254 = vmatpush1.bf16.msra.mxu0 %v3241
      %3255 = vmatprep.subr.bf16.mxu0 0
      %3256 = vmatpush1.bf16.msra.mxu0 %v3240
      %3257 = vmatprep.subr.bf16.mxu0 0
      %3258 = vmatpush1.bf16.msra.mxu0 %v3239
      %3259 = vmatprep.subr.bf16.mxu0 0
      %3260 = vmatpush1.bf16.msra.mxu0 %v3238
      %3261 = vmatprep.subr.bf16.mxu0 0
      %3262 = vmatpush1.bf16.msra.mxu0 %v3237
      %3263 = vmatprep.subr.bf16.mxu0 0
      %3264 = vmatpush1.bf16.msra.mxu0 %v3236
      %3265 = vmatprep.subr.bf16.mxu0 0
      %3266 = vmatpush1.bf16.msra.mxu0 %v3235
      %3267 = vmatprep.subr.bf16.mxu0 0
      %3268 = vmatpush2.bf16.msra.mxu0 0
      %3269 = vmatprep.subr.bf16.mxu0 0
      %3270 = vmatpush2.bf16.msra.mxu0 0
      %3271 = vmatprep.subr.bf16.mxu0 0
      %3272 = vmatpush2.bf16.msra.mxu0 0
      %3273 = vmatprep.subr.bf16.mxu0 0
      %3274 = vmatpush2.bf16.msra.mxu0 0
      %3275 = vmatprep.subr.bf16.mxu0 0
      %3276 = vmatpush2.bf16.msra.mxu0 0
      %3277 = vmatprep.subr.bf16.mxu0 0
      %3278 = vmatpush2.bf16.msra.mxu0 0
      %3279 = vmatprep.subr.bf16.mxu0 0
      %3280 = vmatpush2.bf16.msra.mxu0 0
      %3281 = vmatprep.subr.bf16.mxu0 0
      %3282 = vmatpush2.bf16.msra.mxu0 0
      %3283 = vmatprep.mubr.bf16.mxu0 0
      %3284 = vmatmul.mubr.bf16.gmra.mxu0 %v3132
      %v3285 = vpop.f32.mrf.mxu0
      %v3286 = vadd.f32 0.0, %v3285
      %v3287 = vpop.f32.mrf.mxu0
      %v3288 = vpop.f32.mrf.mxu0
      %v3289 = vadd.f32 0.0, %v3288
      %v3290 = vpop.f32.mrf.mxu0
      %3291 = vmatprep.mubr.bf16.mxu0 0
      %3292 = vmatmul.mubr.bf16.gmra.mxu0 %v3133
      %v3293 = vpop.f32.mrf.mxu0
      %v3294 = vadd.f32 0.0, %v3293
      %v3295 = vpop.f32.mrf.mxu0
      %v3296 = vpop.f32.mrf.mxu0
      %v3297 = vadd.f32 0.0, %v3296
      %v3298 = vpop.f32.mrf.mxu0
      %3299 = vmatprep.mubr.bf16.mxu0 0
      %3300 = vmatmul.mubr.bf16.gmra.mxu0 %v3134
      %v3301 = vpop.f32.mrf.mxu0
      %v3302 = vadd.f32 0.0, %v3301
      %v3303 = vpop.f32.mrf.mxu0
      %v3304 = vpop.f32.mrf.mxu0
      %v3305 = vadd.f32 0.0, %v3304
      %v3306 = vpop.f32.mrf.mxu0
      %3307 = vmatprep.mubr.bf16.mxu0 0
      %3308 = vmatmul.mubr.bf16.gmra.mxu0 %v3135
      %v3309 = vpop.f32.mrf.mxu0
      %v3310 = vadd.f32 0.0, %v3309
      %v3311 = vpop.f32.mrf.mxu0
      %v3312 = vpop.f32.mrf.mxu0
      %v3313 = vadd.f32 0.0, %v3312
      %v3314 = vpop.f32.mrf.mxu0
      %3315 = vmatprep.mubr.bf16.mxu0 0
      %3316 = vmatmul.mubr.bf16.gmra.mxu0 %v3136
      %v3317 = vpop.f32.mrf.mxu0
      %v3318 = vadd.f32 0.0, %v3317
      %v3319 = vpop.f32.mrf.mxu0
      %v3320 = vpop.f32.mrf.mxu0
      %v3321 = vadd.f32 0.0, %v3320
      %v3322 = vpop.f32.mrf.mxu0
      %3323 = vmatprep.mubr.bf16.mxu0 0
      %3324 = vmatmul.mubr.bf16.gmra.mxu0 %v3137
      %v3325 = vpop.f32.mrf.mxu0
      %v3326 = vadd.f32 0.0, %v3325
      %v3327 = vpop.f32.mrf.mxu0
      %v3328 = vpop.f32.mrf.mxu0
      %v3329 = vadd.f32 0.0, %v3328
      %v3330 = vpop.f32.mrf.mxu0
      %3331 = vmatprep.mubr.bf16.mxu0 0
      %3332 = vmatmul.mubr.bf16.gmra.mxu0 %v3138
      %v3333 = vpop.f32.mrf.mxu0
      %v3334 = vadd.f32 0.0, %v3333
      %v3335 = vpop.f32.mrf.mxu0
      %v3336 = vpop.f32.mrf.mxu0
      %v3337 = vadd.f32 0.0, %v3336
      %v3338 = vpop.f32.mrf.mxu0
      %3339 = vmatprep.mubr.bf16.mxu0 0
      %3340 = vmatmul.mubr.bf16.gmra.mxu0 %v3139
      %v3341 = vpop.f32.mrf.mxu0
      %v3342 = vadd.f32 0.0, %v3341
      %v3343 = vpop.f32.mrf.mxu0
      %v3344 = vpop.f32.mrf.mxu0
      %v3345 = vadd.f32 0.0, %v3344
      %v3346 = vpop.f32.mrf.mxu0
      %3347 = vmatprep.mubr.bf16.mxu0 0
      %3348 = vmatmul.mubr.bf16.gmra.mxu0 %v3140
      %v3349 = vpop.f32.mrf.mxu0
      %v3350 = vadd.f32 0.0, %v3349
      %v3351 = vpop.f32.mrf.mxu0
      %v3352 = vpop.f32.mrf.mxu0
      %v3353 = vadd.f32 0.0, %v3352
      %v3354 = vpop.f32.mrf.mxu0
      %3355 = vmatprep.mubr.bf16.mxu0 0
      %3356 = vmatmul.mubr.bf16.gmra.mxu0 %v3141
      %v3357 = vpop.f32.mrf.mxu0
      %v3358 = vadd.f32 0.0, %v3357
      %v3359 = vpop.f32.mrf.mxu0
      %v3360 = vpop.f32.mrf.mxu0
      %v3361 = vadd.f32 0.0, %v3360
      %v3362 = vpop.f32.mrf.mxu0
      %3363 = vmatprep.mubr.bf16.mxu0 0
      %3364 = vmatmul.mubr.bf16.gmra.mxu0 %v3142
      %v3365 = vpop.f32.mrf.mxu0
      %v3366 = vadd.f32 0.0, %v3365
      %v3367 = vpop.f32.mrf.mxu0
      %v3368 = vpop.f32.mrf.mxu0
      %v3369 = vadd.f32 0.0, %v3368
      %v3370 = vpop.f32.mrf.mxu0
      %3371 = vmatprep.mubr.bf16.mxu0 0
      %3372 = vmatmul.mubr.bf16.gmra.mxu0 %v3143
      %v3373 = vpop.f32.mrf.mxu0
      %v3374 = vadd.f32 0.0, %v3373
      %v3375 = vpop.f32.mrf.mxu0
      %v3376 = vpop.f32.mrf.mxu0
      %v3377 = vadd.f32 0.0, %v3376
      %v3378 = vpop.f32.mrf.mxu0
      %3379 = vmatprep.mubr.bf16.mxu0 0
      %3380 = vmatmul.mubr.bf16.gmra.mxu0 %v3144
      %v3381 = vpop.f32.mrf.mxu0
      %v3382 = vadd.f32 0.0, %v3381
      %v3383 = vpop.f32.mrf.mxu0
      %v3384 = vpop.f32.mrf.mxu0
      %v3385 = vadd.f32 0.0, %v3384
      %v3386 = vpop.f32.mrf.mxu0
      %3387 = vmatprep.mubr.bf16.mxu0 0
      %3388 = vmatmul.mubr.bf16.gmra.mxu0 %v3145
      %v3389 = vpop.f32.mrf.mxu0
      %v3390 = vadd.f32 0.0, %v3389
      %v3391 = vpop.f32.mrf.mxu0
      %v3392 = vpop.f32.mrf.mxu0
      %v3393 = vadd.f32 0.0, %v3392
      %v3394 = vpop.f32.mrf.mxu0
      %3395 = vmatprep.mubr.bf16.mxu0 0
      %3396 = vmatmul.mubr.bf16.gmra.mxu0 %v3146
      %v3397 = vpop.f32.mrf.mxu0
      %v3398 = vadd.f32 0.0, %v3397
      %v3399 = vpop.f32.mrf.mxu0
      %v3400 = vpop.f32.mrf.mxu0
      %v3401 = vadd.f32 0.0, %v3400
      %v3402 = vpop.f32.mrf.mxu0
      %3403 = vmatprep.mubr.bf16.mxu0 0
      %3404 = vmatmul.mubr.bf16.gmra.mxu0 %v3147
      %v3405 = vpop.f32.mrf.mxu0
      %v3406 = vadd.f32 0.0, %v3405
      %v3407 = vpop.f32.mrf.mxu0
      %v3408 = vpop.f32.mrf.mxu0
      %v3409 = vadd.f32 0.0, %v3408
      %v3410 = vpop.f32.mrf.mxu0
      %3411 = vmatprep.mubr.bf16.mxu0 0
      %3412 = vmatmul.mubr.bf16.gmra.mxu0 %v3148
      %v3413 = vpop.f32.mrf.mxu0
      %v3414 = vadd.f32 0.0, %v3413
      %v3415 = vpop.f32.mrf.mxu0
      %v3416 = vpop.f32.mrf.mxu0
      %v3417 = vadd.f32 0.0, %v3416
      %v3418 = vpop.f32.mrf.mxu0
      %3419 = vmatprep.mubr.bf16.mxu0 0
      %3420 = vmatmul.mubr.bf16.gmra.mxu0 %v3149
      %v3421 = vpop.f32.mrf.mxu0
      %v3422 = vadd.f32 0.0, %v3421
      %v3423 = vpop.f32.mrf.mxu0
      %v3424 = vpop.f32.mrf.mxu0
      %v3425 = vadd.f32 0.0, %v3424
      %v3426 = vpop.f32.mrf.mxu0
      %3427 = vdwg.mxu0
      %v3428 = vadd.f32 %v3150, %v3286
      %v3429 = vadd.f32 %v3151, %v3289
      %v3430 = vadd.f32 %v3152, %v3294
      %v3431 = vadd.f32 %v3153, %v3297
      %v3432 = vadd.f32 %v3154, %v3302
      %v3433 = vadd.f32 %v3155, %v3305
      %v3434 = vadd.f32 %v3156, %v3310
      %v3435 = vadd.f32 %v3157, %v3313
      %v3436 = vadd.f32 %v3158, %v3318
      %v3437 = vadd.f32 %v3159, %v3321
      %v3438 = vadd.f32 %v3160, %v3326
      %v3439 = vadd.f32 %v3161, %v3329
      %v3440 = vadd.f32 %v3162, %v3334
      %v3441 = vadd.f32 %v3163, %v3337
      %v3442 = vadd.f32 %v3164, %v3342
      %v3443 = vadd.f32 %v3165, %v3345
      %v3444 = vadd.f32 %v3166, %v3350
      %v3445 = vadd.f32 %v3167, %v3353
      %v3446 = vadd.f32 %v3168, %v3358
      %v3447 = vadd.f32 %v3169, %v3361
      %v3448 = vadd.f32 %v3170, %v3366
      %v3449 = vadd.f32 %v3171, %v3369
      %v3450 = vadd.f32 %v3172, %v3374
      %v3451 = vadd.f32 %v3173, %v3377
      %v3452 = vadd.f32 %v3174, %v3382
      %v3453 = vadd.f32 %v3175, %v3385
      %v3454 = vadd.f32 %v3176, %v3390
      %v3455 = vadd.f32 %v3177, %v3393
      %v3456 = vadd.f32 %v3178, %v3398
      %v3457 = vadd.f32 %v3179, %v3401
      %v3458 = vadd.f32 %v3180, %v3406
      %v3459 = vadd.f32 %v3181, %v3409
      %v3460 = vadd.f32 %v3182, %v3414
      %v3461 = vadd.f32 %v3183, %v3417
      %v3462 = vadd.f32 %v3184, %v3422
      %v3463 = vadd.f32 %v3185, %v3425
      %3464 = vst [vmem:[#allocation2] sm:$0xff] %v3428
      %3465 = vst [vmem:[#allocation2 + $0x8] sm:$0xff] %v3429
      %3466 = vst [vmem:[#allocation2 + $0x10] sm:$0xff] %v3430
      %3467 = vst [vmem:[#allocation2 + $0x18] sm:$0xff] %v3431
      %3468 = vst [vmem:[#allocation2 + $0x20] sm:$0xff] %v3432
      %3469 = vst [vmem:[#allocation2 + $0x28] sm:$0xff] %v3433
      %3470 = vst [vmem:[#allocation2 + $0x30] sm:$0xff] %v3434
      %3471 = vst [vmem:[#allocation2 + $0x38] sm:$0xff] %v3435
      %3472 = vst [vmem:[#allocation2 + $0x40] sm:$0xff] %v3436
      %3473 = vst [vmem:[#allocation2 + $0x48] sm:$0xff] %v3437
      %3474 = vst [vmem:[#allocation2 + $0x50] sm:$0xff] %v3438
      %3475 = vst [vmem:[#allocation2 + $0x58] sm:$0xff] %v3439
      %3476 = vst [vmem:[#allocation2 + $0x60] sm:$0xff] %v3440
      %3477 = vst [vmem:[#allocation2 + $0x68] sm:$0xff] %v3441
      %3478 = vst [vmem:[#allocation2 + $0x70] sm:$0xff] %v3442
      %3479 = vst [vmem:[#allocation2 + $0x78] sm:$0xff] %v3443
      %3480 = vst [vmem:[#allocation2 + $0x80] sm:$0xff] %v3444
      %3481 = vst [vmem:[#allocation2 + $0x88] sm:$0xff] %v3445
      %3482 = vst [vmem:[#allocation2 + $0x90] sm:$0xff] %v3446
      %3483 = vst [vmem:[#allocation2 + $0x98] sm:$0xff] %v3447
      %3484 = vst [vmem:[#allocation2 + $0xa0] sm:$0xff] %v3448
      %3485 = vst [vmem:[#allocation2 + $0xa8] sm:$0xff] %v3449
      %3486 = vst [vmem:[#allocation2 + $0xb0] sm:$0xff] %v3450
      %3487 = vst [vmem:[#allocation2 + $0xb8] sm:$0xff] %v3451
      %3488 = vst [vmem:[#allocation2 + $0xc0] sm:$0xff] %v3452
      %3489 = vst [vmem:[#allocation2 + $0xc8] sm:$0xff] %v3453
      %3490 = vst [vmem:[#allocation2 + $0xd0] sm:$0xff] %v3454
      %3491 = vst [vmem:[#allocation2 + $0xd8] sm:$0xff] %v3455
      %3492 = vst [vmem:[#allocation2 + $0xe0] sm:$0xff] %v3456
      %3493 = vst [vmem:[#allocation2 + $0xe8] sm:$0xff] %v3457
      %3494 = vst [vmem:[#allocation2 + $0xf0] sm:$0xff] %v3458
      %3495 = vst [vmem:[#allocation2 + $0xf8] sm:$0xff] %v3459
      %3496 = vst [vmem:[#allocation2 + $0x100] sm:$0xff] %v3460
      %3497 = vst [vmem:[#allocation2 + $0x108] sm:$0xff] %v3461
      %3498 = vst [vmem:[#allocation2 + $0x110] sm:$0xff] %v3462
      %3499 = vst [vmem:[#allocation2 + $0x118] sm:$0xff] %v3463
      %v3500 = vld [vmem:[%s219 + $0x2b] sm:$0xff]
      %v3501 = vld [vmem:[%s219 + $0x33] sm:$0xff]
      %v3502 = vld [vmem:[%s219 + $0x3b] sm:$0xff]
      %v3503 = vld [vmem:[%s219 + $0x43] sm:$0xff]
      %v3504 = vld [vmem:[%s219 + $0x4b] sm:$0xff]
      %v3505 = vld [vmem:[%s219 + $0x53] sm:$0xff]
      %v3506 = vld [vmem:[%s219 + $0x5b] sm:$0xff]
      %v3507 = vld [vmem:[%s219 + $0x63] sm:$0xff]
      %v3508 = vld [vmem:[%s219 + $0x6b] sm:$0xff]
      %v3509 = vld [vmem:[%s219 + $0x73] sm:$0xff]
      %v3510 = vld [vmem:[%s219 + $0x7b] sm:$0xff]
      %v3511 = vld [vmem:[%s219 + $0x83] sm:$0xff]
      %v3512 = vld [vmem:[%s219 + $0x8b] sm:$0xff]
      %v3513 = vld [vmem:[%s219 + $0x93] sm:$0xff]
      %v3514 = vld [vmem:[%s219 + $0x9b] sm:$0xff]
      %v3515 = vld [vmem:[%s219 + $0xa3] sm:$0xff]
      %v3516 = vld [vmem:[%s219 + $0xab] sm:$0xff]
      %v3517 = vld [vmem:[%s219 + $0xb3] sm:$0xff]
      %v3518 = vld [vmem:[%s219 + $0xbb] sm:$0xff]
      %v3519 = vld [vmem:[%s219 + $0xc3] sm:$0xff]
      %v3520 = vld [vmem:[%s219 + $0xcb] sm:$0xff]
      %v3521 = vld [vmem:[%s219 + $0xd3] sm:$0xff]
      %v3522 = vld [vmem:[%s219 + $0xdb] sm:$0xff]
      %v3523 = vld [vmem:[%s219 + $0xe3] sm:$0xff]
      %v3524 = vld [vmem:[%s219 + $0xeb] sm:$0xff]
      %v3525 = vld [vmem:[%s219 + $0xf3] sm:$0xff]
      %v3526 = vld [vmem:[%s219 + $0xfb] sm:$0xff]
      %v3527 = vld [vmem:[%s219 + $0x103] sm:$0xff]
      %v3528 = vld [vmem:[%s219 + $0x10b] sm:$0xff]
      %v3529 = vld [vmem:[%s219 + $0x113] sm:$0xff]
      %v3530 = vld [vmem:[%s219 + $0x11b] sm:$0xff]
      %v3531 = vld [vmem:[%s219 + $0x123] sm:$0xff]
      %v3532 = vld [vmem:[%s219 + $0x12b] sm:$0xff]
      %v3533 = vld [vmem:[%s219 + $0x133] sm:$0xff]
      %v3534 = vld [vmem:[%s219 + $0x13b] sm:$0xff]
      %v3535 = vld [vmem:[%s219 + $0x143] sm:$0xff]
      %v3536 = vpack.c.bf16 %v3501, %v3500
      %v3537 = vpack.c.bf16 %v3503, %v3502
      %v3538 = vpack.c.bf16 %v3505, %v3504
      %v3539 = vpack.c.bf16 %v3507, %v3506
      %v3540 = vpack.c.bf16 %v3509, %v3508
      %v3541 = vpack.c.bf16 %v3511, %v3510
      %v3542 = vpack.c.bf16 %v3513, %v3512
      %v3543 = vpack.c.bf16 %v3515, %v3514
      %v3544 = vpack.c.bf16 %v3517, %v3516
      %v3545 = vpack.c.bf16 %v3519, %v3518
      %v3546 = vpack.c.bf16 %v3521, %v3520
      %v3547 = vpack.c.bf16 %v3523, %v3522
      %v3548 = vpack.c.bf16 %v3525, %v3524
      %v3549 = vpack.c.bf16 %v3527, %v3526
      %v3550 = vpack.c.bf16 %v3529, %v3528
      %v3551 = vpack.c.bf16 %v3531, %v3530
      %v3552 = vpack.c.bf16 %v3533, %v3532
      %v3553 = vpack.c.bf16 %v3535, %v3534
      %v3554 = vld [vmem:[#allocation2] sm:$0xff]
      %v3555 = vld [vmem:[#allocation2 + $0x8] sm:$0xff]
      %v3556 = vld [vmem:[#allocation2 + $0x10] sm:$0xff]
      %v3557 = vld [vmem:[#allocation2 + $0x18] sm:$0xff]
      %v3558 = vld [vmem:[#allocation2 + $0x20] sm:$0xff]
      %v3559 = vld [vmem:[#allocation2 + $0x28] sm:$0xff]
      %v3560 = vld [vmem:[#allocation2 + $0x30] sm:$0xff]
      %v3561 = vld [vmem:[#allocation2 + $0x38] sm:$0xff]
      %v3562 = vld [vmem:[#allocation2 + $0x40] sm:$0xff]
      %v3563 = vld [vmem:[#allocation2 + $0x48] sm:$0xff]
      %v3564 = vld [vmem:[#allocation2 + $0x50] sm:$0xff]
      %v3565 = vld [vmem:[#allocation2 + $0x58] sm:$0xff]
      %v3566 = vld [vmem:[#allocation2 + $0x60] sm:$0xff]
      %v3567 = vld [vmem:[#allocation2 + $0x68] sm:$0xff]
      %v3568 = vld [vmem:[#allocation2 + $0x70] sm:$0xff]
      %v3569 = vld [vmem:[#allocation2 + $0x78] sm:$0xff]
      %v3570 = vld [vmem:[#allocation2 + $0x80] sm:$0xff]
      %v3571 = vld [vmem:[#allocation2 + $0x88] sm:$0xff]
      %v3572 = vld [vmem:[#allocation2 + $0x90] sm:$0xff]
      %v3573 = vld [vmem:[#allocation2 + $0x98] sm:$0xff]
      %v3574 = vld [vmem:[#allocation2 + $0xa0] sm:$0xff]
      %v3575 = vld [vmem:[#allocation2 + $0xa8] sm:$0xff]
      %v3576 = vld [vmem:[#allocation2 + $0xb0] sm:$0xff]
      %v3577 = vld [vmem:[#allocation2 + $0xb8] sm:$0xff]
      %v3578 = vld [vmem:[#allocation2 + $0xc0] sm:$0xff]
      %v3579 = vld [vmem:[#allocation2 + $0xc8] sm:$0xff]
      %v3580 = vld [vmem:[#allocation2 + $0xd0] sm:$0xff]
      %v3581 = vld [vmem:[#allocation2 + $0xd8] sm:$0xff]
      %v3582 = vld [vmem:[#allocation2 + $0xe0] sm:$0xff]
      %v3583 = vld [vmem:[#allocation2 + $0xe8] sm:$0xff]
      %v3584 = vld [vmem:[#allocation2 + $0xf0] sm:$0xff]
      %v3585 = vld [vmem:[#allocation2 + $0xf8] sm:$0xff]
      %v3586 = vld [vmem:[#allocation2 + $0x100] sm:$0xff]
      %v3587 = vld [vmem:[#allocation2 + $0x108] sm:$0xff]
      %v3588 = vld [vmem:[#allocation2 + $0x110] sm:$0xff]
      %v3589 = vld [vmem:[#allocation2 + $0x118] sm:$0xff]
      %s3590 = scalar_lea.vmem %s1, 512
      %v3591 = vld [vmem:[%s3590] sm:$0xf]
      %v3592 = vld [vmem:[%s3590 + $0x4] sm:$0xf]
      %v3593 = vld [vmem:[%s3590 + $0x8] sm:$0xf]
      %v3594 = vld [vmem:[%s3590 + $0xc] sm:$0xf]
      %v3595 = vld [vmem:[%s3590 + $0x10] sm:$0xf]
      %v3596 = vld [vmem:[%s3590 + $0x14] sm:$0xf]
      %v3597 = vld [vmem:[%s3590 + $0x18] sm:$0xf]
      %v3598 = vld [vmem:[%s3590 + $0x1c] sm:$0xf]
      %v3599 = vld [vmem:[%s3590 + $0x20] sm:$0xf]
      %v3600 = vld [vmem:[%s3590 + $0x24] sm:$0xf]
      %v3601 = vld [vmem:[%s3590 + $0x28] sm:$0xf]
      %v3602 = vld [vmem:[%s3590 + $0x2c] sm:$0xf]
      %v3603 = vld [vmem:[%s3590 + $0x30] sm:$0xf]
      %v3604 = vld [vmem:[%s3590 + $0x34] sm:$0xf]
      %v3605 = vld [vmem:[%s3590 + $0x38] sm:$0xf]
      %v3606 = vld [vmem:[%s3590 + $0x3c] sm:$0xf]
      %v3623 = vunpack.c.l.b16 %v3591
      %v3624 = vunpack.c.l.b16 %v3592
      %v3625 = vunpack.c.l.b16 %v3593
      %v3626 = vunpack.c.l.b16 %v3594
      %v3627 = vunpack.c.l.b16 %v3595
      %v3628 = vunpack.c.l.b16 %v3596
      %v3629 = vunpack.c.l.b16 %v3597
      %v3630 = vunpack.c.l.b16 %v3598
      %v3631 = vunpack.c.l.b16 %v3599
      %v3632 = vunpack.c.l.b16 %v3600
      %v3633 = vunpack.c.l.b16 %v3601
      %v3634 = vunpack.c.l.b16 %v3602
      %v3635 = vunpack.c.l.b16 %v3603
      %v3636 = vunpack.c.l.b16 %v3604
      %v3637 = vunpack.c.l.b16 %v3605
      %v3638 = vunpack.c.l.b16 %v3606
      %v3639 = vpack.c.b16 %v3624, %v3623
      %v3640 = vpack.c.b16 %v3626, %v3625
      %v3641 = vpack.c.b16 %v3628, %v3627
      %v3642 = vpack.c.b16 %v3630, %v3629
      %v3643 = vpack.c.b16 %v3632, %v3631
      %v3644 = vpack.c.b16 %v3634, %v3633
      %v3645 = vpack.c.b16 %v3636, %v3635
      %v3646 = vpack.c.b16 %v3638, %v3637
      %3655 = vmatprep.subr.bf16.mxu0 0
      %3656 = vmatpush1.bf16.msra.mxu0 %v3646
      %3657 = vmatprep.subr.bf16.mxu0 0
      %3658 = vmatpush1.bf16.msra.mxu0 %v3645
      %3659 = vmatprep.subr.bf16.mxu0 0
      %3660 = vmatpush1.bf16.msra.mxu0 %v3644
      %3661 = vmatprep.subr.bf16.mxu0 0
      %3662 = vmatpush1.bf16.msra.mxu0 %v3643
      %3663 = vmatprep.subr.bf16.mxu0 0
      %3664 = vmatpush1.bf16.msra.mxu0 %v3642
      %3665 = vmatprep.subr.bf16.mxu0 0
      %3666 = vmatpush1.bf16.msra.mxu0 %v3641
      %3667 = vmatprep.subr.bf16.mxu0 0
      %3668 = vmatpush1.bf16.msra.mxu0 %v3640
      %3669 = vmatprep.subr.bf16.mxu0 0
      %3670 = vmatpush1.bf16.msra.mxu0 %v3639
      %3671 = vmatprep.subr.bf16.mxu0 0
      %3672 = vmatpush2.bf16.msra.mxu0 0
      %3673 = vmatprep.subr.bf16.mxu0 0
      %3674 = vmatpush2.bf16.msra.mxu0 0
      %3675 = vmatprep.subr.bf16.mxu0 0
      %3676 = vmatpush2.bf16.msra.mxu0 0
      %3677 = vmatprep.subr.bf16.mxu0 0
      %3678 = vmatpush2.bf16.msra.mxu0 0
      %3679 = vmatprep.subr.bf16.mxu0 0
      %3680 = vmatpush2.bf16.msra.mxu0 0
      %3681 = vmatprep.subr.bf16.mxu0 0
      %3682 = vmatpush2.bf16.msra.mxu0 0
      %3683 = vmatprep.subr.bf16.mxu0 0
      %3684 = vmatpush2.bf16.msra.mxu0 0
      %3685 = vmatprep.subr.bf16.mxu0 0
      %3686 = vmatpush2.bf16.msra.mxu0 0
      %3687 = vmatprep.mubr.bf16.mxu0 0
      %3688 = vmatmul.mubr.bf16.gmra.mxu0 %v3536
      %v3689 = vpop.f32.mrf.mxu0
      %v3690 = vadd.f32 0.0, %v3689
      %v3691 = vpop.f32.mrf.mxu0
      %v3692 = vpop.f32.mrf.mxu0
      %v3693 = vadd.f32 0.0, %v3692
      %v3694 = vpop.f32.mrf.mxu0
      %3695 = vmatprep.mubr.bf16.mxu0 0
      %3696 = vmatmul.mubr.bf16.gmra.mxu0 %v3537
      %v3697 = vpop.f32.mrf.mxu0
      %v3698 = vadd.f32 0.0, %v3697
      %v3699 = vpop.f32.mrf.mxu0
      %v3700 = vpop.f32.mrf.mxu0
      %v3701 = vadd.f32 0.0, %v3700
      %v3702 = vpop.f32.mrf.mxu0
      %3703 = vmatprep.mubr.bf16.mxu0 0
      %3704 = vmatmul.mubr.bf16.gmra.mxu0 %v3538
      %v3705 = vpop.f32.mrf.mxu0
      %v3706 = vadd.f32 0.0, %v3705
      %v3707 = vpop.f32.mrf.mxu0
      %v3708 = vpop.f32.mrf.mxu0
      %v3709 = vadd.f32 0.0, %v3708
      %v3710 = vpop.f32.mrf.mxu0
      %3711 = vmatprep.mubr.bf16.mxu0 0
      %3712 = vmatmul.mubr.bf16.gmra.mxu0 %v3539
      %v3713 = vpop.f32.mrf.mxu0
      %v3714 = vadd.f32 0.0, %v3713
      %v3715 = vpop.f32.mrf.mxu0
      %v3716 = vpop.f32.mrf.mxu0
      %v3717 = vadd.f32 0.0, %v3716
      %v3718 = vpop.f32.mrf.mxu0
      %3719 = vmatprep.mubr.bf16.mxu0 0
      %3720 = vmatmul.mubr.bf16.gmra.mxu0 %v3540
      %v3721 = vpop.f32.mrf.mxu0
      %v3722 = vadd.f32 0.0, %v3721
      %v3723 = vpop.f32.mrf.mxu0
      %v3724 = vpop.f32.mrf.mxu0
      %v3725 = vadd.f32 0.0, %v3724
      %v3726 = vpop.f32.mrf.mxu0
      %3727 = vmatprep.mubr.bf16.mxu0 0
      %3728 = vmatmul.mubr.bf16.gmra.mxu0 %v3541
      %v3729 = vpop.f32.mrf.mxu0
      %v3730 = vadd.f32 0.0, %v3729
      %v3731 = vpop.f32.mrf.mxu0
      %v3732 = vpop.f32.mrf.mxu0
      %v3733 = vadd.f32 0.0, %v3732
      %v3734 = vpop.f32.mrf.mxu0
      %3735 = vmatprep.mubr.bf16.mxu0 0
      %3736 = vmatmul.mubr.bf16.gmra.mxu0 %v3542
      %v3737 = vpop.f32.mrf.mxu0
      %v3738 = vadd.f32 0.0, %v3737
      %v3739 = vpop.f32.mrf.mxu0
      %v3740 = vpop.f32.mrf.mxu0
      %v3741 = vadd.f32 0.0, %v3740
      %v3742 = vpop.f32.mrf.mxu0
      %3743 = vmatprep.mubr.bf16.mxu0 0
      %3744 = vmatmul.mubr.bf16.gmra.mxu0 %v3543
      %v3745 = vpop.f32.mrf.mxu0
      %v3746 = vadd.f32 0.0, %v3745
      %v3747 = vpop.f32.mrf.mxu0
      %v3748 = vpop.f32.mrf.mxu0
      %v3749 = vadd.f32 0.0, %v3748
      %v3750 = vpop.f32.mrf.mxu0
      %3751 = vmatprep.mubr.bf16.mxu0 0
      %3752 = vmatmul.mubr.bf16.gmra.mxu0 %v3544
      %v3753 = vpop.f32.mrf.mxu0
      %v3754 = vadd.f32 0.0, %v3753
      %v3755 = vpop.f32.mrf.mxu0
      %v3756 = vpop.f32.mrf.mxu0
      %v3757 = vadd.f32 0.0, %v3756
      %v3758 = vpop.f32.mrf.mxu0
      %3759 = vmatprep.mubr.bf16.mxu0 0
      %3760 = vmatmul.mubr.bf16.gmra.mxu0 %v3545
      %v3761 = vpop.f32.mrf.mxu0
      %v3762 = vadd.f32 0.0, %v3761
      %v3763 = vpop.f32.mrf.mxu0
      %v3764 = vpop.f32.mrf.mxu0
      %v3765 = vadd.f32 0.0, %v3764
      %v3766 = vpop.f32.mrf.mxu0
      %3767 = vmatprep.mubr.bf16.mxu0 0
      %3768 = vmatmul.mubr.bf16.gmra.mxu0 %v3546
      %v3769 = vpop.f32.mrf.mxu0
      %v3770 = vadd.f32 0.0, %v3769
      %v3771 = vpop.f32.mrf.mxu0
      %v3772 = vpop.f32.mrf.mxu0
      %v3773 = vadd.f32 0.0, %v3772
      %v3774 = vpop.f32.mrf.mxu0
      %3775 = vmatprep.mubr.bf16.mxu0 0
      %3776 = vmatmul.mubr.bf16.gmra.mxu0 %v3547
      %v3777 = vpop.f32.mrf.mxu0
      %v3778 = vadd.f32 0.0, %v3777
      %v3779 = vpop.f32.mrf.mxu0
      %v3780 = vpop.f32.mrf.mxu0
      %v3781 = vadd.f32 0.0, %v3780
      %v3782 = vpop.f32.mrf.mxu0
      %3783 = vmatprep.mubr.bf16.mxu0 0
      %3784 = vmatmul.mubr.bf16.gmra.mxu0 %v3548
      %v3785 = vpop.f32.mrf.mxu0
      %v3786 = vadd.f32 0.0, %v3785
      %v3787 = vpop.f32.mrf.mxu0
      %v3788 = vpop.f32.mrf.mxu0
      %v3789 = vadd.f32 0.0, %v3788
      %v3790 = vpop.f32.mrf.mxu0
      %3791 = vmatprep.mubr.bf16.mxu0 0
      %3792 = vmatmul.mubr.bf16.gmra.mxu0 %v3549
      %v3793 = vpop.f32.mrf.mxu0
      %v3794 = vadd.f32 0.0, %v3793
      %v3795 = vpop.f32.mrf.mxu0
      %v3796 = vpop.f32.mrf.mxu0
      %v3797 = vadd.f32 0.0, %v3796
      %v3798 = vpop.f32.mrf.mxu0
      %3799 = vmatprep.mubr.bf16.mxu0 0
      %3800 = vmatmul.mubr.bf16.gmra.mxu0 %v3550
      %v3801 = vpop.f32.mrf.mxu0
      %v3802 = vadd.f32 0.0, %v3801
      %v3803 = vpop.f32.mrf.mxu0
      %v3804 = vpop.f32.mrf.mxu0
      %v3805 = vadd.f32 0.0, %v3804
      %v3806 = vpop.f32.mrf.mxu0
      %3807 = vmatprep.mubr.bf16.mxu0 0
      %3808 = vmatmul.mubr.bf16.gmra.mxu0 %v3551
      %v3809 = vpop.f32.mrf.mxu0
      %v3810 = vadd.f32 0.0, %v3809
      %v3811 = vpop.f32.mrf.mxu0
      %v3812 = vpop.f32.mrf.mxu0
      %v3813 = vadd.f32 0.0, %v3812
      %v3814 = vpop.f32.mrf.mxu0
      %3815 = vmatprep.mubr.bf16.mxu0 0
      %3816 = vmatmul.mubr.bf16.gmra.mxu0 %v3552
      %v3817 = vpop.f32.mrf.mxu0
      %v3818 = vadd.f32 0.0, %v3817
      %v3819 = vpop.f32.mrf.mxu0
      %v3820 = vpop.f32.mrf.mxu0
      %v3821 = vadd.f32 0.0, %v3820
      %v3822 = vpop.f32.mrf.mxu0
      %3823 = vmatprep.mubr.bf16.mxu0 0
      %3824 = vmatmul.mubr.bf16.gmra.mxu0 %v3553
      %v3825 = vpop.f32.mrf.mxu0
      %v3826 = vadd.f32 0.0, %v3825
      %v3827 = vpop.f32.mrf.mxu0
      %v3828 = vpop.f32.mrf.mxu0
      %v3829 = vadd.f32 0.0, %v3828
      %v3830 = vpop.f32.mrf.mxu0
      %3831 = vdwg.mxu0
      %v3832 = vadd.f32 %v3554, %v3690
      %v3833 = vadd.f32 %v3555, %v3693
      %v3834 = vadd.f32 %v3556, %v3698
      %v3835 = vadd.f32 %v3557, %v3701
      %v3836 = vadd.f32 %v3558, %v3706
      %v3837 = vadd.f32 %v3559, %v3709
      %v3838 = vadd.f32 %v3560, %v3714
      %v3839 = vadd.f32 %v3561, %v3717
      %v3840 = vadd.f32 %v3562, %v3722
      %v3841 = vadd.f32 %v3563, %v3725
      %v3842 = vadd.f32 %v3564, %v3730
      %v3843 = vadd.f32 %v3565, %v3733
      %v3844 = vadd.f32 %v3566, %v3738
      %v3845 = vadd.f32 %v3567, %v3741
      %v3846 = vadd.f32 %v3568, %v3746
      %v3847 = vadd.f32 %v3569, %v3749
      %v3848 = vadd.f32 %v3570, %v3754
      %v3849 = vadd.f32 %v3571, %v3757
      %v3850 = vadd.f32 %v3572, %v3762
      %v3851 = vadd.f32 %v3573, %v3765
      %v3852 = vadd.f32 %v3574, %v3770
      %v3853 = vadd.f32 %v3575, %v3773
      %v3854 = vadd.f32 %v3576, %v3778
      %v3855 = vadd.f32 %v3577, %v3781
      %v3856 = vadd.f32 %v3578, %v3786
      %v3857 = vadd.f32 %v3579, %v3789
      %v3858 = vadd.f32 %v3580, %v3794
      %v3859 = vadd.f32 %v3581, %v3797
      %v3860 = vadd.f32 %v3582, %v3802
      %v3861 = vadd.f32 %v3583, %v3805
      %v3862 = vadd.f32 %v3584, %v3810
      %v3863 = vadd.f32 %v3585, %v3813
      %v3864 = vadd.f32 %v3586, %v3818
      %v3865 = vadd.f32 %v3587, %v3821
      %v3866 = vadd.f32 %v3588, %v3826
      %v3867 = vadd.f32 %v3589, %v3829
      %3868 = vst [vmem:[#allocation2] sm:$0xff] %v3832
      %3869 = vst [vmem:[#allocation2 + $0x8] sm:$0xff] %v3833
      %3870 = vst [vmem:[#allocation2 + $0x10] sm:$0xff] %v3834
      %3871 = vst [vmem:[#allocation2 + $0x18] sm:$0xff] %v3835
      %3872 = vst [vmem:[#allocation2 + $0x20] sm:$0xff] %v3836
      %3873 = vst [vmem:[#allocation2 + $0x28] sm:$0xff] %v3837
      %3874 = vst [vmem:[#allocation2 + $0x30] sm:$0xff] %v3838
      %3875 = vst [vmem:[#allocation2 + $0x38] sm:$0xff] %v3839
      %3876 = vst [vmem:[#allocation2 + $0x40] sm:$0xff] %v3840
      %3877 = vst [vmem:[#allocation2 + $0x48] sm:$0xff] %v3841
      %3878 = vst [vmem:[#allocation2 + $0x50] sm:$0xff] %v3842
      %3879 = vst [vmem:[#allocation2 + $0x58] sm:$0xff] %v3843
      %3880 = vst [vmem:[#allocation2 + $0x60] sm:$0xff] %v3844
      %3881 = vst [vmem:[#allocation2 + $0x68] sm:$0xff] %v3845
      %3882 = vst [vmem:[#allocation2 + $0x70] sm:$0xff] %v3846
      %3883 = vst [vmem:[#allocation2 + $0x78] sm:$0xff] %v3847
      %3884 = vst [vmem:[#allocation2 + $0x80] sm:$0xff] %v3848
      %3885 = vst [vmem:[#allocation2 + $0x88] sm:$0xff] %v3849
      %3886 = vst [vmem:[#allocation2 + $0x90] sm:$0xff] %v3850
      %3887 = vst [vmem:[#allocation2 + $0x98] sm:$0xff] %v3851
      %3888 = vst [vmem:[#allocation2 + $0xa0] sm:$0xff] %v3852
      %3889 = vst [vmem:[#allocation2 + $0xa8] sm:$0xff] %v3853
      %3890 = vst [vmem:[#allocation2 + $0xb0] sm:$0xff] %v3854
      %3891 = vst [vmem:[#allocation2 + $0xb8] sm:$0xff] %v3855
      %3892 = vst [vmem:[#allocation2 + $0xc0] sm:$0xff] %v3856
      %3893 = vst [vmem:[#allocation2 + $0xc8] sm:$0xff] %v3857
      %3894 = vst [vmem:[#allocation2 + $0xd0] sm:$0xff] %v3858
      %3895 = vst [vmem:[#allocation2 + $0xd8] sm:$0xff] %v3859
      %3896 = vst [vmem:[#allocation2 + $0xe0] sm:$0xff] %v3860
      %3897 = vst [vmem:[#allocation2 + $0xe8] sm:$0xff] %v3861
      %3898 = vst [vmem:[#allocation2 + $0xf0] sm:$0xff] %v3862
      %3899 = vst [vmem:[#allocation2 + $0xf8] sm:$0xff] %v3863
      %3900 = vst [vmem:[#allocation2 + $0x100] sm:$0xff] %v3864
      %3901 = vst [vmem:[#allocation2 + $0x108] sm:$0xff] %v3865
      %3902 = vst [vmem:[#allocation2 + $0x110] sm:$0xff] %v3866
      %3903 = vst [vmem:[#allocation2 + $0x118] sm:$0xff] %v3867
      %v3904 = vld [vmem:[#allocation2] sm:$0xff]
      %v3905 = vld [vmem:[#allocation2 + $0x8] sm:$0xff]
      %v3906 = vld [vmem:[#allocation2 + $0x10] sm:$0xff]
      %v3907 = vld [vmem:[#allocation2 + $0x18] sm:$0xff]
      %v3908 = vld [vmem:[#allocation2 + $0x20] sm:$0xff]
      %v3909 = vld [vmem:[#allocation2 + $0x28] sm:$0xff]
      %v3910 = vld [vmem:[#allocation2 + $0x30] sm:$0xff]
      %v3911 = vld [vmem:[#allocation2 + $0x38] sm:$0xff]
      %v3912 = vld [vmem:[#allocation2 + $0x40] sm:$0xff]
      %v3913 = vld [vmem:[#allocation2 + $0x48] sm:$0xff]
      %v3914 = vld [vmem:[#allocation2 + $0x50] sm:$0xff]
      %v3915 = vld [vmem:[#allocation2 + $0x58] sm:$0xff]
      %v3916 = vld [vmem:[#allocation2 + $0x60] sm:$0xff]
      %v3917 = vld [vmem:[#allocation2 + $0x68] sm:$0xff]
      %v3918 = vld [vmem:[#allocation2 + $0x70] sm:$0xff]
      %v3919 = vld [vmem:[#allocation2 + $0x78] sm:$0xff]
      %v3920 = vld [vmem:[#allocation2 + $0x80] sm:$0xff]
      %v3921 = vld [vmem:[#allocation2 + $0x88] sm:$0xff]
      %v3922 = vld [vmem:[#allocation2 + $0x90] sm:$0xff]
      %v3923 = vld [vmem:[#allocation2 + $0x98] sm:$0xff]
      %v3924 = vld [vmem:[#allocation2 + $0xa0] sm:$0xff]
      %v3925 = vld [vmem:[#allocation2 + $0xa8] sm:$0xff]
      %v3926 = vld [vmem:[#allocation2 + $0xb0] sm:$0xff]
      %v3927 = vld [vmem:[#allocation2 + $0xb8] sm:$0xff]
      %v3928 = vld [vmem:[#allocation2 + $0xc0] sm:$0xff]
      %v3929 = vld [vmem:[#allocation2 + $0xc8] sm:$0xff]
      %v3930 = vld [vmem:[#allocation2 + $0xd0] sm:$0xff]
      %v3931 = vld [vmem:[#allocation2 + $0xd8] sm:$0xff]
      %v3932 = vld [vmem:[#allocation2 + $0xe0] sm:$0xff]
      %v3933 = vld [vmem:[#allocation2 + $0xe8] sm:$0xff]
      %v3934 = vld [vmem:[#allocation2 + $0xf0] sm:$0xff]
      %v3935 = vld [vmem:[#allocation2 + $0xf8] sm:$0xff]
      %v3936 = vld [vmem:[#allocation2 + $0x100] sm:$0xff]
      %v3937 = vld [vmem:[#allocation2 + $0x108] sm:$0xff]
      %v3938 = vld [vmem:[#allocation2 + $0x110] sm:$0xff]
      %v3939 = vld [vmem:[#allocation2 + $0x118] sm:$0xff]
      %v3940 = vmax.f32 %v3904, 0.0
      %v3941 = vmax.f32 %v3905, 0.0
      %v3942 = vmax.f32 %v3906, 0.0
      %v3943 = vmax.f32 %v3907, 0.0
      %v3944 = vmax.f32 %v3908, 0.0
      %v3945 = vmax.f32 %v3909, 0.0
      %v3946 = vmax.f32 %v3910, 0.0
      %v3947 = vmax.f32 %v3911, 0.0
      %v3948 = vmax.f32 %v3912, 0.0
      %v3949 = vmax.f32 %v3913, 0.0
      %v3950 = vmax.f32 %v3914, 0.0
      %v3951 = vmax.f32 %v3915, 0.0
      %v3952 = vmax.f32 %v3916, 0.0
      %v3953 = vmax.f32 %v3917, 0.0
      %v3954 = vmax.f32 %v3918, 0.0
      %v3955 = vmax.f32 %v3919, 0.0
      %v3956 = vmax.f32 %v3920, 0.0
      %v3957 = vmax.f32 %v3921, 0.0
      %v3958 = vmax.f32 %v3922, 0.0
      %v3959 = vmax.f32 %v3923, 0.0
      %v3960 = vmax.f32 %v3924, 0.0
      %v3961 = vmax.f32 %v3925, 0.0
      %v3962 = vmax.f32 %v3926, 0.0
      %v3963 = vmax.f32 %v3927, 0.0
      %v3964 = vmax.f32 %v3928, 0.0
      %v3965 = vmax.f32 %v3929, 0.0
      %v3966 = vmax.f32 %v3930, 0.0
      %v3967 = vmax.f32 %v3931, 0.0
      %v3968 = vmax.f32 %v3932, 0.0
      %v3969 = vmax.f32 %v3933, 0.0
      %v3970 = vmax.f32 %v3934, 0.0
      %v3971 = vmax.f32 %v3935, 0.0
      %v3972 = vmax.f32 %v3936, 0.0
      %v3973 = vmax.f32 %v3937, 0.0
      %v3974 = vmax.f32 %v3938, 0.0
      %v3975 = vmax.f32 %v3939, 0.0
      %v3976 = vpack.c.bf16 %v3941, %v3940
      %v3977 = vpack.c.bf16 %v3943, %v3942
      %v3978 = vpack.c.bf16 %v3945, %v3944
      %v3979 = vpack.c.bf16 %v3947, %v3946
      %v3980 = vpack.c.bf16 %v3949, %v3948
      %v3981 = vpack.c.bf16 %v3951, %v3950
      %v3982 = vpack.c.bf16 %v3953, %v3952
      %v3983 = vpack.c.bf16 %v3955, %v3954
      %v3984 = vpack.c.bf16 %v3957, %v3956
      %v3985 = vpack.c.bf16 %v3959, %v3958
      %v3986 = vpack.c.bf16 %v3961, %v3960
      %v3987 = vpack.c.bf16 %v3963, %v3962
      %v3988 = vpack.c.bf16 %v3965, %v3964
      %v3989 = vpack.c.bf16 %v3967, %v3966
      %v3990 = vpack.c.bf16 %v3969, %v3968
      %v3991 = vpack.c.bf16 %v3971, %v3970
      %v3992 = vpack.c.bf16 %v3973, %v3972
      %v3993 = vpack.c.bf16 %v3975, %v3974
      %v3994 = vld [vmem:[%s3] sm:$0xf]
      %v3995 = vld [vmem:[%s3 + $0x4] sm:$0xf]
      %v3996 = vld [vmem:[%s3 + $0x8] sm:$0xf]
      %v3997 = vld [vmem:[%s3 + $0xc] sm:$0xf]
      %v3998 = vld [vmem:[%s3 + $0x10] sm:$0xf]
      %v3999 = vld [vmem:[%s3 + $0x14] sm:$0xf]
      %v4000 = vld [vmem:[%s3 + $0x18] sm:$0xf]
      %v4001 = vld [vmem:[%s3 + $0x1c] sm:$0xf]
      %v4002 = vld [vmem:[%s3 + $0x20] sm:$0xf]
      %v4003 = vld [vmem:[%s3 + $0x24] sm:$0xf]
      %v4004 = vld [vmem:[%s3 + $0x28] sm:$0xf]
      %v4005 = vld [vmem:[%s3 + $0x2c] sm:$0xf]
      %v4006 = vld [vmem:[%s3 + $0x30] sm:$0xf]
      %v4007 = vld [vmem:[%s3 + $0x34] sm:$0xf]
      %v4008 = vld [vmem:[%s3 + $0x38] sm:$0xf]
      %v4009 = vld [vmem:[%s3 + $0x3c] sm:$0xf]
      %v4010 = vld [vmem:[%s4] sm:$0x1]
      %v4012 = vlaneseq
      %v4013 = vshrl.u32 %v4012, 7
      %v4014 = vsub.s32 0, %v4013
      %v4015 = vrot.slane %v4010, %v4014
      %v4033 = vunpack.c.l.b16 %v3994
      %v4034 = vunpack.c.l.b16 %v3995
      %v4035 = vunpack.c.l.b16 %v3996
      %v4036 = vunpack.c.l.b16 %v3997
      %v4037 = vunpack.c.l.b16 %v3998
      %v4038 = vunpack.c.l.b16 %v3999
      %v4039 = vunpack.c.l.b16 %v4000
      %v4040 = vunpack.c.l.b16 %v4001
      %v4041 = vunpack.c.l.b16 %v4002
      %v4042 = vunpack.c.l.b16 %v4003
      %v4043 = vunpack.c.l.b16 %v4004
      %v4044 = vunpack.c.l.b16 %v4005
      %v4045 = vunpack.c.l.b16 %v4006
      %v4046 = vunpack.c.l.b16 %v4007
      %v4047 = vunpack.c.l.b16 %v4008
      %v4048 = vunpack.c.l.b16 %v4009
      %v4049 = vpack.c.b16 %v4034, %v4033
      %v4050 = vpack.c.b16 %v4036, %v4035
      %v4051 = vpack.c.b16 %v4038, %v4037
      %v4052 = vpack.c.b16 %v4040, %v4039
      %v4053 = vpack.c.b16 %v4042, %v4041
      %v4054 = vpack.c.b16 %v4044, %v4043
      %v4055 = vpack.c.b16 %v4046, %v4045
      %v4056 = vpack.c.b16 %v4048, %v4047
      %4065 = vmatprep.subr.bf16.mxu0 0
      %4066 = vmatpush1.bf16.msra.mxu0 %v4056
      %4067 = vmatprep.subr.bf16.mxu0 0
      %4068 = vmatpush1.bf16.msra.mxu0 %v4055
      %4069 = vmatprep.subr.bf16.mxu0 0
      %4070 = vmatpush1.bf16.msra.mxu0 %v4054
      %4071 = vmatprep.subr.bf16.mxu0 0
      %4072 = vmatpush1.bf16.msra.mxu0 %v4053
      %4073 = vmatprep.subr.bf16.mxu0 0
      %4074 = vmatpush1.bf16.msra.mxu0 %v4052
      %4075 = vmatprep.subr.bf16.mxu0 0
      %4076 = vmatpush1.bf16.msra.mxu0 %v4051
      %4077 = vmatprep.subr.bf16.mxu0 0
      %4078 = vmatpush1.bf16.msra.mxu0 %v4050
      %4079 = vmatprep.subr.bf16.mxu0 0
      %4080 = vmatpush1.bf16.msra.mxu0 %v4049
      %4081 = vmatprep.subr.bf16.mxu0 0
      %4082 = vmatpush2.bf16.msra.mxu0 0
      %4083 = vmatprep.subr.bf16.mxu0 0
      %4084 = vmatpush2.bf16.msra.mxu0 0
      %4085 = vmatprep.subr.bf16.mxu0 0
      %4086 = vmatpush2.bf16.msra.mxu0 0
      %4087 = vmatprep.subr.bf16.mxu0 0
      %4088 = vmatpush2.bf16.msra.mxu0 0
      %4089 = vmatprep.subr.bf16.mxu0 0
      %4090 = vmatpush2.bf16.msra.mxu0 0
      %4091 = vmatprep.subr.bf16.mxu0 0
      %4092 = vmatpush2.bf16.msra.mxu0 0
      %4093 = vmatprep.subr.bf16.mxu0 0
      %4094 = vmatpush2.bf16.msra.mxu0 0
      %4095 = vmatprep.subr.bf16.mxu0 0
      %4096 = vmatpush2.bf16.msra.mxu0 0
      %4097 = vmatprep.mubr.bf16.mxu0 0
      %4098 = vmatmul.mubr.bf16.gmra.mxu0 %v3976
      %v4099 = vpop.f32.mrf.mxu0
      %v4100 = vadd.f32 %v4015, %v4099
      %v4101 = vpop.f32.mrf.mxu0
      %v4102 = vpop.f32.mrf.mxu0
      %v4103 = vadd.f32 %v4015, %v4102
      %v4104 = vpop.f32.mrf.mxu0
      %4105 = vmatprep.mubr.bf16.mxu0 0
      %4106 = vmatmul.mubr.bf16.gmra.mxu0 %v3977
      %v4107 = vpop.f32.mrf.mxu0
      %v4108 = vadd.f32 %v4015, %v4107
      %v4109 = vpop.f32.mrf.mxu0
      %v4110 = vpop.f32.mrf.mxu0
      %v4111 = vadd.f32 %v4015, %v4110
      %v4112 = vpop.f32.mrf.mxu0
      %4113 = vmatprep.mubr.bf16.mxu0 0
      %4114 = vmatmul.mubr.bf16.gmra.mxu0 %v3978
      %v4115 = vpop.f32.mrf.mxu0
      %v4116 = vadd.f32 %v4015, %v4115
      %v4117 = vpop.f32.mrf.mxu0
      %v4118 = vpop.f32.mrf.mxu0
      %v4119 = vadd.f32 %v4015, %v4118
      %v4120 = vpop.f32.mrf.mxu0
      %4121 = vmatprep.mubr.bf16.mxu0 0
      %4122 = vmatmul.mubr.bf16.gmra.mxu0 %v3979
      %v4123 = vpop.f32.mrf.mxu0
      %v4124 = vadd.f32 %v4015, %v4123
      %v4125 = vpop.f32.mrf.mxu0
      %v4126 = vpop.f32.mrf.mxu0
      %v4127 = vadd.f32 %v4015, %v4126
      %v4128 = vpop.f32.mrf.mxu0
      %4129 = vmatprep.mubr.bf16.mxu0 0
      %4130 = vmatmul.mubr.bf16.gmra.mxu0 %v3980
      %v4131 = vpop.f32.mrf.mxu0
      %v4132 = vadd.f32 %v4015, %v4131
      %v4133 = vpop.f32.mrf.mxu0
      %v4134 = vpop.f32.mrf.mxu0
      %v4135 = vadd.f32 %v4015, %v4134
      %v4136 = vpop.f32.mrf.mxu0
      %4137 = vmatprep.mubr.bf16.mxu0 0
      %4138 = vmatmul.mubr.bf16.gmra.mxu0 %v3981
      %v4139 = vpop.f32.mrf.mxu0
      %v4140 = vadd.f32 %v4015, %v4139
      %v4141 = vpop.f32.mrf.mxu0
      %v4142 = vpop.f32.mrf.mxu0
      %v4143 = vadd.f32 %v4015, %v4142
      %v4144 = vpop.f32.mrf.mxu0
      %4145 = vmatprep.mubr.bf16.mxu0 0
      %4146 = vmatmul.mubr.bf16.gmra.mxu0 %v3982
      %v4147 = vpop.f32.mrf.mxu0
      %v4148 = vadd.f32 %v4015, %v4147
      %v4149 = vpop.f32.mrf.mxu0
      %v4150 = vpop.f32.mrf.mxu0
      %v4151 = vadd.f32 %v4015, %v4150
      %v4152 = vpop.f32.mrf.mxu0
      %4153 = vmatprep.mubr.bf16.mxu0 0
      %4154 = vmatmul.mubr.bf16.gmra.mxu0 %v3983
      %v4155 = vpop.f32.mrf.mxu0
      %v4156 = vadd.f32 %v4015, %v4155
      %v4157 = vpop.f32.mrf.mxu0
      %v4158 = vpop.f32.mrf.mxu0
      %v4159 = vadd.f32 %v4015, %v4158
      %v4160 = vpop.f32.mrf.mxu0
      %4161 = vmatprep.mubr.bf16.mxu0 0
      %4162 = vmatmul.mubr.bf16.gmra.mxu0 %v3984
      %v4163 = vpop.f32.mrf.mxu0
      %v4164 = vadd.f32 %v4015, %v4163
      %v4165 = vpop.f32.mrf.mxu0
      %v4166 = vpop.f32.mrf.mxu0
      %v4167 = vadd.f32 %v4015, %v4166
      %v4168 = vpop.f32.mrf.mxu0
      %4169 = vmatprep.mubr.bf16.mxu0 0
      %4170 = vmatmul.mubr.bf16.gmra.mxu0 %v3985
      %v4171 = vpop.f32.mrf.mxu0
      %v4172 = vadd.f32 %v4015, %v4171
      %v4173 = vpop.f32.mrf.mxu0
      %v4174 = vpop.f32.mrf.mxu0
      %v4175 = vadd.f32 %v4015, %v4174
      %v4176 = vpop.f32.mrf.mxu0
      %4177 = vmatprep.mubr.bf16.mxu0 0
      %4178 = vmatmul.mubr.bf16.gmra.mxu0 %v3986
      %v4179 = vpop.f32.mrf.mxu0
      %v4180 = vadd.f32 %v4015, %v4179
      %v4181 = vpop.f32.mrf.mxu0
      %v4182 = vpop.f32.mrf.mxu0
      %v4183 = vadd.f32 %v4015, %v4182
      %v4184 = vpop.f32.mrf.mxu0
      %4185 = vmatprep.mubr.bf16.mxu0 0
      %4186 = vmatmul.mubr.bf16.gmra.mxu0 %v3987
      %v4187 = vpop.f32.mrf.mxu0
      %v4188 = vadd.f32 %v4015, %v4187
      %v4189 = vpop.f32.mrf.mxu0
      %v4190 = vpop.f32.mrf.mxu0
      %v4191 = vadd.f32 %v4015, %v4190
      %v4192 = vpop.f32.mrf.mxu0
      %4193 = vmatprep.mubr.bf16.mxu0 0
      %4194 = vmatmul.mubr.bf16.gmra.mxu0 %v3988
      %v4195 = vpop.f32.mrf.mxu0
      %v4196 = vadd.f32 %v4015, %v4195
      %v4197 = vpop.f32.mrf.mxu0
      %v4198 = vpop.f32.mrf.mxu0
      %v4199 = vadd.f32 %v4015, %v4198
      %v4200 = vpop.f32.mrf.mxu0
      %4201 = vmatprep.mubr.bf16.mxu0 0
      %4202 = vmatmul.mubr.bf16.gmra.mxu0 %v3989
      %v4203 = vpop.f32.mrf.mxu0
      %v4204 = vadd.f32 %v4015, %v4203
      %v4205 = vpop.f32.mrf.mxu0
      %v4206 = vpop.f32.mrf.mxu0
      %v4207 = vadd.f32 %v4015, %v4206
      %v4208 = vpop.f32.mrf.mxu0
      %4209 = vmatprep.mubr.bf16.mxu0 0
      %4210 = vmatmul.mubr.bf16.gmra.mxu0 %v3990
      %v4211 = vpop.f32.mrf.mxu0
      %v4212 = vadd.f32 %v4015, %v4211
      %v4213 = vpop.f32.mrf.mxu0
      %v4214 = vpop.f32.mrf.mxu0
      %v4215 = vadd.f32 %v4015, %v4214
      %v4216 = vpop.f32.mrf.mxu0
      %4217 = vmatprep.mubr.bf16.mxu0 0
      %4218 = vmatmul.mubr.bf16.gmra.mxu0 %v3991
      %v4219 = vpop.f32.mrf.mxu0
      %v4220 = vadd.f32 %v4015, %v4219
      %v4221 = vpop.f32.mrf.mxu0
      %v4222 = vpop.f32.mrf.mxu0
      %v4223 = vadd.f32 %v4015, %v4222
      %v4224 = vpop.f32.mrf.mxu0
      %4225 = vmatprep.mubr.bf16.mxu0 0
      %4226 = vmatmul.mubr.bf16.gmra.mxu0 %v3992
      %v4227 = vpop.f32.mrf.mxu0
      %v4228 = vadd.f32 %v4015, %v4227
      %v4229 = vpop.f32.mrf.mxu0
      %v4230 = vpop.f32.mrf.mxu0
      %v4231 = vadd.f32 %v4015, %v4230
      %v4232 = vpop.f32.mrf.mxu0
      %4233 = vmatprep.mubr.bf16.mxu0 0
      %4234 = vmatmul.mubr.bf16.gmra.mxu0 %v3993
      %v4235 = vpop.f32.mrf.mxu0
      %v4236 = vadd.f32 %v4015, %v4235
      %v4237 = vpop.f32.mrf.mxu0
      %v4238 = vpop.f32.mrf.mxu0
      %v4239 = vadd.f32 %v4015, %v4238
      %v4240 = vpop.f32.mrf.mxu0
      %4241 = vdwg.mxu0
      %4242 = vst [vmem:[%s224] sm:$0xff] %v4100
      %4243 = vst [vmem:[%s224 + $0x8] sm:$0xff] %v4103
      %4244 = vst [vmem:[%s224 + $0x10] sm:$0xff] %v4108
      %4245 = vst [vmem:[%s224 + $0x18] sm:$0xff] %v4111
      %4246 = vst [vmem:[%s224 + $0x20] sm:$0xff] %v4116
      %4247 = vst [vmem:[%s224 + $0x28] sm:$0xff] %v4119
      %4248 = vst [vmem:[%s224 + $0x30] sm:$0xff] %v4124
      %4249 = vst [vmem:[%s224 + $0x38] sm:$0xff] %v4127
      %4250 = vst [vmem:[%s224 + $0x40] sm:$0xff] %v4132
      %4251 = vst [vmem:[%s224 + $0x48] sm:$0xff] %v4135
      %4252 = vst [vmem:[%s224 + $0x50] sm:$0xff] %v4140
      %4253 = vst [vmem:[%s224 + $0x58] sm:$0xff] %v4143
      %4254 = vst [vmem:[%s224 + $0x60] sm:$0xff] %v4148
      %4255 = vst [vmem:[%s224 + $0x68] sm:$0xff] %v4151
      %4256 = vst [vmem:[%s224 + $0x70] sm:$0xff] %v4156
      %4257 = vst [vmem:[%s224 + $0x78] sm:$0xff] %v4159
      %4258 = vst [vmem:[%s224 + $0x80] sm:$0xff] %v4164
      %4259 = vst [vmem:[%s224 + $0x88] sm:$0xff] %v4167
      %4260 = vst [vmem:[%s224 + $0x90] sm:$0xff] %v4172
      %4261 = vst [vmem:[%s224 + $0x98] sm:$0xff] %v4175
      %4262 = vst [vmem:[%s224 + $0xa0] sm:$0xff] %v4180
      %4263 = vst [vmem:[%s224 + $0xa8] sm:$0xff] %v4183
      %4264 = vst [vmem:[%s224 + $0xb0] sm:$0xff] %v4188
      %4265 = vst [vmem:[%s224 + $0xb8] sm:$0xff] %v4191
      %4266 = vst [vmem:[%s224 + $0xc0] sm:$0xff] %v4196
      %4267 = vst [vmem:[%s224 + $0xc8] sm:$0xff] %v4199
      %4268 = vst [vmem:[%s224 + $0xd0] sm:$0xff] %v4204
      %4269 = vst [vmem:[%s224 + $0xd8] sm:$0xff] %v4207
      %4270 = vst [vmem:[%s224 + $0xe0] sm:$0xff] %v4212
      %4271 = vst [vmem:[%s224 + $0xe8] sm:$0xff] %v4215
      %4272 = vst [vmem:[%s224 + $0xf0] sm:$0xff] %v4220
      %4273 = vst [vmem:[%s224 + $0xf8] sm:$0xff] %v4223
      %4274 = vst [vmem:[%s224 + $0x100] sm:$0xff] %v4228
      %4275 = vst [vmem:[%s224 + $0x108] sm:$0xff] %v4231
      %4276 = vst [vmem:[%s224 + $0x110] sm:$0xff] %v4236
      %4277 = vst [vmem:[%s224 + $0x118] sm:$0xff] %v4239
      %p4278 = scmp.lt.s32.totalorder %s16, 1
      %s4279 = scalar_select %p4278, %s16, 1
      %s4280 = smul.addr %s4279, 36
      %s4281 = smul.addr %s4280, 8
      %s4282 = scalar_lea.vmem %s5, %s4281
      // Predicated region
      $region41: #{faster_rcnn_forward.4} parent=39 // pred_check
        %p4283 = pneg %p144
      $region42: #{faster_rcnn_forward.4} parent=39 // pred_check_branch
        %4285 = sbr.rel (%p4283) target = $region44
      $region43: #{faster_rcnn_forward.4} parent=39 // pred_region
        _
      $region44: #{faster_rcnn_forward.4} parent=39 // pred_fallthru
        _
    $region40: #{faster_rcnn_forward.4} parent=5 // pred_fallthru
      _
    %p4286 = scmp.le.s32.totalorder 2, %s11
    // Predicated region
    $region45: #{faster_rcnn_forward.4} parent=5 // pred_check
      %p4287 = pneg %p4286
    $region46: #{faster_rcnn_forward.4} parent=5 // pred_check_branch
      %4289 = sbr.rel (%p4287) target = $region48
    $region47: #{faster_rcnn_forward.4} parent=5 // pred_region
      %s4290 = ssub.s32 %s11, 2
      // Predicated region
      $region49: #{faster_rcnn_forward.4} parent=47 // pred_check
        %p4291 = pneg %p150
      $region50: #{faster_rcnn_forward.4} parent=47 // pred_check_branch
        %4293 = sbr.rel (%p4291) target = $region52
      $region51: #{faster_rcnn_forward.4} parent=47 // pred_region
        %p4294 = scmp.lt.s32.totalorder %s17, 1
        %s4295 = scalar_select %p4294, %s17, 1
        %s4296 = smul.addr %s4295, 36
        %s4297 = smul.addr %s4296, 8
        %s4298 = scalar_lea.vmem %s5, %s4297
      $region52: #{faster_rcnn_forward.4} parent=47 // pred_fallthru
        _
    $region48: #{faster_rcnn_forward.4} parent=5 // pred_fallthru
      _
  $region6: #{faster_rcnn_forward.4} parent=0 // loop_footer
    %s15 = sadd.s32 1, %s11
  $region7: #{faster_rcnn_forward.4} parent=0 // loop_footer_branch
    %10 = sbr.rel target = $region3
  $region8: #{faster_rcnn_forward.4} parent=0 // loop_exit
    _

</llo_original>
